<compile_context>
chip_gen: v6e
topology: v6e:2x2x1
jax: 0.10.0
libtpu: 0.0.40
codegen_flags: <defaults>
</compile_context>

<pallas_src>
import functools
import math

import jax
import jax.numpy as jnp
from jax.experimental import pallas as pl
from jax.experimental.pallas import tpu as pltpu


# ----------------------------- VMEM budgeting --------------------------------

def _vmem_limit_bytes(frac=0.75, cap=100 * 1024 * 1024):
    """Per-generation scoped-VMEM budget (~100 MiB on v5e/v6e, ~48 MiB on v7x)."""
    try:
        info = pltpu.get_tpu_info()
        vmem = int(getattr(info, "vmem_capacity_bytes", 128 * 1024 * 1024))
    except Exception:
        vmem = 128 * 1024 * 1024
    return int(min(vmem * frac, cap))


# ----------------------------- in-kernel helpers -----------------------------

def _layer_norm(x, w, b, eps=1e-5):
    # f32 statistics regardless of matmul precision.
    x = x.astype(jnp.float32)
    mean = jnp.mean(x, axis=-1, keepdims=True)
    var = jnp.mean(jnp.square(x - mean), axis=-1, keepdims=True)
    return (x - mean) * jax.lax.rsqrt(var + eps) * w + b


def _softmax_last(x):
    # Attention-internal softmax: approx reciprocal is fine here (EUP slot).
    m = jnp.max(x, axis=-1, keepdims=True)
    e = jnp.exp(x - m)
    return e * pl.reciprocal(jnp.sum(e, axis=-1, keepdims=True), approx=True)


def _attend(q, k, v, mask, n_heads):
    """Head-batched attention for one batch element.

    q: (Tq, D) f32 (1/sqrt(dk) already folded into Wq), k/v: (Tk, D) f32,
    mask: bool, True == masked, broadcastable to (Tq, Tk). Returns (Tq, D) f32.
    """
    tq, d = q.shape
    tk = k.shape[0]
    dk = d // n_heads
    # TODO(synk): head-major weight layout would remove these relayouts.
    qh = jnp.transpose(q.reshape(tq, n_heads, dk), (1, 0, 2)).astype(jnp.bfloat16)
    kh = jnp.transpose(k.reshape(tk, n_heads, dk), (1, 0, 2)).astype(jnp.bfloat16)
    vh = jnp.transpose(v.reshape(tk, n_heads, dk), (1, 0, 2)).astype(jnp.bfloat16)
    scores = jnp.einsum('hqd,hkd->hqk', qh, kh,
                        preferred_element_type=jnp.float32)          # (H,Tq,Tk)
    scores = jnp.where(mask[None], -1e9, scores)
    probs = _softmax_last(scores)                                     # f32
    ctx = jnp.einsum('hqk,hkd->hqd', probs.astype(jnp.bfloat16), vh,
                     preferred_element_type=jnp.float32)              # (H,Tq,dk)
    return jnp.transpose(ctx, (1, 0, 2)).reshape(tq, d)


# ------------------------ fused decoder stack kernel -------------------------

def decoder_stack_kernel(x_ref, enc_ref, tpad_ref, epad_ref,
                         lnw_ref, lnb_ref,
                         saqkv_w_ref, saqkv_b_ref, saout_w_ref, saout_b_ref,
                         caq_w_ref, caq_b_ref, cakv_w_ref, cakv_b_ref,
                         caout_w_ref, caout_b_ref,
                         w1_ref, b1_ref, w2_ref, b2_ref,
                         out_ref, *, n_heads):
    l = pl.program_id(1)

    # Output block index is constant along the layer axis -> out_ref stays
    # resident in VMEM across layers and doubles as the activation buffer.
    @pl.when(l == 0)
    def _():
        out_ref[...] = x_ref[...]

    x = out_ref[...]                              # (Bt, T, D) f32
    bt, t, d = x.shape
    enc = enc_ref[...]                            # (Bt, S, D) bf16
    s = enc.shape[1]

    lnw = lnw_ref[0]                              # (3, D)
    lnb = lnb_ref[0]

    # Masks generated in-kernel (causal via iota + tiny key-pad flag vectors).
    row = jax.lax.broadcasted_iota(jnp.int32, (t, t), 0)
    col = jax.lax.broadcasted_iota(jnp.int32, (t, t), 1)
    causal = col > row                            # (T, T) bool

    # ---------------- self-attention sub-layer ----------------
    h = _layer_norm(x, lnw[0:1], lnb[0:1])
    qkv = (jnp.dot(h.reshape(bt * t, d).astype(jnp.bfloat16), saqkv_w_ref[0],
                   preferred_element_type=jnp.float32)
           + saqkv_b_ref[0]).reshape(bt, t, 3 * d)
    ctx = []
    for bi in range(bt):                          # static batch-tile loop
        mask = causal | (tpad_ref[bi] > 0.5)      # (T,T) | (1,T)
        ctx.append(_attend(qkv[bi, :, 0:d], qkv[bi, :, d:2 * d],
                           qkv[bi, :, 2 * d:3 * d], mask, n_heads))
    ctx = jnp.concatenate(ctx, axis=0)            # (Bt*T, D)
    attn = jnp.dot(ctx.astype(jnp.bfloat16), saout_w_ref[0],
                   preferred_element_type=jnp.float32) + saout_b_ref[0]
    x = x + attn.reshape(bt, t, d)

    # ---------------- encoder-decoder attention sub-layer ----------------
    h = _layer_norm(x, lnw[1:2], lnb[1:2])
    q_all = (jnp.dot(h.reshape(bt * t, d).astype(jnp.bfloat16), caq_w_ref[0],
                     preferred_element_type=jnp.float32)
             + caq_b_ref[0]).reshape(bt, t, d)
    kv_all = (jnp.dot(enc.reshape(bt * s, d), cakv_w_ref[0],
                      preferred_element_type=jnp.float32)
              + cakv_b_ref[0]).reshape(bt, s, 2 * d)
    ctx = []
    for bi in range(bt):
        mask = epad_ref[bi] > 0.5                 # (1, S), broadcasts over T
        ctx.append(_attend(q_all[bi], kv_all[bi, :, 0:d],
                           kv_all[bi, :, d:2 * d], mask, n_heads))
    ctx = jnp.concatenate(ctx, axis=0)
    attn = jnp.dot(ctx.astype(jnp.bfloat16), caout_w_ref[0],
                   preferred_element_type=jnp.float32) + caout_b_ref[0]
    x = x + attn.reshape(bt, t, d)

    # ---------------- feed-forward sub-layer ----------------
    h = _layer_norm(x, lnw[2:3], lnb[2:3])
    h = jnp.dot(h.reshape(bt * t, d).astype(jnp.bfloat16), w1_ref[0],
                preferred_element_type=jnp.float32) + b1_ref[0]
    h = jnp.maximum(h, 0.0)
    h = jnp.dot(h.astype(jnp.bfloat16), w2_ref[0],
                preferred_element_type=jnp.float32) + b2_ref[0]
    x = x + h.reshape(bt, t, d)

    out_ref[...] = x


def decoder_stack(x, enc_bf16, tgt_kpad, enc_kpad, kp, n_heads, *, b_tile=None):
    B, T, D = x.shape
    S = enc_bf16.shape[1]
    L = kp['sa_qkv_w'].shape[0]
    Hf = kp['w1'].shape[2]
    b_tile = b_tile or B
    assert B % b_tile == 0
    # TODO(synk): on v7x keep >=2 batch tiles on the 'parallel' axis for 2 TCs.
    grid = (B // b_tile, L)

    data_map = lambda bt, l: (bt, 0, 0)           # per-batch-tile data
    w_map = lambda bt, l: (l, 0, 0)               # per-layer weights

    kernel = functools.partial(decoder_stack_kernel, n_heads=n_heads)
    return pl.pallas_call(
        kernel,
        out_shape=jax.ShapeDtypeStruct((B, T, D), jnp.float32),
        grid=grid,
        in_specs=[
            pl.BlockSpec((b_tile, T, D), data_map),       # x (read at l==0)
            pl.BlockSpec((b_tile, S, D), data_map),       # enc (bf16)
            pl.BlockSpec((b_tile, 1, T), data_map),       # target key-pad flags
            pl.BlockSpec((b_tile, 1, S), data_map),       # encoder key-pad flags
            pl.BlockSpec((1, 3, D), w_map),               # ln_w
            pl.BlockSpec((1, 3, D), w_map),               # ln_b
            pl.BlockSpec((1, D, 3 * D), w_map),           # fused Wq|Wk|Wv (bf16)
            pl.BlockSpec((1, 1, 3 * D), w_map),           # fused qkv bias
            pl.BlockSpec((1, D, D), w_map),               # self-attn Wo (bf16)
            pl.BlockSpec((1, 1, D), w_map),               # self-attn bo
            pl.BlockSpec((1, D, D), w_map),               # cross Wq (bf16, pre-scaled)
            pl.BlockSpec((1, 1, D), w_map),               # cross bq (pre-scaled)
            pl.BlockSpec((1, D, 2 * D), w_map),           # cross Wk|Wv (bf16)
            pl.BlockSpec((1, 1, 2 * D), w_map),           # cross kv bias
            pl.BlockSpec((1, D, D), w_map),               # cross Wo (bf16)
            pl.BlockSpec((1, 1, D), w_map),               # cross bo
            pl.BlockSpec((1, D, Hf), w_map),              # ffn w1 (bf16)
            pl.BlockSpec((1, 1, Hf), w_map),              # ffn b1
            pl.BlockSpec((1, Hf, D), w_map),              # ffn w2 (bf16)
            pl.BlockSpec((1, 1, D), w_map),               # ffn b2
        ],
        out_specs=pl.BlockSpec((b_tile, T, D), data_map),
        compiler_params=pltpu.CompilerParams(
            dimension_semantics=("parallel", "arbitrary"),
            vmem_limit_bytes=_vmem_limit_bytes()),
    )(x, enc_bf16, tgt_kpad, enc_kpad,
      kp['ln_w'], kp['ln_b'],
      kp['sa_qkv_w'], kp['sa_qkv_b'], kp['sa_out_w'], kp['sa_out_b'],
      kp['ca_q_w'], kp['ca_q_b'], kp['ca_kv_w'], kp['ca_kv_b'],
      kp['ca_out_w'], kp['ca_out_b'],
      kp['w1'], kp['b1'], kp['w2'], kp['b2'])


# --------------------------- final LN + classifier ---------------------------

def head_kernel(x_ref, lnw_ref, lnb_ref, w_ref, b_ref, out_ref, hln_ref):
    ci = pl.program_id(1)

    # Cache LN(x) once per T tile (vocab tile is the inner axis).
    @pl.when(ci == 0)
    def _():
        hln_ref[...] = _layer_norm(x_ref[...], lnw_ref[...], lnb_ref[...])

    h = hln_ref[...]                                  # (B, tT, D) f32
    b, tt, d = h.shape
    logits = (jnp.dot(h.reshape(b * tt, d).astype(jnp.bfloat16), w_ref[...],
                      preferred_element_type=jnp.float32)
              + b_ref[...]).reshape(b, tt, -1)
    # PyTorch F.softmax with implicit dim on a 3-D tensor normalizes over dim 0
    # (batch axis); per-(t, c) independent, so vocab/T tiling is legal.
    # Exact divide for the user-visible probabilities.
    m = jnp.max(logits, axis=0, keepdims=True)
    e = jnp.exp(logits - m)
    out_ref[...] = e / jnp.sum(e, axis=0, keepdims=True)


def final_head(x, ln_w, ln_b, out_w, out_b, *, c_tile=512, t_tile=None):
    B, T, D = x.shape
    C = out_w.shape[1]
    c_tile = max(128, min(c_tile, pl.cdiv(C, 128) * 128))   # lane-dense tile
    Cp = pl.cdiv(C, c_tile) * c_tile
    t_tile = t_tile or T
    assert T % t_tile == 0
    # Zero-padded, bf16 classifier weight: pad columns never affect real ones.
    w_pad = jnp.zeros((D, Cp), jnp.bfloat16).at[:, :C].set(out_w.astype(jnp.bfloat16))
    b_pad = jnp.zeros((1, Cp), jnp.float32).at[:, :C].set(out_b.astype(jnp.float32))
    probs = pl.pallas_call(
        head_kernel,
        out_shape=jax.ShapeDtypeStruct((B, T, Cp), jnp.float32),
        grid=(T // t_tile, Cp // c_tile),
        in_specs=[
            pl.BlockSpec((B, t_tile, D), lambda ti, ci: (0, ti, 0)),
            pl.BlockSpec((1, D), lambda ti, ci: (0, 0)),
            pl.BlockSpec((1, D), lambda ti, ci: (0, 0)),
            pl.BlockSpec((D, c_tile), lambda ti, ci: (0, ci)),
            pl.BlockSpec((1, c_tile), lambda ti, ci: (0, ci)),
        ],
        out_specs=pl.BlockSpec((B, t_tile, c_tile), lambda ti, ci: (0, ti, ci)),
        scratch_shapes=[pltpu.VMEM((B, t_tile, D), jnp.float32)],
        compiler_params=pltpu.CompilerParams(
            dimension_semantics=("parallel", "arbitrary"),
            vmem_limit_bytes=_vmem_limit_bytes()),
    )(x, ln_w, ln_b, w_pad, b_pad)
    return probs[:, :, :C]


# --------------------------------- JAX glue -----------------------------------

def positional_encoding(max_seq_len, d):
    pos = jnp.arange(max_seq_len, dtype=jnp.float32)[:, None]
    i = jnp.arange(d)[None, :]
    angle = pos / jnp.power(10000.0, (2 * (i // 2)).astype(jnp.float32) / d)
    pe = jnp.where(i % 2 == 0, jnp.sin(angle), jnp.cos(angle))
    return pe.astype(jnp.float32)


def init_params(key, *, n_class, embed_dim, max_seq_len, n_layers,
                expansion_factor, n_heads):
    D = embed_dim
    Hf = expansion_factor * D
    L = n_layers
    scale = 0.02
    keys = jax.random.split(key, 7)
    params = {
        'embed': jax.random.normal(keys[0], (n_class, D), jnp.float32) * scale,
        'pe': positional_encoding(max_seq_len, D),
        'ln_w': jnp.ones((1, D), jnp.float32),
        'ln_b': jnp.zeros((1, D), jnp.float32),
        'out_w': jax.random.normal(keys[1], (D, n_class), jnp.float32) * scale,
        'out_b': jnp.zeros((1, n_class), jnp.float32),
    }
    # Per-layer weights stacked along a leading layer axis (grid indexes layer).
    params['layers'] = {
        'ln_w': jnp.ones((L, 3, D), jnp.float32),
        'ln_b': jnp.zeros((L, 3, D), jnp.float32),
        'sa_w': jax.random.normal(keys[2], (L, 4, D, D), jnp.float32) * scale,
        'sa_b': jnp.zeros((L, 4, D), jnp.float32),
        'ca_w': jax.random.normal(keys[3], (L, 4, D, D), jnp.float32) * scale,
        'ca_b': jnp.zeros((L, 4, D), jnp.float32),
        'w1': jax.random.normal(keys[4], (L, D, Hf), jnp.float32) * scale,
        'b1': jnp.zeros((L, 1, Hf), jnp.float32),
        'w2': jax.random.normal(keys[5], (L, Hf, D), jnp.float32) * scale,
        'b2': jnp.zeros((L, 1, D), jnp.float32),
    }
    return params


def prepare_layer_params(lp, n_heads):
    """Kernel-layout weights: fused QKV / KV, 1/sqrt(dk) folded into Wq & bq,
    bf16 weights for MXU matmuls (biases / LN stay f32)."""
    D = lp['sa_w'].shape[2]
    dk = D // n_heads
    sc = 1.0 / math.sqrt(dk)
    f32, bf16 = jnp.float32, jnp.bfloat16
    sa_w, sa_b = lp['sa_w'], lp['sa_b']
    ca_w, ca_b = lp['ca_w'], lp['ca_b']
    return {
        'ln_w': lp['ln_w'].astype(f32),
        'ln_b': lp['ln_b'].astype(f32),
        'sa_qkv_w': jnp.concatenate([sa_w[:, 0] * sc, sa_w[:, 1], sa_w[:, 2]],
                                    axis=-1).astype(bf16),
        'sa_qkv_b': jnp.concatenate([sa_b[:, 0] * sc, sa_b[:, 1], sa_b[:, 2]],
                                    axis=-1)[:, None, :].astype(f32),
        'sa_out_w': sa_w[:, 3].astype(bf16),
        'sa_out_b': sa_b[:, 3][:, None, :].astype(f32),
        'ca_q_w': (ca_w[:, 0] * sc).astype(bf16),
        'ca_q_b': (ca_b[:, 0] * sc)[:, None, :].astype(f32),
        'ca_kv_w': jnp.concatenate([ca_w[:, 1], ca_w[:, 2]], axis=-1).astype(bf16),
        'ca_kv_b': jnp.concatenate([ca_b[:, 1], ca_b[:, 2]],
                                   axis=-1)[:, None, :].astype(f32),
        'ca_out_w': ca_w[:, 3].astype(bf16),
        'ca_out_b': ca_b[:, 3][:, None, :].astype(f32),
        'w1': lp['w1'].astype(bf16), 'b1': lp['b1'].astype(f32),
        'w2': lp['w2'].astype(bf16), 'b2': lp['b2'].astype(f32),
    }


def transformer_decoder_forward(params, target, enc_output, enc_output_lens,
                                *, n_heads, pad_id=0, b_tile=None):
    if target.ndim == 1:
        target = target[:, None]
    B, T = target.shape
    S = enc_output.shape[1]

    # Tiny key-pad flag vectors (O(B*(T+S)) bytes) instead of full
    # (B,T,T)/(B,T,S) masks; causal part generated in-kernel via iota.
    tgt_kpad = (target == pad_id).astype(jnp.float32)[:, None, :]          # (B,1,T)
    enc_kpad = (jnp.arange(S)[None, :] >= enc_output_lens[:, None]
                ).astype(jnp.float32)[:, None, :]                          # (B,1,S)

    # Embedding gather + sinusoidal positional encoding (plain-JAX glue; the
    # gather has no tidy BlockSpec form). Dropout == identity (inference).
    x = jnp.take(params['embed'], target, axis=0) + params['pe'][None, :T, :]
    x = x.astype(jnp.float32)

    kp = prepare_layer_params(params['layers'], n_heads)
    x = decoder_stack(x, enc_output.astype(jnp.bfloat16),
                      tgt_kpad, enc_kpad, kp, n_heads, b_tile=b_tile)

    return final_head(x, params['ln_w'], params['ln_b'],
                      params['out_w'], params['out_b'])


# ----------------------------------- main -------------------------------------

if __name__ == "__main__":
    key = jax.random.PRNGKey(0)
    B, T, S = 2, 8, 10
    n_class, D = 40, 32
    n_heads, n_layers, expansion_factor = 4, 2, 4
    max_seq_len, pad_id = 16, 0

    kp_, kt_, ke_ = jax.random.split(key, 3)
    params = init_params(kp_, n_class=n_class, embed_dim=D,
                         max_seq_len=max_seq_len, n_layers=n_layers,
                         expansion_factor=expansion_factor, n_heads=n_heads)

    target = jax.random.randint(kt_, (B, T), 1, n_class, dtype=jnp.int32)
    target = target.at[0, T - 2:].set(pad_id)            # introduce some padding
    enc_output = jax.random.normal(ke_, (B, S, D), jnp.float32)
    enc_output_lens = jnp.array([S, 7], jnp.int32)

    probs = transformer_decoder_forward(params, target, enc_output,
                                        enc_output_lens,
                                        n_heads=n_heads, pad_id=pad_id)
    probs = jax.block_until_ready(probs)
    assert probs.shape == (B, T, n_class)
    assert bool(jnp.all(jnp.isfinite(probs)))
    print("KERNEL_OK")
</pallas_src>

<mosaic_0001>
module attributes {stable_mosaic.version = 11 : i64} {
  func.func @decoder_stack_kernel(%arg0: i32, %arg1: i32, %arg2: memref<2x8x32xf32, #tpu.memory_space<vmem>>, %arg3: memref<2x10x32xbf16, #tpu.memory_space<vmem>>, %arg4: memref<2x1x8xf32, #tpu.memory_space<vmem>>, %arg5: memref<2x1x10xf32, #tpu.memory_space<vmem>>, %arg6: memref<1x3x32xf32, #tpu.memory_space<vmem>>, %arg7: memref<1x3x32xf32, #tpu.memory_space<vmem>>, %arg8: memref<1x32x96xbf16, #tpu.memory_space<vmem>>, %arg9: memref<1x1x96xf32, #tpu.memory_space<vmem>>, %arg10: memref<1x32x32xbf16, #tpu.memory_space<vmem>>, %arg11: memref<1x1x32xf32, #tpu.memory_space<vmem>>, %arg12: memref<1x32x32xbf16, #tpu.memory_space<vmem>>, %arg13: memref<1x1x32xf32, #tpu.memory_space<vmem>>, %arg14: memref<1x32x64xbf16, #tpu.memory_space<vmem>>, %arg15: memref<1x1x64xf32, #tpu.memory_space<vmem>>, %arg16: memref<1x32x32xbf16, #tpu.memory_space<vmem>>, %arg17: memref<1x1x32xf32, #tpu.memory_space<vmem>>, %arg18: memref<1x32x128xbf16, #tpu.memory_space<vmem>>, %arg19: memref<1x1x128xf32, #tpu.memory_space<vmem>>, %arg20: memref<1x128x32xbf16, #tpu.memory_space<vmem>>, %arg21: memref<1x1x32xf32, #tpu.memory_space<vmem>>, %arg22: memref<2x8x32xf32, #tpu.memory_space<vmem>>) attributes {dimension_semantics = [#tpu.dimension_semantics<parallel>, #tpu.dimension_semantics<arbitrary>], iteration_bounds = array<i64: 1, 2>, scalar_prefetch = 0 : i64, scratch_operands = 0 : i64, tpu.core_type = #tpu.core_type<tc>, window_params = [{transform_indices = @transform_0, window_bounds = array<i64: 2, 8, 32>}, {transform_indices = @transform_1, window_bounds = array<i64: 2, 10, 32>}, {transform_indices = @transform_2, window_bounds = array<i64: 2, 1, 8>}, {transform_indices = @transform_3, window_bounds = array<i64: 2, 1, 10>}, {transform_indices = @transform_4, window_bounds = array<i64: 1, 3, 32>}, {transform_indices = @transform_5, window_bounds = array<i64: 1, 3, 32>}, {transform_indices = @transform_6, window_bounds = array<i64: 1, 32, 96>}, {transform_indices = @transform_7, window_bounds = array<i64: 1, 1, 96>}, {transform_indices = @transform_8, window_bounds = array<i64: 1, 32, 32>}, {transform_indices = @transform_9, window_bounds = array<i64: 1, 1, 32>}, {transform_indices = @transform_10, window_bounds = array<i64: 1, 32, 32>}, {transform_indices = @transform_11, window_bounds = array<i64: 1, 1, 32>}, {transform_indices = @transform_12, window_bounds = array<i64: 1, 32, 64>}, {transform_indices = @transform_13, window_bounds = array<i64: 1, 1, 64>}, {transform_indices = @transform_14, window_bounds = array<i64: 1, 32, 32>}, {transform_indices = @transform_15, window_bounds = array<i64: 1, 1, 32>}, {transform_indices = @transform_16, window_bounds = array<i64: 1, 32, 128>}, {transform_indices = @transform_17, window_bounds = array<i64: 1, 1, 128>}, {transform_indices = @transform_18, window_bounds = array<i64: 1, 128, 32>}, {transform_indices = @transform_19, window_bounds = array<i64: 1, 1, 32>}, {transform_indices = @transform_20, window_bounds = array<i64: 2, 8, 32>}]} {
    %c0_i32 = arith.constant 0 : i32
    %0 = arith.cmpi eq, %arg1, %c0_i32 : i32
    %1 = arith.extui %0 : i1 to i32
    %c0_i32_0 = arith.constant 0 : i32
    %2 = arith.cmpi ne, %1, %c0_i32_0 : i32
    scf.if %2 {
      %c0_114 = arith.constant 0 : index
      %c0_115 = arith.constant 0 : index
      %c0_116 = arith.constant 0 : index
      %323 = vector.load %arg2[%c0_114, %c0_115, %c0_116] : memref<2x8x32xf32, #tpu.memory_space<vmem>>, vector<2x8x32xf32>
      %c0_117 = arith.constant 0 : index
      %c0_118 = arith.constant 0 : index
      %c0_119 = arith.constant 0 : index
      %324 = vector.load %arg22[%c0_117, %c0_118, %c0_119] : memref<2x8x32xf32, #tpu.memory_space<vmem>>, vector<2x8x32xf32>
      tpu.vector_store %arg22[%c0_117, %c0_118, %c0_119], %323 {strides = array<i32>} : memref<2x8x32xf32, #tpu.memory_space<vmem>>, vector<2x8x32xf32>,
    } else {
    }
    %c0 = arith.constant 0 : index
    %c0_1 = arith.constant 0 : index
    %c0_2 = arith.constant 0 : index
    %3 = vector.load %arg22[%c0, %c0_1, %c0_2] : memref<2x8x32xf32, #tpu.memory_space<vmem>>, vector<2x8x32xf32>
    %c0_3 = arith.constant 0 : index
    %c0_4 = arith.constant 0 : index
    %c0_5 = arith.constant 0 : index
    %4 = vector.load %arg3[%c0_3, %c0_4, %c0_5] : memref<2x10x32xbf16, #tpu.memory_space<vmem>>, vector<2x10x32xbf16>
    %c0_6 = arith.constant 0 : index
    %c0_7 = arith.constant 0 : index
    %c0_8 = arith.constant 0 : index
    %5 = vector.load %arg6[%c0_6, %c0_7, %c0_8] : memref<1x3x32xf32, #tpu.memory_space<vmem>>, vector<1x3x32xf32>
    %6 = vector.shape_cast %5 : vector<1x3x32xf32> to vector<3x32xf32>
    %c0_9 = arith.constant 0 : index
    %c0_10 = arith.constant 0 : index
    %c0_11 = arith.constant 0 : index
    %7 = vector.load %arg7[%c0_9, %c0_10, %c0_11] : memref<1x3x32xf32, #tpu.memory_space<vmem>>, vector<1x3x32xf32>
    %8 = vector.shape_cast %7 : vector<1x3x32xf32> to vector<3x32xf32>
    %9 = tpu.iota {dimensions = array<i32: 0>} : vector<8x8xi32>
    %10 = tpu.iota {dimensions = array<i32: 1>} : vector<8x8xi32>
    %11 = arith.cmpi sgt, %10, %9 : vector<8x8xi32>
    %12 = vector.extract_strided_slice %6 {offsets = [0, 0], sizes = [1, 32], strides = [1, 1]} : vector<3x32xf32> to vector<1x32xf32>
    %13 = vector.extract_strided_slice %8 {offsets = [0, 0], sizes = [1, 32], strides = [1, 1]} : vector<3x32xf32> to vector<1x32xf32>
    %cst = arith.constant dense<0.000000e+00> : vector<2x8xf32>
    %14 = vector.multi_reduction <add>, %3, %cst [2] : vector<2x8x32xf32> to vector<2x8xf32>
    %15 = vector.shape_cast %14 : vector<2x8xf32> to vector<2x8x1xf32>
    %cst_12 = arith.constant 3.200000e+01 : f32
    %16 = vector.broadcast %cst_12 : f32 to vector<2x8x1xf32>
    %17 = arith.divf %15, %16 : vector<2x8x1xf32>
    %18 = vector.broadcast %17 : vector<2x8x1xf32> to vector<2x8x32xf32>
    %19 = arith.subf %3, %18 : vector<2x8x32xf32>
    %20 = arith.mulf %19, %19 : vector<2x8x32xf32>
    %cst_13 = arith.constant dense<0.000000e+00> : vector<2x8xf32>
    %21 = vector.multi_reduction <add>, %20, %cst_13 [2] : vector<2x8x32xf32> to vector<2x8xf32>
    %22 = vector.shape_cast %21 : vector<2x8xf32> to vector<2x8x1xf32>
    %cst_14 = arith.constant 3.200000e+01 : f32
    %23 = vector.broadcast %cst_14 : f32 to vector<2x8x1xf32>
    %24 = arith.divf %22, %23 : vector<2x8x1xf32>
    %25 = vector.broadcast %17 : vector<2x8x1xf32> to vector<2x8x32xf32>
    %26 = arith.subf %3, %25 : vector<2x8x32xf32>
    %cst_15 = arith.constant 9.99999974E-6 : f32
    %27 = vector.broadcast %cst_15 : f32 to vector<2x8x1xf32>
    %28 = arith.addf %24, %27 : vector<2x8x1xf32>
    %29 = math.rsqrt %28 : vector<2x8x1xf32>
    %30 = vector.broadcast %29 : vector<2x8x1xf32> to vector<2x8x32xf32>
    %31 = arith.mulf %26, %30 : vector<2x8x32xf32>
    %32 = vector.shape_cast %12 : vector<1x32xf32> to vector<1x1x32xf32>
    %33 = vector.broadcast %32 : vector<1x1x32xf32> to vector<2x8x32xf32>
    %34 = arith.mulf %31, %33 : vector<2x8x32xf32>
    %35 = vector.shape_cast %13 : vector<1x32xf32> to vector<1x1x32xf32>
    %36 = vector.broadcast %35 : vector<1x1x32xf32> to vector<2x8x32xf32>
    %37 = arith.addf %34, %36 : vector<2x8x32xf32>
    %38 = vector.shape_cast %37 : vector<2x8x32xf32> to vector<16x32xf32>
    %39 = arith.truncf %38 : vector<16x32xf32> to vector<16x32xbf16>
    %c0_16 = arith.constant 0 : index
    %c0_17 = arith.constant 0 : index
    %c0_18 = arith.constant 0 : index
    %40 = vector.load %arg8[%c0_16, %c0_17, %c0_18] : memref<1x32x96xbf16, #tpu.memory_space<vmem>>, vector<1x32x96xbf16>
    %41 = vector.shape_cast %40 : vector<1x32x96xbf16> to vector<32x96xbf16>
    %cst_19 = arith.constant dense<0.000000e+00> : vector<16x96xf32>
    %42 = tpu.matmul %39, %41, %cst_19 {dimension_numbers = #tpu.dot_dimension_numbers<[1], [0], [0], [1], [0, 0, 1, 1], [], []>} : vector<16x32xbf16>, vector<32x96xbf16>, vector<16x96xf32> -> vector<16x96xf32>
    %c0_20 = arith.constant 0 : index
    %c0_21 = arith.constant 0 : index
    %c0_22 = arith.constant 0 : index
    %43 = vector.load %arg9[%c0_20, %c0_21, %c0_22] : memref<1x1x96xf32, #tpu.memory_space<vmem>>, vector<1x1x96xf32>
    %44 = vector.shape_cast %43 : vector<1x1x96xf32> to vector<1x96xf32>
    %45 = vector.broadcast %44 : vector<1x96xf32> to vector<16x96xf32>
    %46 = arith.addf %42, %45 : vector<16x96xf32>
    %47 = vector.shape_cast %46 : vector<16x96xf32> to vector<2x8x96xf32>
    %c0_23 = arith.constant 0 : index
    %c0_24 = arith.constant 0 : index
    %c0_25 = arith.constant 0 : index
    %48 = vector.load %arg4[%c0_23, %c0_24, %c0_25] : memref<2x1x8xf32, #tpu.memory_space<vmem>>, vector<1x1x8xf32>
    %49 = vector.shape_cast %48 : vector<1x1x8xf32> to vector<1x8xf32>
    %cst_26 = arith.constant 5.000000e-01 : f32
    %50 = vector.broadcast %cst_26 : f32 to vector<1x8xf32>
    %51 = arith.cmpf ogt, %49, %50 : vector<1x8xf32>
    %52 = vector.broadcast %51 : vector<1x8xi1> to vector<8x8xi1>
    %53 = arith.ori %11, %52 : vector<8x8xi1>
    %54 = vector.extract_strided_slice %47 {offsets = [0, 0, 0], sizes = [1, 8, 32], strides = [1, 1, 1]} : vector<2x8x96xf32> to vector<1x8x32xf32>
    %55 = vector.shape_cast %54 : vector<1x8x32xf32> to vector<8x32xf32>
    %56 = vector.extract_strided_slice %47 {offsets = [0, 0, 32], sizes = [1, 8, 32], strides = [1, 1, 1]} : vector<2x8x96xf32> to vector<1x8x32xf32>
    %57 = vector.shape_cast %56 : vector<1x8x32xf32> to vector<8x32xf32>
    %58 = vector.extract_strided_slice %47 {offsets = [0, 0, 64], sizes = [1, 8, 32], strides = [1, 1, 1]} : vector<2x8x96xf32> to vector<1x8x32xf32>
    %59 = vector.shape_cast %58 : vector<1x8x32xf32> to vector<8x32xf32>
    %60 = vector.shape_cast %55 : vector<8x32xf32> to vector<8x4x8xf32>
    %61 = tpu.transpose %60, [1, 0, 2] : vector<8x4x8xf32> -> vector<4x8x8xf32>
    %62 = arith.truncf %61 : vector<4x8x8xf32> to vector<4x8x8xbf16>
    %63 = vector.shape_cast %57 : vector<8x32xf32> to vector<8x4x8xf32>
    %64 = tpu.transpose %63, [1, 0, 2] : vector<8x4x8xf32> -> vector<4x8x8xf32>
    %65 = arith.truncf %64 : vector<4x8x8xf32> to vector<4x8x8xbf16>
    %66 = vector.shape_cast %59 : vector<8x32xf32> to vector<8x4x8xf32>
    %67 = tpu.transpose %66, [1, 0, 2] : vector<8x4x8xf32> -> vector<4x8x8xf32>
    %68 = arith.truncf %67 : vector<4x8x8xf32> to vector<4x8x8xbf16>
    "tpu.trace_start"() <{level = 10 : i32, message = "hqd,hkd->hqk"}> : () -> ()
    %cst_27 = arith.constant dense<0.000000e+00> : vector<4x8x8xf32>
    %69 = tpu.matmul %62, %65, %cst_27 {dimension_numbers = #tpu.dot_dimension_numbers<[2], [2], [1], [1], [0, 0, 0, 1, 1, 1], [0], [0]>} : vector<4x8x8xbf16>, vector<4x8x8xbf16>, vector<4x8x8xf32> -> vector<4x8x8xf32>
    "tpu.trace_stop"() : () -> ()
    %70 = vector.shape_cast %53 : vector<8x8xi1> to vector<1x8x8xi1>
    %cst_28 = arith.constant -1.000000e+09 : f32
    %71 = vector.shape_cast %70 : vector<1x8x8xi1> to vector<1x8x8xi1>
    %72 = vector.broadcast %71 : vector<1x8x8xi1> to vector<4x8x8xi1>
    %73 = vector.broadcast %cst_28 : f32 to vector<4x8x8xf32>
    %74 = arith.select %72, %73, %69 : vector<4x8x8xi1>, vector<4x8x8xf32>
    %cst_29 = arith.constant dense<0xFF800000> : vector<4x8xf32>
    %75 = vector.multi_reduction <maximumf>, %74, %cst_29 [2] : vector<4x8x8xf32> to vector<4x8xf32>
    %76 = vector.shape_cast %75 : vector<4x8xf32> to vector<4x8x1xf32>
    %77 = vector.broadcast %76 : vector<4x8x1xf32> to vector<4x8x8xf32>
    %78 = arith.subf %74, %77 : vector<4x8x8xf32>
    %79 = math.exp %78 : vector<4x8x8xf32>
    %cst_30 = arith.constant dense<0.000000e+00> : vector<4x8xf32>
    %80 = vector.multi_reduction <add>, %79, %cst_30 [2] : vector<4x8x8xf32> to vector<4x8xf32>
    %81 = vector.shape_cast %80 : vector<4x8xf32> to vector<4x8x1xf32>
    %82 = tpu.reciprocal %81 {approx = true} : vector<4x8x1xf32> -> vector<4x8x1xf32>
    %83 = vector.broadcast %82 : vector<4x8x1xf32> to vector<4x8x8xf32>
    %84 = arith.mulf %79, %83 : vector<4x8x8xf32>
    %85 = arith.truncf %84 : vector<4x8x8xf32> to vector<4x8x8xbf16>
    "tpu.trace_start"() <{level = 10 : i32, message = "hqk,hkd->hqd"}> : () -> ()
    %cst_31 = arith.constant dense<0.000000e+00> : vector<4x8x8xf32>
    %86 = tpu.matmul %85, %68, %cst_31 {dimension_numbers = #tpu.dot_dimension_numbers<[2], [1], [1], [2], [0, 0, 0, 1, 1, 2], [0], [0]>} : vector<4x8x8xbf16>, vector<4x8x8xbf16>, vector<4x8x8xf32> -> vector<4x8x8xf32>
    "tpu.trace_stop"() : () -> ()
    %87 = tpu.transpose %86, [1, 0, 2] : vector<4x8x8xf32> -> vector<8x4x8xf32>
    %88 = vector.shape_cast %87 : vector<8x4x8xf32> to vector<8x32xf32>
    %c1 = arith.constant 1 : index
    %c0_32 = arith.constant 0 : index
    %c0_33 = arith.constant 0 : index
    %89 = vector.load %arg4[%c1, %c0_32, %c0_33] : memref<2x1x8xf32, #tpu.memory_space<vmem>>, vector<1x1x8xf32>
    %90 = vector.shape_cast %89 : vector<1x1x8xf32> to vector<1x8xf32>
    %cst_34 = arith.constant 5.000000e-01 : f32
    %91 = vector.broadcast %cst_34 : f32 to vector<1x8xf32>
    %92 = arith.cmpf ogt, %90, %91 : vector<1x8xf32>
    %93 = vector.broadcast %92 : vector<1x8xi1> to vector<8x8xi1>
    %94 = arith.ori %11, %93 : vector<8x8xi1>
    %95 = vector.extract_strided_slice %47 {offsets = [1, 0, 0], sizes = [1, 8, 32], strides = [1, 1, 1]} : vector<2x8x96xf32> to vector<1x8x32xf32>
    %96 = vector.shape_cast %95 : vector<1x8x32xf32> to vector<8x32xf32>
    %97 = vector.extract_strided_slice %47 {offsets = [1, 0, 32], sizes = [1, 8, 32], strides = [1, 1, 1]} : vector<2x8x96xf32> to vector<1x8x32xf32>
    %98 = vector.shape_cast %97 : vector<1x8x32xf32> to vector<8x32xf32>
    %99 = vector.extract_strided_slice %47 {offsets = [1, 0, 64], sizes = [1, 8, 32], strides = [1, 1, 1]} : vector<2x8x96xf32> to vector<1x8x32xf32>
    %100 = vector.shape_cast %99 : vector<1x8x32xf32> to vector<8x32xf32>
    %101 = vector.shape_cast %96 : vector<8x32xf32> to vector<8x4x8xf32>
    %102 = tpu.transpose %101, [1, 0, 2] : vector<8x4x8xf32> -> vector<4x8x8xf32>
    %103 = arith.truncf %102 : vector<4x8x8xf32> to vector<4x8x8xbf16>
    %104 = vector.shape_cast %98 : vector<8x32xf32> to vector<8x4x8xf32>
    %105 = tpu.transpose %104, [1, 0, 2] : vector<8x4x8xf32> -> vector<4x8x8xf32>
    %106 = arith.truncf %105 : vector<4x8x8xf32> to vector<4x8x8xbf16>
    %107 = vector.shape_cast %100 : vector<8x32xf32> to vector<8x4x8xf32>
    %108 = tpu.transpose %107, [1, 0, 2] : vector<8x4x8xf32> -> vector<4x8x8xf32>
    %109 = arith.truncf %108 : vector<4x8x8xf32> to vector<4x8x8xbf16>
    "tpu.trace_start"() <{level = 10 : i32, message = "hqd,hkd->hqk"}> : () -> ()
    %cst_35 = arith.constant dense<0.000000e+00> : vector<4x8x8xf32>
    %110 = tpu.matmul %103, %106, %cst_35 {dimension_numbers = #tpu.dot_dimension_numbers<[2], [2], [1], [1], [0, 0, 0, 1, 1, 1], [0], [0]>} : vector<4x8x8xbf16>, vector<4x8x8xbf16>, vector<4x8x8xf32> -> vector<4x8x8xf32>
    "tpu.trace_stop"() : () -> ()
    %111 = vector.shape_cast %94 : vector<8x8xi1> to vector<1x8x8xi1>
    %cst_36 = arith.constant -1.000000e+09 : f32
    %112 = vector.shape_cast %111 : vector<1x8x8xi1> to vector<1x8x8xi1>
    %113 = vector.broadcast %112 : vector<1x8x8xi1> to vector<4x8x8xi1>
    %114 = vector.broadcast %cst_36 : f32 to vector<4x8x8xf32>
    %115 = arith.select %113, %114, %110 : vector<4x8x8xi1>, vector<4x8x8xf32>
    %cst_37 = arith.constant dense<0xFF800000> : vector<4x8xf32>
    %116 = vector.multi_reduction <maximumf>, %115, %cst_37 [2] : vector<4x8x8xf32> to vector<4x8xf32>
    %117 = vector.shape_cast %116 : vector<4x8xf32> to vector<4x8x1xf32>
    %118 = vector.broadcast %117 : vector<4x8x1xf32> to vector<4x8x8xf32>
    %119 = arith.subf %115, %118 : vector<4x8x8xf32>
    %120 = math.exp %119 : vector<4x8x8xf32>
    %cst_38 = arith.constant dense<0.000000e+00> : vector<4x8xf32>
    %121 = vector.multi_reduction <add>, %120, %cst_38 [2] : vector<4x8x8xf32> to vector<4x8xf32>
    %122 = vector.shape_cast %121 : vector<4x8xf32> to vector<4x8x1xf32>
    %123 = tpu.reciprocal %122 {approx = true} : vector<4x8x1xf32> -> vector<4x8x1xf32>
    %124 = vector.broadcast %123 : vector<4x8x1xf32> to vector<4x8x8xf32>
    %125 = arith.mulf %120, %124 : vector<4x8x8xf32>
    %126 = arith.truncf %125 : vector<4x8x8xf32> to vector<4x8x8xbf16>
    "tpu.trace_start"() <{level = 10 : i32, message = "hqk,hkd->hqd"}> : () -> ()
    %cst_39 = arith.constant dense<0.000000e+00> : vector<4x8x8xf32>
    %127 = tpu.matmul %126, %109, %cst_39 {dimension_numbers = #tpu.dot_dimension_numbers<[2], [1], [1], [2], [0, 0, 0, 1, 1, 2], [0], [0]>} : vector<4x8x8xbf16>, vector<4x8x8xbf16>, vector<4x8x8xf32> -> vector<4x8x8xf32>
    "tpu.trace_stop"() : () -> ()
    %128 = tpu.transpose %127, [1, 0, 2] : vector<4x8x8xf32> -> vector<8x4x8xf32>
    %129 = vector.shape_cast %128 : vector<8x4x8xf32> to vector<8x32xf32>
    %130 = tpu.concatenate %88, %129 in 0 : vector<8x32xf32>, vector<8x32xf32> -> vector<16x32xf32>
    %131 = arith.truncf %130 : vector<16x32xf32> to vector<16x32xbf16>
    %c0_40 = arith.constant 0 : index
    %c0_41 = arith.constant 0 : index
    %c0_42 = arith.constant 0 : index
    %132 = vector.load %arg10[%c0_40, %c0_41, %c0_42] : memref<1x32x32xbf16, #tpu.memory_space<vmem>>, vector<1x32x32xbf16>
    %133 = vector.shape_cast %132 : vector<1x32x32xbf16> to vector<32x32xbf16>
    %cst_43 = arith.constant dense<0.000000e+00> : vector<16x32xf32>
    %134 = tpu.matmul %131, %133, %cst_43 {dimension_numbers = #tpu.dot_dimension_numbers<[1], [0], [0], [1], [0, 0, 1, 1], [], []>} : vector<16x32xbf16>, vector<32x32xbf16>, vector<16x32xf32> -> vector<16x32xf32>
    %c0_44 = arith.constant 0 : index
    %c0_45 = arith.constant 0 : index
    %c0_46 = arith.constant 0 : index
    %135 = vector.load %arg11[%c0_44, %c0_45, %c0_46] : memref<1x1x32xf32, #tpu.memory_space<vmem>>, vector<1x1x32xf32>
    %136 = vector.shape_cast %135 : vector<1x1x32xf32> to vector<1x32xf32>
    %137 = vector.broadcast %136 : vector<1x32xf32> to vector<16x32xf32>
    %138 = arith.addf %134, %137 : vector<16x32xf32>
    %139 = vector.shape_cast %138 : vector<16x32xf32> to vector<2x8x32xf32>
    %140 = arith.addf %3, %139 : vector<2x8x32xf32>
    %141 = vector.extract_strided_slice %6 {offsets = [1, 0], sizes = [1, 32], strides = [1, 1]} : vector<3x32xf32> to vector<1x32xf32>
    %142 = vector.extract_strided_slice %8 {offsets = [1, 0], sizes = [1, 32], strides = [1, 1]} : vector<3x32xf32> to vector<1x32xf32>
    %cst_47 = arith.constant dense<0.000000e+00> : vector<2x8xf32>
    %143 = vector.multi_reduction <add>, %140, %cst_47 [2] : vector<2x8x32xf32> to vector<2x8xf32>
    %144 = vector.shape_cast %143 : vector<2x8xf32> to vector<2x8x1xf32>
    %cst_48 = arith.constant 3.200000e+01 : f32
    %145 = vector.broadcast %cst_48 : f32 to vector<2x8x1xf32>
    %146 = arith.divf %144, %145 : vector<2x8x1xf32>
    %147 = vector.broadcast %146 : vector<2x8x1xf32> to vector<2x8x32xf32>
    %148 = arith.subf %140, %147 : vector<2x8x32xf32>
    %149 = arith.mulf %148, %148 : vector<2x8x32xf32>
    %cst_49 = arith.constant dense<0.000000e+00> : vector<2x8xf32>
    %150 = vector.multi_reduction <add>, %149, %cst_49 [2] : vector<2x8x32xf32> to vector<2x8xf32>
    %151 = vector.shape_cast %150 : vector<2x8xf32> to vector<2x8x1xf32>
    %cst_50 = arith.constant 3.200000e+01 : f32
    %152 = vector.broadcast %cst_50 : f32 to vector<2x8x1xf32>
    %153 = arith.divf %151, %152 : vector<2x8x1xf32>
    %154 = vector.broadcast %146 : vector<2x8x1xf32> to vector<2x8x32xf32>
    %155 = arith.subf %140, %154 : vector<2x8x32xf32>
    %cst_51 = arith.constant 9.99999974E-6 : f32
    %156 = vector.broadcast %cst_51 : f32 to vector<2x8x1xf32>
    %157 = arith.addf %153, %156 : vector<2x8x1xf32>
    %158 = math.rsqrt %157 : vector<2x8x1xf32>
    %159 = vector.broadcast %158 : vector<2x8x1xf32> to vector<2x8x32xf32>
    %160 = arith.mulf %155, %159 : vector<2x8x32xf32>
    %161 = vector.shape_cast %141 : vector<1x32xf32> to vector<1x1x32xf32>
    %162 = vector.broadcast %161 : vector<1x1x32xf32> to vector<2x8x32xf32>
    %163 = arith.mulf %160, %162 : vector<2x8x32xf32>
    %164 = vector.shape_cast %142 : vector<1x32xf32> to vector<1x1x32xf32>
    %165 = vector.broadcast %164 : vector<1x1x32xf32> to vector<2x8x32xf32>
    %166 = arith.addf %163, %165 : vector<2x8x32xf32>
    %167 = vector.shape_cast %166 : vector<2x8x32xf32> to vector<16x32xf32>
    %168 = arith.truncf %167 : vector<16x32xf32> to vector<16x32xbf16>
    %c0_52 = arith.constant 0 : index
    %c0_53 = arith.constant 0 : index
    %c0_54 = arith.constant 0 : index
    %169 = vector.load %arg12[%c0_52, %c0_53, %c0_54] : memref<1x32x32xbf16, #tpu.memory_space<vmem>>, vector<1x32x32xbf16>
    %170 = vector.shape_cast %169 : vector<1x32x32xbf16> to vector<32x32xbf16>
    %cst_55 = arith.constant dense<0.000000e+00> : vector<16x32xf32>
    %171 = tpu.matmul %168, %170, %cst_55 {dimension_numbers = #tpu.dot_dimension_numbers<[1], [0], [0], [1], [0, 0, 1, 1], [], []>} : vector<16x32xbf16>, vector<32x32xbf16>, vector<16x32xf32> -> vector<16x32xf32>
    %c0_56 = arith.constant 0 : index
    %c0_57 = arith.constant 0 : index
    %c0_58 = arith.constant 0 : index
    %172 = vector.load %arg13[%c0_56, %c0_57, %c0_58] : memref<1x1x32xf32, #tpu.memory_space<vmem>>, vector<1x1x32xf32>
    %173 = vector.shape_cast %172 : vector<1x1x32xf32> to vector<1x32xf32>
    %174 = vector.broadcast %173 : vector<1x32xf32> to vector<16x32xf32>
    %175 = arith.addf %171, %174 : vector<16x32xf32>
    %176 = vector.shape_cast %175 : vector<16x32xf32> to vector<2x8x32xf32>
    %177 = vector.shape_cast %4 : vector<2x10x32xbf16> to vector<20x32xbf16>
    %c0_59 = arith.constant 0 : index
    %c0_60 = arith.constant 0 : index
    %c0_61 = arith.constant 0 : index
    %178 = vector.load %arg14[%c0_59, %c0_60, %c0_61] : memref<1x32x64xbf16, #tpu.memory_space<vmem>>, vector<1x32x64xbf16>
    %179 = vector.shape_cast %178 : vector<1x32x64xbf16> to vector<32x64xbf16>
    %cst_62 = arith.constant dense<0.000000e+00> : vector<20x64xf32>
    %180 = tpu.matmul %177, %179, %cst_62 {dimension_numbers = #tpu.dot_dimension_numbers<[1], [0], [0], [1], [0, 0, 1, 1], [], []>} : vector<20x32xbf16>, vector<32x64xbf16>, vector<20x64xf32> -> vector<20x64xf32>
    %c0_63 = arith.constant 0 : index
    %c0_64 = arith.constant 0 : index
    %c0_65 = arith.constant 0 : index
    %181 = vector.load %arg15[%c0_63, %c0_64, %c0_65] : memref<1x1x64xf32, #tpu.memory_space<vmem>>, vector<1x1x64xf32>
    %182 = vector.shape_cast %181 : vector<1x1x64xf32> to vector<1x64xf32>
    %183 = vector.broadcast %182 : vector<1x64xf32> to vector<20x64xf32>
    %184 = arith.addf %180, %183 : vector<20x64xf32>
    %185 = vector.shape_cast %184 : vector<20x64xf32> to vector<2x10x64xf32>
    %c0_66 = arith.constant 0 : index
    %c0_67 = arith.constant 0 : index
    %c0_68 = arith.constant 0 : index
    %186 = vector.load %arg5[%c0_66, %c0_67, %c0_68] : memref<2x1x10xf32, #tpu.memory_space<vmem>>, vector<1x1x10xf32>
    %187 = vector.shape_cast %186 : vector<1x1x10xf32> to vector<1x10xf32>
    %cst_69 = arith.constant 5.000000e-01 : f32
    %188 = vector.broadcast %cst_69 : f32 to vector<1x10xf32>
    %189 = arith.cmpf ogt, %187, %188 : vector<1x10xf32>
    %190 = vector.extract_strided_slice %176 {offsets = [0, 0, 0], sizes = [1, 8, 32], strides = [1, 1, 1]} : vector<2x8x32xf32> to vector<1x8x32xf32>
    %191 = vector.shape_cast %190 : vector<1x8x32xf32> to vector<8x32xf32>
    %192 = vector.extract_strided_slice %185 {offsets = [0, 0, 0], sizes = [1, 10, 32], strides = [1, 1, 1]} : vector<2x10x64xf32> to vector<1x10x32xf32>
    %193 = vector.shape_cast %192 : vector<1x10x32xf32> to vector<10x32xf32>
    %194 = vector.extract_strided_slice %185 {offsets = [0, 0, 32], sizes = [1, 10, 32], strides = [1, 1, 1]} : vector<2x10x64xf32> to vector<1x10x32xf32>
    %195 = vector.shape_cast %194 : vector<1x10x32xf32> to vector<10x32xf32>
    %196 = vector.shape_cast %191 : vector<8x32xf32> to vector<8x4x8xf32>
    %197 = tpu.transpose %196, [1, 0, 2] : vector<8x4x8xf32> -> vector<4x8x8xf32>
    %198 = arith.truncf %197 : vector<4x8x8xf32> to vector<4x8x8xbf16>
    %199 = vector.shape_cast %193 : vector<10x32xf32> to vector<10x4x8xf32>
    %200 = tpu.transpose %199, [1, 0, 2] : vector<10x4x8xf32> -> vector<4x10x8xf32>
    %201 = arith.truncf %200 : vector<4x10x8xf32> to vector<4x10x8xbf16>
    %202 = vector.shape_cast %195 : vector<10x32xf32> to vector<10x4x8xf32>
    %203 = tpu.transpose %202, [1, 0, 2] : vector<10x4x8xf32> -> vector<4x10x8xf32>
    %204 = arith.truncf %203 : vector<4x10x8xf32> to vector<4x10x8xbf16>
    "tpu.trace_start"() <{level = 10 : i32, message = "hqd,hkd->hqk"}> : () -> ()
    %cst_70 = arith.constant dense<0.000000e+00> : vector<4x8x10xf32>
    %205 = tpu.matmul %198, %201, %cst_70 {dimension_numbers = #tpu.dot_dimension_numbers<[2], [2], [1], [1], [0, 0, 0, 1, 1, 1], [0], [0]>} : vector<4x8x8xbf16>, vector<4x10x8xbf16>, vector<4x8x10xf32> -> vector<4x8x10xf32>
    "tpu.trace_stop"() : () -> ()
    %206 = vector.shape_cast %189 : vector<1x10xi1> to vector<1x1x10xi1>
    %cst_71 = arith.constant -1.000000e+09 : f32
    %207 = vector.shape_cast %206 : vector<1x1x10xi1> to vector<1x1x10xi1>
    %208 = vector.broadcast %207 : vector<1x1x10xi1> to vector<4x8x10xi1>
    %209 = vector.broadcast %cst_71 : f32 to vector<4x8x10xf32>
    %210 = arith.select %208, %209, %205 : vector<4x8x10xi1>, vector<4x8x10xf32>
    %cst_72 = arith.constant dense<0xFF800000> : vector<4x8xf32>
    %211 = vector.multi_reduction <maximumf>, %210, %cst_72 [2] : vector<4x8x10xf32> to vector<4x8xf32>
    %212 = vector.shape_cast %211 : vector<4x8xf32> to vector<4x8x1xf32>
    %213 = vector.broadcast %212 : vector<4x8x1xf32> to vector<4x8x10xf32>
    %214 = arith.subf %210, %213 : vector<4x8x10xf32>
    %215 = math.exp %214 : vector<4x8x10xf32>
    %cst_73 = arith.constant dense<0.000000e+00> : vector<4x8xf32>
    %216 = vector.multi_reduction <add>, %215, %cst_73 [2] : vector<4x8x10xf32> to vector<4x8xf32>
    %217 = vector.shape_cast %216 : vector<4x8xf32> to vector<4x8x1xf32>
    %218 = tpu.reciprocal %217 {approx = true} : vector<4x8x1xf32> -> vector<4x8x1xf32>
    %219 = vector.broadcast %218 : vector<4x8x1xf32> to vector<4x8x10xf32>
    %220 = arith.mulf %215, %219 : vector<4x8x10xf32>
    %221 = arith.truncf %220 : vector<4x8x10xf32> to vector<4x8x10xbf16>
    "tpu.trace_start"() <{level = 10 : i32, message = "hqk,hkd->hqd"}> : () -> ()
    %cst_74 = arith.constant dense<0.000000e+00> : vector<4x8x8xf32>
    %222 = tpu.matmul %221, %204, %cst_74 {dimension_numbers = #tpu.dot_dimension_numbers<[2], [1], [1], [2], [0, 0, 0, 1, 1, 2], [0], [0]>} : vector<4x8x10xbf16>, vector<4x10x8xbf16>, vector<4x8x8xf32> -> vector<4x8x8xf32>
    "tpu.trace_stop"() : () -> ()
    %223 = tpu.transpose %222, [1, 0, 2] : vector<4x8x8xf32> -> vector<8x4x8xf32>
    %224 = vector.shape_cast %223 : vector<8x4x8xf32> to vector<8x32xf32>
    %c1_75 = arith.constant 1 : index
    %c0_76 = arith.constant 0 : index
    %c0_77 = arith.constant 0 : index
    %225 = vector.load %arg5[%c1_75, %c0_76, %c0_77] : memref<2x1x10xf32, #tpu.memory_space<vmem>>, vector<1x1x10xf32>
    %226 = vector.shape_cast %225 : vector<1x1x10xf32> to vector<1x10xf32>
    %cst_78 = arith.constant 5.000000e-01 : f32
    %227 = vector.broadcast %cst_78 : f32 to vector<1x10xf32>
    %228 = arith.cmpf ogt, %226, %227 : vector<1x10xf32>
    %229 = vector.extract_strided_slice %176 {offsets = [1, 0, 0], sizes = [1, 8, 32], strides = [1, 1, 1]} : vector<2x8x32xf32> to vector<1x8x32xf32>
    %230 = vector.shape_cast %229 : vector<1x8x32xf32> to vector<8x32xf32>
    %231 = vector.extract_strided_slice %185 {offsets = [1, 0, 0], sizes = [1, 10, 32], strides = [1, 1, 1]} : vector<2x10x64xf32> to vector<1x10x32xf32>
    %232 = vector.shape_cast %231 : vector<1x10x32xf32> to vector<10x32xf32>
    %233 = vector.extract_strided_slice %185 {offsets = [1, 0, 32], sizes = [1, 10, 32], strides = [1, 1, 1]} : vector<2x10x64xf32> to vector<1x10x32xf32>
    %234 = vector.shape_cast %233 : vector<1x10x32xf32> to vector<10x32xf32>
    %235 = vector.shape_cast %230 : vector<8x32xf32> to vector<8x4x8xf32>
    %236 = tpu.transpose %235, [1, 0, 2] : vector<8x4x8xf32> -> vector<4x8x8xf32>
    %237 = arith.truncf %236 : vector<4x8x8xf32> to vector<4x8x8xbf16>
    %238 = vector.shape_cast %232 : vector<10x32xf32> to vector<10x4x8xf32>
    %239 = tpu.transpose %238, [1, 0, 2] : vector<10x4x8xf32> -> vector<4x10x8xf32>
    %240 = arith.truncf %239 : vector<4x10x8xf32> to vector<4x10x8xbf16>
    %241 = vector.shape_cast %234 : vector<10x32xf32> to vector<10x4x8xf32>
    %242 = tpu.transpose %241, [1, 0, 2] : vector<10x4x8xf32> -> vector<4x10x8xf32>
    %243 = arith.truncf %242 : vector<4x10x8xf32> to vector<4x10x8xbf16>
    "tpu.trace_start"() <{level = 10 : i32, message = "hqd,hkd->hqk"}> : () -> ()
    %cst_79 = arith.constant dense<0.000000e+00> : vector<4x8x10xf32>
    %244 = tpu.matmul %237, %240, %cst_79 {dimension_numbers = #tpu.dot_dimension_numbers<[2], [2], [1], [1], [0, 0, 0, 1, 1, 1], [0], [0]>} : vector<4x8x8xbf16>, vector<4x10x8xbf16>, vector<4x8x10xf32> -> vector<4x8x10xf32>
    "tpu.trace_stop"() : () -> ()
    %245 = vector.shape_cast %228 : vector<1x10xi1> to vector<1x1x10xi1>
    %cst_80 = arith.constant -1.000000e+09 : f32
    %246 = vector.shape_cast %245 : vector<1x1x10xi1> to vector<1x1x10xi1>
    %247 = vector.broadcast %246 : vector<1x1x10xi1> to vector<4x8x10xi1>
    %248 = vector.broadcast %cst_80 : f32 to vector<4x8x10xf32>
    %249 = arith.select %247, %248, %244 : vector<4x8x10xi1>, vector<4x8x10xf32>
    %cst_81 = arith.constant dense<0xFF800000> : vector<4x8xf32>
    %250 = vector.multi_reduction <maximumf>, %249, %cst_81 [2] : vector<4x8x10xf32> to vector<4x8xf32>
    %251 = vector.shape_cast %250 : vector<4x8xf32> to vector<4x8x1xf32>
    %252 = vector.broadcast %251 : vector<4x8x1xf32> to vector<4x8x10xf32>
    %253 = arith.subf %249, %252 : vector<4x8x10xf32>
    %254 = math.exp %253 : vector<4x8x10xf32>
    %cst_82 = arith.constant dense<0.000000e+00> : vector<4x8xf32>
    %255 = vector.multi_reduction <add>, %254, %cst_82 [2] : vector<4x8x10xf32> to vector<4x8xf32>
    %256 = vector.shape_cast %255 : vector<4x8xf32> to vector<4x8x1xf32>
    %257 = tpu.reciprocal %256 {approx = true} : vector<4x8x1xf32> -> vector<4x8x1xf32>
    %258 = vector.broadcast %257 : vector<4x8x1xf32> to vector<4x8x10xf32>
    %259 = arith.mulf %254, %258 : vector<4x8x10xf32>
    %260 = arith.truncf %259 : vector<4x8x10xf32> to vector<4x8x10xbf16>
    "tpu.trace_start"() <{level = 10 : i32, message = "hqk,hkd->hqd"}> : () -> ()
    %cst_83 = arith.constant dense<0.000000e+00> : vector<4x8x8xf32>
    %261 = tpu.matmul %260, %243, %cst_83 {dimension_numbers = #tpu.dot_dimension_numbers<[2], [1], [1], [2], [0, 0, 0, 1, 1, 2], [0], [0]>} : vector<4x8x10xbf16>, vector<4x10x8xbf16>, vector<4x8x8xf32> -> vector<4x8x8xf32>
    "tpu.trace_stop"() : () -> ()
    %262 = tpu.transpose %261, [1, 0, 2] : vector<4x8x8xf32> -> vector<8x4x8xf32>
    %263 = vector.shape_cast %262 : vector<8x4x8xf32> to vector<8x32xf32>
    %264 = tpu.concatenate %224, %263 in 0 : vector<8x32xf32>, vector<8x32xf32> -> vector<16x32xf32>
    %265 = arith.truncf %264 : vector<16x32xf32> to vector<16x32xbf16>
    %c0_84 = arith.constant 0 : index
    %c0_85 = arith.constant 0 : index
    %c0_86 = arith.constant 0 : index
    %266 = vector.load %arg16[%c0_84, %c0_85, %c0_86] : memref<1x32x32xbf16, #tpu.memory_space<vmem>>, vector<1x32x32xbf16>
    %267 = vector.shape_cast %266 : vector<1x32x32xbf16> to vector<32x32xbf16>
    %cst_87 = arith.constant dense<0.000000e+00> : vector<16x32xf32>
    %268 = tpu.matmul %265, %267, %cst_87 {dimension_numbers = #tpu.dot_dimension_numbers<[1], [0], [0], [1], [0, 0, 1, 1], [], []>} : vector<16x32xbf16>, vector<32x32xbf16>, vector<16x32xf32> -> vector<16x32xf32>
    %c0_88 = arith.constant 0 : index
    %c0_89 = arith.constant 0 : index
    %c0_90 = arith.constant 0 : index
    %269 = vector.load %arg17[%c0_88, %c0_89, %c0_90] : memref<1x1x32xf32, #tpu.memory_space<vmem>>, vector<1x1x32xf32>
    %270 = vector.shape_cast %269 : vector<1x1x32xf32> to vector<1x32xf32>
    %271 = vector.broadcast %270 : vector<1x32xf32> to vector<16x32xf32>
    %272 = arith.addf %268, %271 : vector<16x32xf32>
    %273 = vector.shape_cast %272 : vector<16x32xf32> to vector<2x8x32xf32>
    %274 = arith.addf %140, %273 : vector<2x8x32xf32>
    %275 = vector.extract_strided_slice %6 {offsets = [2, 0], sizes = [1, 32], strides = [1, 1]} : vector<3x32xf32> to vector<1x32xf32>
    %276 = vector.extract_strided_slice %8 {offsets = [2, 0], sizes = [1, 32], strides = [1, 1]} : vector<3x32xf32> to vector<1x32xf32>
    %cst_91 = arith.constant dense<0.000000e+00> : vector<2x8xf32>
    %277 = vector.multi_reduction <add>, %274, %cst_91 [2] : vector<2x8x32xf32> to vector<2x8xf32>
    %278 = vector.shape_cast %277 : vector<2x8xf32> to vector<2x8x1xf32>
    %cst_92 = arith.constant 3.200000e+01 : f32
    %279 = vector.broadcast %cst_92 : f32 to vector<2x8x1xf32>
    %280 = arith.divf %278, %279 : vector<2x8x1xf32>
    %281 = vector.broadcast %280 : vector<2x8x1xf32> to vector<2x8x32xf32>
    %282 = arith.subf %274, %281 : vector<2x8x32xf32>
    %283 = arith.mulf %282, %282 : vector<2x8x32xf32>
    %cst_93 = arith.constant dense<0.000000e+00> : vector<2x8xf32>
    %284 = vector.multi_reduction <add>, %283, %cst_93 [2] : vector<2x8x32xf32> to vector<2x8xf32>
    %285 = vector.shape_cast %284 : vector<2x8xf32> to vector<2x8x1xf32>
    %cst_94 = arith.constant 3.200000e+01 : f32
    %286 = vector.broadcast %cst_94 : f32 to vector<2x8x1xf32>
    %287 = arith.divf %285, %286 : vector<2x8x1xf32>
    %288 = vector.broadcast %280 : vector<2x8x1xf32> to vector<2x8x32xf32>
    %289 = arith.subf %274, %288 : vector<2x8x32xf32>
    %cst_95 = arith.constant 9.99999974E-6 : f32
    %290 = vector.broadcast %cst_95 : f32 to vector<2x8x1xf32>
    %291 = arith.addf %287, %290 : vector<2x8x1xf32>
    %292 = math.rsqrt %291 : vector<2x8x1xf32>
    %293 = vector.broadcast %292 : vector<2x8x1xf32> to vector<2x8x32xf32>
    %294 = arith.mulf %289, %293 : vector<2x8x32xf32>
    %295 = vector.shape_cast %275 : vector<1x32xf32> to vector<1x1x32xf32>
    %296 = vector.broadcast %295 : vector<1x1x32xf32> to vector<2x8x32xf32>
    %297 = arith.mulf %294, %296 : vector<2x8x32xf32>
    %298 = vector.shape_cast %276 : vector<1x32xf32> to vector<1x1x32xf32>
    %299 = vector.broadcast %298 : vector<1x1x32xf32> to vector<2x8x32xf32>
    %300 = arith.addf %297, %299 : vector<2x8x32xf32>
    %301 = vector.shape_cast %300 : vector<2x8x32xf32> to vector<16x32xf32>
    %302 = arith.truncf %301 : vector<16x32xf32> to vector<16x32xbf16>
    %c0_96 = arith.constant 0 : index
    %c0_97 = arith.constant 0 : index
    %c0_98 = arith.constant 0 : index
    %303 = vector.load %arg18[%c0_96, %c0_97, %c0_98] : memref<1x32x128xbf16, #tpu.memory_space<vmem>>, vector<1x32x128xbf16>
    %304 = vector.shape_cast %303 : vector<1x32x128xbf16> to vector<32x128xbf16>
    %cst_99 = arith.constant dense<0.000000e+00> : vector<16x128xf32>
    %305 = tpu.matmul %302, %304, %cst_99 {dimension_numbers = #tpu.dot_dimension_numbers<[1], [0], [0], [1], [0, 0, 1, 1], [], []>} : vector<16x32xbf16>, vector<32x128xbf16>, vector<16x128xf32> -> vector<16x128xf32>
    %c0_100 = arith.constant 0 : index
    %c0_101 = arith.constant 0 : index
    %c0_102 = arith.constant 0 : index
    %306 = vector.load %arg19[%c0_100, %c0_101, %c0_102] : memref<1x1x128xf32, #tpu.memory_space<vmem>>, vector<1x1x128xf32>
    %307 = vector.shape_cast %306 : vector<1x1x128xf32> to vector<1x128xf32>
    %308 = vector.broadcast %307 : vector<1x128xf32> to vector<16x128xf32>
    %309 = arith.addf %305, %308 : vector<16x128xf32>
    %cst_103 = arith.constant 0.000000e+00 : f32
    %310 = vector.broadcast %cst_103 : f32 to vector<16x128xf32>
    %311 = arith.maximumf %309, %310 : vector<16x128xf32>
    %312 = arith.truncf %311 : vector<16x128xf32> to vector<16x128xbf16>
    %c0_104 = arith.constant 0 : index
    %c0_105 = arith.constant 0 : index
    %c0_106 = arith.constant 0 : index
    %313 = vector.load %arg20[%c0_104, %c0_105, %c0_106] : memref<1x128x32xbf16, #tpu.memory_space<vmem>>, vector<1x128x32xbf16>
    %314 = vector.shape_cast %313 : vector<1x128x32xbf16> to vector<128x32xbf16>
    %cst_107 = arith.constant dense<0.000000e+00> : vector<16x32xf32>
    %315 = tpu.matmul %312, %314, %cst_107 {dimension_numbers = #tpu.dot_dimension_numbers<[1], [0], [0], [1], [0, 0, 1, 1], [], []>} : vector<16x128xbf16>, vector<128x32xbf16>, vector<16x32xf32> -> vector<16x32xf32>
    %c0_108 = arith.constant 0 : index
    %c0_109 = arith.constant 0 : index
    %c0_110 = arith.constant 0 : index
    %316 = vector.load %arg21[%c0_108, %c0_109, %c0_110] : memref<1x1x32xf32, #tpu.memory_space<vmem>>, vector<1x1x32xf32>
    %317 = vector.shape_cast %316 : vector<1x1x32xf32> to vector<1x32xf32>
    %318 = vector.broadcast %317 : vector<1x32xf32> to vector<16x32xf32>
    %319 = arith.addf %315, %318 : vector<16x32xf32>
    %320 = vector.shape_cast %319 : vector<16x32xf32> to vector<2x8x32xf32>
    %321 = arith.addf %274, %320 : vector<2x8x32xf32>
    %c0_111 = arith.constant 0 : index
    %c0_112 = arith.constant 0 : index
    %c0_113 = arith.constant 0 : index
    %322 = vector.load %arg22[%c0_111, %c0_112, %c0_113] : memref<2x8x32xf32, #tpu.memory_space<vmem>>, vector<2x8x32xf32>
    tpu.vector_store %arg22[%c0_111, %c0_112, %c0_113], %321 {strides = array<i32>} : memref<2x8x32xf32, #tpu.memory_space<vmem>>, vector<2x8x32xf32>,
    return
  }
  func.func @transform_0(%arg0: i32, %arg1: i32) -> (i32, i32, i32) {
    %c0_i32 = arith.constant 0 : i32
    %c0_i32_0 = arith.constant 0 : i32
    %c0_i32_1 = arith.constant 0 : i32
    return %arg0, %c0_i32, %c0_i32_0 : i32, i32, i32
  }
  func.func @transform_1(%arg0: i32, %arg1: i32) -> (i32, i32, i32) {
    %c0_i32 = arith.constant 0 : i32
    %c0_i32_0 = arith.constant 0 : i32
    %c0_i32_1 = arith.constant 0 : i32
    return %arg0, %c0_i32, %c0_i32_0 : i32, i32, i32
  }
  func.func @transform_2(%arg0: i32, %arg1: i32) -> (i32, i32, i32) {
    %c0_i32 = arith.constant 0 : i32
    %c0_i32_0 = arith.constant 0 : i32
    %c0_i32_1 = arith.constant 0 : i32
    return %arg0, %c0_i32, %c0_i32_0 : i32, i32, i32
  }
  func.func @transform_3(%arg0: i32, %arg1: i32) -> (i32, i32, i32) {
    %c0_i32 = arith.constant 0 : i32
    %c0_i32_0 = arith.constant 0 : i32
    %c0_i32_1 = arith.constant 0 : i32
    return %arg0, %c0_i32, %c0_i32_0 : i32, i32, i32
  }
  func.func @transform_4(%arg0: i32, %arg1: i32) -> (i32, i32, i32) {
    %c0_i32 = arith.constant 0 : i32
    %c0_i32_0 = arith.constant 0 : i32
    %c0_i32_1 = arith.constant 0 : i32
    return %arg1, %c0_i32, %c0_i32_0 : i32, i32, i32
  }
  func.func @transform_5(%arg0: i32, %arg1: i32) -> (i32, i32, i32) {
    %c0_i32 = arith.constant 0 : i32
    %c0_i32_0 = arith.constant 0 : i32
    %c0_i32_1 = arith.constant 0 : i32
    return %arg1, %c0_i32, %c0_i32_0 : i32, i32, i32
  }
  func.func @transform_6(%arg0: i32, %arg1: i32) -> (i32, i32, i32) {
    %c0_i32 = arith.constant 0 : i32
    %c0_i32_0 = arith.constant 0 : i32
    %c0_i32_1 = arith.constant 0 : i32
    return %arg1, %c0_i32, %c0_i32_0 : i32, i32, i32
  }
  func.func @transform_7(%arg0: i32, %arg1: i32) -> (i32, i32, i32) {
    %c0_i32 = arith.constant 0 : i32
    %c0_i32_0 = arith.constant 0 : i32
    %c0_i32_1 = arith.constant 0 : i32
    return %arg1, %c0_i32, %c0_i32_0 : i32, i32, i32
  }
  func.func @transform_8(%arg0: i32, %arg1: i32) -> (i32, i32, i32) {
    %c0_i32 = arith.constant 0 : i32
    %c0_i32_0 = arith.constant 0 : i32
    %c0_i32_1 = arith.constant 0 : i32
    return %arg1, %c0_i32, %c0_i32_0 : i32, i32, i32
  }
  func.func @transform_9(%arg0: i32, %arg1: i32) -> (i32, i32, i32) {
    %c0_i32 = arith.constant 0 : i32
    %c0_i32_0 = arith.constant 0 : i32
    %c0_i32_1 = arith.constant 0 : i32
    return %arg1, %c0_i32, %c0_i32_0 : i32, i32, i32
  }
  func.func @transform_10(%arg0: i32, %arg1: i32) -> (i32, i32, i32) {
    %c0_i32 = arith.constant 0 : i32
    %c0_i32_0 = arith.constant 0 : i32
    %c0_i32_1 = arith.constant 0 : i32
    return %arg1, %c0_i32, %c0_i32_0 : i32, i32, i32
  }
  func.func @transform_11(%arg0: i32, %arg1: i32) -> (i32, i32, i32) {
    %c0_i32 = arith.constant 0 : i32
    %c0_i32_0 = arith.constant 0 : i32
    %c0_i32_1 = arith.constant 0 : i32
    return %arg1, %c0_i32, %c0_i32_0 : i32, i32, i32
  }
  func.func @transform_12(%arg0: i32, %arg1: i32) -> (i32, i32, i32) {
    %c0_i32 = arith.constant 0 : i32
    %c0_i32_0 = arith.constant 0 : i32
    %c0_i32_1 = arith.constant 0 : i32
    return %arg1, %c0_i32, %c0_i32_0 : i32, i32, i32
  }
  func.func @transform_13(%arg0: i32, %arg1: i32) -> (i32, i32, i32) {
    %c0_i32 = arith.constant 0 : i32
    %c0_i32_0 = arith.constant 0 : i32
    %c0_i32_1 = arith.constant 0 : i32
    return %arg1, %c0_i32, %c0_i32_0 : i32, i32, i32
  }
  func.func @transform_14(%arg0: i32, %arg1: i32) -> (i32, i32, i32) {
    %c0_i32 = arith.constant 0 : i32
    %c0_i32_0 = arith.constant 0 : i32
    %c0_i32_1 = arith.constant 0 : i32
    return %arg1, %c0_i32, %c0_i32_0 : i32, i32, i32
  }
  func.func @transform_15(%arg0: i32, %arg1: i32) -> (i32, i32, i32) {
    %c0_i32 = arith.constant 0 : i32
    %c0_i32_0 = arith.constant 0 : i32
    %c0_i32_1 = arith.constant 0 : i32
    return %arg1, %c0_i32, %c0_i32_0 : i32, i32, i32
  }
  func.func @transform_16(%arg0: i32, %arg1: i32) -> (i32, i32, i32) {
    %c0_i32 = arith.constant 0 : i32
    %c0_i32_0 = arith.constant 0 : i32
    %c0_i32_1 = arith.constant 0 : i32
    return %arg1, %c0_i32, %c0_i32_0 : i32, i32, i32
  }
  func.func @transform_17(%arg0: i32, %arg1: i32) -> (i32, i32, i32) {
    %c0_i32 = arith.constant 0 : i32
    %c0_i32_0 = arith.constant 0 : i32
    %c0_i32_1 = arith.constant 0 : i32
    return %arg1, %c0_i32, %c0_i32_0 : i32, i32, i32
  }
  func.func @transform_18(%arg0: i32, %arg1: i32) -> (i32, i32, i32) {
    %c0_i32 = arith.constant 0 : i32
    %c0_i32_0 = arith.constant 0 : i32
    %c0_i32_1 = arith.constant 0 : i32
    return %arg1, %c0_i32, %c0_i32_0 : i32, i32, i32
  }
  func.func @transform_19(%arg0: i32, %arg1: i32) -> (i32, i32, i32) {
    %c0_i32 = arith.constant 0 : i32
    %c0_i32_0 = arith.constant 0 : i32
    %c0_i32_1 = arith.constant 0 : i32
    return %arg1, %c0_i32, %c0_i32_0 : i32, i32, i32
  }
  func.func @transform_20(%arg0: i32, %arg1: i32) -> (i32, i32, i32) {
    %c0_i32 = arith.constant 0 : i32
    %c0_i32_0 = arith.constant 0 : i32
    %c0_i32_1 = arith.constant 0 : i32
    return %arg0, %c0_i32, %c0_i32_0 : i32, i32, i32
  }
}

</mosaic_0001>

<llo_original>
// kernel: tpu_custom_call.1
$region0: #{tpu_custom_call.1}
  #allocation0 [shape = 'u32[]', space=smem, size = 0x4, offset = 0x4, fixed_abs, tag = 'smem constant byte address 0x4 - core index']
  #allocation1 [shape = 'u32[144,128]{1,0:T(1,128)}', space=vmem, size = 0x12000, scoped, tag = 'internal scratch']
  %s0 = inlined_call_operand.hbm [shape: f32[2,8,32], index: 0, kind: input, shape index: {}]
  %s1 = inlined_call_operand.vmem [shape: bf16[2,10,32], index: 1, kind: input, shape index: {}]
  %s2 = inlined_call_operand.hbm [shape: f32[2,1,8], index: 2, kind: input, shape index: {}]
  %s3 = inlined_call_operand.hbm [shape: f32[2,1,10], index: 3, kind: input, shape index: {}]
  %s4 = inlined_call_operand.vmem [shape: f32[2,3,32], index: 4, kind: input, shape index: {}]
  %s5 = inlined_call_operand.vmem [shape: f32[2,3,32], index: 5, kind: input, shape index: {}]
  %s6 = inlined_call_operand.vmem [shape: bf16[2,32,96], index: 6, kind: input, shape index: {}]
  %s7 = inlined_call_operand.hbm [shape: f32[2,1,96], index: 7, kind: input, shape index: {}]
  %s8 = inlined_call_operand.vmem [shape: bf16[2,32,32], index: 8, kind: input, shape index: {}]
  %s9 = inlined_call_operand.vmem [shape: f32[2,1,32], index: 9, kind: input, shape index: {}]
  %s10 = inlined_call_operand.vmem [shape: bf16[2,32,32], index: 10, kind: input, shape index: {}]
  %s11 = inlined_call_operand.vmem [shape: f32[2,1,32], index: 11, kind: input, shape index: {}]
  %s12 = inlined_call_operand.vmem [shape: bf16[2,32,64], index: 12, kind: input, shape index: {}]
  %s13 = inlined_call_operand.vmem [shape: f32[2,1,64], index: 13, kind: input, shape index: {}]
  %s14 = inlined_call_operand.vmem [shape: bf16[2,32,32], index: 14, kind: input, shape index: {}]
  %s15 = inlined_call_operand.vmem [shape: f32[2,1,32], index: 15, kind: input, shape index: {}]
  %s16 = inlined_call_operand.vmem [shape: bf16[2,32,128], index: 16, kind: input, shape index: {}]
  %s17 = inlined_call_operand.vmem [shape: f32[2,1,128], index: 17, kind: input, shape index: {}]
  %s18 = inlined_call_operand.vmem [shape: bf16[2,128,32], index: 18, kind: input, shape index: {}]
  %s19 = inlined_call_operand.vmem [shape: f32[2,1,32], index: 19, kind: input, shape index: {}]
  %s20 = inlined_call_operand.hbm [shape: f32[2,8,32], index: 20, kind: output, shape index: {}]
  %s21 = sld [smem:[#allocation0]]
  $region133: #{tpu_custom_call.1} parent=0
    _
  %s23 = ssub.s32 1, %s21
  %s24 = scalar_select 0, %s23, %s21
  $region1: #{tpu_custom_call.1} parent=0
    #allocation2 [shape = 'u8[8192]{0}', space=vmem, size = 0x2000, scoped, tag = 'input window, operand 0, single buffered']
    #allocation3 [shape = 's32[2]{0}', space=sflag, size = 0x8, scoped, tag = 'scoped memory for tpu_custom_call.1']
    #allocation4 [shape = 's32[2]{0}', space=sflag, size = 0x8, scoped, tag = 'scoped memory for tpu_custom_call.1']
    #allocation5 [shape = 'u8[1024]{0}', space=vmem, size = 0x400, scoped, tag = 'input window, operand 2, single buffered']
    #allocation6 [shape = 's32[1]{0}', space=sflag, size = 0x4, scoped, tag = 'scoped memory for tpu_custom_call.1']
    #allocation7 [shape = 'u8[1024]{0}', space=vmem, size = 0x400, scoped, tag = 'input window, operand 3, single buffered']
    #allocation8 [shape = 'u8[1024]{0}', space=vmem, size = 0x400, scoped, tag = 'input window, operand 7']
    #allocation9 [shape = 's32[2]{0}', space=sflag, size = 0x8, scoped, tag = 'scoped memory for tpu_custom_call.1']
    #allocation10 [shape = 'u8[8192]{0}', space=vmem, size = 0x2000, scoped, tag = 'output window, operand 0, single buffered']
    %25 = vsyncpa [#allocation3], 0
    %26 = vsyncpa [#allocation6], 0
    %27 = vsyncpa [#allocation9], 0
    %s28 = scalar_lea.sflag [#allocation9], 1
    %29 = vsyncpa %s28, 0
    %30 = vsyncpa [#allocation4], 0
    loop: start=0, step=1, limit=4
    $region2: #{tpu_custom_call.1} parent=1 // loop_pre_header
      _
    $region3: #{tpu_custom_call.1} parent=1 // loop_header
      %s32 = sphi 0, %s36
      %p33 = scmp.ge.s32.totalorder %s32, 4
      %s39 = sphi 0, %s51
      %s40 = sphi 0, %s47
      %s41 = sphi 0, %s39
      %s42 = sphi 0, %s40
      %s43 = sphi 0, %s41
      %s44 = sphi 0, %s42
      %s54 = sphi 0, %s56
      %s57 = sphi 0, %s54
      %s58 = sphi 0, %s57
      %s74 = sphi 0, %s58
      %s80 = sphi 0, %s82
      %s83 = sphi 0, %s80
      %s84 = sphi 0, %s83
      %s100 = sphi 0, %s84
      %s106 = sphi 0, %s108
      %s109 = sphi 0, %s106
      %s110 = sphi 0, %s109
      %s126 = sphi 0, %s110
      %s132 = sphi 0, %s134
      %s135 = sphi 0, %s132
      %s136 = sphi 0, %s135
      %s152 = sphi 0, %s136
      %s158 = sphi 0, %s160
      %s161 = sphi 0, %s158
      %s162 = sphi 0, %s161
      %s178 = sphi 0, %s162
      %s184 = sphi 0, %s186
      %s187 = sphi 0, %s184
      %s188 = sphi 0, %s187
      %s204 = sphi 0, %s188
      %s210 = sphi 0, %s212
      %s213 = sphi 0, %s210
      %s214 = sphi 0, %s213
      %s230 = sphi 0, %s214
      %s236 = sphi 0, %s238
      %s239 = sphi 0, %s236
      %s240 = sphi 0, %s239
      %s256 = sphi 0, %s240
      %s262 = sphi 0, %s264
      %s265 = sphi 0, %s262
      %s266 = sphi 0, %s265
      %s282 = sphi 0, %s266
      %s288 = sphi 0, %s290
      %s291 = sphi 0, %s288
      %s292 = sphi 0, %s291
      %s308 = sphi 0, %s292
      %s314 = sphi 0, %s316
      %s317 = sphi 0, %s314
      %s318 = sphi 0, %s317
      %s334 = sphi 0, %s318
      %s340 = sphi 0, %s342
      %s343 = sphi 0, %s340
      %s344 = sphi 0, %s343
      %s360 = sphi 0, %s344
      %s366 = sphi 0, %s368
      %s369 = sphi 0, %s366
      %s370 = sphi 0, %s369
      %s386 = sphi 0, %s370
      %s392 = sphi 0, %s394
      %s395 = sphi 0, %s392
      %s396 = sphi 0, %s395
      %s412 = sphi 0, %s396
      %s418 = sphi 0, %s420
      %s421 = sphi 0, %s418
      %s422 = sphi 0, %s421
      %s438 = sphi 0, %s422
      %s444 = sphi 0, %s446
      %s447 = sphi 0, %s444
      %s448 = sphi 0, %s447
      %s464 = sphi 0, %s448
      %s470 = sphi 0, %s472
      %s473 = sphi 0, %s470
      %s474 = sphi 0, %s473
      %s490 = sphi 0, %s474
      %s496 = sphi 0, %s498
      %s499 = sphi 0, %s496
      %s500 = sphi 0, %s499
      %s516 = sphi 0, %s500
      %s522 = sphi 0, %s524
      %s525 = sphi 0, %s522
      %s526 = sphi 0, %s525
      %s542 = sphi 0, %s526
      %s548 = sphi 0, %s550
      %s551 = sphi 0, %s548
      %s552 = sphi 0, %s551
      %s568 = sphi 0, %s552
      %s574 = sphi 0, %s576
      %s577 = sphi 0, %s574
      %s578 = sphi 0, %s577
      %s594 = sphi 0, %s578
    $region4: #{tpu_custom_call.1} parent=1 // loop_header_branch
      %35 = sbr.rel (%p33) target = $region8
    $region5: #{tpu_custom_call.1} parent=1 // loop_body
      %s37 = ssub.s32 %s32, 1
      %s38 = ssub.s32 %s32, 2
      %s45 = sadd.s32 1, %s40
      %p46 = scmp.ge.s32.totalorder %s45, 2
      %s47 = scalar_select %p46, 0, %s45
      %s48 = sadd.s32 1, %s39
      %s49 = scalar_select %p46, %s48, %s39
      %p50 = scmp.ge.s32.totalorder %s49, 1
      %s51 = scalar_select %p50, 0, %s49
      %s52 = ssub.s32 %s39, %s51
      %p53 = scmp.eq.s32.totalorder %s52, 0
      %s55 = sadd.s32 %s54, 1
      %s56 = scalar_select %p53, %s54, %s55
      %p59 = pneg %p53
      %p60 = scmp.eq.s32.totalorder %s32, 1
      %p61 = por %p59, %p60
      %p62 = scmp.ne.s32.totalorder %s54, %s57
      %p63 = scmp.eq.s32.totalorder %s32, 0
      %p64 = por %p62, %p63
      %p65 = scmp.ne.s32.totalorder %s54, %s57
      %p66 = scmp.eq.s32.totalorder %s37, 1
      %p67 = por %p65, %p66
      %p68 = scmp.ne.s32.totalorder %s57, %s58
      %p69 = scmp.eq.s32.totalorder %s37, 0
      %p70 = por %p68, %p69
      %p71 = scmp.ne.s32.totalorder %s57, %s58
      %p72 = scmp.eq.s32.totalorder %s38, 1
      %p73 = por %p71, %p72
      %p75 = scmp.ne.s32.totalorder %s58, %s74
      %p76 = scmp.eq.s32.totalorder %s38, 0
      %p77 = por %p75, %p76
      %s78 = ssub.s32 %s39, %s51
      %p79 = scmp.eq.s32.totalorder %s78, 0
      %s81 = sadd.s32 %s80, 1
      %s82 = scalar_select %p79, %s80, %s81
      %p85 = pneg %p79
      %p86 = scmp.eq.s32.totalorder %s32, 1
      %p87 = por %p85, %p86
      %p88 = scmp.ne.s32.totalorder %s80, %s83
      %p89 = scmp.eq.s32.totalorder %s32, 0
      %p90 = por %p88, %p89
      %p91 = scmp.ne.s32.totalorder %s80, %s83
      %p92 = scmp.eq.s32.totalorder %s37, 1
      %p93 = por %p91, %p92
      %p94 = scmp.ne.s32.totalorder %s83, %s84
      %p95 = scmp.eq.s32.totalorder %s37, 0
      %p96 = por %p94, %p95
      %p97 = scmp.ne.s32.totalorder %s83, %s84
      %p98 = scmp.eq.s32.totalorder %s38, 1
      %p99 = por %p97, %p98
      %p101 = scmp.ne.s32.totalorder %s84, %s100
      %p102 = scmp.eq.s32.totalorder %s38, 0
      %p103 = por %p101, %p102
      %s104 = ssub.s32 %s39, %s51
      %p105 = scmp.eq.s32.totalorder %s104, 0
      %s107 = sadd.s32 %s106, 1
      %s108 = scalar_select %p105, %s106, %s107
      %p111 = pneg %p105
      %p112 = scmp.eq.s32.totalorder %s32, 1
      %p113 = por %p111, %p112
      %p114 = scmp.ne.s32.totalorder %s106, %s109
      %p115 = scmp.eq.s32.totalorder %s32, 0
      %p116 = por %p114, %p115
      %p117 = scmp.ne.s32.totalorder %s106, %s109
      %p118 = scmp.eq.s32.totalorder %s37, 1
      %p119 = por %p117, %p118
      %p120 = scmp.ne.s32.totalorder %s109, %s110
      %p121 = scmp.eq.s32.totalorder %s37, 0
      %p122 = por %p120, %p121
      %p123 = scmp.ne.s32.totalorder %s109, %s110
      %p124 = scmp.eq.s32.totalorder %s38, 1
      %p125 = por %p123, %p124
      %p127 = scmp.ne.s32.totalorder %s110, %s126
      %p128 = scmp.eq.s32.totalorder %s38, 0
      %p129 = por %p127, %p128
      %s130 = ssub.s32 %s39, %s51
      %p131 = scmp.eq.s32.totalorder %s130, 0
      %s133 = sadd.s32 %s132, 1
      %s134 = scalar_select %p131, %s132, %s133
      %p137 = pneg %p131
      %p138 = scmp.eq.s32.totalorder %s32, 1
      %p139 = por %p137, %p138
      %p140 = scmp.ne.s32.totalorder %s132, %s135
      %p141 = scmp.eq.s32.totalorder %s32, 0
      %p142 = por %p140, %p141
      %p143 = scmp.ne.s32.totalorder %s132, %s135
      %p144 = scmp.eq.s32.totalorder %s37, 1
      %p145 = por %p143, %p144
      %p146 = scmp.ne.s32.totalorder %s135, %s136
      %p147 = scmp.eq.s32.totalorder %s37, 0
      %p148 = por %p146, %p147
      %p149 = scmp.ne.s32.totalorder %s135, %s136
      %p150 = scmp.eq.s32.totalorder %s38, 1
      %p151 = por %p149, %p150
      %p153 = scmp.ne.s32.totalorder %s136, %s152
      %p154 = scmp.eq.s32.totalorder %s38, 0
      %p155 = por %p153, %p154
      %s156 = ssub.s32 %s40, %s47
      %p157 = scmp.eq.s32.totalorder %s156, 0
      %s159 = sadd.s32 %s158, 1
      %s160 = scalar_select %p157, %s158, %s159
      %p163 = pneg %p157
      %p164 = scmp.eq.s32.totalorder %s32, 1
      %p165 = por %p163, %p164
      %p166 = scmp.ne.s32.totalorder %s158, %s161
      %p167 = scmp.eq.s32.totalorder %s32, 0
      %p168 = por %p166, %p167
      %p169 = scmp.ne.s32.totalorder %s158, %s161
      %p170 = scmp.eq.s32.totalorder %s37, 1
      %p171 = por %p169, %p170
      %p172 = scmp.ne.s32.totalorder %s161, %s162
      %p173 = scmp.eq.s32.totalorder %s37, 0
      %p174 = por %p172, %p173
      %p175 = scmp.ne.s32.totalorder %s161, %s162
      %p176 = scmp.eq.s32.totalorder %s38, 1
      %p177 = por %p175, %p176
      %p179 = scmp.ne.s32.totalorder %s162, %s178
      %p180 = scmp.eq.s32.totalorder %s38, 0
      %p181 = por %p179, %p180
      %s182 = ssub.s32 %s40, %s47
      %p183 = scmp.eq.s32.totalorder %s182, 0
      %s185 = sadd.s32 %s184, 1
      %s186 = scalar_select %p183, %s184, %s185
      %p189 = pneg %p183
      %p190 = scmp.eq.s32.totalorder %s32, 1
      %p191 = por %p189, %p190
      %p192 = scmp.ne.s32.totalorder %s184, %s187
      %p193 = scmp.eq.s32.totalorder %s32, 0
      %p194 = por %p192, %p193
      %p195 = scmp.ne.s32.totalorder %s184, %s187
      %p196 = scmp.eq.s32.totalorder %s37, 1
      %p197 = por %p195, %p196
      %p198 = scmp.ne.s32.totalorder %s187, %s188
      %p199 = scmp.eq.s32.totalorder %s37, 0
      %p200 = por %p198, %p199
      %p201 = scmp.ne.s32.totalorder %s187, %s188
      %p202 = scmp.eq.s32.totalorder %s38, 1
      %p203 = por %p201, %p202
      %p205 = scmp.ne.s32.totalorder %s188, %s204
      %p206 = scmp.eq.s32.totalorder %s38, 0
      %p207 = por %p205, %p206
      %s208 = ssub.s32 %s40, %s47
      %p209 = scmp.eq.s32.totalorder %s208, 0
      %s211 = sadd.s32 %s210, 1
      %s212 = scalar_select %p209, %s210, %s211
      %p215 = pneg %p209
      %p216 = scmp.eq.s32.totalorder %s32, 1
      %p217 = por %p215, %p216
      %p218 = scmp.ne.s32.totalorder %s210, %s213
      %p219 = scmp.eq.s32.totalorder %s32, 0
      %p220 = por %p218, %p219
      %p221 = scmp.ne.s32.totalorder %s210, %s213
      %p222 = scmp.eq.s32.totalorder %s37, 1
      %p223 = por %p221, %p222
      %p224 = scmp.ne.s32.totalorder %s213, %s214
      %p225 = scmp.eq.s32.totalorder %s37, 0
      %p226 = por %p224, %p225
      %p227 = scmp.ne.s32.totalorder %s213, %s214
      %p228 = scmp.eq.s32.totalorder %s38, 1
      %p229 = por %p227, %p228
      %p231 = scmp.ne.s32.totalorder %s214, %s230
      %p232 = scmp.eq.s32.totalorder %s38, 0
      %p233 = por %p231, %p232
      %s234 = ssub.s32 %s40, %s47
      %p235 = scmp.eq.s32.totalorder %s234, 0
      %s237 = sadd.s32 %s236, 1
      %s238 = scalar_select %p235, %s236, %s237
      %p241 = pneg %p235
      %p242 = scmp.eq.s32.totalorder %s32, 1
      %p243 = por %p241, %p242
      %p244 = scmp.ne.s32.totalorder %s236, %s239
      %p245 = scmp.eq.s32.totalorder %s32, 0
      %p246 = por %p244, %p245
      %p247 = scmp.ne.s32.totalorder %s236, %s239
      %p248 = scmp.eq.s32.totalorder %s37, 1
      %p249 = por %p247, %p248
      %p250 = scmp.ne.s32.totalorder %s239, %s240
      %p251 = scmp.eq.s32.totalorder %s37, 0
      %p252 = por %p250, %p251
      %p253 = scmp.ne.s32.totalorder %s239, %s240
      %p254 = scmp.eq.s32.totalorder %s38, 1
      %p255 = por %p253, %p254
      %p257 = scmp.ne.s32.totalorder %s240, %s256
      %p258 = scmp.eq.s32.totalorder %s38, 0
      %p259 = por %p257, %p258
      %s260 = ssub.s32 %s40, %s47
      %p261 = scmp.eq.s32.totalorder %s260, 0
      %s263 = sadd.s32 %s262, 1
      %s264 = scalar_select %p261, %s262, %s263
      %p267 = pneg %p261
      %p268 = scmp.eq.s32.totalorder %s32, 1
      %p269 = por %p267, %p268
      %p270 = scmp.ne.s32.totalorder %s262, %s265
      %p271 = scmp.eq.s32.totalorder %s32, 0
      %p272 = por %p270, %p271
      %p273 = scmp.ne.s32.totalorder %s262, %s265
      %p274 = scmp.eq.s32.totalorder %s37, 1
      %p275 = por %p273, %p274
      %p276 = scmp.ne.s32.totalorder %s265, %s266
      %p277 = scmp.eq.s32.totalorder %s37, 0
      %p278 = por %p276, %p277
      %p279 = scmp.ne.s32.totalorder %s265, %s266
      %p280 = scmp.eq.s32.totalorder %s38, 1
      %p281 = por %p279, %p280
      %p283 = scmp.ne.s32.totalorder %s266, %s282
      %p284 = scmp.eq.s32.totalorder %s38, 0
      %p285 = por %p283, %p284
      %s286 = ssub.s32 %s40, %s47
      %p287 = scmp.eq.s32.totalorder %s286, 0
      %s289 = sadd.s32 %s288, 1
      %s290 = scalar_select %p287, %s288, %s289
      %p293 = pneg %p287
      %p294 = scmp.eq.s32.totalorder %s32, 1
      %p295 = por %p293, %p294
      %p296 = scmp.ne.s32.totalorder %s288, %s291
      %p297 = scmp.eq.s32.totalorder %s32, 0
      %p298 = por %p296, %p297
      %p299 = scmp.ne.s32.totalorder %s288, %s291
      %p300 = scmp.eq.s32.totalorder %s37, 1
      %p301 = por %p299, %p300
      %p302 = scmp.ne.s32.totalorder %s291, %s292
      %p303 = scmp.eq.s32.totalorder %s37, 0
      %p304 = por %p302, %p303
      %p305 = scmp.ne.s32.totalorder %s291, %s292
      %p306 = scmp.eq.s32.totalorder %s38, 1
      %p307 = por %p305, %p306
      %p309 = scmp.ne.s32.totalorder %s292, %s308
      %p310 = scmp.eq.s32.totalorder %s38, 0
      %p311 = por %p309, %p310
      %s312 = ssub.s32 %s40, %s47
      %p313 = scmp.eq.s32.totalorder %s312, 0
      %s315 = sadd.s32 %s314, 1
      %s316 = scalar_select %p313, %s314, %s315
      %p319 = pneg %p313
      %p320 = scmp.eq.s32.totalorder %s32, 1
      %p321 = por %p319, %p320
      %p322 = scmp.ne.s32.totalorder %s314, %s317
      %p323 = scmp.eq.s32.totalorder %s32, 0
      %p324 = por %p322, %p323
      %p325 = scmp.ne.s32.totalorder %s314, %s317
      %p326 = scmp.eq.s32.totalorder %s37, 1
      %p327 = por %p325, %p326
      %p328 = scmp.ne.s32.totalorder %s317, %s318
      %p329 = scmp.eq.s32.totalorder %s37, 0
      %p330 = por %p328, %p329
      %p331 = scmp.ne.s32.totalorder %s317, %s318
      %p332 = scmp.eq.s32.totalorder %s38, 1
      %p333 = por %p331, %p332
      %p335 = scmp.ne.s32.totalorder %s318, %s334
      %p336 = scmp.eq.s32.totalorder %s38, 0
      %p337 = por %p335, %p336
      %s338 = ssub.s32 %s40, %s47
      %p339 = scmp.eq.s32.totalorder %s338, 0
      %s341 = sadd.s32 %s340, 1
      %s342 = scalar_select %p339, %s340, %s341
      %p345 = pneg %p339
      %p346 = scmp.eq.s32.totalorder %s32, 1
      %p347 = por %p345, %p346
      %p348 = scmp.ne.s32.totalorder %s340, %s343
      %p349 = scmp.eq.s32.totalorder %s32, 0
      %p350 = por %p348, %p349
      %p351 = scmp.ne.s32.totalorder %s340, %s343
      %p352 = scmp.eq.s32.totalorder %s37, 1
      %p353 = por %p351, %p352
      %p354 = scmp.ne.s32.totalorder %s343, %s344
      %p355 = scmp.eq.s32.totalorder %s37, 0
      %p356 = por %p354, %p355
      %p357 = scmp.ne.s32.totalorder %s343, %s344
      %p358 = scmp.eq.s32.totalorder %s38, 1
      %p359 = por %p357, %p358
      %p361 = scmp.ne.s32.totalorder %s344, %s360
      %p362 = scmp.eq.s32.totalorder %s38, 0
      %p363 = por %p361, %p362
      %s364 = ssub.s32 %s40, %s47
      %p365 = scmp.eq.s32.totalorder %s364, 0
      %s367 = sadd.s32 %s366, 1
      %s368 = scalar_select %p365, %s366, %s367
      %p371 = pneg %p365
      %p372 = scmp.eq.s32.totalorder %s32, 1
      %p373 = por %p371, %p372
      %p374 = scmp.ne.s32.totalorder %s366, %s369
      %p375 = scmp.eq.s32.totalorder %s32, 0
      %p376 = por %p374, %p375
      %p377 = scmp.ne.s32.totalorder %s366, %s369
      %p378 = scmp.eq.s32.totalorder %s37, 1
      %p379 = por %p377, %p378
      %p380 = scmp.ne.s32.totalorder %s369, %s370
      %p381 = scmp.eq.s32.totalorder %s37, 0
      %p382 = por %p380, %p381
      %p383 = scmp.ne.s32.totalorder %s369, %s370
      %p384 = scmp.eq.s32.totalorder %s38, 1
      %p385 = por %p383, %p384
      %p387 = scmp.ne.s32.totalorder %s370, %s386
      %p388 = scmp.eq.s32.totalorder %s38, 0
      %p389 = por %p387, %p388
      %s390 = ssub.s32 %s40, %s47
      %p391 = scmp.eq.s32.totalorder %s390, 0
      %s393 = sadd.s32 %s392, 1
      %s394 = scalar_select %p391, %s392, %s393
      %p397 = pneg %p391
      %p398 = scmp.eq.s32.totalorder %s32, 1
      %p399 = por %p397, %p398
      %p400 = scmp.ne.s32.totalorder %s392, %s395
      %p401 = scmp.eq.s32.totalorder %s32, 0
      %p402 = por %p400, %p401
      %p403 = scmp.ne.s32.totalorder %s392, %s395
      %p404 = scmp.eq.s32.totalorder %s37, 1
      %p405 = por %p403, %p404
      %p406 = scmp.ne.s32.totalorder %s395, %s396
      %p407 = scmp.eq.s32.totalorder %s37, 0
      %p408 = por %p406, %p407
      %p409 = scmp.ne.s32.totalorder %s395, %s396
      %p410 = scmp.eq.s32.totalorder %s38, 1
      %p411 = por %p409, %p410
      %p413 = scmp.ne.s32.totalorder %s396, %s412
      %p414 = scmp.eq.s32.totalorder %s38, 0
      %p415 = por %p413, %p414
      %s416 = ssub.s32 %s40, %s47
      %p417 = scmp.eq.s32.totalorder %s416, 0
      %s419 = sadd.s32 %s418, 1
      %s420 = scalar_select %p417, %s418, %s419
      %p423 = pneg %p417
      %p424 = scmp.eq.s32.totalorder %s32, 1
      %p425 = por %p423, %p424
      %p426 = scmp.ne.s32.totalorder %s418, %s421
      %p427 = scmp.eq.s32.totalorder %s32, 0
      %p428 = por %p426, %p427
      %p429 = scmp.ne.s32.totalorder %s418, %s421
      %p430 = scmp.eq.s32.totalorder %s37, 1
      %p431 = por %p429, %p430
      %p432 = scmp.ne.s32.totalorder %s421, %s422
      %p433 = scmp.eq.s32.totalorder %s37, 0
      %p434 = por %p432, %p433
      %p435 = scmp.ne.s32.totalorder %s421, %s422
      %p436 = scmp.eq.s32.totalorder %s38, 1
      %p437 = por %p435, %p436
      %p439 = scmp.ne.s32.totalorder %s422, %s438
      %p440 = scmp.eq.s32.totalorder %s38, 0
      %p441 = por %p439, %p440
      %s442 = ssub.s32 %s40, %s47
      %p443 = scmp.eq.s32.totalorder %s442, 0
      %s445 = sadd.s32 %s444, 1
      %s446 = scalar_select %p443, %s444, %s445
      %p449 = pneg %p443
      %p450 = scmp.eq.s32.totalorder %s32, 1
      %p451 = por %p449, %p450
      %p452 = scmp.ne.s32.totalorder %s444, %s447
      %p453 = scmp.eq.s32.totalorder %s32, 0
      %p454 = por %p452, %p453
      %p455 = scmp.ne.s32.totalorder %s444, %s447
      %p456 = scmp.eq.s32.totalorder %s37, 1
      %p457 = por %p455, %p456
      %p458 = scmp.ne.s32.totalorder %s447, %s448
      %p459 = scmp.eq.s32.totalorder %s37, 0
      %p460 = por %p458, %p459
      %p461 = scmp.ne.s32.totalorder %s447, %s448
      %p462 = scmp.eq.s32.totalorder %s38, 1
      %p463 = por %p461, %p462
      %p465 = scmp.ne.s32.totalorder %s448, %s464
      %p466 = scmp.eq.s32.totalorder %s38, 0
      %p467 = por %p465, %p466
      %s468 = ssub.s32 %s40, %s47
      %p469 = scmp.eq.s32.totalorder %s468, 0
      %s471 = sadd.s32 %s470, 1
      %s472 = scalar_select %p469, %s470, %s471
      %p475 = pneg %p469
      %p476 = scmp.eq.s32.totalorder %s32, 1
      %p477 = por %p475, %p476
      %p478 = scmp.ne.s32.totalorder %s470, %s473
      %p479 = scmp.eq.s32.totalorder %s32, 0
      %p480 = por %p478, %p479
      %p481 = scmp.ne.s32.totalorder %s470, %s473
      %p482 = scmp.eq.s32.totalorder %s37, 1
      %p483 = por %p481, %p482
      %p484 = scmp.ne.s32.totalorder %s473, %s474
      %p485 = scmp.eq.s32.totalorder %s37, 0
      %p486 = por %p484, %p485
      %p487 = scmp.ne.s32.totalorder %s473, %s474
      %p488 = scmp.eq.s32.totalorder %s38, 1
      %p489 = por %p487, %p488
      %p491 = scmp.ne.s32.totalorder %s474, %s490
      %p492 = scmp.eq.s32.totalorder %s38, 0
      %p493 = por %p491, %p492
      %s494 = ssub.s32 %s40, %s47
      %p495 = scmp.eq.s32.totalorder %s494, 0
      %s497 = sadd.s32 %s496, 1
      %s498 = scalar_select %p495, %s496, %s497
      %p501 = pneg %p495
      %p502 = scmp.eq.s32.totalorder %s32, 1
      %p503 = por %p501, %p502
      %p504 = scmp.ne.s32.totalorder %s496, %s499
      %p505 = scmp.eq.s32.totalorder %s32, 0
      %p506 = por %p504, %p505
      %p507 = scmp.ne.s32.totalorder %s496, %s499
      %p508 = scmp.eq.s32.totalorder %s37, 1
      %p509 = por %p507, %p508
      %p510 = scmp.ne.s32.totalorder %s499, %s500
      %p511 = scmp.eq.s32.totalorder %s37, 0
      %p512 = por %p510, %p511
      %p513 = scmp.ne.s32.totalorder %s499, %s500
      %p514 = scmp.eq.s32.totalorder %s38, 1
      %p515 = por %p513, %p514
      %p517 = scmp.ne.s32.totalorder %s500, %s516
      %p518 = scmp.eq.s32.totalorder %s38, 0
      %p519 = por %p517, %p518
      %s520 = ssub.s32 %s40, %s47
      %p521 = scmp.eq.s32.totalorder %s520, 0
      %s523 = sadd.s32 %s522, 1
      %s524 = scalar_select %p521, %s522, %s523
      %p527 = pneg %p521
      %p528 = scmp.eq.s32.totalorder %s32, 1
      %p529 = por %p527, %p528
      %p530 = scmp.ne.s32.totalorder %s522, %s525
      %p531 = scmp.eq.s32.totalorder %s32, 0
      %p532 = por %p530, %p531
      %p533 = scmp.ne.s32.totalorder %s522, %s525
      %p534 = scmp.eq.s32.totalorder %s37, 1
      %p535 = por %p533, %p534
      %p536 = scmp.ne.s32.totalorder %s525, %s526
      %p537 = scmp.eq.s32.totalorder %s37, 0
      %p538 = por %p536, %p537
      %p539 = scmp.ne.s32.totalorder %s525, %s526
      %p540 = scmp.eq.s32.totalorder %s38, 1
      %p541 = por %p539, %p540
      %p543 = scmp.ne.s32.totalorder %s526, %s542
      %p544 = scmp.eq.s32.totalorder %s38, 0
      %p545 = por %p543, %p544
      %s546 = ssub.s32 %s40, %s47
      %p547 = scmp.eq.s32.totalorder %s546, 0
      %s549 = sadd.s32 %s548, 1
      %s550 = scalar_select %p547, %s548, %s549
      %p553 = pneg %p547
      %p554 = scmp.eq.s32.totalorder %s32, 1
      %p555 = por %p553, %p554
      %p556 = scmp.ne.s32.totalorder %s548, %s551
      %p557 = scmp.eq.s32.totalorder %s32, 0
      %p558 = por %p556, %p557
      %p559 = scmp.ne.s32.totalorder %s548, %s551
      %p560 = scmp.eq.s32.totalorder %s37, 1
      %p561 = por %p559, %p560
      %p562 = scmp.ne.s32.totalorder %s551, %s552
      %p563 = scmp.eq.s32.totalorder %s37, 0
      %p564 = por %p562, %p563
      %p565 = scmp.ne.s32.totalorder %s551, %s552
      %p566 = scmp.eq.s32.totalorder %s38, 1
      %p567 = por %p565, %p566
      %p569 = scmp.ne.s32.totalorder %s552, %s568
      %p570 = scmp.eq.s32.totalorder %s38, 0
      %p571 = por %p569, %p570
      %s572 = ssub.s32 %s39, %s51
      %p573 = scmp.eq.s32.totalorder %s572, 0
      %s575 = sadd.s32 %s574, 1
      %s576 = scalar_select %p573, %s574, %s575
      %p579 = pneg %p573
      %p580 = scmp.eq.s32.totalorder %s32, 1
      %p581 = por %p579, %p580
      %p582 = scmp.ne.s32.totalorder %s574, %s577
      %p583 = scmp.eq.s32.totalorder %s32, 0
      %p584 = por %p582, %p583
      %p585 = scmp.ne.s32.totalorder %s574, %s577
      %p586 = scmp.eq.s32.totalorder %s37, 1
      %p587 = por %p585, %p586
      %p588 = scmp.ne.s32.totalorder %s577, %s578
      %p589 = scmp.eq.s32.totalorder %s37, 0
      %p590 = por %p588, %p589
      %p591 = scmp.ne.s32.totalorder %s577, %s578
      %p592 = scmp.eq.s32.totalorder %s38, 1
      %p593 = por %p591, %p592
      %p595 = scmp.ne.s32.totalorder %s578, %s594
      %p596 = scmp.eq.s32.totalorder %s38, 0
      %p597 = por %p595, %p596
      %p598 = scmp.le.s32.totalorder 1, %s32
      %p599 = scmp.lt.s32.totalorder %s32, 3
      %p600 = pnand %p598, %p599
      %p601 = pneg %p600
      // Predicated region
      $region9: #{tpu_custom_call.1} parent=5 // pred_check
        _
      $region10: #{tpu_custom_call.1} parent=5 // pred_check_branch
        %603 = sbr.rel (%p600) target = $region12
      $region11: #{tpu_custom_call.1} parent=5 // pred_region
        %s604 = ssub.s32 %s32, 1
        // Predicated region
        $region13: #{tpu_custom_call.1} parent=11 // pred_check
          %p605 = pneg %p70
        $region14: #{tpu_custom_call.1} parent=11 // pred_check_branch
          %607 = sbr.rel (%p605) target = $region16
        $region15: #{tpu_custom_call.1} parent=11 // pred_region
          %s608 = smul.u32 2, %s41
          %s610 = ssub.s32 256, 256
          %611 = vsyncadd [#allocation3], %s610
          %s612 = smul.addr %s608, 128
          %s613 = scalar_lea.hbm %s0, %s612
          %s614 = sshll.u32 [#allocation2], 4
          %s615 = int_to_ptr.vmem [resolvable:$true] %s614
          %620 = dma.hbm_to_vmem [thread:$0]  %s613, 256, %s615, [#allocation3], 128, 128, 8
        $region16: #{tpu_custom_call.1} parent=11 // pred_fallthru
          _
        // Predicated region
        $region17: #{tpu_custom_call.1} parent=11 // pred_check
          %p621 = pneg %p96
        $region18: #{tpu_custom_call.1} parent=11 // pred_check_branch
          %623 = sbr.rel (%p621) target = $region20
        $region19: #{tpu_custom_call.1} parent=11 // pred_region
          %s624 = smul.u32 2, %s41
          %p625 = scmp.lt.s32.totalorder %s624, 1
          %s626 = scalar_select %p625, %s624, 1
          %s627 = smul.addr %s626, 2
          %s628 = smul.addr %s627, 4
          %s629 = scalar_lea.vmem %s1, %s628
          %s630 = smul.u32 2, %s41
        $region20: #{tpu_custom_call.1} parent=11 // pred_fallthru
          _
        // Predicated region
        $region21: #{tpu_custom_call.1} parent=11 // pred_check
          %p631 = pneg %p122
        $region22: #{tpu_custom_call.1} parent=11 // pred_check_branch
          %633 = sbr.rel (%p631) target = $region24
        $region23: #{tpu_custom_call.1} parent=11 // pred_region
          %s634 = smul.u32 2, %s41
          %s636 = ssub.s32 32, 32
          %637 = vsyncadd [#allocation6], %s636
          %s638 = smul.addr %s634, 16
          %s639 = scalar_lea.hbm %s2, %s638
          %s640 = sshll.u32 [#allocation5], 4
          %s641 = int_to_ptr.vmem [resolvable:$true] %s640
          %646 = dma.hbm_to_vmem [thread:$0]  %s639, 32, %s641, [#allocation6], 16, 16, 1
        $region24: #{tpu_custom_call.1} parent=11 // pred_fallthru
          _
        // Predicated region
        $region25: #{tpu_custom_call.1} parent=11 // pred_check
          %p647 = pneg %p148
        $region26: #{tpu_custom_call.1} parent=11 // pred_check_branch
          %649 = sbr.rel (%p647) target = $region28
        $region27: #{tpu_custom_call.1} parent=11 // pred_region
          %s650 = smul.u32 2, %s41
          %s652 = ssub.s32 32, 32
          %653 = vsyncadd [#allocation6], %s652
          %s654 = smul.addr %s650, 16
          %s655 = scalar_lea.hbm %s3, %s654
          %s656 = sshll.u32 [#allocation7], 4
          %s657 = int_to_ptr.vmem [resolvable:$true] %s656
          %662 = dma.hbm_to_vmem [thread:$0]  %s655, 32, %s657, [#allocation6], 16, 16, 1
        $region28: #{tpu_custom_call.1} parent=11 // pred_fallthru
          _
      $region12: #{tpu_custom_call.1} parent=5 // pred_fallthru
        _
      %p663 = scmp.lt.s32.totalorder %s32, 2
      // Predicated region
      $region29: #{tpu_custom_call.1} parent=5 // pred_check
        %p664 = pneg %p663
      $region30: #{tpu_custom_call.1} parent=5 // pred_check_branch
        %666 = sbr.rel (%p664) target = $region32
      $region31: #{tpu_custom_call.1} parent=5 // pred_region
        // Predicated region
        $region33: #{tpu_custom_call.1} parent=31 // pred_check
          %p667 = pneg %p168
        $region34: #{tpu_custom_call.1} parent=31 // pred_check_branch
          %669 = sbr.rel (%p667) target = $region36
        $region35: #{tpu_custom_call.1} parent=31 // pred_region
          %p670 = scmp.lt.s32.totalorder %s40, 1
          %s671 = scalar_select %p670, %s40, 1
          %s672 = smul.addr %s671, 4
          %s673 = scalar_lea.vmem %s4, %s672
        $region36: #{tpu_custom_call.1} parent=31 // pred_fallthru
          _
        // Predicated region
        $region37: #{tpu_custom_call.1} parent=31 // pred_check
          %p674 = pneg %p194
        $region38: #{tpu_custom_call.1} parent=31 // pred_check_branch
          %676 = sbr.rel (%p674) target = $region40
        $region39: #{tpu_custom_call.1} parent=31 // pred_region
          %p677 = scmp.lt.s32.totalorder %s40, 1
          %s678 = scalar_select %p677, %s40, 1
          %s679 = smul.addr %s678, 4
          %s680 = scalar_lea.vmem %s5, %s679
        $region40: #{tpu_custom_call.1} parent=31 // pred_fallthru
          _
        // Predicated region
        $region41: #{tpu_custom_call.1} parent=31 // pred_check
          %p681 = pneg %p220
        $region42: #{tpu_custom_call.1} parent=31 // pred_check_branch
          %683 = sbr.rel (%p681) target = $region44
        $region43: #{tpu_custom_call.1} parent=31 // pred_region
          %p684 = scmp.lt.s32.totalorder %s40, 1
          %s685 = scalar_select %p684, %s40, 1
          %s686 = smul.addr %s685, 4
          %s687 = smul.addr %s686, 4
          %s688 = scalar_lea.vmem %s6, %s687
        $region44: #{tpu_custom_call.1} parent=31 // pred_fallthru
          _
        // Predicated region
        $region45: #{tpu_custom_call.1} parent=31 // pred_check
          %p689 = pneg %p246
        $region46: #{tpu_custom_call.1} parent=31 // pred_check_branch
          %691 = sbr.rel (%p689) target = $region48
        $region47: #{tpu_custom_call.1} parent=31 // pred_region
          %s692 = sand.u32 %s236, 1
          %s693 = scalar_lea.sflag [#allocation9], %s692
          %s694 = sand.u32 %s236, 1
          %s695 = scalar_lea.vmem [#allocation8], %s694
          %s697 = ssub.s32 16, 16
          %698 = vsyncadd %s693, %s697
          %s699 = smul.addr %s40, 16
          %s700 = scalar_lea.hbm %s7, %s699
          %s702 = sshll.u32 %s695, 4
          %s703 = int_to_ptr.vmem [resolvable:$true] %s702
          %705 = dma.hbm_to_vmem [thread:$0]  %s700, 16, %s703, %s693
        $region48: #{tpu_custom_call.1} parent=31 // pred_fallthru
          _
        // Predicated region
        $region49: #{tpu_custom_call.1} parent=31 // pred_check
          %p706 = pneg %p272
        $region50: #{tpu_custom_call.1} parent=31 // pred_check_branch
          %708 = sbr.rel (%p706) target = $region52
        $region51: #{tpu_custom_call.1} parent=31 // pred_region
          %p709 = scmp.lt.s32.totalorder %s40, 1
          %s710 = scalar_select %p709, %s40, 1
          %s711 = smul.addr %s710, 4
          %s712 = smul.addr %s711, 4
          %s713 = scalar_lea.vmem %s8, %s712
        $region52: #{tpu_custom_call.1} parent=31 // pred_fallthru
          _
        // Predicated region
        $region53: #{tpu_custom_call.1} parent=31 // pred_check
          %p714 = pneg %p298
        $region54: #{tpu_custom_call.1} parent=31 // pred_check_branch
          %716 = sbr.rel (%p714) target = $region56
        $region55: #{tpu_custom_call.1} parent=31 // pred_region
          %p717 = scmp.lt.s32.totalorder %s40, 1
          %s718 = scalar_select %p717, %s40, 1
          %s719 = scalar_lea.vmem %s9, %s718
        $region56: #{tpu_custom_call.1} parent=31 // pred_fallthru
          _
        // Predicated region
        $region57: #{tpu_custom_call.1} parent=31 // pred_check
          %p720 = pneg %p324
        $region58: #{tpu_custom_call.1} parent=31 // pred_check_branch
          %722 = sbr.rel (%p720) target = $region60
        $region59: #{tpu_custom_call.1} parent=31 // pred_region
          %p723 = scmp.lt.s32.totalorder %s40, 1
          %s724 = scalar_select %p723, %s40, 1
          %s725 = smul.addr %s724, 4
          %s726 = smul.addr %s725, 4
          %s727 = scalar_lea.vmem %s10, %s726
        $region60: #{tpu_custom_call.1} parent=31 // pred_fallthru
          _
        // Predicated region
        $region61: #{tpu_custom_call.1} parent=31 // pred_check
          %p728 = pneg %p350
        $region62: #{tpu_custom_call.1} parent=31 // pred_check_branch
          %730 = sbr.rel (%p728) target = $region64
        $region63: #{tpu_custom_call.1} parent=31 // pred_region
          %p731 = scmp.lt.s32.totalorder %s40, 1
          %s732 = scalar_select %p731, %s40, 1
          %s733 = scalar_lea.vmem %s11, %s732
        $region64: #{tpu_custom_call.1} parent=31 // pred_fallthru
          _
        // Predicated region
        $region65: #{tpu_custom_call.1} parent=31 // pred_check
          %p734 = pneg %p376
        $region66: #{tpu_custom_call.1} parent=31 // pred_check_branch
          %736 = sbr.rel (%p734) target = $region68
        $region67: #{tpu_custom_call.1} parent=31 // pred_region
          %p737 = scmp.lt.s32.totalorder %s40, 1
          %s738 = scalar_select %p737, %s40, 1
          %s739 = smul.addr %s738, 4
          %s740 = smul.addr %s739, 4
          %s741 = scalar_lea.vmem %s12, %s740
        $region68: #{tpu_custom_call.1} parent=31 // pred_fallthru
          _
        // Predicated region
        $region69: #{tpu_custom_call.1} parent=31 // pred_check
          %p742 = pneg %p402
        $region70: #{tpu_custom_call.1} parent=31 // pred_check_branch
          %744 = sbr.rel (%p742) target = $region72
        $region71: #{tpu_custom_call.1} parent=31 // pred_region
          %p745 = scmp.lt.s32.totalorder %s40, 1
          %s746 = scalar_select %p745, %s40, 1
          %s747 = scalar_lea.vmem %s13, %s746
        $region72: #{tpu_custom_call.1} parent=31 // pred_fallthru
          _
        // Predicated region
        $region73: #{tpu_custom_call.1} parent=31 // pred_check
          %p748 = pneg %p428
        $region74: #{tpu_custom_call.1} parent=31 // pred_check_branch
          %750 = sbr.rel (%p748) target = $region76
        $region75: #{tpu_custom_call.1} parent=31 // pred_region
          %p751 = scmp.lt.s32.totalorder %s40, 1
          %s752 = scalar_select %p751, %s40, 1
          %s753 = smul.addr %s752, 4
          %s754 = smul.addr %s753, 4
          %s755 = scalar_lea.vmem %s14, %s754
        $region76: #{tpu_custom_call.1} parent=31 // pred_fallthru
          _
        // Predicated region
        $region77: #{tpu_custom_call.1} parent=31 // pred_check
          %p756 = pneg %p454
        $region78: #{tpu_custom_call.1} parent=31 // pred_check_branch
          %758 = sbr.rel (%p756) target = $region80
        $region79: #{tpu_custom_call.1} parent=31 // pred_region
          %p759 = scmp.lt.s32.totalorder %s40, 1
          %s760 = scalar_select %p759, %s40, 1
          %s761 = scalar_lea.vmem %s15, %s760
        $region80: #{tpu_custom_call.1} parent=31 // pred_fallthru
          _
        // Predicated region
        $region81: #{tpu_custom_call.1} parent=31 // pred_check
          %p762 = pneg %p480
        $region82: #{tpu_custom_call.1} parent=31 // pred_check_branch
          %764 = sbr.rel (%p762) target = $region84
        $region83: #{tpu_custom_call.1} parent=31 // pred_region
          %p765 = scmp.lt.s32.totalorder %s40, 1
          %s766 = scalar_select %p765, %s40, 1
          %s767 = smul.addr %s766, 4
          %s768 = smul.addr %s767, 4
          %s769 = scalar_lea.vmem %s16, %s768
        $region84: #{tpu_custom_call.1} parent=31 // pred_fallthru
          _
        // Predicated region
        $region85: #{tpu_custom_call.1} parent=31 // pred_check
          %p770 = pneg %p506
        $region86: #{tpu_custom_call.1} parent=31 // pred_check_branch
          %772 = sbr.rel (%p770) target = $region88
        $region87: #{tpu_custom_call.1} parent=31 // pred_region
          %p773 = scmp.lt.s32.totalorder %s40, 1
          %s774 = scalar_select %p773, %s40, 1
          %s775 = scalar_lea.vmem %s17, %s774
        $region88: #{tpu_custom_call.1} parent=31 // pred_fallthru
          _
        // Predicated region
        $region89: #{tpu_custom_call.1} parent=31 // pred_check
          %p776 = pneg %p532
        $region90: #{tpu_custom_call.1} parent=31 // pred_check_branch
          %778 = sbr.rel (%p776) target = $region92
        $region91: #{tpu_custom_call.1} parent=31 // pred_region
          %p779 = scmp.lt.s32.totalorder %s40, 1
          %s780 = scalar_select %p779, %s40, 1
          %s781 = smul.addr %s780, 16
          %s782 = smul.addr %s781, 4
          %s783 = scalar_lea.vmem %s18, %s782
        $region92: #{tpu_custom_call.1} parent=31 // pred_fallthru
          _
        // Predicated region
        $region93: #{tpu_custom_call.1} parent=31 // pred_check
          %p784 = pneg %p558
        $region94: #{tpu_custom_call.1} parent=31 // pred_check_branch
          %786 = sbr.rel (%p784) target = $region96
        $region95: #{tpu_custom_call.1} parent=31 // pred_region
          %p787 = scmp.lt.s32.totalorder %s40, 1
          %s788 = scalar_select %p787, %s40, 1
          %s789 = scalar_lea.vmem %s19, %s788
        $region96: #{tpu_custom_call.1} parent=31 // pred_fallthru
          _
      $region32: #{tpu_custom_call.1} parent=5 // pred_fallthru
        _
      %p790 = scmp.le.s32.totalorder 1, %s32
      %p791 = scmp.lt.s32.totalorder %s32, 3
      %p792 = pnand %p790, %p791
      %p793 = pneg %p792
      // Predicated region
      $region97: #{tpu_custom_call.1} parent=5 // pred_check
        _
      $region98: #{tpu_custom_call.1} parent=5 // pred_check_branch
        %795 = sbr.rel (%p792) target = $region100
      $region99: #{tpu_custom_call.1} parent=5 // pred_region
        %s796 = ssub.s32 %s32, 1
        // Predicated region
        $region101: #{tpu_custom_call.1} parent=99 // pred_check
          %p797 = pneg %p70
        $region102: #{tpu_custom_call.1} parent=99 // pred_check_branch
          %799 = sbr.rel (%p797) target = $region104
        $region103: #{tpu_custom_call.1} parent=99 // pred_region
          %800 = dma.done [#allocation3], 256
        $region104: #{tpu_custom_call.1} parent=99 // pred_fallthru
          _
        // Predicated region
        $region105: #{tpu_custom_call.1} parent=99 // pred_check
          %p801 = pneg %p122
        $region106: #{tpu_custom_call.1} parent=99 // pred_check_branch
          %803 = sbr.rel (%p801) target = $region108
        $region107: #{tpu_custom_call.1} parent=99 // pred_region
          %804 = dma.done [#allocation6], 32
        $region108: #{tpu_custom_call.1} parent=99 // pred_fallthru
          _
        // Predicated region
        $region109: #{tpu_custom_call.1} parent=99 // pred_check
          %p805 = pneg %p148
        $region110: #{tpu_custom_call.1} parent=99 // pred_check_branch
          %807 = sbr.rel (%p805) target = $region112
        $region111: #{tpu_custom_call.1} parent=99 // pred_region
          %808 = dma.done [#allocation6], 32
        $region112: #{tpu_custom_call.1} parent=99 // pred_fallthru
          _
        %s809 = sand.u32 %s239, 1
        %s810 = scalar_lea.sflag [#allocation9], %s809
        %s811 = sand.u32 %s239, 1
        %s812 = scalar_lea.vmem [#allocation8], %s811
        // Predicated region
        $region113: #{tpu_custom_call.1} parent=99 // pred_check
          %p813 = pneg %p252
        $region114: #{tpu_custom_call.1} parent=99 // pred_check_branch
          %815 = sbr.rel (%p813) target = $region116
        $region115: #{tpu_custom_call.1} parent=99 // pred_region
          %816 = dma.done %s810, 16
        $region116: #{tpu_custom_call.1} parent=99 // pred_fallthru
          _
        %p817 = pneg %p70
        %p818 = pneg %p67
        %s819 = smul.u32 2, %s41
        %p820 = scmp.lt.s32.totalorder %s819, 1
        %s821 = scalar_select %p820, %s819, 1
        %s822 = smul.addr %s821, 2
        %s823 = smul.addr %s822, 4
        %s824 = scalar_lea.vmem %s1, %s823
        %p825 = pneg %p96
        %p826 = pneg %p93
        %p827 = pneg %p122
        %p828 = pneg %p119
        %p829 = pneg %p148
        %p830 = pneg %p145
        %p831 = scmp.lt.s32.totalorder %s42, 1
        %s832 = scalar_select %p831, %s42, 1
        %s833 = smul.addr %s832, 4
        %s834 = scalar_lea.vmem %s4, %s833
        %p835 = pneg %p174
        %p836 = pneg %p171
        %p837 = scmp.lt.s32.totalorder %s42, 1
        %s838 = scalar_select %p837, %s42, 1
        %s839 = smul.addr %s838, 4
        %s840 = scalar_lea.vmem %s5, %s839
        %p841 = pneg %p200
        %p842 = pneg %p197
        %p843 = scmp.lt.s32.totalorder %s42, 1
        %s844 = scalar_select %p843, %s42, 1
        %s845 = smul.addr %s844, 4
        %s846 = smul.addr %s845, 4
        %s847 = scalar_lea.vmem %s6, %s846
        %p848 = pneg %p226
        %p849 = pneg %p223
        %s850 = sand.u32 %s239, 1
        %s851 = scalar_lea.sflag [#allocation9], %s850
        %s852 = sand.u32 %s239, 1
        %s853 = scalar_lea.vmem [#allocation8], %s852
        %p854 = pneg %p252
        %p855 = pneg %p249
        %p856 = scmp.lt.s32.totalorder %s42, 1
        %s857 = scalar_select %p856, %s42, 1
        %s858 = smul.addr %s857, 4
        %s859 = smul.addr %s858, 4
        %s860 = scalar_lea.vmem %s8, %s859
        %p861 = pneg %p278
        %p862 = pneg %p275
        %p863 = scmp.lt.s32.totalorder %s42, 1
        %s864 = scalar_select %p863, %s42, 1
        %s865 = scalar_lea.vmem %s9, %s864
        %p866 = pneg %p304
        %p867 = pneg %p301
        %p868 = scmp.lt.s32.totalorder %s42, 1
        %s869 = scalar_select %p868, %s42, 1
        %s870 = smul.addr %s869, 4
        %s871 = smul.addr %s870, 4
        %s872 = scalar_lea.vmem %s10, %s871
        %p873 = pneg %p330
        %p874 = pneg %p327
        %p875 = scmp.lt.s32.totalorder %s42, 1
        %s876 = scalar_select %p875, %s42, 1
        %s877 = scalar_lea.vmem %s11, %s876
        %p878 = pneg %p356
        %p879 = pneg %p353
        %p880 = scmp.lt.s32.totalorder %s42, 1
        %s881 = scalar_select %p880, %s42, 1
        %s882 = smul.addr %s881, 4
        %s883 = smul.addr %s882, 4
        %s884 = scalar_lea.vmem %s12, %s883
        %p885 = pneg %p382
        %p886 = pneg %p379
        %p887 = scmp.lt.s32.totalorder %s42, 1
        %s888 = scalar_select %p887, %s42, 1
        %s889 = scalar_lea.vmem %s13, %s888
        %p890 = pneg %p408
        %p891 = pneg %p405
        %p892 = scmp.lt.s32.totalorder %s42, 1
        %s893 = scalar_select %p892, %s42, 1
        %s894 = smul.addr %s893, 4
        %s895 = smul.addr %s894, 4
        %s896 = scalar_lea.vmem %s14, %s895
        %p897 = pneg %p434
        %p898 = pneg %p431
        %p899 = scmp.lt.s32.totalorder %s42, 1
        %s900 = scalar_select %p899, %s42, 1
        %s901 = scalar_lea.vmem %s15, %s900
        %p902 = pneg %p460
        %p903 = pneg %p457
        %p904 = scmp.lt.s32.totalorder %s42, 1
        %s905 = scalar_select %p904, %s42, 1
        %s906 = smul.addr %s905, 4
        %s907 = smul.addr %s906, 4
        %s908 = scalar_lea.vmem %s16, %s907
        %p909 = pneg %p486
        %p910 = pneg %p483
        %p911 = scmp.lt.s32.totalorder %s42, 1
        %s912 = scalar_select %p911, %s42, 1
        %s913 = scalar_lea.vmem %s17, %s912
        %p914 = pneg %p512
        %p915 = pneg %p509
        %p916 = scmp.lt.s32.totalorder %s42, 1
        %s917 = scalar_select %p916, %s42, 1
        %s918 = smul.addr %s917, 16
        %s919 = smul.addr %s918, 4
        %s920 = scalar_lea.vmem %s18, %s919
        %p921 = pneg %p538
        %p922 = pneg %p535
        %p923 = scmp.lt.s32.totalorder %s42, 1
        %s924 = scalar_select %p923, %s42, 1
        %s925 = scalar_lea.vmem %s19, %s924
        %p926 = pneg %p564
        %p927 = pneg %p561
        %p928 = pneg %p590
        %p929 = pneg %p587
        %s930 = smul.u32 2, %s41
        %s931 = smul.u32 2, %s41
        %p932 = scmp.lt.s32.totalorder %s931, 1
        %s933 = scalar_select %p932, %s931, 1
        %s934 = smul.addr %s933, 2
        %s935 = smul.addr %s934, 4
        %s936 = scalar_lea.vmem %s1, %s935
        %s937 = smul.u32 2, %s41
        %s938 = smul.u32 2, %s41
        %s939 = smul.u32 2, %s41
        %p940 = scmp.lt.s32.totalorder %s42, 1
        %s941 = scalar_select %p940, %s42, 1
        %s942 = smul.addr %s941, 4
        %s943 = scalar_lea.vmem %s4, %s942
        %p944 = scmp.lt.s32.totalorder %s42, 1
        %s945 = scalar_select %p944, %s42, 1
        %s946 = smul.addr %s945, 4
        %s947 = scalar_lea.vmem %s5, %s946
        %p948 = scmp.lt.s32.totalorder %s42, 1
        %s949 = scalar_select %p948, %s42, 1
        %s950 = smul.addr %s949, 4
        %s951 = smul.addr %s950, 4
        %s952 = scalar_lea.vmem %s6, %s951
        %p953 = scmp.lt.s32.totalorder %s42, 1
        %s954 = scalar_select %p953, %s42, 1
        %s955 = smul.addr %s954, 4
        %s956 = smul.addr %s955, 4
        %s957 = scalar_lea.vmem %s8, %s956
        %p958 = scmp.lt.s32.totalorder %s42, 1
        %s959 = scalar_select %p958, %s42, 1
        %s960 = scalar_lea.vmem %s9, %s959
        %p961 = scmp.lt.s32.totalorder %s42, 1
        %s962 = scalar_select %p961, %s42, 1
        %s963 = smul.addr %s962, 4
        %s964 = smul.addr %s963, 4
        %s965 = scalar_lea.vmem %s10, %s964
        %p966 = scmp.lt.s32.totalorder %s42, 1
        %s967 = scalar_select %p966, %s42, 1
        %s968 = scalar_lea.vmem %s11, %s967
        %p969 = scmp.lt.s32.totalorder %s42, 1
        %s970 = scalar_select %p969, %s42, 1
        %s971 = smul.addr %s970, 4
        %s972 = smul.addr %s971, 4
        %s973 = scalar_lea.vmem %s12, %s972
        %p974 = scmp.lt.s32.totalorder %s42, 1
        %s975 = scalar_select %p974, %s42, 1
        %s976 = scalar_lea.vmem %s13, %s975
        %p977 = scmp.lt.s32.totalorder %s42, 1
        %s978 = scalar_select %p977, %s42, 1
        %s979 = smul.addr %s978, 4
        %s980 = smul.addr %s979, 4
        %s981 = scalar_lea.vmem %s14, %s980
        %p982 = scmp.lt.s32.totalorder %s42, 1
        %s983 = scalar_select %p982, %s42, 1
        %s984 = scalar_lea.vmem %s15, %s983
        %p985 = scmp.lt.s32.totalorder %s42, 1
        %s986 = scalar_select %p985, %s42, 1
        %s987 = smul.addr %s986, 4
        %s988 = smul.addr %s987, 4
        %s989 = scalar_lea.vmem %s16, %s988
        %p990 = scmp.lt.s32.totalorder %s42, 1
        %s991 = scalar_select %p990, %s42, 1
        %s992 = scalar_lea.vmem %s17, %s991
        %p993 = scmp.lt.s32.totalorder %s42, 1
        %s994 = scalar_select %p993, %s42, 1
        %s995 = smul.addr %s994, 16
        %s996 = smul.addr %s995, 4
        %s997 = scalar_lea.vmem %s18, %s996
        %p998 = scmp.lt.s32.totalorder %s42, 1
        %s999 = scalar_select %p998, %s42, 1
        %s1000 = scalar_lea.vmem %s19, %s999
        %s1001 = smul.u32 2, %s41
        %p1003 = scmp.eq.s32.totalorder %s42, 0
        // Predicated region
        $region117: #{tpu_custom_call.1} parent=99 // pred_check
          %p1004 = pneg %p1003
        $region118: #{tpu_custom_call.1} parent=99 // pred_check_branch
          %1006 = sbr.rel (%p1004) target = $region120
        $region119: #{tpu_custom_call.1} parent=99 // pred_region
          %v1007 = vld [vmem:[#allocation2] sm:$0xff]
          %v1008 = vld [vmem:[#allocation2 + $0x8] sm:$0xff]
          %vm1009 = vcmask 261120
          %1010 = vst.msk [vmem:[#allocation10] sm:$0xff] %vm1009, %v1007
          %1011 = vst.msk [vmem:[#allocation10 + $0x8] sm:$0xff] %vm1009, %v1008
        $region120: #{tpu_custom_call.1} parent=99 // pred_fallthru
          _
        %v1012 = vld [vmem:[#allocation10] sm:$0xff]
        %v1013 = vld [vmem:[#allocation10 + $0x8] sm:$0xff]
        %v1014 = vld [vmem:[%s936] sm:$0xf]
        %v1015 = vld [vmem:[%s936 + $0x4] sm:$0x1]
        %v1016 = vld [vmem:[%s936 + $0x8] sm:$0xf]
        %v1017 = vld [vmem:[%s936 + $0xc] sm:$0x1]
        %v1018 = vld [vmem:[%s943] sm:$0x7]
        %v1019 = vld [vmem:[%s947] sm:$0x7]
        %v1020 = vlaneseq
        %v1021 = vshrl.u32 %v1020, 7
        %v1022 = vlaneseq
        %v1023 = vand.u32 %v1022, 127
        %vm1024 = vcmp.gt.s32.totalorder %v1023, %v1021
        %vm1025 = vcmask 261120
        %v1026 = vsel %vm1025, %v1012, 0.0
        %1027 = vadd.xlane.f32.xlu0 %v1026
        %v1028 = vpop.xlane.xlu0 %1027
        %v1029 = vsel %vm1025, %v1013, 0.0
        %1030 = vadd.xlane.f32.xlu0 %v1029
        %v1031 = vpop.xlane.xlu0 %1030
        %v1032 = vrcp.pop 32.0
        %v1033 = vmul.f32 %v1028, %v1032
        %v1034 = vmul.f32 %v1031, %v1032
        %v1035 = vsub.f32 %v1012, %v1033
        %v1036 = vsub.f32 %v1013, %v1034
        %v1037 = vmul.f32 %v1035, %v1035
        %v1038 = vmul.f32 %v1036, %v1036
        %v1039 = vsel %vm1025, %v1037, 0.0
        %1040 = vadd.xlane.f32.xlu0 %v1039
        %v1041 = vpop.xlane.xlu0 %1040
        %v1042 = vsel %vm1025, %v1038, 0.0
        %1043 = vadd.xlane.f32.xlu0 %v1042
        %v1044 = vpop.xlane.xlu0 %1043
        %v1045 = vmul.f32 %v1041, %v1032
        %v1046 = vmul.f32 %v1044, %v1032
        %v1047 = vadd.f32 %v1045, 1e-05
        %v1048 = vadd.f32 %v1046, 1e-05
        %v1049 = vrsqrt.pop %v1047
        %v1050 = vrsqrt.pop %v1048
        %v1051 = vmul.f32 %v1035, %v1049
        %v1052 = vmul.f32 %v1036, %v1050
        %v1053 = vlaneseq
        %v1054 = vshrl.u32 %v1053, 7
        %v1055 = vsub.s32 0, %v1054
        %v1056 = vrot.slane %v1018, %v1055
        %v1057 = vmul.f32 %v1051, %v1056
        %v1058 = vmul.f32 %v1052, %v1056
        %v1059 = vlaneseq
        %v1060 = vshrl.u32 %v1059, 7
        %v1061 = vsub.s32 0, %v1060
        %v1062 = vrot.slane %v1019, %v1061
        %v1063 = vadd.f32 %v1057, %v1062
        %v1064 = vadd.f32 %v1058, %v1062
        %v1065 = vpack.c.bf16 %v1064, %v1063
        %v1066 = vld [vmem:[%s952] sm:$0xf]
        %v1067 = vld [vmem:[%s952 + $0x4] sm:$0xf]
        %v1068 = vld [vmem:[%s952 + $0x8] sm:$0xf]
        %v1069 = vld [vmem:[%s952 + $0xc] sm:$0xf]
        %v1070 = vld [vmem:[%s812] sm:$0x1]
        %v1072 = vlaneseq
        %v1073 = vshrl.u32 %v1072, 7
        %v1074 = vsub.s32 0, %v1073
        %v1075 = vrot.slane %v1070, %v1074
        %v1081 = vunpack.c.l.b16 %v1066
        %v1082 = vunpack.c.l.b16 %v1067
        %v1083 = vunpack.c.l.b16 %v1068
        %v1084 = vunpack.c.l.b16 %v1069
        %v1085 = vpack.c.b16 %v1082, %v1081
        %v1086 = vpack.c.b16 %v1084, %v1083
        %v1090 = vsel %vm1025, %v1065, 0
        %1092 = vmatprep.subr.bf16.mxu0 0
        %1093 = vmatpush1.bf16.msra.mxu0 0
        %1094 = vmatprep.subr.bf16.mxu0 0
        %1095 = vmatpush1.bf16.msra.mxu0 0
        %1096 = vmatprep.subr.bf16.mxu0 0
        %1097 = vmatpush1.bf16.msra.mxu0 0
        %1098 = vmatprep.subr.bf16.mxu0 0
        %1099 = vmatpush1.bf16.msra.mxu0 0
        %1100 = vmatprep.subr.bf16.mxu0 0
        %1101 = vmatpush1.bf16.msra.mxu0 0
        %1102 = vmatprep.subr.bf16.mxu0 0
        %1103 = vmatpush1.bf16.msra.mxu0 0
        %1104 = vmatprep.subr.bf16.mxu0 0
        %1105 = vmatpush1.bf16.msra.mxu0 %v1086
        %1106 = vmatprep.subr.bf16.mxu0 0
        %1107 = vmatpush1.bf16.msra.mxu0 %v1085
        %1108 = vmatprep.subr.bf16.mxu0 0
        %1109 = vmatpush2.bf16.msra.mxu0 0
        %1110 = vmatprep.subr.bf16.mxu0 0
        %1111 = vmatpush2.bf16.msra.mxu0 0
        %1112 = vmatprep.subr.bf16.mxu0 0
        %1113 = vmatpush2.bf16.msra.mxu0 0
        %1114 = vmatprep.subr.bf16.mxu0 0
        %1115 = vmatpush2.bf16.msra.mxu0 0
        %1116 = vmatprep.subr.bf16.mxu0 0
        %1117 = vmatpush2.bf16.msra.mxu0 0
        %1118 = vmatprep.subr.bf16.mxu0 0
        %1119 = vmatpush2.bf16.msra.mxu0 0
        %1120 = vmatprep.subr.bf16.mxu0 0
        %1121 = vmatpush2.bf16.msra.mxu0 0
        %1122 = vmatprep.subr.bf16.mxu0 0
        %1123 = vmatpush2.bf16.msra.mxu0 0
        %1124 = vmatprep.mubr.bf16.mxu0 0
        %1125 = vmatmul.mubr.bf16.gmra.mxu0 %v1090
        %v1126 = vpop.f32.mrf.mxu0
        %v1127 = vadd.f32 %v1075, %v1126
        %v1128 = vpop.f32.mrf.mxu0
        %v1129 = vpop.f32.mrf.mxu0
        %v1130 = vadd.f32 %v1075, %v1129
        %v1131 = vpop.f32.mrf.mxu0
        %1132 = vdwg.mxu0
        %v1133 = vld [vmem:[#allocation5] sm:$0x1]
        %vm1134 = vcmp.gt.f32.partialorder %v1133, 0.5
        %v1135 = vsel %vm1134, 1, 0
        %v1136 = vlaneseq
        %v1137 = vshrl.u32 %v1136, 7
        %v1138 = vsub.s32 0, %v1137
        %v1139 = vrot.slane %v1135, %v1138
        %vm1140 = vcmp.eq.s32.totalorder %v1139, 1
        %vm1141 = vmor %vm1024, %vm1140
        %1143 = vrot.lane.b32.xlu0 %v1127, 120
        %v1144 = vpop.permute.xlu0 %1143
        %1146 = vrot.lane.b32.xlu0 %v1127, 112
        %v1147 = vpop.permute.xlu0 %1146
        %1149 = vrot.lane.b32.xlu0 %v1127, 104
        %v1150 = vpop.permute.xlu0 %1149
        %v1152 = vcombine.low %v1127, %v1147
        %v1153 = vcombine.high %v1127, %v1147
        %v1155 = vunpack.c.l.s4 1983009808
        %v1156 = vunpack.c.0.s8 %v1155
        %v1157 = vlaneseq
        %v1158 = vshrl.u32 %v1157, 7
        %v1159 = vsub.s32 %v1156, %v1158
        %v1160 = vrot.slane %v1152, %v1159
        %v1162 = vunpack.c.l.s4 1983009808
        %v1163 = vunpack.c.0.s8 %v1162
        %v1164 = vlaneseq
        %v1165 = vshrl.u32 %v1164, 7
        %v1166 = vsub.s32 %v1163, %v1165
        %v1167 = vrot.slane %v1153, %v1166
        %v1168 = vcombine.low %v1144, %v1150
        %v1169 = vcombine.high %v1144, %v1150
        %v1171 = vunpack.c.l.s4 1983009808
        %v1172 = vunpack.c.0.s8 %v1171
        %v1173 = vlaneseq
        %v1174 = vshrl.u32 %v1173, 7
        %v1175 = vsub.s32 %v1172, %v1174
        %v1176 = vrot.slane %v1168, %v1175
        %v1178 = vunpack.c.l.s4 1983009808
        %v1179 = vunpack.c.0.s8 %v1178
        %v1180 = vlaneseq
        %v1181 = vshrl.u32 %v1180, 7
        %v1182 = vsub.s32 %v1179, %v1181
        %v1183 = vrot.slane %v1169, %v1182
        %v1184 = vcombine.low %v1160, %v1176
        %v1185 = vcombine.high %v1160, %v1176
        %v1187 = vunpack.c.l.s4 1934713408
        %v1188 = vunpack.c.0.s8 %v1187
        %v1189 = vlaneseq
        %v1190 = vshrl.u32 %v1189, 7
        %v1191 = vsub.s32 %v1188, %v1190
        %v1192 = vrot.slane %v1184, %v1191
        %v1194 = vunpack.c.l.s4 1934713408
        %v1195 = vunpack.c.0.s8 %v1194
        %v1196 = vlaneseq
        %v1197 = vshrl.u32 %v1196, 7
        %v1198 = vsub.s32 %v1195, %v1197
        %v1199 = vrot.slane %v1185, %v1198
        %v1200 = vcombine.low %v1167, %v1183
        %v1201 = vcombine.high %v1167, %v1183
        %v1203 = vunpack.c.l.s4 1934713408
        %v1204 = vunpack.c.0.s8 %v1203
        %v1205 = vlaneseq
        %v1206 = vshrl.u32 %v1205, 7
        %v1207 = vsub.s32 %v1204, %v1206
        %v1208 = vrot.slane %v1200, %v1207
        %v1210 = vunpack.c.l.s4 1934713408
        %v1211 = vunpack.c.0.s8 %v1210
        %v1212 = vlaneseq
        %v1213 = vshrl.u32 %v1212, 7
        %v1214 = vsub.s32 %v1211, %v1213
        %v1215 = vrot.slane %v1201, %v1214
        %v1216 = vcombine.high %v1192, 0.0
        %v1217 = vcombine.high %v1199, 0.0
        %v1218 = vcombine.high %v1208, 0.0
        %v1219 = vcombine.high %v1215, 0.0
        %v1220 = vcombine.low %v1192, %v1199
        %v1222 = vunpack.c.l.s4 1983009808
        %v1223 = vunpack.c.0.s8 %v1222
        %v1224 = vlaneseq
        %v1225 = vshrl.u32 %v1224, 7
        %v1226 = vsub.s32 %v1223, %v1225
        %v1227 = vrot.slane %v1220, %v1226
        %v1228 = vcombine.low %v1216, %v1217
        %v1230 = vunpack.c.l.s4 1983009808
        %v1231 = vunpack.c.0.s8 %v1230
        %v1232 = vlaneseq
        %v1233 = vshrl.u32 %v1232, 7
        %v1234 = vsub.s32 %v1231, %v1233
        %v1235 = vrot.slane %v1228, %v1234
        %v1236 = vcombine.low %v1208, %v1215
        %v1238 = vunpack.c.l.s4 1983009808
        %v1239 = vunpack.c.0.s8 %v1238
        %v1240 = vlaneseq
        %v1241 = vshrl.u32 %v1240, 7
        %v1242 = vsub.s32 %v1239, %v1241
        %v1243 = vrot.slane %v1236, %v1242
        %v1244 = vcombine.low %v1218, %v1219
        %v1246 = vunpack.c.l.s4 1983009808
        %v1247 = vunpack.c.0.s8 %v1246
        %v1248 = vlaneseq
        %v1249 = vshrl.u32 %v1248, 7
        %v1250 = vsub.s32 %v1247, %v1249
        %v1251 = vrot.slane %v1244, %v1250
        %v1252 = vcombine.low %v1227, %v1235
        %v1253 = vcombine.high %v1227, %v1235
        %v1255 = vunpack.c.l.s4 1934713408
        %v1256 = vunpack.c.0.s8 %v1255
        %v1257 = vlaneseq
        %v1258 = vshrl.u32 %v1257, 7
        %v1259 = vsub.s32 %v1256, %v1258
        %v1260 = vrot.slane %v1252, %v1259
        %v1262 = vunpack.c.l.s4 1934713408
        %v1263 = vunpack.c.0.s8 %v1262
        %v1264 = vlaneseq
        %v1265 = vshrl.u32 %v1264, 7
        %v1266 = vsub.s32 %v1263, %v1265
        %v1267 = vrot.slane %v1253, %v1266
        %v1268 = vcombine.low %v1243, %v1251
        %v1269 = vcombine.high %v1243, %v1251
        %v1271 = vunpack.c.l.s4 1934713408
        %v1272 = vunpack.c.0.s8 %v1271
        %v1273 = vlaneseq
        %v1274 = vshrl.u32 %v1273, 7
        %v1275 = vsub.s32 %v1272, %v1274
        %v1276 = vrot.slane %v1268, %v1275
        %v1278 = vunpack.c.l.s4 1934713408
        %v1279 = vunpack.c.0.s8 %v1278
        %v1280 = vlaneseq
        %v1281 = vshrl.u32 %v1280, 7
        %v1282 = vsub.s32 %v1279, %v1281
        %v1283 = vrot.slane %v1269, %v1282
        %v1284 = vcombine.low %v1260, %v1276
        %v1285 = vcombine.high %v1260, %v1276
        %v1286 = vcombine.low %v1267, %v1283
        %v1287 = vcombine.high %v1267, %v1283
        %v1288 = vpack.c.bf16 %v1284, %v1284
        %v1289 = vpack.c.bf16 %v1285, %v1285
        %v1290 = vpack.c.bf16 %v1286, %v1286
        %v1291 = vpack.c.bf16 %v1287, %v1287
        %1292 = vrot.lane.b32.xlu0 %v1127, 96
        %v1293 = vpop.permute.xlu0 %1292
        %1294 = vrot.lane.b32.xlu0 %v1144, 96
        %v1295 = vpop.permute.xlu0 %1294
        %1296 = vrot.lane.b32.xlu0 %v1147, 96
        %v1297 = vpop.permute.xlu0 %1296
        %1298 = vrot.lane.b32.xlu0 %v1150, 96
        %v1299 = vpop.permute.xlu0 %1298
        %v1304 = vcombine.low %v1293, %v1297
        %v1305 = vcombine.high %v1293, %v1297
        %v1307 = vunpack.c.l.s4 1983009808
        %v1308 = vunpack.c.0.s8 %v1307
        %v1309 = vlaneseq
        %v1310 = vshrl.u32 %v1309, 7
        %v1311 = vsub.s32 %v1308, %v1310
        %v1312 = vrot.slane %v1304, %v1311
        %v1314 = vunpack.c.l.s4 1983009808
        %v1315 = vunpack.c.0.s8 %v1314
        %v1316 = vlaneseq
        %v1317 = vshrl.u32 %v1316, 7
        %v1318 = vsub.s32 %v1315, %v1317
        %v1319 = vrot.slane %v1305, %v1318
        %v1320 = vcombine.low %v1295, %v1299
        %v1321 = vcombine.high %v1295, %v1299
        %v1323 = vunpack.c.l.s4 1983009808
        %v1324 = vunpack.c.0.s8 %v1323
        %v1325 = vlaneseq
        %v1326 = vshrl.u32 %v1325, 7
        %v1327 = vsub.s32 %v1324, %v1326
        %v1328 = vrot.slane %v1320, %v1327
        %v1330 = vunpack.c.l.s4 1983009808
        %v1331 = vunpack.c.0.s8 %v1330
        %v1332 = vlaneseq
        %v1333 = vshrl.u32 %v1332, 7
        %v1334 = vsub.s32 %v1331, %v1333
        %v1335 = vrot.slane %v1321, %v1334
        %v1336 = vcombine.low %v1312, %v1328
        %v1337 = vcombine.high %v1312, %v1328
        %v1339 = vunpack.c.l.s4 1934713408
        %v1340 = vunpack.c.0.s8 %v1339
        %v1341 = vlaneseq
        %v1342 = vshrl.u32 %v1341, 7
        %v1343 = vsub.s32 %v1340, %v1342
        %v1344 = vrot.slane %v1336, %v1343
        %v1346 = vunpack.c.l.s4 1934713408
        %v1347 = vunpack.c.0.s8 %v1346
        %v1348 = vlaneseq
        %v1349 = vshrl.u32 %v1348, 7
        %v1350 = vsub.s32 %v1347, %v1349
        %v1351 = vrot.slane %v1337, %v1350
        %v1352 = vcombine.low %v1319, %v1335
        %v1353 = vcombine.high %v1319, %v1335
        %v1355 = vunpack.c.l.s4 1934713408
        %v1356 = vunpack.c.0.s8 %v1355
        %v1357 = vlaneseq
        %v1358 = vshrl.u32 %v1357, 7
        %v1359 = vsub.s32 %v1356, %v1358
        %v1360 = vrot.slane %v1352, %v1359
        %v1362 = vunpack.c.l.s4 1934713408
        %v1363 = vunpack.c.0.s8 %v1362
        %v1364 = vlaneseq
        %v1365 = vshrl.u32 %v1364, 7
        %v1366 = vsub.s32 %v1363, %v1365
        %v1367 = vrot.slane %v1353, %v1366
        %v1368 = vcombine.high %v1344, 0.0
        %v1369 = vcombine.high %v1351, 0.0
        %v1370 = vcombine.high %v1360, 0.0
        %v1371 = vcombine.high %v1367, 0.0
        %v1372 = vcombine.low %v1344, %v1351
        %v1374 = vunpack.c.l.s4 1983009808
        %v1375 = vunpack.c.0.s8 %v1374
        %v1376 = vlaneseq
        %v1377 = vshrl.u32 %v1376, 7
        %v1378 = vsub.s32 %v1375, %v1377
        %v1379 = vrot.slane %v1372, %v1378
        %v1380 = vcombine.low %v1368, %v1369
        %v1382 = vunpack.c.l.s4 1983009808
        %v1383 = vunpack.c.0.s8 %v1382
        %v1384 = vlaneseq
        %v1385 = vshrl.u32 %v1384, 7
        %v1386 = vsub.s32 %v1383, %v1385
        %v1387 = vrot.slane %v1380, %v1386
        %v1388 = vcombine.low %v1360, %v1367
        %v1390 = vunpack.c.l.s4 1983009808
        %v1391 = vunpack.c.0.s8 %v1390
        %v1392 = vlaneseq
        %v1393 = vshrl.u32 %v1392, 7
        %v1394 = vsub.s32 %v1391, %v1393
        %v1395 = vrot.slane %v1388, %v1394
        %v1396 = vcombine.low %v1370, %v1371
        %v1398 = vunpack.c.l.s4 1983009808
        %v1399 = vunpack.c.0.s8 %v1398
        %v1400 = vlaneseq
        %v1401 = vshrl.u32 %v1400, 7
        %v1402 = vsub.s32 %v1399, %v1401
        %v1403 = vrot.slane %v1396, %v1402
        %v1404 = vcombine.low %v1379, %v1387
        %v1405 = vcombine.high %v1379, %v1387
        %v1407 = vunpack.c.l.s4 1934713408
        %v1408 = vunpack.c.0.s8 %v1407
        %v1409 = vlaneseq
        %v1410 = vshrl.u32 %v1409, 7
        %v1411 = vsub.s32 %v1408, %v1410
        %v1412 = vrot.slane %v1404, %v1411
        %v1414 = vunpack.c.l.s4 1934713408
        %v1415 = vunpack.c.0.s8 %v1414
        %v1416 = vlaneseq
        %v1417 = vshrl.u32 %v1416, 7
        %v1418 = vsub.s32 %v1415, %v1417
        %v1419 = vrot.slane %v1405, %v1418
        %v1420 = vcombine.low %v1395, %v1403
        %v1421 = vcombine.high %v1395, %v1403
        %v1423 = vunpack.c.l.s4 1934713408
        %v1424 = vunpack.c.0.s8 %v1423
        %v1425 = vlaneseq
        %v1426 = vshrl.u32 %v1425, 7
        %v1427 = vsub.s32 %v1424, %v1426
        %v1428 = vrot.slane %v1420, %v1427
        %v1430 = vunpack.c.l.s4 1934713408
        %v1431 = vunpack.c.0.s8 %v1430
        %v1432 = vlaneseq
        %v1433 = vshrl.u32 %v1432, 7
        %v1434 = vsub.s32 %v1431, %v1433
        %v1435 = vrot.slane %v1421, %v1434
        %v1436 = vcombine.low %v1412, %v1428
        %v1437 = vcombine.high %v1412, %v1428
        %v1438 = vcombine.low %v1419, %v1435
        %v1439 = vcombine.high %v1419, %v1435
        %v1440 = vpack.c.bf16 %v1436, %v1436
        %v1441 = vpack.c.bf16 %v1437, %v1437
        %v1442 = vpack.c.bf16 %v1438, %v1438
        %v1443 = vpack.c.bf16 %v1439, %v1439
        %1444 = vrot.lane.b32.xlu0 %v1127, 64
        %v1445 = vpop.permute.xlu0 %1444
        %1446 = vrot.lane.b32.xlu0 %v1144, 64
        %v1447 = vpop.permute.xlu0 %1446
        %1448 = vrot.lane.b32.xlu0 %v1147, 64
        %v1449 = vpop.permute.xlu0 %1448
        %1450 = vrot.lane.b32.xlu0 %v1150, 64
        %v1451 = vpop.permute.xlu0 %1450
        %v1456 = vcombine.low %v1445, %v1449
        %v1457 = vcombine.high %v1445, %v1449
        %v1459 = vunpack.c.l.s4 1983009808
        %v1460 = vunpack.c.0.s8 %v1459
        %v1461 = vlaneseq
        %v1462 = vshrl.u32 %v1461, 7
        %v1463 = vsub.s32 %v1460, %v1462
        %v1464 = vrot.slane %v1456, %v1463
        %v1466 = vunpack.c.l.s4 1983009808
        %v1467 = vunpack.c.0.s8 %v1466
        %v1468 = vlaneseq
        %v1469 = vshrl.u32 %v1468, 7
        %v1470 = vsub.s32 %v1467, %v1469
        %v1471 = vrot.slane %v1457, %v1470
        %v1472 = vcombine.low %v1447, %v1451
        %v1473 = vcombine.high %v1447, %v1451
        %v1475 = vunpack.c.l.s4 1983009808
        %v1476 = vunpack.c.0.s8 %v1475
        %v1477 = vlaneseq
        %v1478 = vshrl.u32 %v1477, 7
        %v1479 = vsub.s32 %v1476, %v1478
        %v1480 = vrot.slane %v1472, %v1479
        %v1482 = vunpack.c.l.s4 1983009808
        %v1483 = vunpack.c.0.s8 %v1482
        %v1484 = vlaneseq
        %v1485 = vshrl.u32 %v1484, 7
        %v1486 = vsub.s32 %v1483, %v1485
        %v1487 = vrot.slane %v1473, %v1486
        %v1488 = vcombine.low %v1464, %v1480
        %v1489 = vcombine.high %v1464, %v1480
        %v1491 = vunpack.c.l.s4 1934713408
        %v1492 = vunpack.c.0.s8 %v1491
        %v1493 = vlaneseq
        %v1494 = vshrl.u32 %v1493, 7
        %v1495 = vsub.s32 %v1492, %v1494
        %v1496 = vrot.slane %v1488, %v1495
        %v1498 = vunpack.c.l.s4 1934713408
        %v1499 = vunpack.c.0.s8 %v1498
        %v1500 = vlaneseq
        %v1501 = vshrl.u32 %v1500, 7
        %v1502 = vsub.s32 %v1499, %v1501
        %v1503 = vrot.slane %v1489, %v1502
        %v1504 = vcombine.low %v1471, %v1487
        %v1505 = vcombine.high %v1471, %v1487
        %v1507 = vunpack.c.l.s4 1934713408
        %v1508 = vunpack.c.0.s8 %v1507
        %v1509 = vlaneseq
        %v1510 = vshrl.u32 %v1509, 7
        %v1511 = vsub.s32 %v1508, %v1510
        %v1512 = vrot.slane %v1504, %v1511
        %v1514 = vunpack.c.l.s4 1934713408
        %v1515 = vunpack.c.0.s8 %v1514
        %v1516 = vlaneseq
        %v1517 = vshrl.u32 %v1516, 7
        %v1518 = vsub.s32 %v1515, %v1517
        %v1519 = vrot.slane %v1505, %v1518
        %v1520 = vcombine.high %v1496, 0.0
        %v1521 = vcombine.high %v1503, 0.0
        %v1522 = vcombine.high %v1512, 0.0
        %v1523 = vcombine.high %v1519, 0.0
        %v1524 = vcombine.low %v1496, %v1503
        %v1526 = vunpack.c.l.s4 1983009808
        %v1527 = vunpack.c.0.s8 %v1526
        %v1528 = vlaneseq
        %v1529 = vshrl.u32 %v1528, 7
        %v1530 = vsub.s32 %v1527, %v1529
        %v1531 = vrot.slane %v1524, %v1530
        %v1532 = vcombine.low %v1520, %v1521
        %v1534 = vunpack.c.l.s4 1983009808
        %v1535 = vunpack.c.0.s8 %v1534
        %v1536 = vlaneseq
        %v1537 = vshrl.u32 %v1536, 7
        %v1538 = vsub.s32 %v1535, %v1537
        %v1539 = vrot.slane %v1532, %v1538
        %v1540 = vcombine.low %v1512, %v1519
        %v1542 = vunpack.c.l.s4 1983009808
        %v1543 = vunpack.c.0.s8 %v1542
        %v1544 = vlaneseq
        %v1545 = vshrl.u32 %v1544, 7
        %v1546 = vsub.s32 %v1543, %v1545
        %v1547 = vrot.slane %v1540, %v1546
        %v1548 = vcombine.low %v1522, %v1523
        %v1550 = vunpack.c.l.s4 1983009808
        %v1551 = vunpack.c.0.s8 %v1550
        %v1552 = vlaneseq
        %v1553 = vshrl.u32 %v1552, 7
        %v1554 = vsub.s32 %v1551, %v1553
        %v1555 = vrot.slane %v1548, %v1554
        %v1556 = vcombine.low %v1531, %v1539
        %v1557 = vcombine.high %v1531, %v1539
        %v1559 = vunpack.c.l.s4 1934713408
        %v1560 = vunpack.c.0.s8 %v1559
        %v1561 = vlaneseq
        %v1562 = vshrl.u32 %v1561, 7
        %v1563 = vsub.s32 %v1560, %v1562
        %v1564 = vrot.slane %v1556, %v1563
        %v1566 = vunpack.c.l.s4 1934713408
        %v1567 = vunpack.c.0.s8 %v1566
        %v1568 = vlaneseq
        %v1569 = vshrl.u32 %v1568, 7
        %v1570 = vsub.s32 %v1567, %v1569
        %v1571 = vrot.slane %v1557, %v1570
        %v1572 = vcombine.low %v1547, %v1555
        %v1573 = vcombine.high %v1547, %v1555
        %v1575 = vunpack.c.l.s4 1934713408
        %v1576 = vunpack.c.0.s8 %v1575
        %v1577 = vlaneseq
        %v1578 = vshrl.u32 %v1577, 7
        %v1579 = vsub.s32 %v1576, %v1578
        %v1580 = vrot.slane %v1572, %v1579
        %v1582 = vunpack.c.l.s4 1934713408
        %v1583 = vunpack.c.0.s8 %v1582
        %v1584 = vlaneseq
        %v1585 = vshrl.u32 %v1584, 7
        %v1586 = vsub.s32 %v1583, %v1585
        %v1587 = vrot.slane %v1573, %v1586
        %v1588 = vcombine.low %v1564, %v1580
        %v1589 = vcombine.high %v1564, %v1580
        %v1590 = vcombine.low %v1571, %v1587
        %v1591 = vcombine.high %v1571, %v1587
        %v1592 = vpack.c.bf16 %v1588, %v1588
        %v1593 = vpack.c.bf16 %v1589, %v1589
        %v1594 = vpack.c.bf16 %v1590, %v1590
        %v1595 = vpack.c.bf16 %v1591, %v1591
        %vm1596 = vcmask 64512
        %v1598 = vsel %vm1596, %v1288, 0
        %v1601 = vsel %vm1596, %v1440, 0
        %1603 = vmatprep.subr.bf16.mxu0 0
        %1604 = vmatpush1.bf16.xpose.msra.mxu0 0
        %1605 = vmatprep.subr.bf16.mxu0 0
        %1606 = vmatpush1.bf16.xpose.msra.mxu0 0
        %1607 = vmatprep.subr.bf16.mxu0 0
        %1608 = vmatpush1.bf16.xpose.msra.mxu0 0
        %1609 = vmatprep.subr.bf16.mxu0 0
        %1610 = vmatpush1.bf16.xpose.msra.mxu0 0
        %1611 = vmatprep.subr.bf16.mxu0 0
        %1612 = vmatpush1.bf16.xpose.msra.mxu0 0
        %1613 = vmatprep.subr.bf16.mxu0 0
        %1614 = vmatpush1.bf16.xpose.msra.mxu0 0
        %1615 = vmatprep.subr.bf16.mxu0 0
        %1616 = vmatpush1.bf16.xpose.msra.mxu0 0
        %1617 = vmatprep.subr.bf16.mxu0 0
        %1618 = vmatpush1.bf16.xpose.msra.mxu0 %v1601
        %1619 = vmatprep.subr.bf16.mxu0 0
        %1620 = vmatpush2.bf16.xpose.msra.mxu0 0
        %1621 = vmatprep.subr.bf16.mxu0 0
        %1622 = vmatpush2.bf16.xpose.msra.mxu0 0
        %1623 = vmatprep.subr.bf16.mxu0 0
        %1624 = vmatpush2.bf16.xpose.msra.mxu0 0
        %1625 = vmatprep.subr.bf16.mxu0 0
        %1626 = vmatpush2.bf16.xpose.msra.mxu0 0
        %1627 = vmatprep.subr.bf16.mxu0 0
        %1628 = vmatpush2.bf16.xpose.msra.mxu0 0
        %1629 = vmatprep.subr.bf16.mxu0 0
        %1630 = vmatpush2.bf16.xpose.msra.mxu0 0
        %1631 = vmatprep.subr.bf16.mxu0 0
        %1632 = vmatpush2.bf16.xpose.msra.mxu0 0
        %1633 = vmatprep.subr.bf16.mxu0 0
        %1634 = vmatpush2.bf16.xpose.msra.mxu0 0
        %1635 = vmatprep.mubr.bf16.mxu0 0
        %1636 = vmatmul.mubr.bf16.gmra.mxu0 %v1598
        %v1637 = vpop.f32.mrf.mxu0
        %v1638 = vadd.f32 0.0, %v1637
        %v1639 = vpop.f32.mrf.mxu0
        %v1640 = vpop.f32.mrf.mxu0
        %v1641 = vpop.f32.mrf.mxu0
        %1642 = vdwg.mxu0
        %v1644 = vsel %vm1596, %v1289, 0
        %v1647 = vsel %vm1596, %v1441, 0
        %1649 = vmatprep.subr.bf16.mxu0 0
        %1650 = vmatpush1.bf16.xpose.msra.mxu0 0
        %1651 = vmatprep.subr.bf16.mxu0 0
        %1652 = vmatpush1.bf16.xpose.msra.mxu0 0
        %1653 = vmatprep.subr.bf16.mxu0 0
        %1654 = vmatpush1.bf16.xpose.msra.mxu0 0
        %1655 = vmatprep.subr.bf16.mxu0 0
        %1656 = vmatpush1.bf16.xpose.msra.mxu0 0
        %1657 = vmatprep.subr.bf16.mxu0 0
        %1658 = vmatpush1.bf16.xpose.msra.mxu0 0
        %1659 = vmatprep.subr.bf16.mxu0 0
        %1660 = vmatpush1.bf16.xpose.msra.mxu0 0
        %1661 = vmatprep.subr.bf16.mxu0 0
        %1662 = vmatpush1.bf16.xpose.msra.mxu0 0
        %1663 = vmatprep.subr.bf16.mxu0 0
        %1664 = vmatpush1.bf16.xpose.msra.mxu0 %v1647
        %1665 = vmatprep.subr.bf16.mxu0 0
        %1666 = vmatpush2.bf16.xpose.msra.mxu0 0
        %1667 = vmatprep.subr.bf16.mxu0 0
        %1668 = vmatpush2.bf16.xpose.msra.mxu0 0
        %1669 = vmatprep.subr.bf16.mxu0 0
        %1670 = vmatpush2.bf16.xpose.msra.mxu0 0
        %1671 = vmatprep.subr.bf16.mxu0 0
        %1672 = vmatpush2.bf16.xpose.msra.mxu0 0
        %1673 = vmatprep.subr.bf16.mxu0 0
        %1674 = vmatpush2.bf16.xpose.msra.mxu0 0
        %1675 = vmatprep.subr.bf16.mxu0 0
        %1676 = vmatpush2.bf16.xpose.msra.mxu0 0
        %1677 = vmatprep.subr.bf16.mxu0 0
        %1678 = vmatpush2.bf16.xpose.msra.mxu0 0
        %1679 = vmatprep.subr.bf16.mxu0 0
        %1680 = vmatpush2.bf16.xpose.msra.mxu0 0
        %1681 = vmatprep.mubr.bf16.mxu0 0
        %1682 = vmatmul.mubr.bf16.gmra.mxu0 %v1644
        %v1683 = vpop.f32.mrf.mxu0
        %v1684 = vadd.f32 0.0, %v1683
        %v1685 = vpop.f32.mrf.mxu0
        %v1686 = vpop.f32.mrf.mxu0
        %v1687 = vpop.f32.mrf.mxu0
        %1688 = vdwg.mxu0
        %v1690 = vsel %vm1596, %v1290, 0
        %v1693 = vsel %vm1596, %v1442, 0
        %1695 = vmatprep.subr.bf16.mxu0 0
        %1696 = vmatpush1.bf16.xpose.msra.mxu0 0
        %1697 = vmatprep.subr.bf16.mxu0 0
        %1698 = vmatpush1.bf16.xpose.msra.mxu0 0
        %1699 = vmatprep.subr.bf16.mxu0 0
        %1700 = vmatpush1.bf16.xpose.msra.mxu0 0
        %1701 = vmatprep.subr.bf16.mxu0 0
        %1702 = vmatpush1.bf16.xpose.msra.mxu0 0
        %1703 = vmatprep.subr.bf16.mxu0 0
        %1704 = vmatpush1.bf16.xpose.msra.mxu0 0
        %1705 = vmatprep.subr.bf16.mxu0 0
        %1706 = vmatpush1.bf16.xpose.msra.mxu0 0
        %1707 = vmatprep.subr.bf16.mxu0 0
        %1708 = vmatpush1.bf16.xpose.msra.mxu0 0
        %1709 = vmatprep.subr.bf16.mxu0 0
        %1710 = vmatpush1.bf16.xpose.msra.mxu0 %v1693
        %1711 = vmatprep.subr.bf16.mxu0 0
        %1712 = vmatpush2.bf16.xpose.msra.mxu0 0
        %1713 = vmatprep.subr.bf16.mxu0 0
        %1714 = vmatpush2.bf16.xpose.msra.mxu0 0
        %1715 = vmatprep.subr.bf16.mxu0 0
        %1716 = vmatpush2.bf16.xpose.msra.mxu0 0
        %1717 = vmatprep.subr.bf16.mxu0 0
        %1718 = vmatpush2.bf16.xpose.msra.mxu0 0
        %1719 = vmatprep.subr.bf16.mxu0 0
        %1720 = vmatpush2.bf16.xpose.msra.mxu0 0
        %1721 = vmatprep.subr.bf16.mxu0 0
        %1722 = vmatpush2.bf16.xpose.msra.mxu0 0
        %1723 = vmatprep.subr.bf16.mxu0 0
        %1724 = vmatpush2.bf16.xpose.msra.mxu0 0
        %1725 = vmatprep.subr.bf16.mxu0 0
        %1726 = vmatpush2.bf16.xpose.msra.mxu0 0
        %1727 = vmatprep.mubr.bf16.mxu0 0
        %1728 = vmatmul.mubr.bf16.gmra.mxu0 %v1690
        %v1729 = vpop.f32.mrf.mxu0
        %v1730 = vadd.f32 0.0, %v1729
        %v1731 = vpop.f32.mrf.mxu0
        %v1732 = vpop.f32.mrf.mxu0
        %v1733 = vpop.f32.mrf.mxu0
        %1734 = vdwg.mxu0
        %v1736 = vsel %vm1596, %v1291, 0
        %v1739 = vsel %vm1596, %v1443, 0
        %1741 = vmatprep.subr.bf16.mxu0 0
        %1742 = vmatpush1.bf16.xpose.msra.mxu0 0
        %1743 = vmatprep.subr.bf16.mxu0 0
        %1744 = vmatpush1.bf16.xpose.msra.mxu0 0
        %1745 = vmatprep.subr.bf16.mxu0 0
        %1746 = vmatpush1.bf16.xpose.msra.mxu0 0
        %1747 = vmatprep.subr.bf16.mxu0 0
        %1748 = vmatpush1.bf16.xpose.msra.mxu0 0
        %1749 = vmatprep.subr.bf16.mxu0 0
        %1750 = vmatpush1.bf16.xpose.msra.mxu0 0
        %1751 = vmatprep.subr.bf16.mxu0 0
        %1752 = vmatpush1.bf16.xpose.msra.mxu0 0
        %1753 = vmatprep.subr.bf16.mxu0 0
        %1754 = vmatpush1.bf16.xpose.msra.mxu0 0
        %1755 = vmatprep.subr.bf16.mxu0 0
        %1756 = vmatpush1.bf16.xpose.msra.mxu0 %v1739
        %1757 = vmatprep.subr.bf16.mxu0 0
        %1758 = vmatpush2.bf16.xpose.msra.mxu0 0
        %1759 = vmatprep.subr.bf16.mxu0 0
        %1760 = vmatpush2.bf16.xpose.msra.mxu0 0
        %1761 = vmatprep.subr.bf16.mxu0 0
        %1762 = vmatpush2.bf16.xpose.msra.mxu0 0
        %1763 = vmatprep.subr.bf16.mxu0 0
        %1764 = vmatpush2.bf16.xpose.msra.mxu0 0
        %1765 = vmatprep.subr.bf16.mxu0 0
        %1766 = vmatpush2.bf16.xpose.msra.mxu0 0
        %1767 = vmatprep.subr.bf16.mxu0 0
        %1768 = vmatpush2.bf16.xpose.msra.mxu0 0
        %1769 = vmatprep.subr.bf16.mxu0 0
        %1770 = vmatpush2.bf16.xpose.msra.mxu0 0
        %1771 = vmatprep.subr.bf16.mxu0 0
        %1772 = vmatpush2.bf16.xpose.msra.mxu0 0
        %1773 = vmatprep.mubr.bf16.mxu0 0
        %1774 = vmatmul.mubr.bf16.gmra.mxu0 %v1736
        %v1775 = vpop.f32.mrf.mxu0
        %v1776 = vadd.f32 0.0, %v1775
        %v1777 = vpop.f32.mrf.mxu0
        %v1778 = vpop.f32.mrf.mxu0
        %v1779 = vpop.f32.mrf.mxu0
        %1780 = vdwg.mxu0
        %v1781 = vsel %vm1141, 1, 0
        %vm1782 = vcmp.eq.s32.totalorder %v1781, 1
        %v1783 = vsel %vm1782, -1e+09, %v1638
        %v1784 = vsel %vm1782, -1e+09, %v1684
        %v1785 = vsel %vm1782, -1e+09, %v1730
        %v1786 = vsel %vm1782, -1e+09, %v1776
        %v1787 = vsel %vm1596, %v1783, -inf
        %1788 = vmax.xlane.f32.xlu0 %v1787
        %v1789 = vpop.xlane.xlu0 %1788
        %v1790 = vsel %vm1596, %v1784, -inf
        %1791 = vmax.xlane.f32.xlu0 %v1790
        %v1792 = vpop.xlane.xlu0 %1791
        %v1793 = vsel %vm1596, %v1785, -inf
        %1794 = vmax.xlane.f32.xlu0 %v1793
        %v1795 = vpop.xlane.xlu0 %1794
        %v1796 = vsel %vm1596, %v1786, -inf
        %1797 = vmax.xlane.f32.xlu0 %v1796
        %v1798 = vpop.xlane.xlu0 %1797
        %v1799 = vsub.f32 %v1783, %v1789
        %v1800 = vsub.f32 %v1784, %v1792
        %v1801 = vsub.f32 %v1785, %v1795
        %v1802 = vsub.f32 %v1786, %v1798
        %v1803 = vmul.f32 %v1799, 1.442695
        %v1804 = vpow.pop %v1803
        %v1805 = vmul.f32 %v1800, 1.442695
        %v1806 = vpow.pop %v1805
        %v1807 = vmul.f32 %v1801, 1.442695
        %v1808 = vpow.pop %v1807
        %v1809 = vmul.f32 %v1802, 1.442695
        %v1810 = vpow.pop %v1809
        %v1811 = vsel %vm1596, %v1804, 0.0
        %1812 = vadd.xlane.f32.xlu0 %v1811
        %v1813 = vpop.xlane.xlu0 %1812
        %v1814 = vsel %vm1596, %v1806, 0.0
        %1815 = vadd.xlane.f32.xlu0 %v1814
        %v1816 = vpop.xlane.xlu0 %1815
        %v1817 = vsel %vm1596, %v1808, 0.0
        %1818 = vadd.xlane.f32.xlu0 %v1817
        %v1819 = vpop.xlane.xlu0 %1818
        %v1820 = vsel %vm1596, %v1810, 0.0
        %1821 = vadd.xlane.f32.xlu0 %v1820
        %v1822 = vpop.xlane.xlu0 %1821
        %v1823 = vrcp.pop %v1813
        %v1824 = vrcp.pop %v1816
        %v1825 = vrcp.pop %v1819
        %v1826 = vrcp.pop %v1822
        %v1827 = vmul.f32 %v1804, %v1823
        %v1828 = vmul.f32 %v1806, %v1824
        %v1829 = vmul.f32 %v1808, %v1825
        %v1830 = vmul.f32 %v1810, %v1826
        %v1831 = vpack.c.bf16 %v1827, %v1827
        %v1832 = vpack.c.bf16 %v1828, %v1828
        %v1833 = vpack.c.bf16 %v1829, %v1829
        %v1834 = vpack.c.bf16 %v1830, %v1830
        %v1836 = vsel %vm1596, %v1831, 0
        %vm1838 = vcmask 1043456
        %v1840 = vsel %vm1838, %v1592, 0
        %1842 = vmatprep.subr.bf16.mxu0 0
        %1843 = vmatpush1.bf16.msra.mxu0 0
        %1844 = vmatprep.subr.bf16.mxu0 0
        %1845 = vmatpush1.bf16.msra.mxu0 0
        %1846 = vmatprep.subr.bf16.mxu0 0
        %1847 = vmatpush1.bf16.msra.mxu0 0
        %1848 = vmatprep.subr.bf16.mxu0 0
        %1849 = vmatpush1.bf16.msra.mxu0 0
        %1850 = vmatprep.subr.bf16.mxu0 0
        %1851 = vmatpush1.bf16.msra.mxu0 0
        %1852 = vmatprep.subr.bf16.mxu0 0
        %1853 = vmatpush1.bf16.msra.mxu0 0
        %1854 = vmatprep.subr.bf16.mxu0 0
        %1855 = vmatpush1.bf16.msra.mxu0 0
        %1856 = vmatprep.subr.bf16.mxu0 0
        %1857 = vmatpush1.bf16.msra.mxu0 %v1840
        %1858 = vmatprep.subr.bf16.mxu0 0
        %1859 = vmatpush2.bf16.msra.mxu0 0
        %1860 = vmatprep.subr.bf16.mxu0 0
        %1861 = vmatpush2.bf16.msra.mxu0 0
        %1862 = vmatprep.subr.bf16.mxu0 0
        %1863 = vmatpush2.bf16.msra.mxu0 0
        %1864 = vmatprep.subr.bf16.mxu0 0
        %1865 = vmatpush2.bf16.msra.mxu0 0
        %1866 = vmatprep.subr.bf16.mxu0 0
        %1867 = vmatpush2.bf16.msra.mxu0 0
        %1868 = vmatprep.subr.bf16.mxu0 0
        %1869 = vmatpush2.bf16.msra.mxu0 0
        %1870 = vmatprep.subr.bf16.mxu0 0
        %1871 = vmatpush2.bf16.msra.mxu0 0
        %1872 = vmatprep.subr.bf16.mxu0 0
        %1873 = vmatpush2.bf16.msra.mxu0 0
        %1874 = vmatprep.mubr.bf16.mxu0 0
        %1875 = vmatmul.mubr.bf16.gmra.mxu0 %v1836
        %v1876 = vpop.f32.mrf.mxu0
        %v1877 = vadd.f32 0.0, %v1876
        %v1878 = vpop.f32.mrf.mxu0
        %v1879 = vpop.f32.mrf.mxu0
        %v1880 = vpop.f32.mrf.mxu0
        %1881 = vdwg.mxu0
        %v1883 = vsel %vm1596, %v1832, 0
        %v1886 = vsel %vm1838, %v1593, 0
        %1888 = vmatprep.subr.bf16.mxu0 0
        %1889 = vmatpush1.bf16.msra.mxu0 0
        %1890 = vmatprep.subr.bf16.mxu0 0
        %1891 = vmatpush1.bf16.msra.mxu0 0
        %1892 = vmatprep.subr.bf16.mxu0 0
        %1893 = vmatpush1.bf16.msra.mxu0 0
        %1894 = vmatprep.subr.bf16.mxu0 0
        %1895 = vmatpush1.bf16.msra.mxu0 0
        %1896 = vmatprep.subr.bf16.mxu0 0
        %1897 = vmatpush1.bf16.msra.mxu0 0
        %1898 = vmatprep.subr.bf16.mxu0 0
        %1899 = vmatpush1.bf16.msra.mxu0 0
        %1900 = vmatprep.subr.bf16.mxu0 0
        %1901 = vmatpush1.bf16.msra.mxu0 0
        %1902 = vmatprep.subr.bf16.mxu0 0
        %1903 = vmatpush1.bf16.msra.mxu0 %v1886
        %1904 = vmatprep.subr.bf16.mxu0 0
        %1905 = vmatpush2.bf16.msra.mxu0 0
        %1906 = vmatprep.subr.bf16.mxu0 0
        %1907 = vmatpush2.bf16.msra.mxu0 0
        %1908 = vmatprep.subr.bf16.mxu0 0
        %1909 = vmatpush2.bf16.msra.mxu0 0
        %1910 = vmatprep.subr.bf16.mxu0 0
        %1911 = vmatpush2.bf16.msra.mxu0 0
        %1912 = vmatprep.subr.bf16.mxu0 0
        %1913 = vmatpush2.bf16.msra.mxu0 0
        %1914 = vmatprep.subr.bf16.mxu0 0
        %1915 = vmatpush2.bf16.msra.mxu0 0
        %1916 = vmatprep.subr.bf16.mxu0 0
        %1917 = vmatpush2.bf16.msra.mxu0 0
        %1918 = vmatprep.subr.bf16.mxu0 0
        %1919 = vmatpush2.bf16.msra.mxu0 0
        %1920 = vmatprep.mubr.bf16.mxu0 0
        %1921 = vmatmul.mubr.bf16.gmra.mxu0 %v1883
        %v1922 = vpop.f32.mrf.mxu0
        %v1923 = vadd.f32 0.0, %v1922
        %v1924 = vpop.f32.mrf.mxu0
        %v1925 = vpop.f32.mrf.mxu0
        %v1926 = vpop.f32.mrf.mxu0
        %1927 = vdwg.mxu0
        %v1929 = vsel %vm1596, %v1833, 0
        %v1932 = vsel %vm1838, %v1594, 0
        %1934 = vmatprep.subr.bf16.mxu0 0
        %1935 = vmatpush1.bf16.msra.mxu0 0
        %1936 = vmatprep.subr.bf16.mxu0 0
        %1937 = vmatpush1.bf16.msra.mxu0 0
        %1938 = vmatprep.subr.bf16.mxu0 0
        %1939 = vmatpush1.bf16.msra.mxu0 0
        %1940 = vmatprep.subr.bf16.mxu0 0
        %1941 = vmatpush1.bf16.msra.mxu0 0
        %1942 = vmatprep.subr.bf16.mxu0 0
        %1943 = vmatpush1.bf16.msra.mxu0 0
        %1944 = vmatprep.subr.bf16.mxu0 0
        %1945 = vmatpush1.bf16.msra.mxu0 0
        %1946 = vmatprep.subr.bf16.mxu0 0
        %1947 = vmatpush1.bf16.msra.mxu0 0
        %1948 = vmatprep.subr.bf16.mxu0 0
        %1949 = vmatpush1.bf16.msra.mxu0 %v1932
        %1950 = vmatprep.subr.bf16.mxu0 0
        %1951 = vmatpush2.bf16.msra.mxu0 0
        %1952 = vmatprep.subr.bf16.mxu0 0
        %1953 = vmatpush2.bf16.msra.mxu0 0
        %1954 = vmatprep.subr.bf16.mxu0 0
        %1955 = vmatpush2.bf16.msra.mxu0 0
        %1956 = vmatprep.subr.bf16.mxu0 0
        %1957 = vmatpush2.bf16.msra.mxu0 0
        %1958 = vmatprep.subr.bf16.mxu0 0
        %1959 = vmatpush2.bf16.msra.mxu0 0
        %1960 = vmatprep.subr.bf16.mxu0 0
        %1961 = vmatpush2.bf16.msra.mxu0 0
        %1962 = vmatprep.subr.bf16.mxu0 0
        %1963 = vmatpush2.bf16.msra.mxu0 0
        %1964 = vmatprep.subr.bf16.mxu0 0
        %1965 = vmatpush2.bf16.msra.mxu0 0
        %1966 = vmatprep.mubr.bf16.mxu0 0
        %1967 = vmatmul.mubr.bf16.gmra.mxu0 %v1929
        %v1968 = vpop.f32.mrf.mxu0
        %v1969 = vadd.f32 0.0, %v1968
        %v1970 = vpop.f32.mrf.mxu0
        %v1971 = vpop.f32.mrf.mxu0
        %v1972 = vpop.f32.mrf.mxu0
        %1973 = vdwg.mxu0
        %v1975 = vsel %vm1596, %v1834, 0
        %v1978 = vsel %vm1838, %v1595, 0
        %1980 = vmatprep.subr.bf16.mxu0 0
        %1981 = vmatpush1.bf16.msra.mxu0 0
        %1982 = vmatprep.subr.bf16.mxu0 0
        %1983 = vmatpush1.bf16.msra.mxu0 0
        %1984 = vmatprep.subr.bf16.mxu0 0
        %1985 = vmatpush1.bf16.msra.mxu0 0
        %1986 = vmatprep.subr.bf16.mxu0 0
        %1987 = vmatpush1.bf16.msra.mxu0 0
        %1988 = vmatprep.subr.bf16.mxu0 0
        %1989 = vmatpush1.bf16.msra.mxu0 0
        %1990 = vmatprep.subr.bf16.mxu0 0
        %1991 = vmatpush1.bf16.msra.mxu0 0
        %1992 = vmatprep.subr.bf16.mxu0 0
        %1993 = vmatpush1.bf16.msra.mxu0 0
        %1994 = vmatprep.subr.bf16.mxu0 0
        %1995 = vmatpush1.bf16.msra.mxu0 %v1978
        %1996 = vmatprep.subr.bf16.mxu0 0
        %1997 = vmatpush2.bf16.msra.mxu0 0
        %1998 = vmatprep.subr.bf16.mxu0 0
        %1999 = vmatpush2.bf16.msra.mxu0 0
        %2000 = vmatprep.subr.bf16.mxu0 0
        %2001 = vmatpush2.bf16.msra.mxu0 0
        %2002 = vmatprep.subr.bf16.mxu0 0
        %2003 = vmatpush2.bf16.msra.mxu0 0
        %2004 = vmatprep.subr.bf16.mxu0 0
        %2005 = vmatpush2.bf16.msra.mxu0 0
        %2006 = vmatprep.subr.bf16.mxu0 0
        %2007 = vmatpush2.bf16.msra.mxu0 0
        %2008 = vmatprep.subr.bf16.mxu0 0
        %2009 = vmatpush2.bf16.msra.mxu0 0
        %2010 = vmatprep.subr.bf16.mxu0 0
        %2011 = vmatpush2.bf16.msra.mxu0 0
        %2012 = vmatprep.mubr.bf16.mxu0 0
        %2013 = vmatmul.mubr.bf16.gmra.mxu0 %v1975
        %v2014 = vpop.f32.mrf.mxu0
        %v2015 = vadd.f32 0.0, %v2014
        %v2016 = vpop.f32.mrf.mxu0
        %v2017 = vpop.f32.mrf.mxu0
        %v2018 = vpop.f32.mrf.mxu0
        %2019 = vdwg.mxu0
        %v2020 = vcombine.low %v1877, %v1969
        %v2021 = vcombine.high %v1877, %v1969
        %v2023 = vunpack.c.l.s4 1983009808
        %v2024 = vunpack.c.0.s8 %v2023
        %v2025 = vlaneseq
        %v2026 = vshrl.u32 %v2025, 7
        %v2027 = vsub.s32 %v2024, %v2026
        %v2028 = vrot.slane %v2020, %v2027
        %v2030 = vunpack.c.l.s4 1983009808
        %v2031 = vunpack.c.0.s8 %v2030
        %v2032 = vlaneseq
        %v2033 = vshrl.u32 %v2032, 7
        %v2034 = vsub.s32 %v2031, %v2033
        %v2035 = vrot.slane %v2021, %v2034
        %v2036 = vcombine.low %v1923, %v2015
        %v2037 = vcombine.high %v1923, %v2015
        %v2039 = vunpack.c.l.s4 1983009808
        %v2040 = vunpack.c.0.s8 %v2039
        %v2041 = vlaneseq
        %v2042 = vshrl.u32 %v2041, 7
        %v2043 = vsub.s32 %v2040, %v2042
        %v2044 = vrot.slane %v2036, %v2043
        %v2046 = vunpack.c.l.s4 1983009808
        %v2047 = vunpack.c.0.s8 %v2046
        %v2048 = vlaneseq
        %v2049 = vshrl.u32 %v2048, 7
        %v2050 = vsub.s32 %v2047, %v2049
        %v2051 = vrot.slane %v2037, %v2050
        %v2052 = vcombine.low %v2028, %v2044
        %v2053 = vcombine.high %v2028, %v2044
        %v2055 = vunpack.c.l.s4 1934713408
        %v2056 = vunpack.c.0.s8 %v2055
        %v2057 = vlaneseq
        %v2058 = vshrl.u32 %v2057, 7
        %v2059 = vsub.s32 %v2056, %v2058
        %v2060 = vrot.slane %v2052, %v2059
        %v2062 = vunpack.c.l.s4 1934713408
        %v2063 = vunpack.c.0.s8 %v2062
        %v2064 = vlaneseq
        %v2065 = vshrl.u32 %v2064, 7
        %v2066 = vsub.s32 %v2063, %v2065
        %v2067 = vrot.slane %v2053, %v2066
        %v2068 = vcombine.low %v2035, %v2051
        %v2069 = vcombine.high %v2035, %v2051
        %v2071 = vunpack.c.l.s4 1934713408
        %v2072 = vunpack.c.0.s8 %v2071
        %v2073 = vlaneseq
        %v2074 = vshrl.u32 %v2073, 7
        %v2075 = vsub.s32 %v2072, %v2074
        %v2076 = vrot.slane %v2068, %v2075
        %v2078 = vunpack.c.l.s4 1934713408
        %v2079 = vunpack.c.0.s8 %v2078
        %v2080 = vlaneseq
        %v2081 = vshrl.u32 %v2080, 7
        %v2082 = vsub.s32 %v2079, %v2081
        %v2083 = vrot.slane %v2069, %v2082
        %v2084 = vcombine.high %v2060, 0.0
        %v2085 = vcombine.high %v2067, 0.0
        %v2086 = vcombine.high %v2076, 0.0
        %v2087 = vcombine.high %v2083, 0.0
        %v2088 = vcombine.low %v2060, %v2067
        %v2090 = vunpack.c.l.s4 1983009808
        %v2091 = vunpack.c.0.s8 %v2090
        %v2092 = vlaneseq
        %v2093 = vshrl.u32 %v2092, 7
        %v2094 = vsub.s32 %v2091, %v2093
        %v2095 = vrot.slane %v2088, %v2094
        %v2096 = vcombine.low %v2084, %v2085
        %v2098 = vunpack.c.l.s4 1983009808
        %v2099 = vunpack.c.0.s8 %v2098
        %v2100 = vlaneseq
        %v2101 = vshrl.u32 %v2100, 7
        %v2102 = vsub.s32 %v2099, %v2101
        %v2103 = vrot.slane %v2096, %v2102
        %v2104 = vcombine.low %v2076, %v2083
        %v2106 = vunpack.c.l.s4 1983009808
        %v2107 = vunpack.c.0.s8 %v2106
        %v2108 = vlaneseq
        %v2109 = vshrl.u32 %v2108, 7
        %v2110 = vsub.s32 %v2107, %v2109
        %v2111 = vrot.slane %v2104, %v2110
        %v2112 = vcombine.low %v2086, %v2087
        %v2114 = vunpack.c.l.s4 1983009808
        %v2115 = vunpack.c.0.s8 %v2114
        %v2116 = vlaneseq
        %v2117 = vshrl.u32 %v2116, 7
        %v2118 = vsub.s32 %v2115, %v2117
        %v2119 = vrot.slane %v2112, %v2118
        %v2120 = vcombine.low %v2095, %v2103
        %v2121 = vcombine.high %v2095, %v2103
        %v2123 = vunpack.c.l.s4 1934713408
        %v2124 = vunpack.c.0.s8 %v2123
        %v2125 = vlaneseq
        %v2126 = vshrl.u32 %v2125, 7
        %v2127 = vsub.s32 %v2124, %v2126
        %v2128 = vrot.slane %v2120, %v2127
        %v2130 = vunpack.c.l.s4 1934713408
        %v2131 = vunpack.c.0.s8 %v2130
        %v2132 = vlaneseq
        %v2133 = vshrl.u32 %v2132, 7
        %v2134 = vsub.s32 %v2131, %v2133
        %v2135 = vrot.slane %v2121, %v2134
        %v2136 = vcombine.low %v2111, %v2119
        %v2137 = vcombine.high %v2111, %v2119
        %v2139 = vunpack.c.l.s4 1934713408
        %v2140 = vunpack.c.0.s8 %v2139
        %v2141 = vlaneseq
        %v2142 = vshrl.u32 %v2141, 7
        %v2143 = vsub.s32 %v2140, %v2142
        %v2144 = vrot.slane %v2136, %v2143
        %v2146 = vunpack.c.l.s4 1934713408
        %v2147 = vunpack.c.0.s8 %v2146
        %v2148 = vlaneseq
        %v2149 = vshrl.u32 %v2148, 7
        %v2150 = vsub.s32 %v2147, %v2149
        %v2151 = vrot.slane %v2137, %v2150
        %v2152 = vcombine.low %v2128, %v2144
        %v2153 = vcombine.high %v2128, %v2144
        %v2154 = vcombine.low %v2135, %v2151
        %v2155 = vcombine.high %v2135, %v2151
        %2157 = vrot.lane.b32.xlu0 %v2153, 8
        %v2158 = vpop.permute.xlu0 %2157
        %2161 = vrot.lane.b32.xlu0 %v2154, 16
        %v2162 = vpop.permute.xlu0 %2161
        %2165 = vrot.lane.b32.xlu0 %v2155, 24
        %v2166 = vpop.permute.xlu0 %2165
        %v2168 = vsel %vm1596, %v2152, %v2158
        %vm2169 = vcmask 130048
        %v2170 = vsel %vm2169, %v2168, %v2162
        %vm2171 = vcmask 195584
        %v2172 = vsel %vm2171, %v2170, %v2166
        %s2173 = scalar_lea.vmem [#allocation5], 1
        %v2174 = vld [vmem:[%s2173] sm:$0x1]
        %vm2175 = vcmp.gt.f32.partialorder %v2174, 0.5
        %v2176 = vsel %vm2175, 1, 0
        %v2177 = vlaneseq
        %v2178 = vshrl.u32 %v2177, 7
        %v2179 = vsub.s32 0, %v2178
        %v2180 = vrot.slane %v2176, %v2179
        %vm2181 = vcmp.eq.s32.totalorder %v2180, 1
        %vm2182 = vmor %vm1024, %vm2181
        %2184 = vrot.lane.b32.xlu0 %v1130, 120
        %v2185 = vpop.permute.xlu0 %2184
        %2187 = vrot.lane.b32.xlu0 %v1130, 112
        %v2188 = vpop.permute.xlu0 %2187
        %2190 = vrot.lane.b32.xlu0 %v1130, 104
        %v2191 = vpop.permute.xlu0 %2190
        %v2193 = vcombine.low %v1130, %v2188
        %v2194 = vcombine.high %v1130, %v2188
        %v2196 = vunpack.c.l.s4 1983009808
        %v2197 = vunpack.c.0.s8 %v2196
        %v2198 = vlaneseq
        %v2199 = vshrl.u32 %v2198, 7
        %v2200 = vsub.s32 %v2197, %v2199
        %v2201 = vrot.slane %v2193, %v2200
        %v2203 = vunpack.c.l.s4 1983009808
        %v2204 = vunpack.c.0.s8 %v2203
        %v2205 = vlaneseq
        %v2206 = vshrl.u32 %v2205, 7
        %v2207 = vsub.s32 %v2204, %v2206
        %v2208 = vrot.slane %v2194, %v2207
        %v2209 = vcombine.low %v2185, %v2191
        %v2210 = vcombine.high %v2185, %v2191
        %v2212 = vunpack.c.l.s4 1983009808
        %v2213 = vunpack.c.0.s8 %v2212
        %v2214 = vlaneseq
        %v2215 = vshrl.u32 %v2214, 7
        %v2216 = vsub.s32 %v2213, %v2215
        %v2217 = vrot.slane %v2209, %v2216
        %v2219 = vunpack.c.l.s4 1983009808
        %v2220 = vunpack.c.0.s8 %v2219
        %v2221 = vlaneseq
        %v2222 = vshrl.u32 %v2221, 7
        %v2223 = vsub.s32 %v2220, %v2222
        %v2224 = vrot.slane %v2210, %v2223
        %v2225 = vcombine.low %v2201, %v2217
        %v2226 = vcombine.high %v2201, %v2217
        %v2228 = vunpack.c.l.s4 1934713408
        %v2229 = vunpack.c.0.s8 %v2228
        %v2230 = vlaneseq
        %v2231 = vshrl.u32 %v2230, 7
        %v2232 = vsub.s32 %v2229, %v2231
        %v2233 = vrot.slane %v2225, %v2232
        %v2235 = vunpack.c.l.s4 1934713408
        %v2236 = vunpack.c.0.s8 %v2235
        %v2237 = vlaneseq
        %v2238 = vshrl.u32 %v2237, 7
        %v2239 = vsub.s32 %v2236, %v2238
        %v2240 = vrot.slane %v2226, %v2239
        %v2241 = vcombine.low %v2208, %v2224
        %v2242 = vcombine.high %v2208, %v2224
        %v2244 = vunpack.c.l.s4 1934713408
        %v2245 = vunpack.c.0.s8 %v2244
        %v2246 = vlaneseq
        %v2247 = vshrl.u32 %v2246, 7
        %v2248 = vsub.s32 %v2245, %v2247
        %v2249 = vrot.slane %v2241, %v2248
        %v2251 = vunpack.c.l.s4 1934713408
        %v2252 = vunpack.c.0.s8 %v2251
        %v2253 = vlaneseq
        %v2254 = vshrl.u32 %v2253, 7
        %v2255 = vsub.s32 %v2252, %v2254
        %v2256 = vrot.slane %v2242, %v2255
        %v2257 = vcombine.high %v2233, 0.0
        %v2258 = vcombine.high %v2240, 0.0
        %v2259 = vcombine.high %v2249, 0.0
        %v2260 = vcombine.high %v2256, 0.0
        %v2261 = vcombine.low %v2233, %v2240
        %v2263 = vunpack.c.l.s4 1983009808
        %v2264 = vunpack.c.0.s8 %v2263
        %v2265 = vlaneseq
        %v2266 = vshrl.u32 %v2265, 7
        %v2267 = vsub.s32 %v2264, %v2266
        %v2268 = vrot.slane %v2261, %v2267
        %v2269 = vcombine.low %v2257, %v2258
        %v2271 = vunpack.c.l.s4 1983009808
        %v2272 = vunpack.c.0.s8 %v2271
        %v2273 = vlaneseq
        %v2274 = vshrl.u32 %v2273, 7
        %v2275 = vsub.s32 %v2272, %v2274
        %v2276 = vrot.slane %v2269, %v2275
        %v2277 = vcombine.low %v2249, %v2256
        %v2279 = vunpack.c.l.s4 1983009808
        %v2280 = vunpack.c.0.s8 %v2279
        %v2281 = vlaneseq
        %v2282 = vshrl.u32 %v2281, 7
        %v2283 = vsub.s32 %v2280, %v2282
        %v2284 = vrot.slane %v2277, %v2283
        %v2285 = vcombine.low %v2259, %v2260
        %v2287 = vunpack.c.l.s4 1983009808
        %v2288 = vunpack.c.0.s8 %v2287
        %v2289 = vlaneseq
        %v2290 = vshrl.u32 %v2289, 7
        %v2291 = vsub.s32 %v2288, %v2290
        %v2292 = vrot.slane %v2285, %v2291
        %v2293 = vcombine.low %v2268, %v2276
        %v2294 = vcombine.high %v2268, %v2276
        %v2296 = vunpack.c.l.s4 1934713408
        %v2297 = vunpack.c.0.s8 %v2296
        %v2298 = vlaneseq
        %v2299 = vshrl.u32 %v2298, 7
        %v2300 = vsub.s32 %v2297, %v2299
        %v2301 = vrot.slane %v2293, %v2300
        %v2303 = vunpack.c.l.s4 1934713408
        %v2304 = vunpack.c.0.s8 %v2303
        %v2305 = vlaneseq
        %v2306 = vshrl.u32 %v2305, 7
        %v2307 = vsub.s32 %v2304, %v2306
        %v2308 = vrot.slane %v2294, %v2307
        %v2309 = vcombine.low %v2284, %v2292
        %v2310 = vcombine.high %v2284, %v2292
        %v2312 = vunpack.c.l.s4 1934713408
        %v2313 = vunpack.c.0.s8 %v2312
        %v2314 = vlaneseq
        %v2315 = vshrl.u32 %v2314, 7
        %v2316 = vsub.s32 %v2313, %v2315
        %v2317 = vrot.slane %v2309, %v2316
        %v2319 = vunpack.c.l.s4 1934713408
        %v2320 = vunpack.c.0.s8 %v2319
        %v2321 = vlaneseq
        %v2322 = vshrl.u32 %v2321, 7
        %v2323 = vsub.s32 %v2320, %v2322
        %v2324 = vrot.slane %v2310, %v2323
        %v2325 = vcombine.low %v2301, %v2317
        %v2326 = vcombine.high %v2301, %v2317
        %v2327 = vcombine.low %v2308, %v2324
        %v2328 = vcombine.high %v2308, %v2324
        %v2329 = vpack.c.bf16 %v2325, %v2325
        %v2330 = vpack.c.bf16 %v2326, %v2326
        %v2331 = vpack.c.bf16 %v2327, %v2327
        %v2332 = vpack.c.bf16 %v2328, %v2328
        %2333 = vrot.lane.b32.xlu0 %v1130, 96
        %v2334 = vpop.permute.xlu0 %2333
        %2335 = vrot.lane.b32.xlu0 %v2185, 96
        %v2336 = vpop.permute.xlu0 %2335
        %2337 = vrot.lane.b32.xlu0 %v2188, 96
        %v2338 = vpop.permute.xlu0 %2337
        %2339 = vrot.lane.b32.xlu0 %v2191, 96
        %v2340 = vpop.permute.xlu0 %2339
        %v2345 = vcombine.low %v2334, %v2338
        %v2346 = vcombine.high %v2334, %v2338
        %v2348 = vunpack.c.l.s4 1983009808
        %v2349 = vunpack.c.0.s8 %v2348
        %v2350 = vlaneseq
        %v2351 = vshrl.u32 %v2350, 7
        %v2352 = vsub.s32 %v2349, %v2351
        %v2353 = vrot.slane %v2345, %v2352
        %v2355 = vunpack.c.l.s4 1983009808
        %v2356 = vunpack.c.0.s8 %v2355
        %v2357 = vlaneseq
        %v2358 = vshrl.u32 %v2357, 7
        %v2359 = vsub.s32 %v2356, %v2358
        %v2360 = vrot.slane %v2346, %v2359
        %v2361 = vcombine.low %v2336, %v2340
        %v2362 = vcombine.high %v2336, %v2340
        %v2364 = vunpack.c.l.s4 1983009808
        %v2365 = vunpack.c.0.s8 %v2364
        %v2366 = vlaneseq
        %v2367 = vshrl.u32 %v2366, 7
        %v2368 = vsub.s32 %v2365, %v2367
        %v2369 = vrot.slane %v2361, %v2368
        %v2371 = vunpack.c.l.s4 1983009808
        %v2372 = vunpack.c.0.s8 %v2371
        %v2373 = vlaneseq
        %v2374 = vshrl.u32 %v2373, 7
        %v2375 = vsub.s32 %v2372, %v2374
        %v2376 = vrot.slane %v2362, %v2375
        %v2377 = vcombine.low %v2353, %v2369
        %v2378 = vcombine.high %v2353, %v2369
        %v2380 = vunpack.c.l.s4 1934713408
        %v2381 = vunpack.c.0.s8 %v2380
        %v2382 = vlaneseq
        %v2383 = vshrl.u32 %v2382, 7
        %v2384 = vsub.s32 %v2381, %v2383
        %v2385 = vrot.slane %v2377, %v2384
        %v2387 = vunpack.c.l.s4 1934713408
        %v2388 = vunpack.c.0.s8 %v2387
        %v2389 = vlaneseq
        %v2390 = vshrl.u32 %v2389, 7
        %v2391 = vsub.s32 %v2388, %v2390
        %v2392 = vrot.slane %v2378, %v2391
        %v2393 = vcombine.low %v2360, %v2376
        %v2394 = vcombine.high %v2360, %v2376
        %v2396 = vunpack.c.l.s4 1934713408
        %v2397 = vunpack.c.0.s8 %v2396
        %v2398 = vlaneseq
        %v2399 = vshrl.u32 %v2398, 7
        %v2400 = vsub.s32 %v2397, %v2399
        %v2401 = vrot.slane %v2393, %v2400
        %v2403 = vunpack.c.l.s4 1934713408
        %v2404 = vunpack.c.0.s8 %v2403
        %v2405 = vlaneseq
        %v2406 = vshrl.u32 %v2405, 7
        %v2407 = vsub.s32 %v2404, %v2406
        %v2408 = vrot.slane %v2394, %v2407
        %v2409 = vcombine.high %v2385, 0.0
        %v2410 = vcombine.high %v2392, 0.0
        %v2411 = vcombine.high %v2401, 0.0
        %v2412 = vcombine.high %v2408, 0.0
        %v2413 = vcombine.low %v2385, %v2392
        %v2415 = vunpack.c.l.s4 1983009808
        %v2416 = vunpack.c.0.s8 %v2415
        %v2417 = vlaneseq
        %v2418 = vshrl.u32 %v2417, 7
        %v2419 = vsub.s32 %v2416, %v2418
        %v2420 = vrot.slane %v2413, %v2419
        %v2421 = vcombine.low %v2409, %v2410
        %v2423 = vunpack.c.l.s4 1983009808
        %v2424 = vunpack.c.0.s8 %v2423
        %v2425 = vlaneseq
        %v2426 = vshrl.u32 %v2425, 7
        %v2427 = vsub.s32 %v2424, %v2426
        %v2428 = vrot.slane %v2421, %v2427
        %v2429 = vcombine.low %v2401, %v2408
        %v2431 = vunpack.c.l.s4 1983009808
        %v2432 = vunpack.c.0.s8 %v2431
        %v2433 = vlaneseq
        %v2434 = vshrl.u32 %v2433, 7
        %v2435 = vsub.s32 %v2432, %v2434
        %v2436 = vrot.slane %v2429, %v2435
        %v2437 = vcombine.low %v2411, %v2412
        %v2439 = vunpack.c.l.s4 1983009808
        %v2440 = vunpack.c.0.s8 %v2439
        %v2441 = vlaneseq
        %v2442 = vshrl.u32 %v2441, 7
        %v2443 = vsub.s32 %v2440, %v2442
        %v2444 = vrot.slane %v2437, %v2443
        %v2445 = vcombine.low %v2420, %v2428
        %v2446 = vcombine.high %v2420, %v2428
        %v2448 = vunpack.c.l.s4 1934713408
        %v2449 = vunpack.c.0.s8 %v2448
        %v2450 = vlaneseq
        %v2451 = vshrl.u32 %v2450, 7
        %v2452 = vsub.s32 %v2449, %v2451
        %v2453 = vrot.slane %v2445, %v2452
        %v2455 = vunpack.c.l.s4 1934713408
        %v2456 = vunpack.c.0.s8 %v2455
        %v2457 = vlaneseq
        %v2458 = vshrl.u32 %v2457, 7
        %v2459 = vsub.s32 %v2456, %v2458
        %v2460 = vrot.slane %v2446, %v2459
        %v2461 = vcombine.low %v2436, %v2444
        %v2462 = vcombine.high %v2436, %v2444
        %v2464 = vunpack.c.l.s4 1934713408
        %v2465 = vunpack.c.0.s8 %v2464
        %v2466 = vlaneseq
        %v2467 = vshrl.u32 %v2466, 7
        %v2468 = vsub.s32 %v2465, %v2467
        %v2469 = vrot.slane %v2461, %v2468
        %v2471 = vunpack.c.l.s4 1934713408
        %v2472 = vunpack.c.0.s8 %v2471
        %v2473 = vlaneseq
        %v2474 = vshrl.u32 %v2473, 7
        %v2475 = vsub.s32 %v2472, %v2474
        %v2476 = vrot.slane %v2462, %v2475
        %v2477 = vcombine.low %v2453, %v2469
        %v2478 = vcombine.high %v2453, %v2469
        %v2479 = vcombine.low %v2460, %v2476
        %v2480 = vcombine.high %v2460, %v2476
        %v2481 = vpack.c.bf16 %v2477, %v2477
        %v2482 = vpack.c.bf16 %v2478, %v2478
        %v2483 = vpack.c.bf16 %v2479, %v2479
        %v2484 = vpack.c.bf16 %v2480, %v2480
        %2485 = vrot.lane.b32.xlu0 %v1130, 64
        %v2486 = vpop.permute.xlu0 %2485
        %2487 = vrot.lane.b32.xlu0 %v2185, 64
        %v2488 = vpop.permute.xlu0 %2487
        %2489 = vrot.lane.b32.xlu0 %v2188, 64
        %v2490 = vpop.permute.xlu0 %2489
        %2491 = vrot.lane.b32.xlu0 %v2191, 64
        %v2492 = vpop.permute.xlu0 %2491
        %v2497 = vcombine.low %v2486, %v2490
        %v2498 = vcombine.high %v2486, %v2490
        %v2500 = vunpack.c.l.s4 1983009808
        %v2501 = vunpack.c.0.s8 %v2500
        %v2502 = vlaneseq
        %v2503 = vshrl.u32 %v2502, 7
        %v2504 = vsub.s32 %v2501, %v2503
        %v2505 = vrot.slane %v2497, %v2504
        %v2507 = vunpack.c.l.s4 1983009808
        %v2508 = vunpack.c.0.s8 %v2507
        %v2509 = vlaneseq
        %v2510 = vshrl.u32 %v2509, 7
        %v2511 = vsub.s32 %v2508, %v2510
        %v2512 = vrot.slane %v2498, %v2511
        %v2513 = vcombine.low %v2488, %v2492
        %v2514 = vcombine.high %v2488, %v2492
        %v2516 = vunpack.c.l.s4 1983009808
        %v2517 = vunpack.c.0.s8 %v2516
        %v2518 = vlaneseq
        %v2519 = vshrl.u32 %v2518, 7
        %v2520 = vsub.s32 %v2517, %v2519
        %v2521 = vrot.slane %v2513, %v2520
        %v2523 = vunpack.c.l.s4 1983009808
        %v2524 = vunpack.c.0.s8 %v2523
        %v2525 = vlaneseq
        %v2526 = vshrl.u32 %v2525, 7
        %v2527 = vsub.s32 %v2524, %v2526
        %v2528 = vrot.slane %v2514, %v2527
        %v2529 = vcombine.low %v2505, %v2521
        %v2530 = vcombine.high %v2505, %v2521
        %v2532 = vunpack.c.l.s4 1934713408
        %v2533 = vunpack.c.0.s8 %v2532
        %v2534 = vlaneseq
        %v2535 = vshrl.u32 %v2534, 7
        %v2536 = vsub.s32 %v2533, %v2535
        %v2537 = vrot.slane %v2529, %v2536
        %v2539 = vunpack.c.l.s4 1934713408
        %v2540 = vunpack.c.0.s8 %v2539
        %v2541 = vlaneseq
        %v2542 = vshrl.u32 %v2541, 7
        %v2543 = vsub.s32 %v2540, %v2542
        %v2544 = vrot.slane %v2530, %v2543
        %v2545 = vcombine.low %v2512, %v2528
        %v2546 = vcombine.high %v2512, %v2528
        %v2548 = vunpack.c.l.s4 1934713408
        %v2549 = vunpack.c.0.s8 %v2548
        %v2550 = vlaneseq
        %v2551 = vshrl.u32 %v2550, 7
        %v2552 = vsub.s32 %v2549, %v2551
        %v2553 = vrot.slane %v2545, %v2552
        %v2555 = vunpack.c.l.s4 1934713408
        %v2556 = vunpack.c.0.s8 %v2555
        %v2557 = vlaneseq
        %v2558 = vshrl.u32 %v2557, 7
        %v2559 = vsub.s32 %v2556, %v2558
        %v2560 = vrot.slane %v2546, %v2559
        %v2561 = vcombine.high %v2537, 0.0
        %v2562 = vcombine.high %v2544, 0.0
        %v2563 = vcombine.high %v2553, 0.0
        %v2564 = vcombine.high %v2560, 0.0
        %v2565 = vcombine.low %v2537, %v2544
        %v2567 = vunpack.c.l.s4 1983009808
        %v2568 = vunpack.c.0.s8 %v2567
        %v2569 = vlaneseq
        %v2570 = vshrl.u32 %v2569, 7
        %v2571 = vsub.s32 %v2568, %v2570
        %v2572 = vrot.slane %v2565, %v2571
        %v2573 = vcombine.low %v2561, %v2562
        %v2575 = vunpack.c.l.s4 1983009808
        %v2576 = vunpack.c.0.s8 %v2575
        %v2577 = vlaneseq
        %v2578 = vshrl.u32 %v2577, 7
        %v2579 = vsub.s32 %v2576, %v2578
        %v2580 = vrot.slane %v2573, %v2579
        %v2581 = vcombine.low %v2553, %v2560
        %v2583 = vunpack.c.l.s4 1983009808
        %v2584 = vunpack.c.0.s8 %v2583
        %v2585 = vlaneseq
        %v2586 = vshrl.u32 %v2585, 7
        %v2587 = vsub.s32 %v2584, %v2586
        %v2588 = vrot.slane %v2581, %v2587
        %v2589 = vcombine.low %v2563, %v2564
        %v2591 = vunpack.c.l.s4 1983009808
        %v2592 = vunpack.c.0.s8 %v2591
        %v2593 = vlaneseq
        %v2594 = vshrl.u32 %v2593, 7
        %v2595 = vsub.s32 %v2592, %v2594
        %v2596 = vrot.slane %v2589, %v2595
        %v2597 = vcombine.low %v2572, %v2580
        %v2598 = vcombine.high %v2572, %v2580
        %v2600 = vunpack.c.l.s4 1934713408
        %v2601 = vunpack.c.0.s8 %v2600
        %v2602 = vlaneseq
        %v2603 = vshrl.u32 %v2602, 7
        %v2604 = vsub.s32 %v2601, %v2603
        %v2605 = vrot.slane %v2597, %v2604
        %v2607 = vunpack.c.l.s4 1934713408
        %v2608 = vunpack.c.0.s8 %v2607
        %v2609 = vlaneseq
        %v2610 = vshrl.u32 %v2609, 7
        %v2611 = vsub.s32 %v2608, %v2610
        %v2612 = vrot.slane %v2598, %v2611
        %v2613 = vcombine.low %v2588, %v2596
        %v2614 = vcombine.high %v2588, %v2596
        %v2616 = vunpack.c.l.s4 1934713408
        %v2617 = vunpack.c.0.s8 %v2616
        %v2618 = vlaneseq
        %v2619 = vshrl.u32 %v2618, 7
        %v2620 = vsub.s32 %v2617, %v2619
        %v2621 = vrot.slane %v2613, %v2620
        %v2623 = vunpack.c.l.s4 1934713408
        %v2624 = vunpack.c.0.s8 %v2623
        %v2625 = vlaneseq
        %v2626 = vshrl.u32 %v2625, 7
        %v2627 = vsub.s32 %v2624, %v2626
        %v2628 = vrot.slane %v2614, %v2627
        %v2629 = vcombine.low %v2605, %v2621
        %v2630 = vcombine.high %v2605, %v2621
        %v2631 = vcombine.low %v2612, %v2628
        %v2632 = vcombine.high %v2612, %v2628
        %v2633 = vpack.c.bf16 %v2629, %v2629
        %v2634 = vpack.c.bf16 %v2630, %v2630
        %v2635 = vpack.c.bf16 %v2631, %v2631
        %v2636 = vpack.c.bf16 %v2632, %v2632
        %v2638 = vsel %vm1596, %v2329, 0
        %v2641 = vsel %vm1596, %v2481, 0
        %2643 = vmatprep.subr.bf16.mxu0 0
        %2644 = vmatpush1.bf16.xpose.msra.mxu0 0
        %2645 = vmatprep.subr.bf16.mxu0 0
        %2646 = vmatpush1.bf16.xpose.msra.mxu0 0
        %2647 = vmatprep.subr.bf16.mxu0 0
        %2648 = vmatpush1.bf16.xpose.msra.mxu0 0
        %2649 = vmatprep.subr.bf16.mxu0 0
        %2650 = vmatpush1.bf16.xpose.msra.mxu0 0
        %2651 = vmatprep.subr.bf16.mxu0 0
        %2652 = vmatpush1.bf16.xpose.msra.mxu0 0
        %2653 = vmatprep.subr.bf16.mxu0 0
        %2654 = vmatpush1.bf16.xpose.msra.mxu0 0
        %2655 = vmatprep.subr.bf16.mxu0 0
        %2656 = vmatpush1.bf16.xpose.msra.mxu0 0
        %2657 = vmatprep.subr.bf16.mxu0 0
        %2658 = vmatpush1.bf16.xpose.msra.mxu0 %v2641
        %2659 = vmatprep.subr.bf16.mxu0 0
        %2660 = vmatpush2.bf16.xpose.msra.mxu0 0
        %2661 = vmatprep.subr.bf16.mxu0 0
        %2662 = vmatpush2.bf16.xpose.msra.mxu0 0
        %2663 = vmatprep.subr.bf16.mxu0 0
        %2664 = vmatpush2.bf16.xpose.msra.mxu0 0
        %2665 = vmatprep.subr.bf16.mxu0 0
        %2666 = vmatpush2.bf16.xpose.msra.mxu0 0
        %2667 = vmatprep.subr.bf16.mxu0 0
        %2668 = vmatpush2.bf16.xpose.msra.mxu0 0
        %2669 = vmatprep.subr.bf16.mxu0 0
        %2670 = vmatpush2.bf16.xpose.msra.mxu0 0
        %2671 = vmatprep.subr.bf16.mxu0 0
        %2672 = vmatpush2.bf16.xpose.msra.mxu0 0
        %2673 = vmatprep.subr.bf16.mxu0 0
        %2674 = vmatpush2.bf16.xpose.msra.mxu0 0
        %2675 = vmatprep.mubr.bf16.mxu0 0
        %2676 = vmatmul.mubr.bf16.gmra.mxu0 %v2638
        %v2677 = vpop.f32.mrf.mxu0
        %v2678 = vadd.f32 0.0, %v2677
        %v2679 = vpop.f32.mrf.mxu0
        %v2680 = vpop.f32.mrf.mxu0
        %v2681 = vpop.f32.mrf.mxu0
        %2682 = vdwg.mxu0
        %v2684 = vsel %vm1596, %v2330, 0
        %v2687 = vsel %vm1596, %v2482, 0
        %2689 = vmatprep.subr.bf16.mxu0 0
        %2690 = vmatpush1.bf16.xpose.msra.mxu0 0
        %2691 = vmatprep.subr.bf16.mxu0 0
        %2692 = vmatpush1.bf16.xpose.msra.mxu0 0
        %2693 = vmatprep.subr.bf16.mxu0 0
        %2694 = vmatpush1.bf16.xpose.msra.mxu0 0
        %2695 = vmatprep.subr.bf16.mxu0 0
        %2696 = vmatpush1.bf16.xpose.msra.mxu0 0
        %2697 = vmatprep.subr.bf16.mxu0 0
        %2698 = vmatpush1.bf16.xpose.msra.mxu0 0
        %2699 = vmatprep.subr.bf16.mxu0 0
        %2700 = vmatpush1.bf16.xpose.msra.mxu0 0
        %2701 = vmatprep.subr.bf16.mxu0 0
        %2702 = vmatpush1.bf16.xpose.msra.mxu0 0
        %2703 = vmatprep.subr.bf16.mxu0 0
        %2704 = vmatpush1.bf16.xpose.msra.mxu0 %v2687
        %2705 = vmatprep.subr.bf16.mxu0 0
        %2706 = vmatpush2.bf16.xpose.msra.mxu0 0
        %2707 = vmatprep.subr.bf16.mxu0 0
        %2708 = vmatpush2.bf16.xpose.msra.mxu0 0
        %2709 = vmatprep.subr.bf16.mxu0 0
        %2710 = vmatpush2.bf16.xpose.msra.mxu0 0
        %2711 = vmatprep.subr.bf16.mxu0 0
        %2712 = vmatpush2.bf16.xpose.msra.mxu0 0
        %2713 = vmatprep.subr.bf16.mxu0 0
        %2714 = vmatpush2.bf16.xpose.msra.mxu0 0
        %2715 = vmatprep.subr.bf16.mxu0 0
        %2716 = vmatpush2.bf16.xpose.msra.mxu0 0
        %2717 = vmatprep.subr.bf16.mxu0 0
        %2718 = vmatpush2.bf16.xpose.msra.mxu0 0
        %2719 = vmatprep.subr.bf16.mxu0 0
        %2720 = vmatpush2.bf16.xpose.msra.mxu0 0
        %2721 = vmatprep.mubr.bf16.mxu0 0
        %2722 = vmatmul.mubr.bf16.gmra.mxu0 %v2684
        %v2723 = vpop.f32.mrf.mxu0
        %v2724 = vadd.f32 0.0, %v2723
        %v2725 = vpop.f32.mrf.mxu0
        %v2726 = vpop.f32.mrf.mxu0
        %v2727 = vpop.f32.mrf.mxu0
        %2728 = vdwg.mxu0
        %v2730 = vsel %vm1596, %v2331, 0
        %v2733 = vsel %vm1596, %v2483, 0
        %2735 = vmatprep.subr.bf16.mxu0 0
        %2736 = vmatpush1.bf16.xpose.msra.mxu0 0
        %2737 = vmatprep.subr.bf16.mxu0 0
        %2738 = vmatpush1.bf16.xpose.msra.mxu0 0
        %2739 = vmatprep.subr.bf16.mxu0 0
        %2740 = vmatpush1.bf16.xpose.msra.mxu0 0
        %2741 = vmatprep.subr.bf16.mxu0 0
        %2742 = vmatpush1.bf16.xpose.msra.mxu0 0
        %2743 = vmatprep.subr.bf16.mxu0 0
        %2744 = vmatpush1.bf16.xpose.msra.mxu0 0
        %2745 = vmatprep.subr.bf16.mxu0 0
        %2746 = vmatpush1.bf16.xpose.msra.mxu0 0
        %2747 = vmatprep.subr.bf16.mxu0 0
        %2748 = vmatpush1.bf16.xpose.msra.mxu0 0
        %2749 = vmatprep.subr.bf16.mxu0 0
        %2750 = vmatpush1.bf16.xpose.msra.mxu0 %v2733
        %2751 = vmatprep.subr.bf16.mxu0 0
        %2752 = vmatpush2.bf16.xpose.msra.mxu0 0
        %2753 = vmatprep.subr.bf16.mxu0 0
        %2754 = vmatpush2.bf16.xpose.msra.mxu0 0
        %2755 = vmatprep.subr.bf16.mxu0 0
        %2756 = vmatpush2.bf16.xpose.msra.mxu0 0
        %2757 = vmatprep.subr.bf16.mxu0 0
        %2758 = vmatpush2.bf16.xpose.msra.mxu0 0
        %2759 = vmatprep.subr.bf16.mxu0 0
        %2760 = vmatpush2.bf16.xpose.msra.mxu0 0
        %2761 = vmatprep.subr.bf16.mxu0 0
        %2762 = vmatpush2.bf16.xpose.msra.mxu0 0
        %2763 = vmatprep.subr.bf16.mxu0 0
        %2764 = vmatpush2.bf16.xpose.msra.mxu0 0
        %2765 = vmatprep.subr.bf16.mxu0 0
        %2766 = vmatpush2.bf16.xpose.msra.mxu0 0
        %2767 = vmatprep.mubr.bf16.mxu0 0
        %2768 = vmatmul.mubr.bf16.gmra.mxu0 %v2730
        %v2769 = vpop.f32.mrf.mxu0
        %v2770 = vadd.f32 0.0, %v2769
        %v2771 = vpop.f32.mrf.mxu0
        %v2772 = vpop.f32.mrf.mxu0
        %v2773 = vpop.f32.mrf.mxu0
        %2774 = vdwg.mxu0
        %v2776 = vsel %vm1596, %v2332, 0
        %v2779 = vsel %vm1596, %v2484, 0
        %2781 = vmatprep.subr.bf16.mxu0 0
        %2782 = vmatpush1.bf16.xpose.msra.mxu0 0
        %2783 = vmatprep.subr.bf16.mxu0 0
        %2784 = vmatpush1.bf16.xpose.msra.mxu0 0
        %2785 = vmatprep.subr.bf16.mxu0 0
        %2786 = vmatpush1.bf16.xpose.msra.mxu0 0
        %2787 = vmatprep.subr.bf16.mxu0 0
        %2788 = vmatpush1.bf16.xpose.msra.mxu0 0
        %2789 = vmatprep.subr.bf16.mxu0 0
        %2790 = vmatpush1.bf16.xpose.msra.mxu0 0
        %2791 = vmatprep.subr.bf16.mxu0 0
        %2792 = vmatpush1.bf16.xpose.msra.mxu0 0
        %2793 = vmatprep.subr.bf16.mxu0 0
        %2794 = vmatpush1.bf16.xpose.msra.mxu0 0
        %2795 = vmatprep.subr.bf16.mxu0 0
        %2796 = vmatpush1.bf16.xpose.msra.mxu0 %v2779
        %2797 = vmatprep.subr.bf16.mxu0 0
        %2798 = vmatpush2.bf16.xpose.msra.mxu0 0
        %2799 = vmatprep.subr.bf16.mxu0 0
        %2800 = vmatpush2.bf16.xpose.msra.mxu0 0
        %2801 = vmatprep.subr.bf16.mxu0 0
        %2802 = vmatpush2.bf16.xpose.msra.mxu0 0
        %2803 = vmatprep.subr.bf16.mxu0 0
        %2804 = vmatpush2.bf16.xpose.msra.mxu0 0
        %2805 = vmatprep.subr.bf16.mxu0 0
        %2806 = vmatpush2.bf16.xpose.msra.mxu0 0
        %2807 = vmatprep.subr.bf16.mxu0 0
        %2808 = vmatpush2.bf16.xpose.msra.mxu0 0
        %2809 = vmatprep.subr.bf16.mxu0 0
        %2810 = vmatpush2.bf16.xpose.msra.mxu0 0
        %2811 = vmatprep.subr.bf16.mxu0 0
        %2812 = vmatpush2.bf16.xpose.msra.mxu0 0
        %2813 = vmatprep.mubr.bf16.mxu0 0
        %2814 = vmatmul.mubr.bf16.gmra.mxu0 %v2776
        %v2815 = vpop.f32.mrf.mxu0
        %v2816 = vadd.f32 0.0, %v2815
        %v2817 = vpop.f32.mrf.mxu0
        %v2818 = vpop.f32.mrf.mxu0
        %v2819 = vpop.f32.mrf.mxu0
        %2820 = vdwg.mxu0
        %v2821 = vsel %vm2182, 1, 0
        %vm2822 = vcmp.eq.s32.totalorder %v2821, 1
        %v2823 = vsel %vm2822, -1e+09, %v2678
        %v2824 = vsel %vm2822, -1e+09, %v2724
        %v2825 = vsel %vm2822, -1e+09, %v2770
        %v2826 = vsel %vm2822, -1e+09, %v2816
        %v2827 = vsel %vm1596, %v2823, -inf
        %2828 = vmax.xlane.f32.xlu0 %v2827
        %v2829 = vpop.xlane.xlu0 %2828
        %v2830 = vsel %vm1596, %v2824, -inf
        %2831 = vmax.xlane.f32.xlu0 %v2830
        %v2832 = vpop.xlane.xlu0 %2831
        %v2833 = vsel %vm1596, %v2825, -inf
        %2834 = vmax.xlane.f32.xlu0 %v2833
        %v2835 = vpop.xlane.xlu0 %2834
        %v2836 = vsel %vm1596, %v2826, -inf
        %2837 = vmax.xlane.f32.xlu0 %v2836
        %v2838 = vpop.xlane.xlu0 %2837
        %v2839 = vsub.f32 %v2823, %v2829
        %v2840 = vsub.f32 %v2824, %v2832
        %v2841 = vsub.f32 %v2825, %v2835
        %v2842 = vsub.f32 %v2826, %v2838
        %v2843 = vmul.f32 %v2839, 1.442695
        %v2844 = vpow.pop %v2843
        %v2845 = vmul.f32 %v2840, 1.442695
        %v2846 = vpow.pop %v2845
        %v2847 = vmul.f32 %v2841, 1.442695
        %v2848 = vpow.pop %v2847
        %v2849 = vmul.f32 %v2842, 1.442695
        %v2850 = vpow.pop %v2849
        %v2851 = vsel %vm1596, %v2844, 0.0
        %2852 = vadd.xlane.f32.xlu0 %v2851
        %v2853 = vpop.xlane.xlu0 %2852
        %v2854 = vsel %vm1596, %v2846, 0.0
        %2855 = vadd.xlane.f32.xlu0 %v2854
        %v2856 = vpop.xlane.xlu0 %2855
        %v2857 = vsel %vm1596, %v2848, 0.0
        %2858 = vadd.xlane.f32.xlu0 %v2857
        %v2859 = vpop.xlane.xlu0 %2858
        %v2860 = vsel %vm1596, %v2850, 0.0
        %2861 = vadd.xlane.f32.xlu0 %v2860
        %v2862 = vpop.xlane.xlu0 %2861
        %v2863 = vrcp.pop %v2853
        %v2864 = vrcp.pop %v2856
        %v2865 = vrcp.pop %v2859
        %v2866 = vrcp.pop %v2862
        %v2867 = vmul.f32 %v2844, %v2863
        %v2868 = vmul.f32 %v2846, %v2864
        %v2869 = vmul.f32 %v2848, %v2865
        %v2870 = vmul.f32 %v2850, %v2866
        %v2871 = vpack.c.bf16 %v2867, %v2867
        %v2872 = vpack.c.bf16 %v2868, %v2868
        %v2873 = vpack.c.bf16 %v2869, %v2869
        %v2874 = vpack.c.bf16 %v2870, %v2870
        %v2876 = vsel %vm1596, %v2871, 0
        %v2879 = vsel %vm1838, %v2633, 0
        %2881 = vmatprep.subr.bf16.mxu0 0
        %2882 = vmatpush1.bf16.msra.mxu0 0
        %2883 = vmatprep.subr.bf16.mxu0 0
        %2884 = vmatpush1.bf16.msra.mxu0 0
        %2885 = vmatprep.subr.bf16.mxu0 0
        %2886 = vmatpush1.bf16.msra.mxu0 0
        %2887 = vmatprep.subr.bf16.mxu0 0
        %2888 = vmatpush1.bf16.msra.mxu0 0
        %2889 = vmatprep.subr.bf16.mxu0 0
        %2890 = vmatpush1.bf16.msra.mxu0 0
        %2891 = vmatprep.subr.bf16.mxu0 0
        %2892 = vmatpush1.bf16.msra.mxu0 0
        %2893 = vmatprep.subr.bf16.mxu0 0
        %2894 = vmatpush1.bf16.msra.mxu0 0
        %2895 = vmatprep.subr.bf16.mxu0 0
        %2896 = vmatpush1.bf16.msra.mxu0 %v2879
        %2897 = vmatprep.subr.bf16.mxu0 0
        %2898 = vmatpush2.bf16.msra.mxu0 0
        %2899 = vmatprep.subr.bf16.mxu0 0
        %2900 = vmatpush2.bf16.msra.mxu0 0
        %2901 = vmatprep.subr.bf16.mxu0 0
        %2902 = vmatpush2.bf16.msra.mxu0 0
        %2903 = vmatprep.subr.bf16.mxu0 0
        %2904 = vmatpush2.bf16.msra.mxu0 0
        %2905 = vmatprep.subr.bf16.mxu0 0
        %2906 = vmatpush2.bf16.msra.mxu0 0
        %2907 = vmatprep.subr.bf16.mxu0 0
        %2908 = vmatpush2.bf16.msra.mxu0 0
        %2909 = vmatprep.subr.bf16.mxu0 0
        %2910 = vmatpush2.bf16.msra.mxu0 0
        %2911 = vmatprep.subr.bf16.mxu0 0
        %2912 = vmatpush2.bf16.msra.mxu0 0
        %2913 = vmatprep.mubr.bf16.mxu0 0
        %2914 = vmatmul.mubr.bf16.gmra.mxu0 %v2876
        %v2915 = vpop.f32.mrf.mxu0
        %v2916 = vadd.f32 0.0, %v2915
        %v2917 = vpop.f32.mrf.mxu0
        %v2918 = vpop.f32.mrf.mxu0
        %v2919 = vpop.f32.mrf.mxu0
        %2920 = vdwg.mxu0
        %v2922 = vsel %vm1596, %v2872, 0
        %v2925 = vsel %vm1838, %v2634, 0
        %2927 = vmatprep.subr.bf16.mxu0 0
        %2928 = vmatpush1.bf16.msra.mxu0 0
        %2929 = vmatprep.subr.bf16.mxu0 0
        %2930 = vmatpush1.bf16.msra.mxu0 0
        %2931 = vmatprep.subr.bf16.mxu0 0
        %2932 = vmatpush1.bf16.msra.mxu0 0
        %2933 = vmatprep.subr.bf16.mxu0 0
        %2934 = vmatpush1.bf16.msra.mxu0 0
        %2935 = vmatprep.subr.bf16.mxu0 0
        %2936 = vmatpush1.bf16.msra.mxu0 0
        %2937 = vmatprep.subr.bf16.mxu0 0
        %2938 = vmatpush1.bf16.msra.mxu0 0
        %2939 = vmatprep.subr.bf16.mxu0 0
        %2940 = vmatpush1.bf16.msra.mxu0 0
        %2941 = vmatprep.subr.bf16.mxu0 0
        %2942 = vmatpush1.bf16.msra.mxu0 %v2925
        %2943 = vmatprep.subr.bf16.mxu0 0
        %2944 = vmatpush2.bf16.msra.mxu0 0
        %2945 = vmatprep.subr.bf16.mxu0 0
        %2946 = vmatpush2.bf16.msra.mxu0 0
        %2947 = vmatprep.subr.bf16.mxu0 0
        %2948 = vmatpush2.bf16.msra.mxu0 0
        %2949 = vmatprep.subr.bf16.mxu0 0
        %2950 = vmatpush2.bf16.msra.mxu0 0
        %2951 = vmatprep.subr.bf16.mxu0 0
        %2952 = vmatpush2.bf16.msra.mxu0 0
        %2953 = vmatprep.subr.bf16.mxu0 0
        %2954 = vmatpush2.bf16.msra.mxu0 0
        %2955 = vmatprep.subr.bf16.mxu0 0
        %2956 = vmatpush2.bf16.msra.mxu0 0
        %2957 = vmatprep.subr.bf16.mxu0 0
        %2958 = vmatpush2.bf16.msra.mxu0 0
        %2959 = vmatprep.mubr.bf16.mxu0 0
        %2960 = vmatmul.mubr.bf16.gmra.mxu0 %v2922
        %v2961 = vpop.f32.mrf.mxu0
        %v2962 = vadd.f32 0.0, %v2961
        %v2963 = vpop.f32.mrf.mxu0
        %v2964 = vpop.f32.mrf.mxu0
        %v2965 = vpop.f32.mrf.mxu0
        %2966 = vdwg.mxu0
        %v2968 = vsel %vm1596, %v2873, 0
        %v2971 = vsel %vm1838, %v2635, 0
        %2973 = vmatprep.subr.bf16.mxu0 0
        %2974 = vmatpush1.bf16.msra.mxu0 0
        %2975 = vmatprep.subr.bf16.mxu0 0
        %2976 = vmatpush1.bf16.msra.mxu0 0
        %2977 = vmatprep.subr.bf16.mxu0 0
        %2978 = vmatpush1.bf16.msra.mxu0 0
        %2979 = vmatprep.subr.bf16.mxu0 0
        %2980 = vmatpush1.bf16.msra.mxu0 0
        %2981 = vmatprep.subr.bf16.mxu0 0
        %2982 = vmatpush1.bf16.msra.mxu0 0
        %2983 = vmatprep.subr.bf16.mxu0 0
        %2984 = vmatpush1.bf16.msra.mxu0 0
        %2985 = vmatprep.subr.bf16.mxu0 0
        %2986 = vmatpush1.bf16.msra.mxu0 0
        %2987 = vmatprep.subr.bf16.mxu0 0
        %2988 = vmatpush1.bf16.msra.mxu0 %v2971
        %2989 = vmatprep.subr.bf16.mxu0 0
        %2990 = vmatpush2.bf16.msra.mxu0 0
        %2991 = vmatprep.subr.bf16.mxu0 0
        %2992 = vmatpush2.bf16.msra.mxu0 0
        %2993 = vmatprep.subr.bf16.mxu0 0
        %2994 = vmatpush2.bf16.msra.mxu0 0
        %2995 = vmatprep.subr.bf16.mxu0 0
        %2996 = vmatpush2.bf16.msra.mxu0 0
        %2997 = vmatprep.subr.bf16.mxu0 0
        %2998 = vmatpush2.bf16.msra.mxu0 0
        %2999 = vmatprep.subr.bf16.mxu0 0
        %3000 = vmatpush2.bf16.msra.mxu0 0
        %3001 = vmatprep.subr.bf16.mxu0 0
        %3002 = vmatpush2.bf16.msra.mxu0 0
        %3003 = vmatprep.subr.bf16.mxu0 0
        %3004 = vmatpush2.bf16.msra.mxu0 0
        %3005 = vmatprep.mubr.bf16.mxu0 0
        %3006 = vmatmul.mubr.bf16.gmra.mxu0 %v2968
        %v3007 = vpop.f32.mrf.mxu0
        %v3008 = vadd.f32 0.0, %v3007
        %v3009 = vpop.f32.mrf.mxu0
        %v3010 = vpop.f32.mrf.mxu0
        %v3011 = vpop.f32.mrf.mxu0
        %3012 = vdwg.mxu0
        %v3014 = vsel %vm1596, %v2874, 0
        %v3017 = vsel %vm1838, %v2636, 0
        %3019 = vmatprep.subr.bf16.mxu0 0
        %3020 = vmatpush1.bf16.msra.mxu0 0
        %3021 = vmatprep.subr.bf16.mxu0 0
        %3022 = vmatpush1.bf16.msra.mxu0 0
        %3023 = vmatprep.subr.bf16.mxu0 0
        %3024 = vmatpush1.bf16.msra.mxu0 0
        %3025 = vmatprep.subr.bf16.mxu0 0
        %3026 = vmatpush1.bf16.msra.mxu0 0
        %3027 = vmatprep.subr.bf16.mxu0 0
        %3028 = vmatpush1.bf16.msra.mxu0 0
        %3029 = vmatprep.subr.bf16.mxu0 0
        %3030 = vmatpush1.bf16.msra.mxu0 0
        %3031 = vmatprep.subr.bf16.mxu0 0
        %3032 = vmatpush1.bf16.msra.mxu0 0
        %3033 = vmatprep.subr.bf16.mxu0 0
        %3034 = vmatpush1.bf16.msra.mxu0 %v3017
        %3035 = vmatprep.subr.bf16.mxu0 0
        %3036 = vmatpush2.bf16.msra.mxu0 0
        %3037 = vmatprep.subr.bf16.mxu0 0
        %3038 = vmatpush2.bf16.msra.mxu0 0
        %3039 = vmatprep.subr.bf16.mxu0 0
        %3040 = vmatpush2.bf16.msra.mxu0 0
        %3041 = vmatprep.subr.bf16.mxu0 0
        %3042 = vmatpush2.bf16.msra.mxu0 0
        %3043 = vmatprep.subr.bf16.mxu0 0
        %3044 = vmatpush2.bf16.msra.mxu0 0
        %3045 = vmatprep.subr.bf16.mxu0 0
        %3046 = vmatpush2.bf16.msra.mxu0 0
        %3047 = vmatprep.subr.bf16.mxu0 0
        %3048 = vmatpush2.bf16.msra.mxu0 0
        %3049 = vmatprep.subr.bf16.mxu0 0
        %3050 = vmatpush2.bf16.msra.mxu0 0
        %3051 = vmatprep.mubr.bf16.mxu0 0
        %3052 = vmatmul.mubr.bf16.gmra.mxu0 %v3014
        %v3053 = vpop.f32.mrf.mxu0
        %v3054 = vadd.f32 0.0, %v3053
        %v3055 = vpop.f32.mrf.mxu0
        %v3056 = vpop.f32.mrf.mxu0
        %v3057 = vpop.f32.mrf.mxu0
        %3058 = vdwg.mxu0
        %v3059 = vcombine.low %v2916, %v3008
        %v3060 = vcombine.high %v2916, %v3008
        %v3062 = vunpack.c.l.s4 1983009808
        %v3063 = vunpack.c.0.s8 %v3062
        %v3064 = vlaneseq
        %v3065 = vshrl.u32 %v3064, 7
        %v3066 = vsub.s32 %v3063, %v3065
        %v3067 = vrot.slane %v3059, %v3066
        %v3069 = vunpack.c.l.s4 1983009808
        %v3070 = vunpack.c.0.s8 %v3069
        %v3071 = vlaneseq
        %v3072 = vshrl.u32 %v3071, 7
        %v3073 = vsub.s32 %v3070, %v3072
        %v3074 = vrot.slane %v3060, %v3073
        %v3075 = vcombine.low %v2962, %v3054
        %v3076 = vcombine.high %v2962, %v3054
        %v3078 = vunpack.c.l.s4 1983009808
        %v3079 = vunpack.c.0.s8 %v3078
        %v3080 = vlaneseq
        %v3081 = vshrl.u32 %v3080, 7
        %v3082 = vsub.s32 %v3079, %v3081
        %v3083 = vrot.slane %v3075, %v3082
        %v3085 = vunpack.c.l.s4 1983009808
        %v3086 = vunpack.c.0.s8 %v3085
        %v3087 = vlaneseq
        %v3088 = vshrl.u32 %v3087, 7
        %v3089 = vsub.s32 %v3086, %v3088
        %v3090 = vrot.slane %v3076, %v3089
        %v3091 = vcombine.low %v3067, %v3083
        %v3092 = vcombine.high %v3067, %v3083
        %v3094 = vunpack.c.l.s4 1934713408
        %v3095 = vunpack.c.0.s8 %v3094
        %v3096 = vlaneseq
        %v3097 = vshrl.u32 %v3096, 7
        %v3098 = vsub.s32 %v3095, %v3097
        %v3099 = vrot.slane %v3091, %v3098
        %v3101 = vunpack.c.l.s4 1934713408
        %v3102 = vunpack.c.0.s8 %v3101
        %v3103 = vlaneseq
        %v3104 = vshrl.u32 %v3103, 7
        %v3105 = vsub.s32 %v3102, %v3104
        %v3106 = vrot.slane %v3092, %v3105
        %v3107 = vcombine.low %v3074, %v3090
        %v3108 = vcombine.high %v3074, %v3090
        %v3110 = vunpack.c.l.s4 1934713408
        %v3111 = vunpack.c.0.s8 %v3110
        %v3112 = vlaneseq
        %v3113 = vshrl.u32 %v3112, 7
        %v3114 = vsub.s32 %v3111, %v3113
        %v3115 = vrot.slane %v3107, %v3114
        %v3117 = vunpack.c.l.s4 1934713408
        %v3118 = vunpack.c.0.s8 %v3117
        %v3119 = vlaneseq
        %v3120 = vshrl.u32 %v3119, 7
        %v3121 = vsub.s32 %v3118, %v3120
        %v3122 = vrot.slane %v3108, %v3121
        %v3123 = vcombine.high %v3099, 0.0
        %v3124 = vcombine.high %v3106, 0.0
        %v3125 = vcombine.high %v3115, 0.0
        %v3126 = vcombine.high %v3122, 0.0
        %v3127 = vcombine.low %v3099, %v3106
        %v3129 = vunpack.c.l.s4 1983009808
        %v3130 = vunpack.c.0.s8 %v3129
        %v3131 = vlaneseq
        %v3132 = vshrl.u32 %v3131, 7
        %v3133 = vsub.s32 %v3130, %v3132
        %v3134 = vrot.slane %v3127, %v3133
        %v3135 = vcombine.low %v3123, %v3124
        %v3137 = vunpack.c.l.s4 1983009808
        %v3138 = vunpack.c.0.s8 %v3137
        %v3139 = vlaneseq
        %v3140 = vshrl.u32 %v3139, 7
        %v3141 = vsub.s32 %v3138, %v3140
        %v3142 = vrot.slane %v3135, %v3141
        %v3143 = vcombine.low %v3115, %v3122
        %v3145 = vunpack.c.l.s4 1983009808
        %v3146 = vunpack.c.0.s8 %v3145
        %v3147 = vlaneseq
        %v3148 = vshrl.u32 %v3147, 7
        %v3149 = vsub.s32 %v3146, %v3148
        %v3150 = vrot.slane %v3143, %v3149
        %v3151 = vcombine.low %v3125, %v3126
        %v3153 = vunpack.c.l.s4 1983009808
        %v3154 = vunpack.c.0.s8 %v3153
        %v3155 = vlaneseq
        %v3156 = vshrl.u32 %v3155, 7
        %v3157 = vsub.s32 %v3154, %v3156
        %v3158 = vrot.slane %v3151, %v3157
        %v3159 = vcombine.low %v3134, %v3142
        %v3160 = vcombine.high %v3134, %v3142
        %v3162 = vunpack.c.l.s4 1934713408
        %v3163 = vunpack.c.0.s8 %v3162
        %v3164 = vlaneseq
        %v3165 = vshrl.u32 %v3164, 7
        %v3166 = vsub.s32 %v3163, %v3165
        %v3167 = vrot.slane %v3159, %v3166
        %v3169 = vunpack.c.l.s4 1934713408
        %v3170 = vunpack.c.0.s8 %v3169
        %v3171 = vlaneseq
        %v3172 = vshrl.u32 %v3171, 7
        %v3173 = vsub.s32 %v3170, %v3172
        %v3174 = vrot.slane %v3160, %v3173
        %v3175 = vcombine.low %v3150, %v3158
        %v3176 = vcombine.high %v3150, %v3158
        %v3178 = vunpack.c.l.s4 1934713408
        %v3179 = vunpack.c.0.s8 %v3178
        %v3180 = vlaneseq
        %v3181 = vshrl.u32 %v3180, 7
        %v3182 = vsub.s32 %v3179, %v3181
        %v3183 = vrot.slane %v3175, %v3182
        %v3185 = vunpack.c.l.s4 1934713408
        %v3186 = vunpack.c.0.s8 %v3185
        %v3187 = vlaneseq
        %v3188 = vshrl.u32 %v3187, 7
        %v3189 = vsub.s32 %v3186, %v3188
        %v3190 = vrot.slane %v3176, %v3189
        %v3191 = vcombine.low %v3167, %v3183
        %v3192 = vcombine.high %v3167, %v3183
        %v3193 = vcombine.low %v3174, %v3190
        %v3194 = vcombine.high %v3174, %v3190
        %3196 = vrot.lane.b32.xlu0 %v3192, 8
        %v3197 = vpop.permute.xlu0 %3196
        %3200 = vrot.lane.b32.xlu0 %v3193, 16
        %v3201 = vpop.permute.xlu0 %3200
        %3204 = vrot.lane.b32.xlu0 %v3194, 24
        %v3205 = vpop.permute.xlu0 %3204
        %v3207 = vsel %vm1596, %v3191, %v3197
        %v3208 = vsel %vm2169, %v3207, %v3201
        %v3209 = vsel %vm2171, %v3208, %v3205
        %v3210 = vpack.c.bf16 %v3209, %v2172
        %v3211 = vld [vmem:[%s957] sm:$0xf]
        %v3212 = vld [vmem:[%s957 + $0x4] sm:$0xf]
        %v3213 = vld [vmem:[%s957 + $0x8] sm:$0xf]
        %v3214 = vld [vmem:[%s957 + $0xc] sm:$0xf]
        %v3215 = vld [vmem:[%s960] sm:$0x1]
        %v3217 = vlaneseq
        %v3218 = vshrl.u32 %v3217, 7
        %v3219 = vsub.s32 0, %v3218
        %v3220 = vrot.slane %v3215, %v3219
        %v3226 = vunpack.c.l.b16 %v3211
        %v3227 = vunpack.c.l.b16 %v3212
        %v3228 = vunpack.c.l.b16 %v3213
        %v3229 = vunpack.c.l.b16 %v3214
        %v3230 = vpack.c.b16 %v3227, %v3226
        %v3231 = vpack.c.b16 %v3229, %v3228
        %v3235 = vsel %vm1025, %v3210, 0
        %3237 = vmatprep.subr.bf16.mxu0 0
        %3238 = vmatpush1.bf16.msra.mxu0 0
        %3239 = vmatprep.subr.bf16.mxu0 0
        %3240 = vmatpush1.bf16.msra.mxu0 0
        %3241 = vmatprep.subr.bf16.mxu0 0
        %3242 = vmatpush1.bf16.msra.mxu0 0
        %3243 = vmatprep.subr.bf16.mxu0 0
        %3244 = vmatpush1.bf16.msra.mxu0 0
        %3245 = vmatprep.subr.bf16.mxu0 0
        %3246 = vmatpush1.bf16.msra.mxu0 0
        %3247 = vmatprep.subr.bf16.mxu0 0
        %3248 = vmatpush1.bf16.msra.mxu0 0
        %3249 = vmatprep.subr.bf16.mxu0 0
        %3250 = vmatpush1.bf16.msra.mxu0 %v3231
        %3251 = vmatprep.subr.bf16.mxu0 0
        %3252 = vmatpush1.bf16.msra.mxu0 %v3230
        %3253 = vmatprep.subr.bf16.mxu0 0
        %3254 = vmatpush2.bf16.msra.mxu0 0
        %3255 = vmatprep.subr.bf16.mxu0 0
        %3256 = vmatpush2.bf16.msra.mxu0 0
        %3257 = vmatprep.subr.bf16.mxu0 0
        %3258 = vmatpush2.bf16.msra.mxu0 0
        %3259 = vmatprep.subr.bf16.mxu0 0
        %3260 = vmatpush2.bf16.msra.mxu0 0
        %3261 = vmatprep.subr.bf16.mxu0 0
        %3262 = vmatpush2.bf16.msra.mxu0 0
        %3263 = vmatprep.subr.bf16.mxu0 0
        %3264 = vmatpush2.bf16.msra.mxu0 0
        %3265 = vmatprep.subr.bf16.mxu0 0
        %3266 = vmatpush2.bf16.msra.mxu0 0
        %3267 = vmatprep.subr.bf16.mxu0 0
        %3268 = vmatpush2.bf16.msra.mxu0 0
        %3269 = vmatprep.mubr.bf16.mxu0 0
        %3270 = vmatmul.mubr.bf16.gmra.mxu0 %v3235
        %v3271 = vpop.f32.mrf.mxu0
        %v3272 = vadd.f32 %v3220, %v3271
        %v3273 = vpop.f32.mrf.mxu0
        %v3274 = vpop.f32.mrf.mxu0
        %v3275 = vadd.f32 %v3220, %v3274
        %v3276 = vpop.f32.mrf.mxu0
        %3277 = vdwg.mxu0
        %v3278 = vadd.f32 %v1012, %v3272
        %v3279 = vadd.f32 %v1013, %v3275
        %v3280 = vsel %vm1025, %v3278, 0.0
        %3281 = vadd.xlane.f32.xlu0 %v3280
        %v3282 = vpop.xlane.xlu0 %3281
        %v3283 = vsel %vm1025, %v3279, 0.0
        %3284 = vadd.xlane.f32.xlu0 %v3283
        %v3285 = vpop.xlane.xlu0 %3284
        %v3286 = vmul.f32 %v3282, %v1032
        %v3287 = vmul.f32 %v3285, %v1032
        %v3288 = vsub.f32 %v3278, %v3286
        %v3289 = vsub.f32 %v3279, %v3287
        %v3290 = vmul.f32 %v3288, %v3288
        %v3291 = vmul.f32 %v3289, %v3289
        %v3292 = vsel %vm1025, %v3290, 0.0
        %3293 = vadd.xlane.f32.xlu0 %v3292
        %v3294 = vpop.xlane.xlu0 %3293
        %v3295 = vsel %vm1025, %v3291, 0.0
        %3296 = vadd.xlane.f32.xlu0 %v3295
        %v3297 = vpop.xlane.xlu0 %3296
        %v3298 = vmul.f32 %v3294, %v1032
        %v3299 = vmul.f32 %v3297, %v1032
        %v3300 = vadd.f32 %v3298, 1e-05
        %v3301 = vadd.f32 %v3299, 1e-05
        %v3302 = vrsqrt.pop %v3300
        %v3303 = vrsqrt.pop %v3301
        %v3304 = vmul.f32 %v3288, %v3302
        %v3305 = vmul.f32 %v3289, %v3303
        %v3306 = vlaneseq
        %v3307 = vshrl.u32 %v3306, 7
        %v3308 = vsub.s32 1, %v3307
        %v3309 = vrot.slane %v1018, %v3308
        %v3310 = vmul.f32 %v3304, %v3309
        %v3311 = vmul.f32 %v3305, %v3309
        %v3312 = vlaneseq
        %v3313 = vshrl.u32 %v3312, 7
        %v3314 = vsub.s32 1, %v3313
        %v3315 = vrot.slane %v1019, %v3314
        %v3316 = vadd.f32 %v3310, %v3315
        %v3317 = vadd.f32 %v3311, %v3315
        %v3318 = vpack.c.bf16 %v3317, %v3316
        %v3319 = vld [vmem:[%s965] sm:$0xf]
        %v3320 = vld [vmem:[%s965 + $0x4] sm:$0xf]
        %v3321 = vld [vmem:[%s965 + $0x8] sm:$0xf]
        %v3322 = vld [vmem:[%s965 + $0xc] sm:$0xf]
        %v3323 = vld [vmem:[%s968] sm:$0x1]
        %v3325 = vlaneseq
        %v3326 = vshrl.u32 %v3325, 7
        %v3327 = vsub.s32 0, %v3326
        %v3328 = vrot.slane %v3323, %v3327
        %v3334 = vunpack.c.l.b16 %v3319
        %v3335 = vunpack.c.l.b16 %v3320
        %v3336 = vunpack.c.l.b16 %v3321
        %v3337 = vunpack.c.l.b16 %v3322
        %v3338 = vpack.c.b16 %v3335, %v3334
        %v3339 = vpack.c.b16 %v3337, %v3336
        %v3343 = vsel %vm1025, %v3318, 0
        %3345 = vmatprep.subr.bf16.mxu0 0
        %3346 = vmatpush1.bf16.msra.mxu0 0
        %3347 = vmatprep.subr.bf16.mxu0 0
        %3348 = vmatpush1.bf16.msra.mxu0 0
        %3349 = vmatprep.subr.bf16.mxu0 0
        %3350 = vmatpush1.bf16.msra.mxu0 0
        %3351 = vmatprep.subr.bf16.mxu0 0
        %3352 = vmatpush1.bf16.msra.mxu0 0
        %3353 = vmatprep.subr.bf16.mxu0 0
        %3354 = vmatpush1.bf16.msra.mxu0 0
        %3355 = vmatprep.subr.bf16.mxu0 0
        %3356 = vmatpush1.bf16.msra.mxu0 0
        %3357 = vmatprep.subr.bf16.mxu0 0
        %3358 = vmatpush1.bf16.msra.mxu0 %v3339
        %3359 = vmatprep.subr.bf16.mxu0 0
        %3360 = vmatpush1.bf16.msra.mxu0 %v3338
        %3361 = vmatprep.subr.bf16.mxu0 0
        %3362 = vmatpush2.bf16.msra.mxu0 0
        %3363 = vmatprep.subr.bf16.mxu0 0
        %3364 = vmatpush2.bf16.msra.mxu0 0
        %3365 = vmatprep.subr.bf16.mxu0 0
        %3366 = vmatpush2.bf16.msra.mxu0 0
        %3367 = vmatprep.subr.bf16.mxu0 0
        %3368 = vmatpush2.bf16.msra.mxu0 0
        %3369 = vmatprep.subr.bf16.mxu0 0
        %3370 = vmatpush2.bf16.msra.mxu0 0
        %3371 = vmatprep.subr.bf16.mxu0 0
        %3372 = vmatpush2.bf16.msra.mxu0 0
        %3373 = vmatprep.subr.bf16.mxu0 0
        %3374 = vmatpush2.bf16.msra.mxu0 0
        %3375 = vmatprep.subr.bf16.mxu0 0
        %3376 = vmatpush2.bf16.msra.mxu0 0
        %3377 = vmatprep.mubr.bf16.mxu0 0
        %3378 = vmatmul.mubr.bf16.gmra.mxu0 %v3343
        %v3379 = vpop.f32.mrf.mxu0
        %v3380 = vadd.f32 %v3328, %v3379
        %v3381 = vpop.f32.mrf.mxu0
        %v3382 = vpop.f32.mrf.mxu0
        %v3383 = vadd.f32 %v3328, %v3382
        %v3384 = vpop.f32.mrf.mxu0
        %3385 = vdwg.mxu0
        %v3391 = vunpack.c.l.s4 1966171168
        %v3392 = vunpack.c.0.s8 %v3391
        %v3393 = vlaneseq
        %v3394 = vshrl.u32 %v3393, 7
        %v3395 = vsub.s32 %v3392, %v3394
        %v3396 = vrot.slane %v1014, %v3395
        %v3397 = vcombine.high %v3396, %v3396
        %v3399 = vunpack.c.l.s4 1966171168
        %v3400 = vunpack.c.0.s8 %v3399
        %v3401 = vlaneseq
        %v3402 = vshrl.u32 %v3401, 7
        %v3403 = vsub.s32 %v3400, %v3402
        %v3404 = vrot.slane %v3396, %v3403
        %v3406 = vunpack.c.l.s4 1966171168
        %v3407 = vunpack.c.0.s8 %v3406
        %v3408 = vlaneseq
        %v3409 = vshrl.u32 %v3408, 7
        %v3410 = vsub.s32 %v3407, %v3409
        %v3411 = vrot.slane %v3397, %v3410
        %v3412 = vcombine.high %v3404, %v3404
        %v3413 = vcombine.high %v3411, %v3411
        %v3415 = vunpack.c.l.s4 1966171168
        %v3416 = vunpack.c.0.s8 %v3415
        %v3417 = vlaneseq
        %v3418 = vshrl.u32 %v3417, 7
        %v3419 = vsub.s32 %v3416, %v3418
        %v3420 = vrot.slane %v1015, %v3419
        %v3422 = vunpack.c.l.s4 1966171168
        %v3423 = vunpack.c.0.s8 %v3422
        %v3424 = vlaneseq
        %v3425 = vshrl.u32 %v3424, 7
        %v3426 = vsub.s32 %v3423, %v3425
        %v3427 = vrot.slane %v3420, %v3426
        %v3429 = vunpack.c.l.s4 1966171168
        %v3430 = vunpack.c.0.s8 %v3429
        %v3431 = vlaneseq
        %v3432 = vshrl.u32 %v3431, 7
        %v3433 = vsub.s32 %v3430, %v3432
        %v3434 = vrot.slane %v1016, %v3433
        %v3435 = vcombine.high %v3434, %v3434
        %v3437 = vunpack.c.l.s4 1966171168
        %v3438 = vunpack.c.0.s8 %v3437
        %v3439 = vlaneseq
        %v3440 = vshrl.u32 %v3439, 7
        %v3441 = vsub.s32 %v3438, %v3440
        %v3442 = vrot.slane %v3434, %v3441
        %v3444 = vunpack.c.l.s4 1966171168
        %v3445 = vunpack.c.0.s8 %v3444
        %v3446 = vlaneseq
        %v3447 = vshrl.u32 %v3446, 7
        %v3448 = vsub.s32 %v3445, %v3447
        %v3449 = vrot.slane %v3435, %v3448
        %v3450 = vcombine.high %v3442, %v3442
        %v3451 = vcombine.high %v3449, %v3449
        %v3453 = vunpack.c.l.s4 1966171168
        %v3454 = vunpack.c.0.s8 %v3453
        %v3455 = vlaneseq
        %v3456 = vshrl.u32 %v3455, 7
        %v3457 = vsub.s32 %v3454, %v3456
        %v3458 = vrot.slane %v1017, %v3457
        %v3460 = vunpack.c.l.s4 1966171168
        %v3461 = vunpack.c.0.s8 %v3460
        %v3462 = vlaneseq
        %v3463 = vshrl.u32 %v3462, 7
        %v3464 = vsub.s32 %v3461, %v3463
        %v3465 = vrot.slane %v3458, %v3464
        %v3466 = vld [vmem:[%s973] sm:$0xf]
        %v3467 = vld [vmem:[%s973 + $0x4] sm:$0xf]
        %v3468 = vld [vmem:[%s973 + $0x8] sm:$0xf]
        %v3469 = vld [vmem:[%s973 + $0xc] sm:$0xf]
        %v3470 = vld [vmem:[%s976] sm:$0x1]
        %v3472 = vlaneseq
        %v3473 = vshrl.u32 %v3472, 7
        %v3474 = vsub.s32 0, %v3473
        %v3475 = vrot.slane %v3470, %v3474
        %v3477 = vcombine.low %v3404, %v3411
        %v3478 = vcombine.low %v3412, %v3413
        %v3479 = vcombine.low %v3427, %v3442
        %v3480 = vcombine.low %v3449, %v3450
        %v3482 = vunpack.c.l.s4 1966171168
        %v3483 = vunpack.c.0.s8 %v3482
        %v3484 = vlaneseq
        %v3485 = vshrl.u32 %v3484, 7
        %v3486 = vsub.s32 %v3483, %v3485
        %v3487 = vrot.slane %v3477, %v3486
        %v3489 = vunpack.c.l.s4 1966171168
        %v3490 = vunpack.c.0.s8 %v3489
        %v3491 = vlaneseq
        %v3492 = vshrl.u32 %v3491, 7
        %v3493 = vsub.s32 %v3490, %v3492
        %v3494 = vrot.slane %v3478, %v3493
        %v3496 = vunpack.c.l.s4 1966171168
        %v3497 = vunpack.c.0.s8 %v3496
        %v3498 = vlaneseq
        %v3499 = vshrl.u32 %v3498, 7
        %v3500 = vsub.s32 %v3497, %v3499
        %v3501 = vrot.slane %v3479, %v3500
        %v3503 = vunpack.c.l.s4 1966171168
        %v3504 = vunpack.c.0.s8 %v3503
        %v3505 = vlaneseq
        %v3506 = vshrl.u32 %v3505, 7
        %v3507 = vsub.s32 %v3504, %v3506
        %v3508 = vrot.slane %v3480, %v3507
        %v3509 = vcombine.low %v3487, %v3494
        %v3510 = vcombine.low %v3501, %v3508
        %v3512 = vunpack.c.l.s4 1966171168
        %v3513 = vunpack.c.0.s8 %v3512
        %v3514 = vlaneseq
        %v3515 = vshrl.u32 %v3514, 7
        %v3516 = vsub.s32 %v3513, %v3515
        %v3517 = vrot.slane %v3509, %v3516
        %v3519 = vunpack.c.l.s4 1966171168
        %v3520 = vunpack.c.0.s8 %v3519
        %v3521 = vlaneseq
        %v3522 = vshrl.u32 %v3521, 7
        %v3523 = vsub.s32 %v3520, %v3522
        %v3524 = vrot.slane %v3510, %v3523
        %v3525 = vcombine.low %v3517, %v3524
        %v3526 = vcombine.low %v3451, %v3465
        %v3528 = vunpack.c.l.s4 1966171168
        %v3529 = vunpack.c.0.s8 %v3528
        %v3530 = vlaneseq
        %v3531 = vshrl.u32 %v3530, 7
        %v3532 = vsub.s32 %v3529, %v3531
        %v3533 = vrot.slane %v3526, %v3532
        %v3535 = vunpack.c.l.s4 1966171168
        %v3536 = vunpack.c.0.s8 %v3535
        %v3537 = vlaneseq
        %v3538 = vshrl.u32 %v3537, 7
        %v3539 = vsub.s32 %v3536, %v3538
        %v3540 = vrot.slane %v3533, %v3539
        %v3545 = vunpack.c.l.b16 %v3466
        %v3546 = vunpack.c.l.b16 %v3467
        %v3547 = vunpack.c.l.b16 %v3468
        %v3548 = vunpack.c.l.b16 %v3469
        %v3549 = vpack.c.b16 %v3546, %v3545
        %v3550 = vpack.c.b16 %v3548, %v3547
        %v3554 = vsel %vm1025, %v3525, 0
        %v3557 = vsel %vm1025, %v3540, 0
        %3559 = vmatprep.subr.bf16.mxu0 0
        %3560 = vmatpush1.bf16.msra.mxu0 0
        %3561 = vmatprep.subr.bf16.mxu0 0
        %3562 = vmatpush1.bf16.msra.mxu0 0
        %3563 = vmatprep.subr.bf16.mxu0 0
        %3564 = vmatpush1.bf16.msra.mxu0 0
        %3565 = vmatprep.subr.bf16.mxu0 0
        %3566 = vmatpush1.bf16.msra.mxu0 0
        %3567 = vmatprep.subr.bf16.mxu0 0
        %3568 = vmatpush1.bf16.msra.mxu0 0
        %3569 = vmatprep.subr.bf16.mxu0 0
        %3570 = vmatpush1.bf16.msra.mxu0 0
        %3571 = vmatprep.subr.bf16.mxu0 0
        %3572 = vmatpush1.bf16.msra.mxu0 %v3550
        %3573 = vmatprep.subr.bf16.mxu0 0
        %3574 = vmatpush1.bf16.msra.mxu0 %v3549
        %3575 = vmatprep.subr.bf16.mxu0 0
        %3576 = vmatpush2.bf16.msra.mxu0 0
        %3577 = vmatprep.subr.bf16.mxu0 0
        %3578 = vmatpush2.bf16.msra.mxu0 0
        %3579 = vmatprep.subr.bf16.mxu0 0
        %3580 = vmatpush2.bf16.msra.mxu0 0
        %3581 = vmatprep.subr.bf16.mxu0 0
        %3582 = vmatpush2.bf16.msra.mxu0 0
        %3583 = vmatprep.subr.bf16.mxu0 0
        %3584 = vmatpush2.bf16.msra.mxu0 0
        %3585 = vmatprep.subr.bf16.mxu0 0
        %3586 = vmatpush2.bf16.msra.mxu0 0
        %3587 = vmatprep.subr.bf16.mxu0 0
        %3588 = vmatpush2.bf16.msra.mxu0 0
        %3589 = vmatprep.subr.bf16.mxu0 0
        %3590 = vmatpush2.bf16.msra.mxu0 0
        %3591 = vmatprep.mubr.bf16.mxu0 0
        %3592 = vmatmul.mubr.bf16.gmra.mxu0 %v3554
        %v3593 = vpop.f32.mrf.mxu0
        %v3594 = vadd.f32 %v3475, %v3593
        %v3595 = vpop.f32.mrf.mxu0
        %v3596 = vpop.f32.mrf.mxu0
        %v3597 = vadd.f32 %v3475, %v3596
        %v3598 = vpop.f32.mrf.mxu0
        %3599 = vmatprep.mubr.bf16.mxu0 0
        %3600 = vmatmul.mubr.bf16.gmra.mxu0 %v3557
        %v3601 = vpop.f32.mrf.mxu0
        %v3602 = vadd.f32 %v3475, %v3601
        %v3603 = vpop.f32.mrf.mxu0
        %v3604 = vpop.f32.mrf.mxu0
        %v3605 = vpop.f32.mrf.mxu0
        %3606 = vdwg.mxu0
        %v3610 = vcombine.high %v3594, %v3594
        %v3612 = vunpack.c.l.s4 1983009808
        %v3613 = vunpack.c.0.s8 %v3612
        %v3614 = vlaneseq
        %v3615 = vshrl.u32 %v3614, 7
        %v3616 = vsub.s32 %v3613, %v3615
        %v3617 = vrot.slane %v3594, %v3616
        %v3619 = vunpack.c.l.s4 1983009808
        %v3620 = vunpack.c.0.s8 %v3619
        %v3621 = vlaneseq
        %v3622 = vshrl.u32 %v3621, 7
        %v3623 = vsub.s32 %v3620, %v3622
        %v3624 = vrot.slane %v3610, %v3623
        %v3625 = vcombine.high %v3617, %v3617
        %v3626 = vcombine.high %v3624, %v3624
        %v3627 = vcombine.high %v3597, %v3597
        %v3629 = vunpack.c.l.s4 1983009808
        %v3630 = vunpack.c.0.s8 %v3629
        %v3631 = vlaneseq
        %v3632 = vshrl.u32 %v3631, 7
        %v3633 = vsub.s32 %v3630, %v3632
        %v3634 = vrot.slane %v3597, %v3633
        %v3636 = vunpack.c.l.s4 1983009808
        %v3637 = vunpack.c.0.s8 %v3636
        %v3638 = vlaneseq
        %v3639 = vshrl.u32 %v3638, 7
        %v3640 = vsub.s32 %v3637, %v3639
        %v3641 = vrot.slane %v3627, %v3640
        %v3642 = vcombine.high %v3634, %v3634
        %v3643 = vcombine.high %v3641, %v3641
        %v3645 = vunpack.c.l.s4 1983009808
        %v3646 = vunpack.c.0.s8 %v3645
        %v3647 = vlaneseq
        %v3648 = vshrl.u32 %v3647, 7
        %v3649 = vsub.s32 %v3646, %v3648
        %v3650 = vrot.slane %v3602, %v3649
        %v3651 = vcombine.high %v3650, %v3650
        %v3662 = vld [vmem:[#allocation7] sm:$0x1]
        %vm3663 = vcmp.gt.f32.partialorder %v3662, 0.5
        %3665 = vrot.lane.b32.xlu0 %v3380, 120
        %v3666 = vpop.permute.xlu0 %3665
        %3668 = vrot.lane.b32.xlu0 %v3380, 112
        %v3669 = vpop.permute.xlu0 %3668
        %3671 = vrot.lane.b32.xlu0 %v3380, 104
        %v3672 = vpop.permute.xlu0 %3671
        %v3674 = vcombine.low %v3380, %v3669
        %v3675 = vcombine.high %v3380, %v3669
        %v3677 = vunpack.c.l.s4 1983009808
        %v3678 = vunpack.c.0.s8 %v3677
        %v3679 = vlaneseq
        %v3680 = vshrl.u32 %v3679, 7
        %v3681 = vsub.s32 %v3678, %v3680
        %v3682 = vrot.slane %v3674, %v3681
        %v3684 = vunpack.c.l.s4 1983009808
        %v3685 = vunpack.c.0.s8 %v3684
        %v3686 = vlaneseq
        %v3687 = vshrl.u32 %v3686, 7
        %v3688 = vsub.s32 %v3685, %v3687
        %v3689 = vrot.slane %v3675, %v3688
        %v3690 = vcombine.low %v3666, %v3672
        %v3691 = vcombine.high %v3666, %v3672
        %v3693 = vunpack.c.l.s4 1983009808
        %v3694 = vunpack.c.0.s8 %v3693
        %v3695 = vlaneseq
        %v3696 = vshrl.u32 %v3695, 7
        %v3697 = vsub.s32 %v3694, %v3696
        %v3698 = vrot.slane %v3690, %v3697
        %v3700 = vunpack.c.l.s4 1983009808
        %v3701 = vunpack.c.0.s8 %v3700
        %v3702 = vlaneseq
        %v3703 = vshrl.u32 %v3702, 7
        %v3704 = vsub.s32 %v3701, %v3703
        %v3705 = vrot.slane %v3691, %v3704
        %v3706 = vcombine.low %v3682, %v3698
        %v3707 = vcombine.high %v3682, %v3698
        %v3709 = vunpack.c.l.s4 1934713408
        %v3710 = vunpack.c.0.s8 %v3709
        %v3711 = vlaneseq
        %v3712 = vshrl.u32 %v3711, 7
        %v3713 = vsub.s32 %v3710, %v3712
        %v3714 = vrot.slane %v3706, %v3713
        %v3716 = vunpack.c.l.s4 1934713408
        %v3717 = vunpack.c.0.s8 %v3716
        %v3718 = vlaneseq
        %v3719 = vshrl.u32 %v3718, 7
        %v3720 = vsub.s32 %v3717, %v3719
        %v3721 = vrot.slane %v3707, %v3720
        %v3722 = vcombine.low %v3689, %v3705
        %v3723 = vcombine.high %v3689, %v3705
        %v3725 = vunpack.c.l.s4 1934713408
        %v3726 = vunpack.c.0.s8 %v3725
        %v3727 = vlaneseq
        %v3728 = vshrl.u32 %v3727, 7
        %v3729 = vsub.s32 %v3726, %v3728
        %v3730 = vrot.slane %v3722, %v3729
        %v3732 = vunpack.c.l.s4 1934713408
        %v3733 = vunpack.c.0.s8 %v3732
        %v3734 = vlaneseq
        %v3735 = vshrl.u32 %v3734, 7
        %v3736 = vsub.s32 %v3733, %v3735
        %v3737 = vrot.slane %v3723, %v3736
        %v3738 = vcombine.high %v3714, 0.0
        %v3739 = vcombine.high %v3721, 0.0
        %v3740 = vcombine.high %v3730, 0.0
        %v3741 = vcombine.high %v3737, 0.0
        %v3742 = vcombine.low %v3714, %v3721
        %v3744 = vunpack.c.l.s4 1983009808
        %v3745 = vunpack.c.0.s8 %v3744
        %v3746 = vlaneseq
        %v3747 = vshrl.u32 %v3746, 7
        %v3748 = vsub.s32 %v3745, %v3747
        %v3749 = vrot.slane %v3742, %v3748
        %v3750 = vcombine.low %v3738, %v3739
        %v3752 = vunpack.c.l.s4 1983009808
        %v3753 = vunpack.c.0.s8 %v3752
        %v3754 = vlaneseq
        %v3755 = vshrl.u32 %v3754, 7
        %v3756 = vsub.s32 %v3753, %v3755
        %v3757 = vrot.slane %v3750, %v3756
        %v3758 = vcombine.low %v3730, %v3737
        %v3760 = vunpack.c.l.s4 1983009808
        %v3761 = vunpack.c.0.s8 %v3760
        %v3762 = vlaneseq
        %v3763 = vshrl.u32 %v3762, 7
        %v3764 = vsub.s32 %v3761, %v3763
        %v3765 = vrot.slane %v3758, %v3764
        %v3766 = vcombine.low %v3740, %v3741
        %v3768 = vunpack.c.l.s4 1983009808
        %v3769 = vunpack.c.0.s8 %v3768
        %v3770 = vlaneseq
        %v3771 = vshrl.u32 %v3770, 7
        %v3772 = vsub.s32 %v3769, %v3771
        %v3773 = vrot.slane %v3766, %v3772
        %v3774 = vcombine.low %v3749, %v3757
        %v3775 = vcombine.high %v3749, %v3757
        %v3777 = vunpack.c.l.s4 1934713408
        %v3778 = vunpack.c.0.s8 %v3777
        %v3779 = vlaneseq
        %v3780 = vshrl.u32 %v3779, 7
        %v3781 = vsub.s32 %v3778, %v3780
        %v3782 = vrot.slane %v3774, %v3781
        %v3784 = vunpack.c.l.s4 1934713408
        %v3785 = vunpack.c.0.s8 %v3784
        %v3786 = vlaneseq
        %v3787 = vshrl.u32 %v3786, 7
        %v3788 = vsub.s32 %v3785, %v3787
        %v3789 = vrot.slane %v3775, %v3788
        %v3790 = vcombine.low %v3765, %v3773
        %v3791 = vcombine.high %v3765, %v3773
        %v3793 = vunpack.c.l.s4 1934713408
        %v3794 = vunpack.c.0.s8 %v3793
        %v3795 = vlaneseq
        %v3796 = vshrl.u32 %v3795, 7
        %v3797 = vsub.s32 %v3794, %v3796
        %v3798 = vrot.slane %v3790, %v3797
        %v3800 = vunpack.c.l.s4 1934713408
        %v3801 = vunpack.c.0.s8 %v3800
        %v3802 = vlaneseq
        %v3803 = vshrl.u32 %v3802, 7
        %v3804 = vsub.s32 %v3801, %v3803
        %v3805 = vrot.slane %v3791, %v3804
        %v3806 = vcombine.low %v3782, %v3798
        %v3807 = vcombine.high %v3782, %v3798
        %v3808 = vcombine.low %v3789, %v3805
        %v3809 = vcombine.high %v3789, %v3805
        %v3810 = vpack.c.bf16 %v3806, %v3806
        %v3811 = vpack.c.bf16 %v3807, %v3807
        %v3812 = vpack.c.bf16 %v3808, %v3808
        %v3813 = vpack.c.bf16 %v3809, %v3809
        %3814 = vrot.lane.b32.xlu0 %v3617, 120
        %v3815 = vpop.permute.xlu0 %3814
        %3816 = vrot.lane.b32.xlu0 %v3625, 120
        %v3817 = vpop.permute.xlu0 %3816
        %3818 = vrot.lane.b32.xlu0 %v3624, 120
        %v3819 = vpop.permute.xlu0 %3818
        %3820 = vrot.lane.b32.xlu0 %v3626, 120
        %v3821 = vpop.permute.xlu0 %3820
        %3822 = vrot.lane.b32.xlu0 %v3634, 120
        %v3823 = vpop.permute.xlu0 %3822
        %3829 = vrot.lane.b32.xlu0 %v3617, 112
        %v3830 = vpop.permute.xlu0 %3829
        %3831 = vrot.lane.b32.xlu0 %v3625, 112
        %v3832 = vpop.permute.xlu0 %3831
        %3833 = vrot.lane.b32.xlu0 %v3624, 112
        %v3834 = vpop.permute.xlu0 %3833
        %3835 = vrot.lane.b32.xlu0 %v3626, 112
        %v3836 = vpop.permute.xlu0 %3835
        %3837 = vrot.lane.b32.xlu0 %v3634, 112
        %v3838 = vpop.permute.xlu0 %3837
        %3844 = vrot.lane.b32.xlu0 %v3617, 104
        %v3845 = vpop.permute.xlu0 %3844
        %3846 = vrot.lane.b32.xlu0 %v3625, 104
        %v3847 = vpop.permute.xlu0 %3846
        %3848 = vrot.lane.b32.xlu0 %v3624, 104
        %v3849 = vpop.permute.xlu0 %3848
        %3850 = vrot.lane.b32.xlu0 %v3626, 104
        %v3851 = vpop.permute.xlu0 %3850
        %3852 = vrot.lane.b32.xlu0 %v3634, 104
        %v3853 = vpop.permute.xlu0 %3852
        %v3859 = vcombine.low %v3617, %v3815
        %v3861 = vunpack.c.l.s4 1934713408
        %v3862 = vunpack.c.0.s8 %v3861
        %v3863 = vlaneseq
        %v3864 = vshrl.u32 %v3863, 7
        %v3865 = vsub.s32 %v3862, %v3864
        %v3866 = vrot.slane %v3859, %v3865
        %v3867 = vcombine.high %v3866, 0.0
        %v3868 = vcombine.low %v3830, %v3845
        %v3870 = vunpack.c.l.s4 1934713408
        %v3871 = vunpack.c.0.s8 %v3870
        %v3872 = vlaneseq
        %v3873 = vshrl.u32 %v3872, 7
        %v3874 = vsub.s32 %v3871, %v3873
        %v3875 = vrot.slane %v3868, %v3874
        %v3876 = vcombine.high %v3875, 0.0
        %v3877 = vcombine.low %v3625, %v3817
        %v3879 = vunpack.c.l.s4 1934713408
        %v3880 = vunpack.c.0.s8 %v3879
        %v3881 = vlaneseq
        %v3882 = vshrl.u32 %v3881, 7
        %v3883 = vsub.s32 %v3880, %v3882
        %v3884 = vrot.slane %v3877, %v3883
        %v3885 = vcombine.high %v3884, 0.0
        %v3886 = vcombine.low %v3832, %v3847
        %v3888 = vunpack.c.l.s4 1934713408
        %v3889 = vunpack.c.0.s8 %v3888
        %v3890 = vlaneseq
        %v3891 = vshrl.u32 %v3890, 7
        %v3892 = vsub.s32 %v3889, %v3891
        %v3893 = vrot.slane %v3886, %v3892
        %v3894 = vcombine.high %v3893, 0.0
        %v3895 = vcombine.low %v3624, %v3819
        %v3897 = vunpack.c.l.s4 1934713408
        %v3898 = vunpack.c.0.s8 %v3897
        %v3899 = vlaneseq
        %v3900 = vshrl.u32 %v3899, 7
        %v3901 = vsub.s32 %v3898, %v3900
        %v3902 = vrot.slane %v3895, %v3901
        %v3903 = vcombine.high %v3902, 0.0
        %v3904 = vcombine.low %v3834, %v3849
        %v3906 = vunpack.c.l.s4 1934713408
        %v3907 = vunpack.c.0.s8 %v3906
        %v3908 = vlaneseq
        %v3909 = vshrl.u32 %v3908, 7
        %v3910 = vsub.s32 %v3907, %v3909
        %v3911 = vrot.slane %v3904, %v3910
        %v3912 = vcombine.high %v3911, 0.0
        %v3913 = vcombine.low %v3626, %v3821
        %v3915 = vunpack.c.l.s4 1934713408
        %v3916 = vunpack.c.0.s8 %v3915
        %v3917 = vlaneseq
        %v3918 = vshrl.u32 %v3917, 7
        %v3919 = vsub.s32 %v3916, %v3918
        %v3920 = vrot.slane %v3913, %v3919
        %v3921 = vcombine.high %v3920, 0.0
        %v3922 = vcombine.low %v3836, %v3851
        %v3924 = vunpack.c.l.s4 1934713408
        %v3925 = vunpack.c.0.s8 %v3924
        %v3926 = vlaneseq
        %v3927 = vshrl.u32 %v3926, 7
        %v3928 = vsub.s32 %v3925, %v3927
        %v3929 = vrot.slane %v3922, %v3928
        %v3930 = vcombine.high %v3929, 0.0
        %v3931 = vcombine.low %v3634, %v3823
        %v3933 = vunpack.c.l.s4 1934713408
        %v3934 = vunpack.c.0.s8 %v3933
        %v3935 = vlaneseq
        %v3936 = vshrl.u32 %v3935, 7
        %v3937 = vsub.s32 %v3934, %v3936
        %v3938 = vrot.slane %v3931, %v3937
        %v3939 = vcombine.high %v3938, 0.0
        %v3940 = vcombine.low %v3838, %v3853
        %v3942 = vunpack.c.l.s4 1934713408
        %v3943 = vunpack.c.0.s8 %v3942
        %v3944 = vlaneseq
        %v3945 = vshrl.u32 %v3944, 7
        %v3946 = vsub.s32 %v3943, %v3945
        %v3947 = vrot.slane %v3940, %v3946
        %v3948 = vcombine.high %v3947, 0.0
        %v3949 = vcombine.low %v3866, %v3867
        %v3951 = vunpack.c.l.s4 1934713408
        %v3952 = vunpack.c.0.s8 %v3951
        %v3953 = vlaneseq
        %v3954 = vshrl.u32 %v3953, 7
        %v3955 = vsub.s32 %v3952, %v3954
        %v3956 = vrot.slane %v3949, %v3955
        %v3957 = vcombine.high %v3956, 0.0
        %v3958 = vcombine.low %v3884, %v3885
        %v3960 = vunpack.c.l.s4 1934713408
        %v3961 = vunpack.c.0.s8 %v3960
        %v3962 = vlaneseq
        %v3963 = vshrl.u32 %v3962, 7
        %v3964 = vsub.s32 %v3961, %v3963
        %v3965 = vrot.slane %v3958, %v3964
        %v3966 = vcombine.high %v3965, 0.0
        %v3967 = vcombine.low %v3902, %v3903
        %v3969 = vunpack.c.l.s4 1934713408
        %v3970 = vunpack.c.0.s8 %v3969
        %v3971 = vlaneseq
        %v3972 = vshrl.u32 %v3971, 7
        %v3973 = vsub.s32 %v3970, %v3972
        %v3974 = vrot.slane %v3967, %v3973
        %v3975 = vcombine.high %v3974, 0.0
        %v3976 = vcombine.low %v3920, %v3921
        %v3978 = vunpack.c.l.s4 1934713408
        %v3979 = vunpack.c.0.s8 %v3978
        %v3980 = vlaneseq
        %v3981 = vshrl.u32 %v3980, 7
        %v3982 = vsub.s32 %v3979, %v3981
        %v3983 = vrot.slane %v3976, %v3982
        %v3984 = vcombine.high %v3983, 0.0
        %v3985 = vcombine.low %v3938, %v3939
        %v3987 = vunpack.c.l.s4 1934713408
        %v3988 = vunpack.c.0.s8 %v3987
        %v3989 = vlaneseq
        %v3990 = vshrl.u32 %v3989, 7
        %v3991 = vsub.s32 %v3988, %v3990
        %v3992 = vrot.slane %v3985, %v3991
        %v3993 = vcombine.high %v3992, 0.0
        %v3994 = vcombine.low %v3875, %v3876
        %v3996 = vunpack.c.l.s4 1934713408
        %v3997 = vunpack.c.0.s8 %v3996
        %v3998 = vlaneseq
        %v3999 = vshrl.u32 %v3998, 7
        %v4000 = vsub.s32 %v3997, %v3999
        %v4001 = vrot.slane %v3994, %v4000
        %v4002 = vcombine.high %v4001, 0.0
        %v4003 = vcombine.low %v3893, %v3894
        %v4005 = vunpack.c.l.s4 1934713408
        %v4006 = vunpack.c.0.s8 %v4005
        %v4007 = vlaneseq
        %v4008 = vshrl.u32 %v4007, 7
        %v4009 = vsub.s32 %v4006, %v4008
        %v4010 = vrot.slane %v4003, %v4009
        %v4011 = vcombine.high %v4010, 0.0
        %v4012 = vcombine.low %v3911, %v3912
        %v4014 = vunpack.c.l.s4 1934713408
        %v4015 = vunpack.c.0.s8 %v4014
        %v4016 = vlaneseq
        %v4017 = vshrl.u32 %v4016, 7
        %v4018 = vsub.s32 %v4015, %v4017
        %v4019 = vrot.slane %v4012, %v4018
        %v4020 = vcombine.high %v4019, 0.0
        %v4021 = vcombine.low %v3929, %v3930
        %v4023 = vunpack.c.l.s4 1934713408
        %v4024 = vunpack.c.0.s8 %v4023
        %v4025 = vlaneseq
        %v4026 = vshrl.u32 %v4025, 7
        %v4027 = vsub.s32 %v4024, %v4026
        %v4028 = vrot.slane %v4021, %v4027
        %v4029 = vcombine.high %v4028, 0.0
        %v4030 = vcombine.low %v3947, %v3948
        %v4032 = vunpack.c.l.s4 1934713408
        %v4033 = vunpack.c.0.s8 %v4032
        %v4034 = vlaneseq
        %v4035 = vshrl.u32 %v4034, 7
        %v4036 = vsub.s32 %v4033, %v4035
        %v4037 = vrot.slane %v4030, %v4036
        %v4038 = vcombine.high %v4037, 0.0
        %v4059 = vcombine.low %v3956, %v3965
        %v4060 = vcombine.low %v3974, %v3983
        %v4062 = vunpack.c.l.s4 1983009808
        %v4063 = vunpack.c.0.s8 %v4062
        %v4064 = vlaneseq
        %v4065 = vshrl.u32 %v4064, 7
        %v4066 = vsub.s32 %v4063, %v4065
        %v4067 = vrot.slane %v4059, %v4066
        %v4069 = vunpack.c.l.s4 1983009808
        %v4070 = vunpack.c.0.s8 %v4069
        %v4071 = vlaneseq
        %v4072 = vshrl.u32 %v4071, 7
        %v4073 = vsub.s32 %v4070, %v4072
        %v4074 = vrot.slane %v4060, %v4073
        %v4075 = vcombine.low %v4067, %v4074
        %v4077 = vunpack.c.l.s4 1983009808
        %v4078 = vunpack.c.0.s8 %v4077
        %v4079 = vlaneseq
        %v4080 = vshrl.u32 %v4079, 7
        %v4081 = vsub.s32 %v4078, %v4080
        %v4082 = vrot.slane %v3992, %v4081
        %v4083 = vcombine.low %v3957, %v3966
        %v4084 = vcombine.low %v3975, %v3984
        %v4086 = vunpack.c.l.s4 1983009808
        %v4087 = vunpack.c.0.s8 %v4086
        %v4088 = vlaneseq
        %v4089 = vshrl.u32 %v4088, 7
        %v4090 = vsub.s32 %v4087, %v4089
        %v4091 = vrot.slane %v4083, %v4090
        %v4093 = vunpack.c.l.s4 1983009808
        %v4094 = vunpack.c.0.s8 %v4093
        %v4095 = vlaneseq
        %v4096 = vshrl.u32 %v4095, 7
        %v4097 = vsub.s32 %v4094, %v4096
        %v4098 = vrot.slane %v4084, %v4097
        %v4099 = vcombine.low %v4091, %v4098
        %v4101 = vunpack.c.l.s4 1983009808
        %v4102 = vunpack.c.0.s8 %v4101
        %v4103 = vlaneseq
        %v4104 = vshrl.u32 %v4103, 7
        %v4105 = vsub.s32 %v4102, %v4104
        %v4106 = vrot.slane %v3993, %v4105
        %v4107 = vcombine.low %v4001, %v4010
        %v4108 = vcombine.low %v4019, %v4028
        %v4110 = vunpack.c.l.s4 1983009808
        %v4111 = vunpack.c.0.s8 %v4110
        %v4112 = vlaneseq
        %v4113 = vshrl.u32 %v4112, 7
        %v4114 = vsub.s32 %v4111, %v4113
        %v4115 = vrot.slane %v4107, %v4114
        %v4117 = vunpack.c.l.s4 1983009808
        %v4118 = vunpack.c.0.s8 %v4117
        %v4119 = vlaneseq
        %v4120 = vshrl.u32 %v4119, 7
        %v4121 = vsub.s32 %v4118, %v4120
        %v4122 = vrot.slane %v4108, %v4121
        %v4123 = vcombine.low %v4115, %v4122
        %v4125 = vunpack.c.l.s4 1983009808
        %v4126 = vunpack.c.0.s8 %v4125
        %v4127 = vlaneseq
        %v4128 = vshrl.u32 %v4127, 7
        %v4129 = vsub.s32 %v4126, %v4128
        %v4130 = vrot.slane %v4037, %v4129
        %v4131 = vcombine.low %v4002, %v4011
        %v4132 = vcombine.low %v4020, %v4029
        %v4134 = vunpack.c.l.s4 1983009808
        %v4135 = vunpack.c.0.s8 %v4134
        %v4136 = vlaneseq
        %v4137 = vshrl.u32 %v4136, 7
        %v4138 = vsub.s32 %v4135, %v4137
        %v4139 = vrot.slane %v4131, %v4138
        %v4141 = vunpack.c.l.s4 1983009808
        %v4142 = vunpack.c.0.s8 %v4141
        %v4143 = vlaneseq
        %v4144 = vshrl.u32 %v4143, 7
        %v4145 = vsub.s32 %v4142, %v4144
        %v4146 = vrot.slane %v4132, %v4145
        %v4147 = vcombine.low %v4139, %v4146
        %v4149 = vunpack.c.l.s4 1983009808
        %v4150 = vunpack.c.0.s8 %v4149
        %v4151 = vlaneseq
        %v4152 = vshrl.u32 %v4151, 7
        %v4153 = vsub.s32 %v4150, %v4152
        %v4154 = vrot.slane %v4038, %v4153
        %v4163 = vpack.c.bf16 %v4082, %v4075
        %v4164 = vpack.c.bf16 %v4106, %v4099
        %v4165 = vpack.c.bf16 %v4130, %v4123
        %v4166 = vpack.c.bf16 %v4154, %v4147
        %4167 = vrot.lane.b32.xlu0 %v3617, 96
        %v4168 = vpop.permute.xlu0 %4167
        %4169 = vrot.lane.b32.xlu0 %v3625, 96
        %v4170 = vpop.permute.xlu0 %4169
        %4171 = vrot.lane.b32.xlu0 %v3624, 96
        %v4172 = vpop.permute.xlu0 %4171
        %4173 = vrot.lane.b32.xlu0 %v3626, 96
        %v4174 = vpop.permute.xlu0 %4173
        %4175 = vrot.lane.b32.xlu0 %v3634, 96
        %v4176 = vpop.permute.xlu0 %4175
        %4177 = vrot.lane.b32.xlu0 %v3815, 96
        %v4178 = vpop.permute.xlu0 %4177
        %4179 = vrot.lane.b32.xlu0 %v3817, 96
        %v4180 = vpop.permute.xlu0 %4179
        %4181 = vrot.lane.b32.xlu0 %v3819, 96
        %v4182 = vpop.permute.xlu0 %4181
        %4183 = vrot.lane.b32.xlu0 %v3821, 96
        %v4184 = vpop.permute.xlu0 %4183
        %4185 = vrot.lane.b32.xlu0 %v3823, 96
        %v4186 = vpop.permute.xlu0 %4185
        %4187 = vrot.lane.b32.xlu0 %v3830, 96
        %v4188 = vpop.permute.xlu0 %4187
        %4189 = vrot.lane.b32.xlu0 %v3832, 96
        %v4190 = vpop.permute.xlu0 %4189
        %4191 = vrot.lane.b32.xlu0 %v3834, 96
        %v4192 = vpop.permute.xlu0 %4191
        %4193 = vrot.lane.b32.xlu0 %v3836, 96
        %v4194 = vpop.permute.xlu0 %4193
        %4195 = vrot.lane.b32.xlu0 %v3838, 96
        %v4196 = vpop.permute.xlu0 %4195
        %4197 = vrot.lane.b32.xlu0 %v3845, 96
        %v4198 = vpop.permute.xlu0 %4197
        %4199 = vrot.lane.b32.xlu0 %v3847, 96
        %v4200 = vpop.permute.xlu0 %4199
        %4201 = vrot.lane.b32.xlu0 %v3849, 96
        %v4202 = vpop.permute.xlu0 %4201
        %4203 = vrot.lane.b32.xlu0 %v3851, 96
        %v4204 = vpop.permute.xlu0 %4203
        %4205 = vrot.lane.b32.xlu0 %v3853, 96
        %v4206 = vpop.permute.xlu0 %4205
        %v4227 = vcombine.low %v4168, %v4178
        %v4229 = vunpack.c.l.s4 1934713408
        %v4230 = vunpack.c.0.s8 %v4229
        %v4231 = vlaneseq
        %v4232 = vshrl.u32 %v4231, 7
        %v4233 = vsub.s32 %v4230, %v4232
        %v4234 = vrot.slane %v4227, %v4233
        %v4235 = vcombine.high %v4234, 0.0
        %v4236 = vcombine.low %v4188, %v4198
        %v4238 = vunpack.c.l.s4 1934713408
        %v4239 = vunpack.c.0.s8 %v4238
        %v4240 = vlaneseq
        %v4241 = vshrl.u32 %v4240, 7
        %v4242 = vsub.s32 %v4239, %v4241
        %v4243 = vrot.slane %v4236, %v4242
        %v4244 = vcombine.high %v4243, 0.0
        %v4245 = vcombine.low %v4170, %v4180
        %v4247 = vunpack.c.l.s4 1934713408
        %v4248 = vunpack.c.0.s8 %v4247
        %v4249 = vlaneseq
        %v4250 = vshrl.u32 %v4249, 7
        %v4251 = vsub.s32 %v4248, %v4250
        %v4252 = vrot.slane %v4245, %v4251
        %v4253 = vcombine.high %v4252, 0.0
        %v4254 = vcombine.low %v4190, %v4200
        %v4256 = vunpack.c.l.s4 1934713408
        %v4257 = vunpack.c.0.s8 %v4256
        %v4258 = vlaneseq
        %v4259 = vshrl.u32 %v4258, 7
        %v4260 = vsub.s32 %v4257, %v4259
        %v4261 = vrot.slane %v4254, %v4260
        %v4262 = vcombine.high %v4261, 0.0
        %v4263 = vcombine.low %v4172, %v4182
        %v4265 = vunpack.c.l.s4 1934713408
        %v4266 = vunpack.c.0.s8 %v4265
        %v4267 = vlaneseq
        %v4268 = vshrl.u32 %v4267, 7
        %v4269 = vsub.s32 %v4266, %v4268
        %v4270 = vrot.slane %v4263, %v4269
        %v4271 = vcombine.high %v4270, 0.0
        %v4272 = vcombine.low %v4192, %v4202
        %v4274 = vunpack.c.l.s4 1934713408
        %v4275 = vunpack.c.0.s8 %v4274
        %v4276 = vlaneseq
        %v4277 = vshrl.u32 %v4276, 7
        %v4278 = vsub.s32 %v4275, %v4277
        %v4279 = vrot.slane %v4272, %v4278
        %v4280 = vcombine.high %v4279, 0.0
        %v4281 = vcombine.low %v4174, %v4184
        %v4283 = vunpack.c.l.s4 1934713408
        %v4284 = vunpack.c.0.s8 %v4283
        %v4285 = vlaneseq
        %v4286 = vshrl.u32 %v4285, 7
        %v4287 = vsub.s32 %v4284, %v4286
        %v4288 = vrot.slane %v4281, %v4287
        %v4289 = vcombine.high %v4288, 0.0
        %v4290 = vcombine.low %v4194, %v4204
        %v4292 = vunpack.c.l.s4 1934713408
        %v4293 = vunpack.c.0.s8 %v4292
        %v4294 = vlaneseq
        %v4295 = vshrl.u32 %v4294, 7
        %v4296 = vsub.s32 %v4293, %v4295
        %v4297 = vrot.slane %v4290, %v4296
        %v4298 = vcombine.high %v4297, 0.0
        %v4299 = vcombine.low %v4176, %v4186
        %v4301 = vunpack.c.l.s4 1934713408
        %v4302 = vunpack.c.0.s8 %v4301
        %v4303 = vlaneseq
        %v4304 = vshrl.u32 %v4303, 7
        %v4305 = vsub.s32 %v4302, %v4304
        %v4306 = vrot.slane %v4299, %v4305
        %v4307 = vcombine.high %v4306, 0.0
        %v4308 = vcombine.low %v4196, %v4206
        %v4310 = vunpack.c.l.s4 1934713408
        %v4311 = vunpack.c.0.s8 %v4310
        %v4312 = vlaneseq
        %v4313 = vshrl.u32 %v4312, 7
        %v4314 = vsub.s32 %v4311, %v4313
        %v4315 = vrot.slane %v4308, %v4314
        %v4316 = vcombine.high %v4315, 0.0
        %v4317 = vcombine.low %v4234, %v4235
        %v4319 = vunpack.c.l.s4 1934713408
        %v4320 = vunpack.c.0.s8 %v4319
        %v4321 = vlaneseq
        %v4322 = vshrl.u32 %v4321, 7
        %v4323 = vsub.s32 %v4320, %v4322
        %v4324 = vrot.slane %v4317, %v4323
        %v4325 = vcombine.high %v4324, 0.0
        %v4326 = vcombine.low %v4252, %v4253
        %v4328 = vunpack.c.l.s4 1934713408
        %v4329 = vunpack.c.0.s8 %v4328
        %v4330 = vlaneseq
        %v4331 = vshrl.u32 %v4330, 7
        %v4332 = vsub.s32 %v4329, %v4331
        %v4333 = vrot.slane %v4326, %v4332
        %v4334 = vcombine.high %v4333, 0.0
        %v4335 = vcombine.low %v4270, %v4271
        %v4337 = vunpack.c.l.s4 1934713408
        %v4338 = vunpack.c.0.s8 %v4337
        %v4339 = vlaneseq
        %v4340 = vshrl.u32 %v4339, 7
        %v4341 = vsub.s32 %v4338, %v4340
        %v4342 = vrot.slane %v4335, %v4341
        %v4343 = vcombine.high %v4342, 0.0
        %v4344 = vcombine.low %v4288, %v4289
        %v4346 = vunpack.c.l.s4 1934713408
        %v4347 = vunpack.c.0.s8 %v4346
        %v4348 = vlaneseq
        %v4349 = vshrl.u32 %v4348, 7
        %v4350 = vsub.s32 %v4347, %v4349
        %v4351 = vrot.slane %v4344, %v4350
        %v4352 = vcombine.high %v4351, 0.0
        %v4353 = vcombine.low %v4306, %v4307
        %v4355 = vunpack.c.l.s4 1934713408
        %v4356 = vunpack.c.0.s8 %v4355
        %v4357 = vlaneseq
        %v4358 = vshrl.u32 %v4357, 7
        %v4359 = vsub.s32 %v4356, %v4358
        %v4360 = vrot.slane %v4353, %v4359
        %v4361 = vcombine.high %v4360, 0.0
        %v4362 = vcombine.low %v4243, %v4244
        %v4364 = vunpack.c.l.s4 1934713408
        %v4365 = vunpack.c.0.s8 %v4364
        %v4366 = vlaneseq
        %v4367 = vshrl.u32 %v4366, 7
        %v4368 = vsub.s32 %v4365, %v4367
        %v4369 = vrot.slane %v4362, %v4368
        %v4370 = vcombine.high %v4369, 0.0
        %v4371 = vcombine.low %v4261, %v4262
        %v4373 = vunpack.c.l.s4 1934713408
        %v4374 = vunpack.c.0.s8 %v4373
        %v4375 = vlaneseq
        %v4376 = vshrl.u32 %v4375, 7
        %v4377 = vsub.s32 %v4374, %v4376
        %v4378 = vrot.slane %v4371, %v4377
        %v4379 = vcombine.high %v4378, 0.0
        %v4380 = vcombine.low %v4279, %v4280
        %v4382 = vunpack.c.l.s4 1934713408
        %v4383 = vunpack.c.0.s8 %v4382
        %v4384 = vlaneseq
        %v4385 = vshrl.u32 %v4384, 7
        %v4386 = vsub.s32 %v4383, %v4385
        %v4387 = vrot.slane %v4380, %v4386
        %v4388 = vcombine.high %v4387, 0.0
        %v4389 = vcombine.low %v4297, %v4298
        %v4391 = vunpack.c.l.s4 1934713408
        %v4392 = vunpack.c.0.s8 %v4391
        %v4393 = vlaneseq
        %v4394 = vshrl.u32 %v4393, 7
        %v4395 = vsub.s32 %v4392, %v4394
        %v4396 = vrot.slane %v4389, %v4395
        %v4397 = vcombine.high %v4396, 0.0
        %v4398 = vcombine.low %v4315, %v4316
        %v4400 = vunpack.c.l.s4 1934713408
        %v4401 = vunpack.c.0.s8 %v4400
        %v4402 = vlaneseq
        %v4403 = vshrl.u32 %v4402, 7
        %v4404 = vsub.s32 %v4401, %v4403
        %v4405 = vrot.slane %v4398, %v4404
        %v4406 = vcombine.high %v4405, 0.0
        %v4427 = vcombine.low %v4324, %v4333
        %v4428 = vcombine.low %v4342, %v4351
        %v4430 = vunpack.c.l.s4 1983009808
        %v4431 = vunpack.c.0.s8 %v4430
        %v4432 = vlaneseq
        %v4433 = vshrl.u32 %v4432, 7
        %v4434 = vsub.s32 %v4431, %v4433
        %v4435 = vrot.slane %v4427, %v4434
        %v4437 = vunpack.c.l.s4 1983009808
        %v4438 = vunpack.c.0.s8 %v4437
        %v4439 = vlaneseq
        %v4440 = vshrl.u32 %v4439, 7
        %v4441 = vsub.s32 %v4438, %v4440
        %v4442 = vrot.slane %v4428, %v4441
        %v4443 = vcombine.low %v4435, %v4442
        %v4445 = vunpack.c.l.s4 1983009808
        %v4446 = vunpack.c.0.s8 %v4445
        %v4447 = vlaneseq
        %v4448 = vshrl.u32 %v4447, 7
        %v4449 = vsub.s32 %v4446, %v4448
        %v4450 = vrot.slane %v4360, %v4449
        %v4451 = vcombine.low %v4325, %v4334
        %v4452 = vcombine.low %v4343, %v4352
        %v4454 = vunpack.c.l.s4 1983009808
        %v4455 = vunpack.c.0.s8 %v4454
        %v4456 = vlaneseq
        %v4457 = vshrl.u32 %v4456, 7
        %v4458 = vsub.s32 %v4455, %v4457
        %v4459 = vrot.slane %v4451, %v4458
        %v4461 = vunpack.c.l.s4 1983009808
        %v4462 = vunpack.c.0.s8 %v4461
        %v4463 = vlaneseq
        %v4464 = vshrl.u32 %v4463, 7
        %v4465 = vsub.s32 %v4462, %v4464
        %v4466 = vrot.slane %v4452, %v4465
        %v4467 = vcombine.low %v4459, %v4466
        %v4469 = vunpack.c.l.s4 1983009808
        %v4470 = vunpack.c.0.s8 %v4469
        %v4471 = vlaneseq
        %v4472 = vshrl.u32 %v4471, 7
        %v4473 = vsub.s32 %v4470, %v4472
        %v4474 = vrot.slane %v4361, %v4473
        %v4475 = vcombine.low %v4369, %v4378
        %v4476 = vcombine.low %v4387, %v4396
        %v4478 = vunpack.c.l.s4 1983009808
        %v4479 = vunpack.c.0.s8 %v4478
        %v4480 = vlaneseq
        %v4481 = vshrl.u32 %v4480, 7
        %v4482 = vsub.s32 %v4479, %v4481
        %v4483 = vrot.slane %v4475, %v4482
        %v4485 = vunpack.c.l.s4 1983009808
        %v4486 = vunpack.c.0.s8 %v4485
        %v4487 = vlaneseq
        %v4488 = vshrl.u32 %v4487, 7
        %v4489 = vsub.s32 %v4486, %v4488
        %v4490 = vrot.slane %v4476, %v4489
        %v4491 = vcombine.low %v4483, %v4490
        %v4493 = vunpack.c.l.s4 1983009808
        %v4494 = vunpack.c.0.s8 %v4493
        %v4495 = vlaneseq
        %v4496 = vshrl.u32 %v4495, 7
        %v4497 = vsub.s32 %v4494, %v4496
        %v4498 = vrot.slane %v4405, %v4497
        %v4499 = vcombine.low %v4370, %v4379
        %v4500 = vcombine.low %v4388, %v4397
        %v4502 = vunpack.c.l.s4 1983009808
        %v4503 = vunpack.c.0.s8 %v4502
        %v4504 = vlaneseq
        %v4505 = vshrl.u32 %v4504, 7
        %v4506 = vsub.s32 %v4503, %v4505
        %v4507 = vrot.slane %v4499, %v4506
        %v4509 = vunpack.c.l.s4 1983009808
        %v4510 = vunpack.c.0.s8 %v4509
        %v4511 = vlaneseq
        %v4512 = vshrl.u32 %v4511, 7
        %v4513 = vsub.s32 %v4510, %v4512
        %v4514 = vrot.slane %v4500, %v4513
        %v4515 = vcombine.low %v4507, %v4514
        %v4517 = vunpack.c.l.s4 1983009808
        %v4518 = vunpack.c.0.s8 %v4517
        %v4519 = vlaneseq
        %v4520 = vshrl.u32 %v4519, 7
        %v4521 = vsub.s32 %v4518, %v4520
        %v4522 = vrot.slane %v4406, %v4521
        %v4531 = vpack.c.bf16 %v4450, %v4443
        %v4532 = vpack.c.bf16 %v4474, %v4467
        %v4533 = vpack.c.bf16 %v4498, %v4491
        %v4534 = vpack.c.bf16 %v4522, %v4515
        %v4536 = vsel %vm1596, %v3810, 0
        %v4539 = vsel %vm1596, %v4163, 0
        %4541 = vmatprep.subr.bf16.mxu0 0
        %4542 = vmatpush1.bf16.xpose.msra.mxu0 0
        %4543 = vmatprep.subr.bf16.mxu0 0
        %4544 = vmatpush1.bf16.xpose.msra.mxu0 0
        %4545 = vmatprep.subr.bf16.mxu0 0
        %4546 = vmatpush1.bf16.xpose.msra.mxu0 0
        %4547 = vmatprep.subr.bf16.mxu0 0
        %4548 = vmatpush1.bf16.xpose.msra.mxu0 0
        %4549 = vmatprep.subr.bf16.mxu0 0
        %4550 = vmatpush1.bf16.xpose.msra.mxu0 0
        %4551 = vmatprep.subr.bf16.mxu0 0
        %4552 = vmatpush1.bf16.xpose.msra.mxu0 0
        %4553 = vmatprep.subr.bf16.mxu0 0
        %4554 = vmatpush1.bf16.xpose.msra.mxu0 0
        %4555 = vmatprep.subr.bf16.mxu0 0
        %4556 = vmatpush1.bf16.xpose.msra.mxu0 %v4539
        %4557 = vmatprep.subr.bf16.mxu0 0
        %4558 = vmatpush2.bf16.xpose.msra.mxu0 0
        %4559 = vmatprep.subr.bf16.mxu0 0
        %4560 = vmatpush2.bf16.xpose.msra.mxu0 0
        %4561 = vmatprep.subr.bf16.mxu0 0
        %4562 = vmatpush2.bf16.xpose.msra.mxu0 0
        %4563 = vmatprep.subr.bf16.mxu0 0
        %4564 = vmatpush2.bf16.xpose.msra.mxu0 0
        %4565 = vmatprep.subr.bf16.mxu0 0
        %4566 = vmatpush2.bf16.xpose.msra.mxu0 0
        %4567 = vmatprep.subr.bf16.mxu0 0
        %4568 = vmatpush2.bf16.xpose.msra.mxu0 0
        %4569 = vmatprep.subr.bf16.mxu0 0
        %4570 = vmatpush2.bf16.xpose.msra.mxu0 0
        %4571 = vmatprep.subr.bf16.mxu0 0
        %4572 = vmatpush2.bf16.xpose.msra.mxu0 0
        %4573 = vmatprep.mubr.bf16.mxu0 0
        %4574 = vmatmul.mubr.bf16.gmra.mxu0 %v4536
        %v4575 = vpop.f32.mrf.mxu0
        %v4576 = vadd.f32 0.0, %v4575
        %v4577 = vpop.f32.mrf.mxu0
        %v4578 = vpop.f32.mrf.mxu0
        %v4579 = vpop.f32.mrf.mxu0
        %4580 = vdwg.mxu0
        %v4582 = vsel %vm1596, %v3811, 0
        %v4585 = vsel %vm1596, %v4164, 0
        %4587 = vmatprep.subr.bf16.mxu0 0
        %4588 = vmatpush1.bf16.xpose.msra.mxu0 0
        %4589 = vmatprep.subr.bf16.mxu0 0
        %4590 = vmatpush1.bf16.xpose.msra.mxu0 0
        %4591 = vmatprep.subr.bf16.mxu0 0
        %4592 = vmatpush1.bf16.xpose.msra.mxu0 0
        %4593 = vmatprep.subr.bf16.mxu0 0
        %4594 = vmatpush1.bf16.xpose.msra.mxu0 0
        %4595 = vmatprep.subr.bf16.mxu0 0
        %4596 = vmatpush1.bf16.xpose.msra.mxu0 0
        %4597 = vmatprep.subr.bf16.mxu0 0
        %4598 = vmatpush1.bf16.xpose.msra.mxu0 0
        %4599 = vmatprep.subr.bf16.mxu0 0
        %4600 = vmatpush1.bf16.xpose.msra.mxu0 0
        %4601 = vmatprep.subr.bf16.mxu0 0
        %4602 = vmatpush1.bf16.xpose.msra.mxu0 %v4585
        %4603 = vmatprep.subr.bf16.mxu0 0
        %4604 = vmatpush2.bf16.xpose.msra.mxu0 0
        %4605 = vmatprep.subr.bf16.mxu0 0
        %4606 = vmatpush2.bf16.xpose.msra.mxu0 0
        %4607 = vmatprep.subr.bf16.mxu0 0
        %4608 = vmatpush2.bf16.xpose.msra.mxu0 0
        %4609 = vmatprep.subr.bf16.mxu0 0
        %4610 = vmatpush2.bf16.xpose.msra.mxu0 0
        %4611 = vmatprep.subr.bf16.mxu0 0
        %4612 = vmatpush2.bf16.xpose.msra.mxu0 0
        %4613 = vmatprep.subr.bf16.mxu0 0
        %4614 = vmatpush2.bf16.xpose.msra.mxu0 0
        %4615 = vmatprep.subr.bf16.mxu0 0
        %4616 = vmatpush2.bf16.xpose.msra.mxu0 0
        %4617 = vmatprep.subr.bf16.mxu0 0
        %4618 = vmatpush2.bf16.xpose.msra.mxu0 0
        %4619 = vmatprep.mubr.bf16.mxu0 0
        %4620 = vmatmul.mubr.bf16.gmra.mxu0 %v4582
        %v4621 = vpop.f32.mrf.mxu0
        %v4622 = vadd.f32 0.0, %v4621
        %v4623 = vpop.f32.mrf.mxu0
        %v4624 = vpop.f32.mrf.mxu0
        %v4625 = vpop.f32.mrf.mxu0
        %4626 = vdwg.mxu0
        %v4628 = vsel %vm1596, %v3812, 0
        %v4631 = vsel %vm1596, %v4165, 0
        %4633 = vmatprep.subr.bf16.mxu0 0
        %4634 = vmatpush1.bf16.xpose.msra.mxu0 0
        %4635 = vmatprep.subr.bf16.mxu0 0
        %4636 = vmatpush1.bf16.xpose.msra.mxu0 0
        %4637 = vmatprep.subr.bf16.mxu0 0
        %4638 = vmatpush1.bf16.xpose.msra.mxu0 0
        %4639 = vmatprep.subr.bf16.mxu0 0
        %4640 = vmatpush1.bf16.xpose.msra.mxu0 0
        %4641 = vmatprep.subr.bf16.mxu0 0
        %4642 = vmatpush1.bf16.xpose.msra.mxu0 0
        %4643 = vmatprep.subr.bf16.mxu0 0
        %4644 = vmatpush1.bf16.xpose.msra.mxu0 0
        %4645 = vmatprep.subr.bf16.mxu0 0
        %4646 = vmatpush1.bf16.xpose.msra.mxu0 0
        %4647 = vmatprep.subr.bf16.mxu0 0
        %4648 = vmatpush1.bf16.xpose.msra.mxu0 %v4631
        %4649 = vmatprep.subr.bf16.mxu0 0
        %4650 = vmatpush2.bf16.xpose.msra.mxu0 0
        %4651 = vmatprep.subr.bf16.mxu0 0
        %4652 = vmatpush2.bf16.xpose.msra.mxu0 0
        %4653 = vmatprep.subr.bf16.mxu0 0
        %4654 = vmatpush2.bf16.xpose.msra.mxu0 0
        %4655 = vmatprep.subr.bf16.mxu0 0
        %4656 = vmatpush2.bf16.xpose.msra.mxu0 0
        %4657 = vmatprep.subr.bf16.mxu0 0
        %4658 = vmatpush2.bf16.xpose.msra.mxu0 0
        %4659 = vmatprep.subr.bf16.mxu0 0
        %4660 = vmatpush2.bf16.xpose.msra.mxu0 0
        %4661 = vmatprep.subr.bf16.mxu0 0
        %4662 = vmatpush2.bf16.xpose.msra.mxu0 0
        %4663 = vmatprep.subr.bf16.mxu0 0
        %4664 = vmatpush2.bf16.xpose.msra.mxu0 0
        %4665 = vmatprep.mubr.bf16.mxu0 0
        %4666 = vmatmul.mubr.bf16.gmra.mxu0 %v4628
        %v4667 = vpop.f32.mrf.mxu0
        %v4668 = vadd.f32 0.0, %v4667
        %v4669 = vpop.f32.mrf.mxu0
        %v4670 = vpop.f32.mrf.mxu0
        %v4671 = vpop.f32.mrf.mxu0
        %4672 = vdwg.mxu0
        %v4674 = vsel %vm1596, %v3813, 0
        %v4677 = vsel %vm1596, %v4166, 0
        %4679 = vmatprep.subr.bf16.mxu0 0
        %4680 = vmatpush1.bf16.xpose.msra.mxu0 0
        %4681 = vmatprep.subr.bf16.mxu0 0
        %4682 = vmatpush1.bf16.xpose.msra.mxu0 0
        %4683 = vmatprep.subr.bf16.mxu0 0
        %4684 = vmatpush1.bf16.xpose.msra.mxu0 0
        %4685 = vmatprep.subr.bf16.mxu0 0
        %4686 = vmatpush1.bf16.xpose.msra.mxu0 0
        %4687 = vmatprep.subr.bf16.mxu0 0
        %4688 = vmatpush1.bf16.xpose.msra.mxu0 0
        %4689 = vmatprep.subr.bf16.mxu0 0
        %4690 = vmatpush1.bf16.xpose.msra.mxu0 0
        %4691 = vmatprep.subr.bf16.mxu0 0
        %4692 = vmatpush1.bf16.xpose.msra.mxu0 0
        %4693 = vmatprep.subr.bf16.mxu0 0
        %4694 = vmatpush1.bf16.xpose.msra.mxu0 %v4677
        %4695 = vmatprep.subr.bf16.mxu0 0
        %4696 = vmatpush2.bf16.xpose.msra.mxu0 0
        %4697 = vmatprep.subr.bf16.mxu0 0
        %4698 = vmatpush2.bf16.xpose.msra.mxu0 0
        %4699 = vmatprep.subr.bf16.mxu0 0
        %4700 = vmatpush2.bf16.xpose.msra.mxu0 0
        %4701 = vmatprep.subr.bf16.mxu0 0
        %4702 = vmatpush2.bf16.xpose.msra.mxu0 0
        %4703 = vmatprep.subr.bf16.mxu0 0
        %4704 = vmatpush2.bf16.xpose.msra.mxu0 0
        %4705 = vmatprep.subr.bf16.mxu0 0
        %4706 = vmatpush2.bf16.xpose.msra.mxu0 0
        %4707 = vmatprep.subr.bf16.mxu0 0
        %4708 = vmatpush2.bf16.xpose.msra.mxu0 0
        %4709 = vmatprep.subr.bf16.mxu0 0
        %4710 = vmatpush2.bf16.xpose.msra.mxu0 0
        %4711 = vmatprep.mubr.bf16.mxu0 0
        %4712 = vmatmul.mubr.bf16.gmra.mxu0 %v4674
        %v4713 = vpop.f32.mrf.mxu0
        %v4714 = vadd.f32 0.0, %v4713
        %v4715 = vpop.f32.mrf.mxu0
        %v4716 = vpop.f32.mrf.mxu0
        %v4717 = vpop.f32.mrf.mxu0
        %4718 = vdwg.mxu0
        %v4719 = vsel %vm3663, 1, 0
        %v4720 = vlaneseq
        %v4721 = vshrl.u32 %v4720, 7
        %v4722 = vsub.s32 0, %v4721
        %v4723 = vrot.slane %v4719, %v4722
        %vm4724 = vcmp.eq.s32.totalorder %v4723, 1
        %v4725 = vsel %vm4724, -1e+09, %v4576
        %v4726 = vsel %vm4724, -1e+09, %v4622
        %v4727 = vsel %vm4724, -1e+09, %v4668
        %v4728 = vsel %vm4724, -1e+09, %v4714
        %vm4729 = vcmask 80896
        %v4730 = vsel %vm4729, %v4725, -inf
        %4731 = vmax.xlane.f32.xlu0 %v4730
        %v4732 = vpop.xlane.xlu0 %4731
        %v4733 = vsel %vm4729, %v4726, -inf
        %4734 = vmax.xlane.f32.xlu0 %v4733
        %v4735 = vpop.xlane.xlu0 %4734
        %v4736 = vsel %vm4729, %v4727, -inf
        %4737 = vmax.xlane.f32.xlu0 %v4736
        %v4738 = vpop.xlane.xlu0 %4737
        %v4739 = vsel %vm4729, %v4728, -inf
        %4740 = vmax.xlane.f32.xlu0 %v4739
        %v4741 = vpop.xlane.xlu0 %4740
        %v4742 = vsub.f32 %v4725, %v4732
        %v4743 = vsub.f32 %v4726, %v4735
        %v4744 = vsub.f32 %v4727, %v4738
        %v4745 = vsub.f32 %v4728, %v4741
        %v4746 = vmul.f32 %v4742, 1.442695
        %v4747 = vpow.pop %v4746
        %v4748 = vmul.f32 %v4743, 1.442695
        %v4749 = vpow.pop %v4748
        %v4750 = vmul.f32 %v4744, 1.442695
        %v4751 = vpow.pop %v4750
        %v4752 = vmul.f32 %v4745, 1.442695
        %v4753 = vpow.pop %v4752
        %v4754 = vsel %vm4729, %v4747, 0.0
        %4755 = vadd.xlane.f32.xlu0 %v4754
        %v4756 = vpop.xlane.xlu0 %4755
        %v4757 = vsel %vm4729, %v4749, 0.0
        %4758 = vadd.xlane.f32.xlu0 %v4757
        %v4759 = vpop.xlane.xlu0 %4758
        %v4760 = vsel %vm4729, %v4751, 0.0
        %4761 = vadd.xlane.f32.xlu0 %v4760
        %v4762 = vpop.xlane.xlu0 %4761
        %v4763 = vsel %vm4729, %v4753, 0.0
        %4764 = vadd.xlane.f32.xlu0 %v4763
        %v4765 = vpop.xlane.xlu0 %4764
        %v4766 = vrcp.pop %v4756
        %v4767 = vrcp.pop %v4759
        %v4768 = vrcp.pop %v4762
        %v4769 = vrcp.pop %v4765
        %v4770 = vmul.f32 %v4747, %v4766
        %v4771 = vmul.f32 %v4749, %v4767
        %v4772 = vmul.f32 %v4751, %v4768
        %v4773 = vmul.f32 %v4753, %v4769
        %v4774 = vpack.c.bf16 %v4770, %v4770
        %v4775 = vpack.c.bf16 %v4771, %v4771
        %v4776 = vpack.c.bf16 %v4772, %v4772
        %v4777 = vpack.c.bf16 %v4773, %v4773
        %v4779 = vsel %vm4729, %v4774, 0
        %vm4781 = vcmask 1044480
        %v4783 = vsel %vm4781, %v4531, 0
        %4785 = vmatprep.subr.bf16.mxu0 0
        %4786 = vmatpush1.bf16.msra.mxu0 0
        %4787 = vmatprep.subr.bf16.mxu0 0
        %4788 = vmatpush1.bf16.msra.mxu0 0
        %4789 = vmatprep.subr.bf16.mxu0 0
        %4790 = vmatpush1.bf16.msra.mxu0 0
        %4791 = vmatprep.subr.bf16.mxu0 0
        %4792 = vmatpush1.bf16.msra.mxu0 0
        %4793 = vmatprep.subr.bf16.mxu0 0
        %4794 = vmatpush1.bf16.msra.mxu0 0
        %4795 = vmatprep.subr.bf16.mxu0 0
        %4796 = vmatpush1.bf16.msra.mxu0 0
        %4797 = vmatprep.subr.bf16.mxu0 0
        %4798 = vmatpush1.bf16.msra.mxu0 0
        %4799 = vmatprep.subr.bf16.mxu0 0
        %4800 = vmatpush1.bf16.msra.mxu0 %v4783
        %4801 = vmatprep.subr.bf16.mxu0 0
        %4802 = vmatpush2.bf16.msra.mxu0 0
        %4803 = vmatprep.subr.bf16.mxu0 0
        %4804 = vmatpush2.bf16.msra.mxu0 0
        %4805 = vmatprep.subr.bf16.mxu0 0
        %4806 = vmatpush2.bf16.msra.mxu0 0
        %4807 = vmatprep.subr.bf16.mxu0 0
        %4808 = vmatpush2.bf16.msra.mxu0 0
        %4809 = vmatprep.subr.bf16.mxu0 0
        %4810 = vmatpush2.bf16.msra.mxu0 0
        %4811 = vmatprep.subr.bf16.mxu0 0
        %4812 = vmatpush2.bf16.msra.mxu0 0
        %4813 = vmatprep.subr.bf16.mxu0 0
        %4814 = vmatpush2.bf16.msra.mxu0 0
        %4815 = vmatprep.subr.bf16.mxu0 0
        %4816 = vmatpush2.bf16.msra.mxu0 0
        %4817 = vmatprep.mubr.bf16.mxu0 0
        %4818 = vmatmul.mubr.bf16.gmra.mxu0 %v4779
        %v4819 = vpop.f32.mrf.mxu0
        %v4820 = vadd.f32 0.0, %v4819
        %v4821 = vpop.f32.mrf.mxu0
        %v4822 = vpop.f32.mrf.mxu0
        %v4823 = vpop.f32.mrf.mxu0
        %4824 = vdwg.mxu0
        %v4826 = vsel %vm4729, %v4775, 0
        %v4829 = vsel %vm4781, %v4532, 0
        %4831 = vmatprep.subr.bf16.mxu0 0
        %4832 = vmatpush1.bf16.msra.mxu0 0
        %4833 = vmatprep.subr.bf16.mxu0 0
        %4834 = vmatpush1.bf16.msra.mxu0 0
        %4835 = vmatprep.subr.bf16.mxu0 0
        %4836 = vmatpush1.bf16.msra.mxu0 0
        %4837 = vmatprep.subr.bf16.mxu0 0
        %4838 = vmatpush1.bf16.msra.mxu0 0
        %4839 = vmatprep.subr.bf16.mxu0 0
        %4840 = vmatpush1.bf16.msra.mxu0 0
        %4841 = vmatprep.subr.bf16.mxu0 0
        %4842 = vmatpush1.bf16.msra.mxu0 0
        %4843 = vmatprep.subr.bf16.mxu0 0
        %4844 = vmatpush1.bf16.msra.mxu0 0
        %4845 = vmatprep.subr.bf16.mxu0 0
        %4846 = vmatpush1.bf16.msra.mxu0 %v4829
        %4847 = vmatprep.subr.bf16.mxu0 0
        %4848 = vmatpush2.bf16.msra.mxu0 0
        %4849 = vmatprep.subr.bf16.mxu0 0
        %4850 = vmatpush2.bf16.msra.mxu0 0
        %4851 = vmatprep.subr.bf16.mxu0 0
        %4852 = vmatpush2.bf16.msra.mxu0 0
        %4853 = vmatprep.subr.bf16.mxu0 0
        %4854 = vmatpush2.bf16.msra.mxu0 0
        %4855 = vmatprep.subr.bf16.mxu0 0
        %4856 = vmatpush2.bf16.msra.mxu0 0
        %4857 = vmatprep.subr.bf16.mxu0 0
        %4858 = vmatpush2.bf16.msra.mxu0 0
        %4859 = vmatprep.subr.bf16.mxu0 0
        %4860 = vmatpush2.bf16.msra.mxu0 0
        %4861 = vmatprep.subr.bf16.mxu0 0
        %4862 = vmatpush2.bf16.msra.mxu0 0
        %4863 = vmatprep.mubr.bf16.mxu0 0
        %4864 = vmatmul.mubr.bf16.gmra.mxu0 %v4826
        %v4865 = vpop.f32.mrf.mxu0
        %v4866 = vadd.f32 0.0, %v4865
        %v4867 = vpop.f32.mrf.mxu0
        %v4868 = vpop.f32.mrf.mxu0
        %v4869 = vpop.f32.mrf.mxu0
        %4870 = vdwg.mxu0
        %v4872 = vsel %vm4729, %v4776, 0
        %v4875 = vsel %vm4781, %v4533, 0
        %4877 = vmatprep.subr.bf16.mxu0 0
        %4878 = vmatpush1.bf16.msra.mxu0 0
        %4879 = vmatprep.subr.bf16.mxu0 0
        %4880 = vmatpush1.bf16.msra.mxu0 0
        %4881 = vmatprep.subr.bf16.mxu0 0
        %4882 = vmatpush1.bf16.msra.mxu0 0
        %4883 = vmatprep.subr.bf16.mxu0 0
        %4884 = vmatpush1.bf16.msra.mxu0 0
        %4885 = vmatprep.subr.bf16.mxu0 0
        %4886 = vmatpush1.bf16.msra.mxu0 0
        %4887 = vmatprep.subr.bf16.mxu0 0
        %4888 = vmatpush1.bf16.msra.mxu0 0
        %4889 = vmatprep.subr.bf16.mxu0 0
        %4890 = vmatpush1.bf16.msra.mxu0 0
        %4891 = vmatprep.subr.bf16.mxu0 0
        %4892 = vmatpush1.bf16.msra.mxu0 %v4875
        %4893 = vmatprep.subr.bf16.mxu0 0
        %4894 = vmatpush2.bf16.msra.mxu0 0
        %4895 = vmatprep.subr.bf16.mxu0 0
        %4896 = vmatpush2.bf16.msra.mxu0 0
        %4897 = vmatprep.subr.bf16.mxu0 0
        %4898 = vmatpush2.bf16.msra.mxu0 0
        %4899 = vmatprep.subr.bf16.mxu0 0
        %4900 = vmatpush2.bf16.msra.mxu0 0
        %4901 = vmatprep.subr.bf16.mxu0 0
        %4902 = vmatpush2.bf16.msra.mxu0 0
        %4903 = vmatprep.subr.bf16.mxu0 0
        %4904 = vmatpush2.bf16.msra.mxu0 0
        %4905 = vmatprep.subr.bf16.mxu0 0
        %4906 = vmatpush2.bf16.msra.mxu0 0
        %4907 = vmatprep.subr.bf16.mxu0 0
        %4908 = vmatpush2.bf16.msra.mxu0 0
        %4909 = vmatprep.mubr.bf16.mxu0 0
        %4910 = vmatmul.mubr.bf16.gmra.mxu0 %v4872
        %v4911 = vpop.f32.mrf.mxu0
        %v4912 = vadd.f32 0.0, %v4911
        %v4913 = vpop.f32.mrf.mxu0
        %v4914 = vpop.f32.mrf.mxu0
        %v4915 = vpop.f32.mrf.mxu0
        %4916 = vdwg.mxu0
        %v4918 = vsel %vm4729, %v4777, 0
        %v4921 = vsel %vm4781, %v4534, 0
        %4923 = vmatprep.subr.bf16.mxu0 0
        %4924 = vmatpush1.bf16.msra.mxu0 0
        %4925 = vmatprep.subr.bf16.mxu0 0
        %4926 = vmatpush1.bf16.msra.mxu0 0
        %4927 = vmatprep.subr.bf16.mxu0 0
        %4928 = vmatpush1.bf16.msra.mxu0 0
        %4929 = vmatprep.subr.bf16.mxu0 0
        %4930 = vmatpush1.bf16.msra.mxu0 0
        %4931 = vmatprep.subr.bf16.mxu0 0
        %4932 = vmatpush1.bf16.msra.mxu0 0
        %4933 = vmatprep.subr.bf16.mxu0 0
        %4934 = vmatpush1.bf16.msra.mxu0 0
        %4935 = vmatprep.subr.bf16.mxu0 0
        %4936 = vmatpush1.bf16.msra.mxu0 0
        %4937 = vmatprep.subr.bf16.mxu0 0
        %4938 = vmatpush1.bf16.msra.mxu0 %v4921
        %4939 = vmatprep.subr.bf16.mxu0 0
        %4940 = vmatpush2.bf16.msra.mxu0 0
        %4941 = vmatprep.subr.bf16.mxu0 0
        %4942 = vmatpush2.bf16.msra.mxu0 0
        %4943 = vmatprep.subr.bf16.mxu0 0
        %4944 = vmatpush2.bf16.msra.mxu0 0
        %4945 = vmatprep.subr.bf16.mxu0 0
        %4946 = vmatpush2.bf16.msra.mxu0 0
        %4947 = vmatprep.subr.bf16.mxu0 0
        %4948 = vmatpush2.bf16.msra.mxu0 0
        %4949 = vmatprep.subr.bf16.mxu0 0
        %4950 = vmatpush2.bf16.msra.mxu0 0
        %4951 = vmatprep.subr.bf16.mxu0 0
        %4952 = vmatpush2.bf16.msra.mxu0 0
        %4953 = vmatprep.subr.bf16.mxu0 0
        %4954 = vmatpush2.bf16.msra.mxu0 0
        %4955 = vmatprep.mubr.bf16.mxu0 0
        %4956 = vmatmul.mubr.bf16.gmra.mxu0 %v4918
        %v4957 = vpop.f32.mrf.mxu0
        %v4958 = vadd.f32 0.0, %v4957
        %v4959 = vpop.f32.mrf.mxu0
        %v4960 = vpop.f32.mrf.mxu0
        %v4961 = vpop.f32.mrf.mxu0
        %4962 = vdwg.mxu0
        %v4963 = vcombine.low %v4820, %v4912
        %v4964 = vcombine.high %v4820, %v4912
        %v4966 = vunpack.c.l.s4 1983009808
        %v4967 = vunpack.c.0.s8 %v4966
        %v4968 = vlaneseq
        %v4969 = vshrl.u32 %v4968, 7
        %v4970 = vsub.s32 %v4967, %v4969
        %v4971 = vrot.slane %v4963, %v4970
        %v4973 = vunpack.c.l.s4 1983009808
        %v4974 = vunpack.c.0.s8 %v4973
        %v4975 = vlaneseq
        %v4976 = vshrl.u32 %v4975, 7
        %v4977 = vsub.s32 %v4974, %v4976
        %v4978 = vrot.slane %v4964, %v4977
        %v4979 = vcombine.low %v4866, %v4958
        %v4980 = vcombine.high %v4866, %v4958
        %v4982 = vunpack.c.l.s4 1983009808
        %v4983 = vunpack.c.0.s8 %v4982
        %v4984 = vlaneseq
        %v4985 = vshrl.u32 %v4984, 7
        %v4986 = vsub.s32 %v4983, %v4985
        %v4987 = vrot.slane %v4979, %v4986
        %v4989 = vunpack.c.l.s4 1983009808
        %v4990 = vunpack.c.0.s8 %v4989
        %v4991 = vlaneseq
        %v4992 = vshrl.u32 %v4991, 7
        %v4993 = vsub.s32 %v4990, %v4992
        %v4994 = vrot.slane %v4980, %v4993
        %v4995 = vcombine.low %v4971, %v4987
        %v4996 = vcombine.high %v4971, %v4987
        %v4998 = vunpack.c.l.s4 1934713408
        %v4999 = vunpack.c.0.s8 %v4998
        %v5000 = vlaneseq
        %v5001 = vshrl.u32 %v5000, 7
        %v5002 = vsub.s32 %v4999, %v5001
        %v5003 = vrot.slane %v4995, %v5002
        %v5005 = vunpack.c.l.s4 1934713408
        %v5006 = vunpack.c.0.s8 %v5005
        %v5007 = vlaneseq
        %v5008 = vshrl.u32 %v5007, 7
        %v5009 = vsub.s32 %v5006, %v5008
        %v5010 = vrot.slane %v4996, %v5009
        %v5011 = vcombine.low %v4978, %v4994
        %v5012 = vcombine.high %v4978, %v4994
        %v5014 = vunpack.c.l.s4 1934713408
        %v5015 = vunpack.c.0.s8 %v5014
        %v5016 = vlaneseq
        %v5017 = vshrl.u32 %v5016, 7
        %v5018 = vsub.s32 %v5015, %v5017
        %v5019 = vrot.slane %v5011, %v5018
        %v5021 = vunpack.c.l.s4 1934713408
        %v5022 = vunpack.c.0.s8 %v5021
        %v5023 = vlaneseq
        %v5024 = vshrl.u32 %v5023, 7
        %v5025 = vsub.s32 %v5022, %v5024
        %v5026 = vrot.slane %v5012, %v5025
        %v5027 = vcombine.high %v5003, 0.0
        %v5028 = vcombine.high %v5010, 0.0
        %v5029 = vcombine.high %v5019, 0.0
        %v5030 = vcombine.high %v5026, 0.0
        %v5031 = vcombine.low %v5003, %v5010
        %v5033 = vunpack.c.l.s4 1983009808
        %v5034 = vunpack.c.0.s8 %v5033
        %v5035 = vlaneseq
        %v5036 = vshrl.u32 %v5035, 7
        %v5037 = vsub.s32 %v5034, %v5036
        %v5038 = vrot.slane %v5031, %v5037
        %v5039 = vcombine.low %v5027, %v5028
        %v5041 = vunpack.c.l.s4 1983009808
        %v5042 = vunpack.c.0.s8 %v5041
        %v5043 = vlaneseq
        %v5044 = vshrl.u32 %v5043, 7
        %v5045 = vsub.s32 %v5042, %v5044
        %v5046 = vrot.slane %v5039, %v5045
        %v5047 = vcombine.low %v5019, %v5026
        %v5049 = vunpack.c.l.s4 1983009808
        %v5050 = vunpack.c.0.s8 %v5049
        %v5051 = vlaneseq
        %v5052 = vshrl.u32 %v5051, 7
        %v5053 = vsub.s32 %v5050, %v5052
        %v5054 = vrot.slane %v5047, %v5053
        %v5055 = vcombine.low %v5029, %v5030
        %v5057 = vunpack.c.l.s4 1983009808
        %v5058 = vunpack.c.0.s8 %v5057
        %v5059 = vlaneseq
        %v5060 = vshrl.u32 %v5059, 7
        %v5061 = vsub.s32 %v5058, %v5060
        %v5062 = vrot.slane %v5055, %v5061
        %v5063 = vcombine.low %v5038, %v5046
        %v5064 = vcombine.high %v5038, %v5046
        %v5066 = vunpack.c.l.s4 1934713408
        %v5067 = vunpack.c.0.s8 %v5066
        %v5068 = vlaneseq
        %v5069 = vshrl.u32 %v5068, 7
        %v5070 = vsub.s32 %v5067, %v5069
        %v5071 = vrot.slane %v5063, %v5070
        %v5073 = vunpack.c.l.s4 1934713408
        %v5074 = vunpack.c.0.s8 %v5073
        %v5075 = vlaneseq
        %v5076 = vshrl.u32 %v5075, 7
        %v5077 = vsub.s32 %v5074, %v5076
        %v5078 = vrot.slane %v5064, %v5077
        %v5079 = vcombine.low %v5054, %v5062
        %v5080 = vcombine.high %v5054, %v5062
        %v5082 = vunpack.c.l.s4 1934713408
        %v5083 = vunpack.c.0.s8 %v5082
        %v5084 = vlaneseq
        %v5085 = vshrl.u32 %v5084, 7
        %v5086 = vsub.s32 %v5083, %v5085
        %v5087 = vrot.slane %v5079, %v5086
        %v5089 = vunpack.c.l.s4 1934713408
        %v5090 = vunpack.c.0.s8 %v5089
        %v5091 = vlaneseq
        %v5092 = vshrl.u32 %v5091, 7
        %v5093 = vsub.s32 %v5090, %v5092
        %v5094 = vrot.slane %v5080, %v5093
        %v5095 = vcombine.low %v5071, %v5087
        %v5096 = vcombine.high %v5071, %v5087
        %v5097 = vcombine.low %v5078, %v5094
        %v5098 = vcombine.high %v5078, %v5094
        %5100 = vrot.lane.b32.xlu0 %v5096, 8
        %v5101 = vpop.permute.xlu0 %5100
        %5104 = vrot.lane.b32.xlu0 %v5097, 16
        %v5105 = vpop.permute.xlu0 %5104
        %5108 = vrot.lane.b32.xlu0 %v5098, 24
        %v5109 = vpop.permute.xlu0 %5108
        %v5111 = vsel %vm1596, %v5095, %v5101
        %v5112 = vsel %vm2169, %v5111, %v5105
        %v5113 = vsel %vm2171, %v5112, %v5109
        %s5114 = scalar_lea.vmem [#allocation7], 1
        %v5115 = vld [vmem:[%s5114] sm:$0x1]
        %vm5116 = vcmp.gt.f32.partialorder %v5115, 0.5
        %5118 = vrot.lane.b32.xlu0 %v3383, 120
        %v5119 = vpop.permute.xlu0 %5118
        %5121 = vrot.lane.b32.xlu0 %v3383, 112
        %v5122 = vpop.permute.xlu0 %5121
        %5124 = vrot.lane.b32.xlu0 %v3383, 104
        %v5125 = vpop.permute.xlu0 %5124
        %v5127 = vcombine.low %v3383, %v5122
        %v5128 = vcombine.high %v3383, %v5122
        %v5130 = vunpack.c.l.s4 1983009808
        %v5131 = vunpack.c.0.s8 %v5130
        %v5132 = vlaneseq
        %v5133 = vshrl.u32 %v5132, 7
        %v5134 = vsub.s32 %v5131, %v5133
        %v5135 = vrot.slane %v5127, %v5134
        %v5137 = vunpack.c.l.s4 1983009808
        %v5138 = vunpack.c.0.s8 %v5137
        %v5139 = vlaneseq
        %v5140 = vshrl.u32 %v5139, 7
        %v5141 = vsub.s32 %v5138, %v5140
        %v5142 = vrot.slane %v5128, %v5141
        %v5143 = vcombine.low %v5119, %v5125
        %v5144 = vcombine.high %v5119, %v5125
        %v5146 = vunpack.c.l.s4 1983009808
        %v5147 = vunpack.c.0.s8 %v5146
        %v5148 = vlaneseq
        %v5149 = vshrl.u32 %v5148, 7
        %v5150 = vsub.s32 %v5147, %v5149
        %v5151 = vrot.slane %v5143, %v5150
        %v5153 = vunpack.c.l.s4 1983009808
        %v5154 = vunpack.c.0.s8 %v5153
        %v5155 = vlaneseq
        %v5156 = vshrl.u32 %v5155, 7
        %v5157 = vsub.s32 %v5154, %v5156
        %v5158 = vrot.slane %v5144, %v5157
        %v5159 = vcombine.low %v5135, %v5151
        %v5160 = vcombine.high %v5135, %v5151
        %v5162 = vunpack.c.l.s4 1934713408
        %v5163 = vunpack.c.0.s8 %v5162
        %v5164 = vlaneseq
        %v5165 = vshrl.u32 %v5164, 7
        %v5166 = vsub.s32 %v5163, %v5165
        %v5167 = vrot.slane %v5159, %v5166
        %v5169 = vunpack.c.l.s4 1934713408
        %v5170 = vunpack.c.0.s8 %v5169
        %v5171 = vlaneseq
        %v5172 = vshrl.u32 %v5171, 7
        %v5173 = vsub.s32 %v5170, %v5172
        %v5174 = vrot.slane %v5160, %v5173
        %v5175 = vcombine.low %v5142, %v5158
        %v5176 = vcombine.high %v5142, %v5158
        %v5178 = vunpack.c.l.s4 1934713408
        %v5179 = vunpack.c.0.s8 %v5178
        %v5180 = vlaneseq
        %v5181 = vshrl.u32 %v5180, 7
        %v5182 = vsub.s32 %v5179, %v5181
        %v5183 = vrot.slane %v5175, %v5182
        %v5185 = vunpack.c.l.s4 1934713408
        %v5186 = vunpack.c.0.s8 %v5185
        %v5187 = vlaneseq
        %v5188 = vshrl.u32 %v5187, 7
        %v5189 = vsub.s32 %v5186, %v5188
        %v5190 = vrot.slane %v5176, %v5189
        %v5191 = vcombine.high %v5167, 0.0
        %v5192 = vcombine.high %v5174, 0.0
        %v5193 = vcombine.high %v5183, 0.0
        %v5194 = vcombine.high %v5190, 0.0
        %v5195 = vcombine.low %v5167, %v5174
        %v5197 = vunpack.c.l.s4 1983009808
        %v5198 = vunpack.c.0.s8 %v5197
        %v5199 = vlaneseq
        %v5200 = vshrl.u32 %v5199, 7
        %v5201 = vsub.s32 %v5198, %v5200
        %v5202 = vrot.slane %v5195, %v5201
        %v5203 = vcombine.low %v5191, %v5192
        %v5205 = vunpack.c.l.s4 1983009808
        %v5206 = vunpack.c.0.s8 %v5205
        %v5207 = vlaneseq
        %v5208 = vshrl.u32 %v5207, 7
        %v5209 = vsub.s32 %v5206, %v5208
        %v5210 = vrot.slane %v5203, %v5209
        %v5211 = vcombine.low %v5183, %v5190
        %v5213 = vunpack.c.l.s4 1983009808
        %v5214 = vunpack.c.0.s8 %v5213
        %v5215 = vlaneseq
        %v5216 = vshrl.u32 %v5215, 7
        %v5217 = vsub.s32 %v5214, %v5216
        %v5218 = vrot.slane %v5211, %v5217
        %v5219 = vcombine.low %v5193, %v5194
        %v5221 = vunpack.c.l.s4 1983009808
        %v5222 = vunpack.c.0.s8 %v5221
        %v5223 = vlaneseq
        %v5224 = vshrl.u32 %v5223, 7
        %v5225 = vsub.s32 %v5222, %v5224
        %v5226 = vrot.slane %v5219, %v5225
        %v5227 = vcombine.low %v5202, %v5210
        %v5228 = vcombine.high %v5202, %v5210
        %v5230 = vunpack.c.l.s4 1934713408
        %v5231 = vunpack.c.0.s8 %v5230
        %v5232 = vlaneseq
        %v5233 = vshrl.u32 %v5232, 7
        %v5234 = vsub.s32 %v5231, %v5233
        %v5235 = vrot.slane %v5227, %v5234
        %v5237 = vunpack.c.l.s4 1934713408
        %v5238 = vunpack.c.0.s8 %v5237
        %v5239 = vlaneseq
        %v5240 = vshrl.u32 %v5239, 7
        %v5241 = vsub.s32 %v5238, %v5240
        %v5242 = vrot.slane %v5228, %v5241
        %v5243 = vcombine.low %v5218, %v5226
        %v5244 = vcombine.high %v5218, %v5226
        %v5246 = vunpack.c.l.s4 1934713408
        %v5247 = vunpack.c.0.s8 %v5246
        %v5248 = vlaneseq
        %v5249 = vshrl.u32 %v5248, 7
        %v5250 = vsub.s32 %v5247, %v5249
        %v5251 = vrot.slane %v5243, %v5250
        %v5253 = vunpack.c.l.s4 1934713408
        %v5254 = vunpack.c.0.s8 %v5253
        %v5255 = vlaneseq
        %v5256 = vshrl.u32 %v5255, 7
        %v5257 = vsub.s32 %v5254, %v5256
        %v5258 = vrot.slane %v5244, %v5257
        %v5259 = vcombine.low %v5235, %v5251
        %v5260 = vcombine.high %v5235, %v5251
        %v5261 = vcombine.low %v5242, %v5258
        %v5262 = vcombine.high %v5242, %v5258
        %v5263 = vpack.c.bf16 %v5259, %v5259
        %v5264 = vpack.c.bf16 %v5260, %v5260
        %v5265 = vpack.c.bf16 %v5261, %v5261
        %v5266 = vpack.c.bf16 %v5262, %v5262
        %5267 = vrot.lane.b32.xlu0 %v3642, 120
        %v5268 = vpop.permute.xlu0 %5267
        %5269 = vrot.lane.b32.xlu0 %v3641, 120
        %v5270 = vpop.permute.xlu0 %5269
        %5271 = vrot.lane.b32.xlu0 %v3643, 120
        %v5272 = vpop.permute.xlu0 %5271
        %5273 = vrot.lane.b32.xlu0 %v3650, 120
        %v5274 = vpop.permute.xlu0 %5273
        %5275 = vrot.lane.b32.xlu0 %v3651, 120
        %v5276 = vpop.permute.xlu0 %5275
        %5282 = vrot.lane.b32.xlu0 %v3642, 112
        %v5283 = vpop.permute.xlu0 %5282
        %5284 = vrot.lane.b32.xlu0 %v3641, 112
        %v5285 = vpop.permute.xlu0 %5284
        %5286 = vrot.lane.b32.xlu0 %v3643, 112
        %v5287 = vpop.permute.xlu0 %5286
        %5288 = vrot.lane.b32.xlu0 %v3650, 112
        %v5289 = vpop.permute.xlu0 %5288
        %5290 = vrot.lane.b32.xlu0 %v3651, 112
        %v5291 = vpop.permute.xlu0 %5290
        %5297 = vrot.lane.b32.xlu0 %v3642, 104
        %v5298 = vpop.permute.xlu0 %5297
        %5299 = vrot.lane.b32.xlu0 %v3641, 104
        %v5300 = vpop.permute.xlu0 %5299
        %5301 = vrot.lane.b32.xlu0 %v3643, 104
        %v5302 = vpop.permute.xlu0 %5301
        %5303 = vrot.lane.b32.xlu0 %v3650, 104
        %v5304 = vpop.permute.xlu0 %5303
        %5305 = vrot.lane.b32.xlu0 %v3651, 104
        %v5306 = vpop.permute.xlu0 %5305
        %v5312 = vcombine.low %v3642, %v5268
        %v5314 = vunpack.c.l.s4 1934713408
        %v5315 = vunpack.c.0.s8 %v5314
        %v5316 = vlaneseq
        %v5317 = vshrl.u32 %v5316, 7
        %v5318 = vsub.s32 %v5315, %v5317
        %v5319 = vrot.slane %v5312, %v5318
        %v5320 = vcombine.high %v5319, 0.0
        %v5321 = vcombine.low %v5283, %v5298
        %v5323 = vunpack.c.l.s4 1934713408
        %v5324 = vunpack.c.0.s8 %v5323
        %v5325 = vlaneseq
        %v5326 = vshrl.u32 %v5325, 7
        %v5327 = vsub.s32 %v5324, %v5326
        %v5328 = vrot.slane %v5321, %v5327
        %v5329 = vcombine.high %v5328, 0.0
        %v5330 = vcombine.low %v3641, %v5270
        %v5332 = vunpack.c.l.s4 1934713408
        %v5333 = vunpack.c.0.s8 %v5332
        %v5334 = vlaneseq
        %v5335 = vshrl.u32 %v5334, 7
        %v5336 = vsub.s32 %v5333, %v5335
        %v5337 = vrot.slane %v5330, %v5336
        %v5338 = vcombine.high %v5337, 0.0
        %v5339 = vcombine.low %v5285, %v5300
        %v5341 = vunpack.c.l.s4 1934713408
        %v5342 = vunpack.c.0.s8 %v5341
        %v5343 = vlaneseq
        %v5344 = vshrl.u32 %v5343, 7
        %v5345 = vsub.s32 %v5342, %v5344
        %v5346 = vrot.slane %v5339, %v5345
        %v5347 = vcombine.high %v5346, 0.0
        %v5348 = vcombine.low %v3643, %v5272
        %v5350 = vunpack.c.l.s4 1934713408
        %v5351 = vunpack.c.0.s8 %v5350
        %v5352 = vlaneseq
        %v5353 = vshrl.u32 %v5352, 7
        %v5354 = vsub.s32 %v5351, %v5353
        %v5355 = vrot.slane %v5348, %v5354
        %v5356 = vcombine.high %v5355, 0.0
        %v5357 = vcombine.low %v5287, %v5302
        %v5359 = vunpack.c.l.s4 1934713408
        %v5360 = vunpack.c.0.s8 %v5359
        %v5361 = vlaneseq
        %v5362 = vshrl.u32 %v5361, 7
        %v5363 = vsub.s32 %v5360, %v5362
        %v5364 = vrot.slane %v5357, %v5363
        %v5365 = vcombine.high %v5364, 0.0
        %v5366 = vcombine.low %v3650, %v5274
        %v5368 = vunpack.c.l.s4 1934713408
        %v5369 = vunpack.c.0.s8 %v5368
        %v5370 = vlaneseq
        %v5371 = vshrl.u32 %v5370, 7
        %v5372 = vsub.s32 %v5369, %v5371
        %v5373 = vrot.slane %v5366, %v5372
        %v5374 = vcombine.high %v5373, 0.0
        %v5375 = vcombine.low %v5289, %v5304
        %v5377 = vunpack.c.l.s4 1934713408
        %v5378 = vunpack.c.0.s8 %v5377
        %v5379 = vlaneseq
        %v5380 = vshrl.u32 %v5379, 7
        %v5381 = vsub.s32 %v5378, %v5380
        %v5382 = vrot.slane %v5375, %v5381
        %v5383 = vcombine.high %v5382, 0.0
        %v5384 = vcombine.low %v3651, %v5276
        %v5386 = vunpack.c.l.s4 1934713408
        %v5387 = vunpack.c.0.s8 %v5386
        %v5388 = vlaneseq
        %v5389 = vshrl.u32 %v5388, 7
        %v5390 = vsub.s32 %v5387, %v5389
        %v5391 = vrot.slane %v5384, %v5390
        %v5392 = vcombine.high %v5391, 0.0
        %v5393 = vcombine.low %v5291, %v5306
        %v5395 = vunpack.c.l.s4 1934713408
        %v5396 = vunpack.c.0.s8 %v5395
        %v5397 = vlaneseq
        %v5398 = vshrl.u32 %v5397, 7
        %v5399 = vsub.s32 %v5396, %v5398
        %v5400 = vrot.slane %v5393, %v5399
        %v5401 = vcombine.high %v5400, 0.0
        %v5402 = vcombine.low %v5319, %v5320
        %v5404 = vunpack.c.l.s4 1934713408
        %v5405 = vunpack.c.0.s8 %v5404
        %v5406 = vlaneseq
        %v5407 = vshrl.u32 %v5406, 7
        %v5408 = vsub.s32 %v5405, %v5407
        %v5409 = vrot.slane %v5402, %v5408
        %v5410 = vcombine.high %v5409, 0.0
        %v5411 = vcombine.low %v5337, %v5338
        %v5413 = vunpack.c.l.s4 1934713408
        %v5414 = vunpack.c.0.s8 %v5413
        %v5415 = vlaneseq
        %v5416 = vshrl.u32 %v5415, 7
        %v5417 = vsub.s32 %v5414, %v5416
        %v5418 = vrot.slane %v5411, %v5417
        %v5419 = vcombine.high %v5418, 0.0
        %v5420 = vcombine.low %v5355, %v5356
        %v5422 = vunpack.c.l.s4 1934713408
        %v5423 = vunpack.c.0.s8 %v5422
        %v5424 = vlaneseq
        %v5425 = vshrl.u32 %v5424, 7
        %v5426 = vsub.s32 %v5423, %v5425
        %v5427 = vrot.slane %v5420, %v5426
        %v5428 = vcombine.high %v5427, 0.0
        %v5429 = vcombine.low %v5373, %v5374
        %v5431 = vunpack.c.l.s4 1934713408
        %v5432 = vunpack.c.0.s8 %v5431
        %v5433 = vlaneseq
        %v5434 = vshrl.u32 %v5433, 7
        %v5435 = vsub.s32 %v5432, %v5434
        %v5436 = vrot.slane %v5429, %v5435
        %v5437 = vcombine.high %v5436, 0.0
        %v5438 = vcombine.low %v5391, %v5392
        %v5440 = vunpack.c.l.s4 1934713408
        %v5441 = vunpack.c.0.s8 %v5440
        %v5442 = vlaneseq
        %v5443 = vshrl.u32 %v5442, 7
        %v5444 = vsub.s32 %v5441, %v5443
        %v5445 = vrot.slane %v5438, %v5444
        %v5446 = vcombine.high %v5445, 0.0
        %v5447 = vcombine.low %v5328, %v5329
        %v5449 = vunpack.c.l.s4 1934713408
        %v5450 = vunpack.c.0.s8 %v5449
        %v5451 = vlaneseq
        %v5452 = vshrl.u32 %v5451, 7
        %v5453 = vsub.s32 %v5450, %v5452
        %v5454 = vrot.slane %v5447, %v5453
        %v5455 = vcombine.high %v5454, 0.0
        %v5456 = vcombine.low %v5346, %v5347
        %v5458 = vunpack.c.l.s4 1934713408
        %v5459 = vunpack.c.0.s8 %v5458
        %v5460 = vlaneseq
        %v5461 = vshrl.u32 %v5460, 7
        %v5462 = vsub.s32 %v5459, %v5461
        %v5463 = vrot.slane %v5456, %v5462
        %v5464 = vcombine.high %v5463, 0.0
        %v5465 = vcombine.low %v5364, %v5365
        %v5467 = vunpack.c.l.s4 1934713408
        %v5468 = vunpack.c.0.s8 %v5467
        %v5469 = vlaneseq
        %v5470 = vshrl.u32 %v5469, 7
        %v5471 = vsub.s32 %v5468, %v5470
        %v5472 = vrot.slane %v5465, %v5471
        %v5473 = vcombine.high %v5472, 0.0
        %v5474 = vcombine.low %v5382, %v5383
        %v5476 = vunpack.c.l.s4 1934713408
        %v5477 = vunpack.c.0.s8 %v5476
        %v5478 = vlaneseq
        %v5479 = vshrl.u32 %v5478, 7
        %v5480 = vsub.s32 %v5477, %v5479
        %v5481 = vrot.slane %v5474, %v5480
        %v5482 = vcombine.high %v5481, 0.0
        %v5483 = vcombine.low %v5400, %v5401
        %v5485 = vunpack.c.l.s4 1934713408
        %v5486 = vunpack.c.0.s8 %v5485
        %v5487 = vlaneseq
        %v5488 = vshrl.u32 %v5487, 7
        %v5489 = vsub.s32 %v5486, %v5488
        %v5490 = vrot.slane %v5483, %v5489
        %v5491 = vcombine.high %v5490, 0.0
        %v5512 = vcombine.low %v5409, %v5418
        %v5513 = vcombine.low %v5427, %v5436
        %v5515 = vunpack.c.l.s4 1983009808
        %v5516 = vunpack.c.0.s8 %v5515
        %v5517 = vlaneseq
        %v5518 = vshrl.u32 %v5517, 7
        %v5519 = vsub.s32 %v5516, %v5518
        %v5520 = vrot.slane %v5512, %v5519
        %v5522 = vunpack.c.l.s4 1983009808
        %v5523 = vunpack.c.0.s8 %v5522
        %v5524 = vlaneseq
        %v5525 = vshrl.u32 %v5524, 7
        %v5526 = vsub.s32 %v5523, %v5525
        %v5527 = vrot.slane %v5513, %v5526
        %v5528 = vcombine.low %v5520, %v5527
        %v5530 = vunpack.c.l.s4 1983009808
        %v5531 = vunpack.c.0.s8 %v5530
        %v5532 = vlaneseq
        %v5533 = vshrl.u32 %v5532, 7
        %v5534 = vsub.s32 %v5531, %v5533
        %v5535 = vrot.slane %v5445, %v5534
        %v5536 = vcombine.low %v5410, %v5419
        %v5537 = vcombine.low %v5428, %v5437
        %v5539 = vunpack.c.l.s4 1983009808
        %v5540 = vunpack.c.0.s8 %v5539
        %v5541 = vlaneseq
        %v5542 = vshrl.u32 %v5541, 7
        %v5543 = vsub.s32 %v5540, %v5542
        %v5544 = vrot.slane %v5536, %v5543
        %v5546 = vunpack.c.l.s4 1983009808
        %v5547 = vunpack.c.0.s8 %v5546
        %v5548 = vlaneseq
        %v5549 = vshrl.u32 %v5548, 7
        %v5550 = vsub.s32 %v5547, %v5549
        %v5551 = vrot.slane %v5537, %v5550
        %v5552 = vcombine.low %v5544, %v5551
        %v5554 = vunpack.c.l.s4 1983009808
        %v5555 = vunpack.c.0.s8 %v5554
        %v5556 = vlaneseq
        %v5557 = vshrl.u32 %v5556, 7
        %v5558 = vsub.s32 %v5555, %v5557
        %v5559 = vrot.slane %v5446, %v5558
        %v5560 = vcombine.low %v5454, %v5463
        %v5561 = vcombine.low %v5472, %v5481
        %v5563 = vunpack.c.l.s4 1983009808
        %v5564 = vunpack.c.0.s8 %v5563
        %v5565 = vlaneseq
        %v5566 = vshrl.u32 %v5565, 7
        %v5567 = vsub.s32 %v5564, %v5566
        %v5568 = vrot.slane %v5560, %v5567
        %v5570 = vunpack.c.l.s4 1983009808
        %v5571 = vunpack.c.0.s8 %v5570
        %v5572 = vlaneseq
        %v5573 = vshrl.u32 %v5572, 7
        %v5574 = vsub.s32 %v5571, %v5573
        %v5575 = vrot.slane %v5561, %v5574
        %v5576 = vcombine.low %v5568, %v5575
        %v5578 = vunpack.c.l.s4 1983009808
        %v5579 = vunpack.c.0.s8 %v5578
        %v5580 = vlaneseq
        %v5581 = vshrl.u32 %v5580, 7
        %v5582 = vsub.s32 %v5579, %v5581
        %v5583 = vrot.slane %v5490, %v5582
        %v5584 = vcombine.low %v5455, %v5464
        %v5585 = vcombine.low %v5473, %v5482
        %v5587 = vunpack.c.l.s4 1983009808
        %v5588 = vunpack.c.0.s8 %v5587
        %v5589 = vlaneseq
        %v5590 = vshrl.u32 %v5589, 7
        %v5591 = vsub.s32 %v5588, %v5590
        %v5592 = vrot.slane %v5584, %v5591
        %v5594 = vunpack.c.l.s4 1983009808
        %v5595 = vunpack.c.0.s8 %v5594
        %v5596 = vlaneseq
        %v5597 = vshrl.u32 %v5596, 7
        %v5598 = vsub.s32 %v5595, %v5597
        %v5599 = vrot.slane %v5585, %v5598
        %v5600 = vcombine.low %v5592, %v5599
        %v5602 = vunpack.c.l.s4 1983009808
        %v5603 = vunpack.c.0.s8 %v5602
        %v5604 = vlaneseq
        %v5605 = vshrl.u32 %v5604, 7
        %v5606 = vsub.s32 %v5603, %v5605
        %v5607 = vrot.slane %v5491, %v5606
        %v5616 = vpack.c.bf16 %v5535, %v5528
        %v5617 = vpack.c.bf16 %v5559, %v5552
        %v5618 = vpack.c.bf16 %v5583, %v5576
        %v5619 = vpack.c.bf16 %v5607, %v5600
        %5620 = vrot.lane.b32.xlu0 %v3642, 96
        %v5621 = vpop.permute.xlu0 %5620
        %5622 = vrot.lane.b32.xlu0 %v3641, 96
        %v5623 = vpop.permute.xlu0 %5622
        %5624 = vrot.lane.b32.xlu0 %v3643, 96
        %v5625 = vpop.permute.xlu0 %5624
        %5626 = vrot.lane.b32.xlu0 %v3650, 96
        %v5627 = vpop.permute.xlu0 %5626
        %5628 = vrot.lane.b32.xlu0 %v3651, 96
        %v5629 = vpop.permute.xlu0 %5628
        %5630 = vrot.lane.b32.xlu0 %v5268, 96
        %v5631 = vpop.permute.xlu0 %5630
        %5632 = vrot.lane.b32.xlu0 %v5270, 96
        %v5633 = vpop.permute.xlu0 %5632
        %5634 = vrot.lane.b32.xlu0 %v5272, 96
        %v5635 = vpop.permute.xlu0 %5634
        %5636 = vrot.lane.b32.xlu0 %v5274, 96
        %v5637 = vpop.permute.xlu0 %5636
        %5638 = vrot.lane.b32.xlu0 %v5276, 96
        %v5639 = vpop.permute.xlu0 %5638
        %5640 = vrot.lane.b32.xlu0 %v5283, 96
        %v5641 = vpop.permute.xlu0 %5640
        %5642 = vrot.lane.b32.xlu0 %v5285, 96
        %v5643 = vpop.permute.xlu0 %5642
        %5644 = vrot.lane.b32.xlu0 %v5287, 96
        %v5645 = vpop.permute.xlu0 %5644
        %5646 = vrot.lane.b32.xlu0 %v5289, 96
        %v5647 = vpop.permute.xlu0 %5646
        %5648 = vrot.lane.b32.xlu0 %v5291, 96
        %v5649 = vpop.permute.xlu0 %5648
        %5650 = vrot.lane.b32.xlu0 %v5298, 96
        %v5651 = vpop.permute.xlu0 %5650
        %5652 = vrot.lane.b32.xlu0 %v5300, 96
        %v5653 = vpop.permute.xlu0 %5652
        %5654 = vrot.lane.b32.xlu0 %v5302, 96
        %v5655 = vpop.permute.xlu0 %5654
        %5656 = vrot.lane.b32.xlu0 %v5304, 96
        %v5657 = vpop.permute.xlu0 %5656
        %5658 = vrot.lane.b32.xlu0 %v5306, 96
        %v5659 = vpop.permute.xlu0 %5658
        %v5680 = vcombine.low %v5621, %v5631
        %v5682 = vunpack.c.l.s4 1934713408
        %v5683 = vunpack.c.0.s8 %v5682
        %v5684 = vlaneseq
        %v5685 = vshrl.u32 %v5684, 7
        %v5686 = vsub.s32 %v5683, %v5685
        %v5687 = vrot.slane %v5680, %v5686
        %v5688 = vcombine.high %v5687, 0.0
        %v5689 = vcombine.low %v5641, %v5651
        %v5691 = vunpack.c.l.s4 1934713408
        %v5692 = vunpack.c.0.s8 %v5691
        %v5693 = vlaneseq
        %v5694 = vshrl.u32 %v5693, 7
        %v5695 = vsub.s32 %v5692, %v5694
        %v5696 = vrot.slane %v5689, %v5695
        %v5697 = vcombine.high %v5696, 0.0
        %v5698 = vcombine.low %v5623, %v5633
        %v5700 = vunpack.c.l.s4 1934713408
        %v5701 = vunpack.c.0.s8 %v5700
        %v5702 = vlaneseq
        %v5703 = vshrl.u32 %v5702, 7
        %v5704 = vsub.s32 %v5701, %v5703
        %v5705 = vrot.slane %v5698, %v5704
        %v5706 = vcombine.high %v5705, 0.0
        %v5707 = vcombine.low %v5643, %v5653
        %v5709 = vunpack.c.l.s4 1934713408
        %v5710 = vunpack.c.0.s8 %v5709
        %v5711 = vlaneseq
        %v5712 = vshrl.u32 %v5711, 7
        %v5713 = vsub.s32 %v5710, %v5712
        %v5714 = vrot.slane %v5707, %v5713
        %v5715 = vcombine.high %v5714, 0.0
        %v5716 = vcombine.low %v5625, %v5635
        %v5718 = vunpack.c.l.s4 1934713408
        %v5719 = vunpack.c.0.s8 %v5718
        %v5720 = vlaneseq
        %v5721 = vshrl.u32 %v5720, 7
        %v5722 = vsub.s32 %v5719, %v5721
        %v5723 = vrot.slane %v5716, %v5722
        %v5724 = vcombine.high %v5723, 0.0
        %v5725 = vcombine.low %v5645, %v5655
        %v5727 = vunpack.c.l.s4 1934713408
        %v5728 = vunpack.c.0.s8 %v5727
        %v5729 = vlaneseq
        %v5730 = vshrl.u32 %v5729, 7
        %v5731 = vsub.s32 %v5728, %v5730
        %v5732 = vrot.slane %v5725, %v5731
        %v5733 = vcombine.high %v5732, 0.0
        %v5734 = vcombine.low %v5627, %v5637
        %v5736 = vunpack.c.l.s4 1934713408
        %v5737 = vunpack.c.0.s8 %v5736
        %v5738 = vlaneseq
        %v5739 = vshrl.u32 %v5738, 7
        %v5740 = vsub.s32 %v5737, %v5739
        %v5741 = vrot.slane %v5734, %v5740
        %v5742 = vcombine.high %v5741, 0.0
        %v5743 = vcombine.low %v5647, %v5657
        %v5745 = vunpack.c.l.s4 1934713408
        %v5746 = vunpack.c.0.s8 %v5745
        %v5747 = vlaneseq
        %v5748 = vshrl.u32 %v5747, 7
        %v5749 = vsub.s32 %v5746, %v5748
        %v5750 = vrot.slane %v5743, %v5749
        %v5751 = vcombine.high %v5750, 0.0
        %v5752 = vcombine.low %v5629, %v5639
        %v5754 = vunpack.c.l.s4 1934713408
        %v5755 = vunpack.c.0.s8 %v5754
        %v5756 = vlaneseq
        %v5757 = vshrl.u32 %v5756, 7
        %v5758 = vsub.s32 %v5755, %v5757
        %v5759 = vrot.slane %v5752, %v5758
        %v5760 = vcombine.high %v5759, 0.0
        %v5761 = vcombine.low %v5649, %v5659
        %v5763 = vunpack.c.l.s4 1934713408
        %v5764 = vunpack.c.0.s8 %v5763
        %v5765 = vlaneseq
        %v5766 = vshrl.u32 %v5765, 7
        %v5767 = vsub.s32 %v5764, %v5766
        %v5768 = vrot.slane %v5761, %v5767
        %v5769 = vcombine.high %v5768, 0.0
        %v5770 = vcombine.low %v5687, %v5688
        %v5772 = vunpack.c.l.s4 1934713408
        %v5773 = vunpack.c.0.s8 %v5772
        %v5774 = vlaneseq
        %v5775 = vshrl.u32 %v5774, 7
        %v5776 = vsub.s32 %v5773, %v5775
        %v5777 = vrot.slane %v5770, %v5776
        %v5778 = vcombine.high %v5777, 0.0
        %v5779 = vcombine.low %v5705, %v5706
        %v5781 = vunpack.c.l.s4 1934713408
        %v5782 = vunpack.c.0.s8 %v5781
        %v5783 = vlaneseq
        %v5784 = vshrl.u32 %v5783, 7
        %v5785 = vsub.s32 %v5782, %v5784
        %v5786 = vrot.slane %v5779, %v5785
        %v5787 = vcombine.high %v5786, 0.0
        %v5788 = vcombine.low %v5723, %v5724
        %v5790 = vunpack.c.l.s4 1934713408
        %v5791 = vunpack.c.0.s8 %v5790
        %v5792 = vlaneseq
        %v5793 = vshrl.u32 %v5792, 7
        %v5794 = vsub.s32 %v5791, %v5793
        %v5795 = vrot.slane %v5788, %v5794
        %v5796 = vcombine.high %v5795, 0.0
        %v5797 = vcombine.low %v5741, %v5742
        %v5799 = vunpack.c.l.s4 1934713408
        %v5800 = vunpack.c.0.s8 %v5799
        %v5801 = vlaneseq
        %v5802 = vshrl.u32 %v5801, 7
        %v5803 = vsub.s32 %v5800, %v5802
        %v5804 = vrot.slane %v5797, %v5803
        %v5805 = vcombine.high %v5804, 0.0
        %v5806 = vcombine.low %v5759, %v5760
        %v5808 = vunpack.c.l.s4 1934713408
        %v5809 = vunpack.c.0.s8 %v5808
        %v5810 = vlaneseq
        %v5811 = vshrl.u32 %v5810, 7
        %v5812 = vsub.s32 %v5809, %v5811
        %v5813 = vrot.slane %v5806, %v5812
        %v5814 = vcombine.high %v5813, 0.0
        %v5815 = vcombine.low %v5696, %v5697
        %v5817 = vunpack.c.l.s4 1934713408
        %v5818 = vunpack.c.0.s8 %v5817
        %v5819 = vlaneseq
        %v5820 = vshrl.u32 %v5819, 7
        %v5821 = vsub.s32 %v5818, %v5820
        %v5822 = vrot.slane %v5815, %v5821
        %v5823 = vcombine.high %v5822, 0.0
        %v5824 = vcombine.low %v5714, %v5715
        %v5826 = vunpack.c.l.s4 1934713408
        %v5827 = vunpack.c.0.s8 %v5826
        %v5828 = vlaneseq
        %v5829 = vshrl.u32 %v5828, 7
        %v5830 = vsub.s32 %v5827, %v5829
        %v5831 = vrot.slane %v5824, %v5830
        %v5832 = vcombine.high %v5831, 0.0
        %v5833 = vcombine.low %v5732, %v5733
        %v5835 = vunpack.c.l.s4 1934713408
        %v5836 = vunpack.c.0.s8 %v5835
        %v5837 = vlaneseq
        %v5838 = vshrl.u32 %v5837, 7
        %v5839 = vsub.s32 %v5836, %v5838
        %v5840 = vrot.slane %v5833, %v5839
        %v5841 = vcombine.high %v5840, 0.0
        %v5842 = vcombine.low %v5750, %v5751
        %v5844 = vunpack.c.l.s4 1934713408
        %v5845 = vunpack.c.0.s8 %v5844
        %v5846 = vlaneseq
        %v5847 = vshrl.u32 %v5846, 7
        %v5848 = vsub.s32 %v5845, %v5847
        %v5849 = vrot.slane %v5842, %v5848
        %v5850 = vcombine.high %v5849, 0.0
        %v5851 = vcombine.low %v5768, %v5769
        %v5853 = vunpack.c.l.s4 1934713408
        %v5854 = vunpack.c.0.s8 %v5853
        %v5855 = vlaneseq
        %v5856 = vshrl.u32 %v5855, 7
        %v5857 = vsub.s32 %v5854, %v5856
        %v5858 = vrot.slane %v5851, %v5857
        %v5859 = vcombine.high %v5858, 0.0
        %v5880 = vcombine.low %v5777, %v5786
        %v5881 = vcombine.low %v5795, %v5804
        %v5883 = vunpack.c.l.s4 1983009808
        %v5884 = vunpack.c.0.s8 %v5883
        %v5885 = vlaneseq
        %v5886 = vshrl.u32 %v5885, 7
        %v5887 = vsub.s32 %v5884, %v5886
        %v5888 = vrot.slane %v5880, %v5887
        %v5890 = vunpack.c.l.s4 1983009808
        %v5891 = vunpack.c.0.s8 %v5890
        %v5892 = vlaneseq
        %v5893 = vshrl.u32 %v5892, 7
        %v5894 = vsub.s32 %v5891, %v5893
        %v5895 = vrot.slane %v5881, %v5894
        %v5896 = vcombine.low %v5888, %v5895
        %v5898 = vunpack.c.l.s4 1983009808
        %v5899 = vunpack.c.0.s8 %v5898
        %v5900 = vlaneseq
        %v5901 = vshrl.u32 %v5900, 7
        %v5902 = vsub.s32 %v5899, %v5901
        %v5903 = vrot.slane %v5813, %v5902
        %v5904 = vcombine.low %v5778, %v5787
        %v5905 = vcombine.low %v5796, %v5805
        %v5907 = vunpack.c.l.s4 1983009808
        %v5908 = vunpack.c.0.s8 %v5907
        %v5909 = vlaneseq
        %v5910 = vshrl.u32 %v5909, 7
        %v5911 = vsub.s32 %v5908, %v5910
        %v5912 = vrot.slane %v5904, %v5911
        %v5914 = vunpack.c.l.s4 1983009808
        %v5915 = vunpack.c.0.s8 %v5914
        %v5916 = vlaneseq
        %v5917 = vshrl.u32 %v5916, 7
        %v5918 = vsub.s32 %v5915, %v5917
        %v5919 = vrot.slane %v5905, %v5918
        %v5920 = vcombine.low %v5912, %v5919
        %v5922 = vunpack.c.l.s4 1983009808
        %v5923 = vunpack.c.0.s8 %v5922
        %v5924 = vlaneseq
        %v5925 = vshrl.u32 %v5924, 7
        %v5926 = vsub.s32 %v5923, %v5925
        %v5927 = vrot.slane %v5814, %v5926
        %v5928 = vcombine.low %v5822, %v5831
        %v5929 = vcombine.low %v5840, %v5849
        %v5931 = vunpack.c.l.s4 1983009808
        %v5932 = vunpack.c.0.s8 %v5931
        %v5933 = vlaneseq
        %v5934 = vshrl.u32 %v5933, 7
        %v5935 = vsub.s32 %v5932, %v5934
        %v5936 = vrot.slane %v5928, %v5935
        %v5938 = vunpack.c.l.s4 1983009808
        %v5939 = vunpack.c.0.s8 %v5938
        %v5940 = vlaneseq
        %v5941 = vshrl.u32 %v5940, 7
        %v5942 = vsub.s32 %v5939, %v5941
        %v5943 = vrot.slane %v5929, %v5942
        %v5944 = vcombine.low %v5936, %v5943
        %v5946 = vunpack.c.l.s4 1983009808
        %v5947 = vunpack.c.0.s8 %v5946
        %v5948 = vlaneseq
        %v5949 = vshrl.u32 %v5948, 7
        %v5950 = vsub.s32 %v5947, %v5949
        %v5951 = vrot.slane %v5858, %v5950
        %v5952 = vcombine.low %v5823, %v5832
        %v5953 = vcombine.low %v5841, %v5850
        %v5955 = vunpack.c.l.s4 1983009808
        %v5956 = vunpack.c.0.s8 %v5955
        %v5957 = vlaneseq
        %v5958 = vshrl.u32 %v5957, 7
        %v5959 = vsub.s32 %v5956, %v5958
        %v5960 = vrot.slane %v5952, %v5959
        %v5962 = vunpack.c.l.s4 1983009808
        %v5963 = vunpack.c.0.s8 %v5962
        %v5964 = vlaneseq
        %v5965 = vshrl.u32 %v5964, 7
        %v5966 = vsub.s32 %v5963, %v5965
        %v5967 = vrot.slane %v5953, %v5966
        %v5968 = vcombine.low %v5960, %v5967
        %v5970 = vunpack.c.l.s4 1983009808
        %v5971 = vunpack.c.0.s8 %v5970
        %v5972 = vlaneseq
        %v5973 = vshrl.u32 %v5972, 7
        %v5974 = vsub.s32 %v5971, %v5973
        %v5975 = vrot.slane %v5859, %v5974
        %v5984 = vpack.c.bf16 %v5903, %v5896
        %v5985 = vpack.c.bf16 %v5927, %v5920
        %v5986 = vpack.c.bf16 %v5951, %v5944
        %v5987 = vpack.c.bf16 %v5975, %v5968
        %v5989 = vsel %vm1596, %v5263, 0
        %v5992 = vsel %vm1596, %v5616, 0
        %5994 = vmatprep.subr.bf16.mxu0 0
        %5995 = vmatpush1.bf16.xpose.msra.mxu0 0
        %5996 = vmatprep.subr.bf16.mxu0 0
        %5997 = vmatpush1.bf16.xpose.msra.mxu0 0
        %5998 = vmatprep.subr.bf16.mxu0 0
        %5999 = vmatpush1.bf16.xpose.msra.mxu0 0
        %6000 = vmatprep.subr.bf16.mxu0 0
        %6001 = vmatpush1.bf16.xpose.msra.mxu0 0
        %6002 = vmatprep.subr.bf16.mxu0 0
        %6003 = vmatpush1.bf16.xpose.msra.mxu0 0
        %6004 = vmatprep.subr.bf16.mxu0 0
        %6005 = vmatpush1.bf16.xpose.msra.mxu0 0
        %6006 = vmatprep.subr.bf16.mxu0 0
        %6007 = vmatpush1.bf16.xpose.msra.mxu0 0
        %6008 = vmatprep.subr.bf16.mxu0 0
        %6009 = vmatpush1.bf16.xpose.msra.mxu0 %v5992
        %6010 = vmatprep.subr.bf16.mxu0 0
        %6011 = vmatpush2.bf16.xpose.msra.mxu0 0
        %6012 = vmatprep.subr.bf16.mxu0 0
        %6013 = vmatpush2.bf16.xpose.msra.mxu0 0
        %6014 = vmatprep.subr.bf16.mxu0 0
        %6015 = vmatpush2.bf16.xpose.msra.mxu0 0
        %6016 = vmatprep.subr.bf16.mxu0 0
        %6017 = vmatpush2.bf16.xpose.msra.mxu0 0
        %6018 = vmatprep.subr.bf16.mxu0 0
        %6019 = vmatpush2.bf16.xpose.msra.mxu0 0
        %6020 = vmatprep.subr.bf16.mxu0 0
        %6021 = vmatpush2.bf16.xpose.msra.mxu0 0
        %6022 = vmatprep.subr.bf16.mxu0 0
        %6023 = vmatpush2.bf16.xpose.msra.mxu0 0
        %6024 = vmatprep.subr.bf16.mxu0 0
        %6025 = vmatpush2.bf16.xpose.msra.mxu0 0
        %6026 = vmatprep.mubr.bf16.mxu0 0
        %6027 = vmatmul.mubr.bf16.gmra.mxu0 %v5989
        %v6028 = vpop.f32.mrf.mxu0
        %v6029 = vadd.f32 0.0, %v6028
        %v6030 = vpop.f32.mrf.mxu0
        %v6031 = vpop.f32.mrf.mxu0
        %v6032 = vpop.f32.mrf.mxu0
        %6033 = vdwg.mxu0
        %v6035 = vsel %vm1596, %v5264, 0
        %v6038 = vsel %vm1596, %v5617, 0
        %6040 = vmatprep.subr.bf16.mxu0 0
        %6041 = vmatpush1.bf16.xpose.msra.mxu0 0
        %6042 = vmatprep.subr.bf16.mxu0 0
        %6043 = vmatpush1.bf16.xpose.msra.mxu0 0
        %6044 = vmatprep.subr.bf16.mxu0 0
        %6045 = vmatpush1.bf16.xpose.msra.mxu0 0
        %6046 = vmatprep.subr.bf16.mxu0 0
        %6047 = vmatpush1.bf16.xpose.msra.mxu0 0
        %6048 = vmatprep.subr.bf16.mxu0 0
        %6049 = vmatpush1.bf16.xpose.msra.mxu0 0
        %6050 = vmatprep.subr.bf16.mxu0 0
        %6051 = vmatpush1.bf16.xpose.msra.mxu0 0
        %6052 = vmatprep.subr.bf16.mxu0 0
        %6053 = vmatpush1.bf16.xpose.msra.mxu0 0
        %6054 = vmatprep.subr.bf16.mxu0 0
        %6055 = vmatpush1.bf16.xpose.msra.mxu0 %v6038
        %6056 = vmatprep.subr.bf16.mxu0 0
        %6057 = vmatpush2.bf16.xpose.msra.mxu0 0
        %6058 = vmatprep.subr.bf16.mxu0 0
        %6059 = vmatpush2.bf16.xpose.msra.mxu0 0
        %6060 = vmatprep.subr.bf16.mxu0 0
        %6061 = vmatpush2.bf16.xpose.msra.mxu0 0
        %6062 = vmatprep.subr.bf16.mxu0 0
        %6063 = vmatpush2.bf16.xpose.msra.mxu0 0
        %6064 = vmatprep.subr.bf16.mxu0 0
        %6065 = vmatpush2.bf16.xpose.msra.mxu0 0
        %6066 = vmatprep.subr.bf16.mxu0 0
        %6067 = vmatpush2.bf16.xpose.msra.mxu0 0
        %6068 = vmatprep.subr.bf16.mxu0 0
        %6069 = vmatpush2.bf16.xpose.msra.mxu0 0
        %6070 = vmatprep.subr.bf16.mxu0 0
        %6071 = vmatpush2.bf16.xpose.msra.mxu0 0
        %6072 = vmatprep.mubr.bf16.mxu0 0
        %6073 = vmatmul.mubr.bf16.gmra.mxu0 %v6035
        %v6074 = vpop.f32.mrf.mxu0
        %v6075 = vadd.f32 0.0, %v6074
        %v6076 = vpop.f32.mrf.mxu0
        %v6077 = vpop.f32.mrf.mxu0
        %v6078 = vpop.f32.mrf.mxu0
        %6079 = vdwg.mxu0
        %v6081 = vsel %vm1596, %v5265, 0
        %v6084 = vsel %vm1596, %v5618, 0
        %6086 = vmatprep.subr.bf16.mxu0 0
        %6087 = vmatpush1.bf16.xpose.msra.mxu0 0
        %6088 = vmatprep.subr.bf16.mxu0 0
        %6089 = vmatpush1.bf16.xpose.msra.mxu0 0
        %6090 = vmatprep.subr.bf16.mxu0 0
        %6091 = vmatpush1.bf16.xpose.msra.mxu0 0
        %6092 = vmatprep.subr.bf16.mxu0 0
        %6093 = vmatpush1.bf16.xpose.msra.mxu0 0
        %6094 = vmatprep.subr.bf16.mxu0 0
        %6095 = vmatpush1.bf16.xpose.msra.mxu0 0
        %6096 = vmatprep.subr.bf16.mxu0 0
        %6097 = vmatpush1.bf16.xpose.msra.mxu0 0
        %6098 = vmatprep.subr.bf16.mxu0 0
        %6099 = vmatpush1.bf16.xpose.msra.mxu0 0
        %6100 = vmatprep.subr.bf16.mxu0 0
        %6101 = vmatpush1.bf16.xpose.msra.mxu0 %v6084
        %6102 = vmatprep.subr.bf16.mxu0 0
        %6103 = vmatpush2.bf16.xpose.msra.mxu0 0
        %6104 = vmatprep.subr.bf16.mxu0 0
        %6105 = vmatpush2.bf16.xpose.msra.mxu0 0
        %6106 = vmatprep.subr.bf16.mxu0 0
        %6107 = vmatpush2.bf16.xpose.msra.mxu0 0
        %6108 = vmatprep.subr.bf16.mxu0 0
        %6109 = vmatpush2.bf16.xpose.msra.mxu0 0
        %6110 = vmatprep.subr.bf16.mxu0 0
        %6111 = vmatpush2.bf16.xpose.msra.mxu0 0
        %6112 = vmatprep.subr.bf16.mxu0 0
        %6113 = vmatpush2.bf16.xpose.msra.mxu0 0
        %6114 = vmatprep.subr.bf16.mxu0 0
        %6115 = vmatpush2.bf16.xpose.msra.mxu0 0
        %6116 = vmatprep.subr.bf16.mxu0 0
        %6117 = vmatpush2.bf16.xpose.msra.mxu0 0
        %6118 = vmatprep.mubr.bf16.mxu0 0
        %6119 = vmatmul.mubr.bf16.gmra.mxu0 %v6081
        %v6120 = vpop.f32.mrf.mxu0
        %v6121 = vadd.f32 0.0, %v6120
        %v6122 = vpop.f32.mrf.mxu0
        %v6123 = vpop.f32.mrf.mxu0
        %v6124 = vpop.f32.mrf.mxu0
        %6125 = vdwg.mxu0
        %v6127 = vsel %vm1596, %v5266, 0
        %v6130 = vsel %vm1596, %v5619, 0
        %6132 = vmatprep.subr.bf16.mxu0 0
        %6133 = vmatpush1.bf16.xpose.msra.mxu0 0
        %6134 = vmatprep.subr.bf16.mxu0 0
        %6135 = vmatpush1.bf16.xpose.msra.mxu0 0
        %6136 = vmatprep.subr.bf16.mxu0 0
        %6137 = vmatpush1.bf16.xpose.msra.mxu0 0
        %6138 = vmatprep.subr.bf16.mxu0 0
        %6139 = vmatpush1.bf16.xpose.msra.mxu0 0
        %6140 = vmatprep.subr.bf16.mxu0 0
        %6141 = vmatpush1.bf16.xpose.msra.mxu0 0
        %6142 = vmatprep.subr.bf16.mxu0 0
        %6143 = vmatpush1.bf16.xpose.msra.mxu0 0
        %6144 = vmatprep.subr.bf16.mxu0 0
        %6145 = vmatpush1.bf16.xpose.msra.mxu0 0
        %6146 = vmatprep.subr.bf16.mxu0 0
        %6147 = vmatpush1.bf16.xpose.msra.mxu0 %v6130
        %6148 = vmatprep.subr.bf16.mxu0 0
        %6149 = vmatpush2.bf16.xpose.msra.mxu0 0
        %6150 = vmatprep.subr.bf16.mxu0 0
        %6151 = vmatpush2.bf16.xpose.msra.mxu0 0
        %6152 = vmatprep.subr.bf16.mxu0 0
        %6153 = vmatpush2.bf16.xpose.msra.mxu0 0
        %6154 = vmatprep.subr.bf16.mxu0 0
        %6155 = vmatpush2.bf16.xpose.msra.mxu0 0
        %6156 = vmatprep.subr.bf16.mxu0 0
        %6157 = vmatpush2.bf16.xpose.msra.mxu0 0
        %6158 = vmatprep.subr.bf16.mxu0 0
        %6159 = vmatpush2.bf16.xpose.msra.mxu0 0
        %6160 = vmatprep.subr.bf16.mxu0 0
        %6161 = vmatpush2.bf16.xpose.msra.mxu0 0
        %6162 = vmatprep.subr.bf16.mxu0 0
        %6163 = vmatpush2.bf16.xpose.msra.mxu0 0
        %6164 = vmatprep.mubr.bf16.mxu0 0
        %6165 = vmatmul.mubr.bf16.gmra.mxu0 %v6127
        %v6166 = vpop.f32.mrf.mxu0
        %v6167 = vadd.f32 0.0, %v6166
        %v6168 = vpop.f32.mrf.mxu0
        %v6169 = vpop.f32.mrf.mxu0
        %v6170 = vpop.f32.mrf.mxu0
        %6171 = vdwg.mxu0
        %v6172 = vsel %vm5116, 1, 0
        %v6173 = vlaneseq
        %v6174 = vshrl.u32 %v6173, 7
        %v6175 = vsub.s32 0, %v6174
        %v6176 = vrot.slane %v6172, %v6175
        %vm6177 = vcmp.eq.s32.totalorder %v6176, 1
        %v6178 = vsel %vm6177, -1e+09, %v6029
        %v6179 = vsel %vm6177, -1e+09, %v6075
        %v6180 = vsel %vm6177, -1e+09, %v6121
        %v6181 = vsel %vm6177, -1e+09, %v6167
        %v6182 = vsel %vm4729, %v6178, -inf
        %6183 = vmax.xlane.f32.xlu0 %v6182
        %v6184 = vpop.xlane.xlu0 %6183
        %v6185 = vsel %vm4729, %v6179, -inf
        %6186 = vmax.xlane.f32.xlu0 %v6185
        %v6187 = vpop.xlane.xlu0 %6186
        %v6188 = vsel %vm4729, %v6180, -inf
        %6189 = vmax.xlane.f32.xlu0 %v6188
        %v6190 = vpop.xlane.xlu0 %6189
        %v6191 = vsel %vm4729, %v6181, -inf
        %6192 = vmax.xlane.f32.xlu0 %v6191
        %v6193 = vpop.xlane.xlu0 %6192
        %v6194 = vsub.f32 %v6178, %v6184
        %v6195 = vsub.f32 %v6179, %v6187
        %v6196 = vsub.f32 %v6180, %v6190
        %v6197 = vsub.f32 %v6181, %v6193
        %v6198 = vmul.f32 %v6194, 1.442695
        %v6199 = vpow.pop %v6198
        %v6200 = vmul.f32 %v6195, 1.442695
        %v6201 = vpow.pop %v6200
        %v6202 = vmul.f32 %v6196, 1.442695
        %v6203 = vpow.pop %v6202
        %v6204 = vmul.f32 %v6197, 1.442695
        %v6205 = vpow.pop %v6204
        %v6206 = vsel %vm4729, %v6199, 0.0
        %6207 = vadd.xlane.f32.xlu0 %v6206
        %v6208 = vpop.xlane.xlu0 %6207
        %v6209 = vsel %vm4729, %v6201, 0.0
        %6210 = vadd.xlane.f32.xlu0 %v6209
        %v6211 = vpop.xlane.xlu0 %6210
        %v6212 = vsel %vm4729, %v6203, 0.0
        %6213 = vadd.xlane.f32.xlu0 %v6212
        %v6214 = vpop.xlane.xlu0 %6213
        %v6215 = vsel %vm4729, %v6205, 0.0
        %6216 = vadd.xlane.f32.xlu0 %v6215
        %v6217 = vpop.xlane.xlu0 %6216
        %v6218 = vrcp.pop %v6208
        %v6219 = vrcp.pop %v6211
        %v6220 = vrcp.pop %v6214
        %v6221 = vrcp.pop %v6217
        %v6222 = vmul.f32 %v6199, %v6218
        %v6223 = vmul.f32 %v6201, %v6219
        %v6224 = vmul.f32 %v6203, %v6220
        %v6225 = vmul.f32 %v6205, %v6221
        %v6226 = vpack.c.bf16 %v6222, %v6222
        %v6227 = vpack.c.bf16 %v6223, %v6223
        %v6228 = vpack.c.bf16 %v6224, %v6224
        %v6229 = vpack.c.bf16 %v6225, %v6225
        %v6231 = vsel %vm4729, %v6226, 0
        %v6234 = vsel %vm4781, %v5984, 0
        %6236 = vmatprep.subr.bf16.mxu0 0
        %6237 = vmatpush1.bf16.msra.mxu0 0
        %6238 = vmatprep.subr.bf16.mxu0 0
        %6239 = vmatpush1.bf16.msra.mxu0 0
        %6240 = vmatprep.subr.bf16.mxu0 0
        %6241 = vmatpush1.bf16.msra.mxu0 0
        %6242 = vmatprep.subr.bf16.mxu0 0
        %6243 = vmatpush1.bf16.msra.mxu0 0
        %6244 = vmatprep.subr.bf16.mxu0 0
        %6245 = vmatpush1.bf16.msra.mxu0 0
        %6246 = vmatprep.subr.bf16.mxu0 0
        %6247 = vmatpush1.bf16.msra.mxu0 0
        %6248 = vmatprep.subr.bf16.mxu0 0
        %6249 = vmatpush1.bf16.msra.mxu0 0
        %6250 = vmatprep.subr.bf16.mxu0 0
        %6251 = vmatpush1.bf16.msra.mxu0 %v6234
        %6252 = vmatprep.subr.bf16.mxu0 0
        %6253 = vmatpush2.bf16.msra.mxu0 0
        %6254 = vmatprep.subr.bf16.mxu0 0
        %6255 = vmatpush2.bf16.msra.mxu0 0
        %6256 = vmatprep.subr.bf16.mxu0 0
        %6257 = vmatpush2.bf16.msra.mxu0 0
        %6258 = vmatprep.subr.bf16.mxu0 0
        %6259 = vmatpush2.bf16.msra.mxu0 0
        %6260 = vmatprep.subr.bf16.mxu0 0
        %6261 = vmatpush2.bf16.msra.mxu0 0
        %6262 = vmatprep.subr.bf16.mxu0 0
        %6263 = vmatpush2.bf16.msra.mxu0 0
        %6264 = vmatprep.subr.bf16.mxu0 0
        %6265 = vmatpush2.bf16.msra.mxu0 0
        %6266 = vmatprep.subr.bf16.mxu0 0
        %6267 = vmatpush2.bf16.msra.mxu0 0
        %6268 = vmatprep.mubr.bf16.mxu0 0
        %6269 = vmatmul.mubr.bf16.gmra.mxu0 %v6231
        %v6270 = vpop.f32.mrf.mxu0
        %v6271 = vadd.f32 0.0, %v6270
        %v6272 = vpop.f32.mrf.mxu0
        %v6273 = vpop.f32.mrf.mxu0
        %v6274 = vpop.f32.mrf.mxu0
        %6275 = vdwg.mxu0
        %v6277 = vsel %vm4729, %v6227, 0
        %v6280 = vsel %vm4781, %v5985, 0
        %6282 = vmatprep.subr.bf16.mxu0 0
        %6283 = vmatpush1.bf16.msra.mxu0 0
        %6284 = vmatprep.subr.bf16.mxu0 0
        %6285 = vmatpush1.bf16.msra.mxu0 0
        %6286 = vmatprep.subr.bf16.mxu0 0
        %6287 = vmatpush1.bf16.msra.mxu0 0
        %6288 = vmatprep.subr.bf16.mxu0 0
        %6289 = vmatpush1.bf16.msra.mxu0 0
        %6290 = vmatprep.subr.bf16.mxu0 0
        %6291 = vmatpush1.bf16.msra.mxu0 0
        %6292 = vmatprep.subr.bf16.mxu0 0
        %6293 = vmatpush1.bf16.msra.mxu0 0
        %6294 = vmatprep.subr.bf16.mxu0 0
        %6295 = vmatpush1.bf16.msra.mxu0 0
        %6296 = vmatprep.subr.bf16.mxu0 0
        %6297 = vmatpush1.bf16.msra.mxu0 %v6280
        %6298 = vmatprep.subr.bf16.mxu0 0
        %6299 = vmatpush2.bf16.msra.mxu0 0
        %6300 = vmatprep.subr.bf16.mxu0 0
        %6301 = vmatpush2.bf16.msra.mxu0 0
        %6302 = vmatprep.subr.bf16.mxu0 0
        %6303 = vmatpush2.bf16.msra.mxu0 0
        %6304 = vmatprep.subr.bf16.mxu0 0
        %6305 = vmatpush2.bf16.msra.mxu0 0
        %6306 = vmatprep.subr.bf16.mxu0 0
        %6307 = vmatpush2.bf16.msra.mxu0 0
        %6308 = vmatprep.subr.bf16.mxu0 0
        %6309 = vmatpush2.bf16.msra.mxu0 0
        %6310 = vmatprep.subr.bf16.mxu0 0
        %6311 = vmatpush2.bf16.msra.mxu0 0
        %6312 = vmatprep.subr.bf16.mxu0 0
        %6313 = vmatpush2.bf16.msra.mxu0 0
        %6314 = vmatprep.mubr.bf16.mxu0 0
        %6315 = vmatmul.mubr.bf16.gmra.mxu0 %v6277
        %v6316 = vpop.f32.mrf.mxu0
        %v6317 = vadd.f32 0.0, %v6316
        %v6318 = vpop.f32.mrf.mxu0
        %v6319 = vpop.f32.mrf.mxu0
        %v6320 = vpop.f32.mrf.mxu0
        %6321 = vdwg.mxu0
        %v6323 = vsel %vm4729, %v6228, 0
        %v6326 = vsel %vm4781, %v5986, 0
        %6328 = vmatprep.subr.bf16.mxu0 0
        %6329 = vmatpush1.bf16.msra.mxu0 0
        %6330 = vmatprep.subr.bf16.mxu0 0
        %6331 = vmatpush1.bf16.msra.mxu0 0
        %6332 = vmatprep.subr.bf16.mxu0 0
        %6333 = vmatpush1.bf16.msra.mxu0 0
        %6334 = vmatprep.subr.bf16.mxu0 0
        %6335 = vmatpush1.bf16.msra.mxu0 0
        %6336 = vmatprep.subr.bf16.mxu0 0
        %6337 = vmatpush1.bf16.msra.mxu0 0
        %6338 = vmatprep.subr.bf16.mxu0 0
        %6339 = vmatpush1.bf16.msra.mxu0 0
        %6340 = vmatprep.subr.bf16.mxu0 0
        %6341 = vmatpush1.bf16.msra.mxu0 0
        %6342 = vmatprep.subr.bf16.mxu0 0
        %6343 = vmatpush1.bf16.msra.mxu0 %v6326
        %6344 = vmatprep.subr.bf16.mxu0 0
        %6345 = vmatpush2.bf16.msra.mxu0 0
        %6346 = vmatprep.subr.bf16.mxu0 0
        %6347 = vmatpush2.bf16.msra.mxu0 0
        %6348 = vmatprep.subr.bf16.mxu0 0
        %6349 = vmatpush2.bf16.msra.mxu0 0
        %6350 = vmatprep.subr.bf16.mxu0 0
        %6351 = vmatpush2.bf16.msra.mxu0 0
        %6352 = vmatprep.subr.bf16.mxu0 0
        %6353 = vmatpush2.bf16.msra.mxu0 0
        %6354 = vmatprep.subr.bf16.mxu0 0
        %6355 = vmatpush2.bf16.msra.mxu0 0
        %6356 = vmatprep.subr.bf16.mxu0 0
        %6357 = vmatpush2.bf16.msra.mxu0 0
        %6358 = vmatprep.subr.bf16.mxu0 0
        %6359 = vmatpush2.bf16.msra.mxu0 0
        %6360 = vmatprep.mubr.bf16.mxu0 0
        %6361 = vmatmul.mubr.bf16.gmra.mxu0 %v6323
        %v6362 = vpop.f32.mrf.mxu0
        %v6363 = vadd.f32 0.0, %v6362
        %v6364 = vpop.f32.mrf.mxu0
        %v6365 = vpop.f32.mrf.mxu0
        %v6366 = vpop.f32.mrf.mxu0
        %6367 = vdwg.mxu0
        %v6369 = vsel %vm4729, %v6229, 0
        %v6372 = vsel %vm4781, %v5987, 0
        %6374 = vmatprep.subr.bf16.mxu0 0
        %6375 = vmatpush1.bf16.msra.mxu0 0
        %6376 = vmatprep.subr.bf16.mxu0 0
        %6377 = vmatpush1.bf16.msra.mxu0 0
        %6378 = vmatprep.subr.bf16.mxu0 0
        %6379 = vmatpush1.bf16.msra.mxu0 0
        %6380 = vmatprep.subr.bf16.mxu0 0
        %6381 = vmatpush1.bf16.msra.mxu0 0
        %6382 = vmatprep.subr.bf16.mxu0 0
        %6383 = vmatpush1.bf16.msra.mxu0 0
        %6384 = vmatprep.subr.bf16.mxu0 0
        %6385 = vmatpush1.bf16.msra.mxu0 0
        %6386 = vmatprep.subr.bf16.mxu0 0
        %6387 = vmatpush1.bf16.msra.mxu0 0
        %6388 = vmatprep.subr.bf16.mxu0 0
        %6389 = vmatpush1.bf16.msra.mxu0 %v6372
        %6390 = vmatprep.subr.bf16.mxu0 0
        %6391 = vmatpush2.bf16.msra.mxu0 0
        %6392 = vmatprep.subr.bf16.mxu0 0
        %6393 = vmatpush2.bf16.msra.mxu0 0
        %6394 = vmatprep.subr.bf16.mxu0 0
        %6395 = vmatpush2.bf16.msra.mxu0 0
        %6396 = vmatprep.subr.bf16.mxu0 0
        %6397 = vmatpush2.bf16.msra.mxu0 0
        %6398 = vmatprep.subr.bf16.mxu0 0
        %6399 = vmatpush2.bf16.msra.mxu0 0
        %6400 = vmatprep.subr.bf16.mxu0 0
        %6401 = vmatpush2.bf16.msra.mxu0 0
        %6402 = vmatprep.subr.bf16.mxu0 0
        %6403 = vmatpush2.bf16.msra.mxu0 0
        %6404 = vmatprep.subr.bf16.mxu0 0
        %6405 = vmatpush2.bf16.msra.mxu0 0
        %6406 = vmatprep.mubr.bf16.mxu0 0
        %6407 = vmatmul.mubr.bf16.gmra.mxu0 %v6369
        %v6408 = vpop.f32.mrf.mxu0
        %v6409 = vadd.f32 0.0, %v6408
        %v6410 = vpop.f32.mrf.mxu0
        %v6411 = vpop.f32.mrf.mxu0
        %v6412 = vpop.f32.mrf.mxu0
        %6413 = vdwg.mxu0
        %v6414 = vcombine.low %v6271, %v6363
        %v6415 = vcombine.high %v6271, %v6363
        %v6417 = vunpack.c.l.s4 1983009808
        %v6418 = vunpack.c.0.s8 %v6417
        %v6419 = vlaneseq
        %v6420 = vshrl.u32 %v6419, 7
        %v6421 = vsub.s32 %v6418, %v6420
        %v6422 = vrot.slane %v6414, %v6421
        %v6424 = vunpack.c.l.s4 1983009808
        %v6425 = vunpack.c.0.s8 %v6424
        %v6426 = vlaneseq
        %v6427 = vshrl.u32 %v6426, 7
        %v6428 = vsub.s32 %v6425, %v6427
        %v6429 = vrot.slane %v6415, %v6428
        %v6430 = vcombine.low %v6317, %v6409
        %v6431 = vcombine.high %v6317, %v6409
        %v6433 = vunpack.c.l.s4 1983009808
        %v6434 = vunpack.c.0.s8 %v6433
        %v6435 = vlaneseq
        %v6436 = vshrl.u32 %v6435, 7
        %v6437 = vsub.s32 %v6434, %v6436
        %v6438 = vrot.slane %v6430, %v6437
        %v6440 = vunpack.c.l.s4 1983009808
        %v6441 = vunpack.c.0.s8 %v6440
        %v6442 = vlaneseq
        %v6443 = vshrl.u32 %v6442, 7
        %v6444 = vsub.s32 %v6441, %v6443
        %v6445 = vrot.slane %v6431, %v6444
        %v6446 = vcombine.low %v6422, %v6438
        %v6447 = vcombine.high %v6422, %v6438
        %v6449 = vunpack.c.l.s4 1934713408
        %v6450 = vunpack.c.0.s8 %v6449
        %v6451 = vlaneseq
        %v6452 = vshrl.u32 %v6451, 7
        %v6453 = vsub.s32 %v6450, %v6452
        %v6454 = vrot.slane %v6446, %v6453
        %v6456 = vunpack.c.l.s4 1934713408
        %v6457 = vunpack.c.0.s8 %v6456
        %v6458 = vlaneseq
        %v6459 = vshrl.u32 %v6458, 7
        %v6460 = vsub.s32 %v6457, %v6459
        %v6461 = vrot.slane %v6447, %v6460
        %v6462 = vcombine.low %v6429, %v6445
        %v6463 = vcombine.high %v6429, %v6445
        %v6465 = vunpack.c.l.s4 1934713408
        %v6466 = vunpack.c.0.s8 %v6465
        %v6467 = vlaneseq
        %v6468 = vshrl.u32 %v6467, 7
        %v6469 = vsub.s32 %v6466, %v6468
        %v6470 = vrot.slane %v6462, %v6469
        %v6472 = vunpack.c.l.s4 1934713408
        %v6473 = vunpack.c.0.s8 %v6472
        %v6474 = vlaneseq
        %v6475 = vshrl.u32 %v6474, 7
        %v6476 = vsub.s32 %v6473, %v6475
        %v6477 = vrot.slane %v6463, %v6476
        %v6478 = vcombine.high %v6454, 0.0
        %v6479 = vcombine.high %v6461, 0.0
        %v6480 = vcombine.high %v6470, 0.0
        %v6481 = vcombine.high %v6477, 0.0
        %v6482 = vcombine.low %v6454, %v6461
        %v6484 = vunpack.c.l.s4 1983009808
        %v6485 = vunpack.c.0.s8 %v6484
        %v6486 = vlaneseq
        %v6487 = vshrl.u32 %v6486, 7
        %v6488 = vsub.s32 %v6485, %v6487
        %v6489 = vrot.slane %v6482, %v6488
        %v6490 = vcombine.low %v6478, %v6479
        %v6492 = vunpack.c.l.s4 1983009808
        %v6493 = vunpack.c.0.s8 %v6492
        %v6494 = vlaneseq
        %v6495 = vshrl.u32 %v6494, 7
        %v6496 = vsub.s32 %v6493, %v6495
        %v6497 = vrot.slane %v6490, %v6496
        %v6498 = vcombine.low %v6470, %v6477
        %v6500 = vunpack.c.l.s4 1983009808
        %v6501 = vunpack.c.0.s8 %v6500
        %v6502 = vlaneseq
        %v6503 = vshrl.u32 %v6502, 7
        %v6504 = vsub.s32 %v6501, %v6503
        %v6505 = vrot.slane %v6498, %v6504
        %v6506 = vcombine.low %v6480, %v6481
        %v6508 = vunpack.c.l.s4 1983009808
        %v6509 = vunpack.c.0.s8 %v6508
        %v6510 = vlaneseq
        %v6511 = vshrl.u32 %v6510, 7
        %v6512 = vsub.s32 %v6509, %v6511
        %v6513 = vrot.slane %v6506, %v6512
        %v6514 = vcombine.low %v6489, %v6497
        %v6515 = vcombine.high %v6489, %v6497
        %v6517 = vunpack.c.l.s4 1934713408
        %v6518 = vunpack.c.0.s8 %v6517
        %v6519 = vlaneseq
        %v6520 = vshrl.u32 %v6519, 7
        %v6521 = vsub.s32 %v6518, %v6520
        %v6522 = vrot.slane %v6514, %v6521
        %v6524 = vunpack.c.l.s4 1934713408
        %v6525 = vunpack.c.0.s8 %v6524
        %v6526 = vlaneseq
        %v6527 = vshrl.u32 %v6526, 7
        %v6528 = vsub.s32 %v6525, %v6527
        %v6529 = vrot.slane %v6515, %v6528
        %v6530 = vcombine.low %v6505, %v6513
        %v6531 = vcombine.high %v6505, %v6513
        %v6533 = vunpack.c.l.s4 1934713408
        %v6534 = vunpack.c.0.s8 %v6533
        %v6535 = vlaneseq
        %v6536 = vshrl.u32 %v6535, 7
        %v6537 = vsub.s32 %v6534, %v6536
        %v6538 = vrot.slane %v6530, %v6537
        %v6540 = vunpack.c.l.s4 1934713408
        %v6541 = vunpack.c.0.s8 %v6540
        %v6542 = vlaneseq
        %v6543 = vshrl.u32 %v6542, 7
        %v6544 = vsub.s32 %v6541, %v6543
        %v6545 = vrot.slane %v6531, %v6544
        %v6546 = vcombine.low %v6522, %v6538
        %v6547 = vcombine.high %v6522, %v6538
        %v6548 = vcombine.low %v6529, %v6545
        %v6549 = vcombine.high %v6529, %v6545
        %6551 = vrot.lane.b32.xlu0 %v6547, 8
        %v6552 = vpop.permute.xlu0 %6551
        %6555 = vrot.lane.b32.xlu0 %v6548, 16
        %v6556 = vpop.permute.xlu0 %6555
        %6559 = vrot.lane.b32.xlu0 %v6549, 24
        %v6560 = vpop.permute.xlu0 %6559
        %v6562 = vsel %vm1596, %v6546, %v6552
        %v6563 = vsel %vm2169, %v6562, %v6556
        %v6564 = vsel %vm2171, %v6563, %v6560
        %v6565 = vpack.c.bf16 %v6564, %v5113
        %v6566 = vld [vmem:[%s981] sm:$0xf]
        %v6567 = vld [vmem:[%s981 + $0x4] sm:$0xf]
        %v6568 = vld [vmem:[%s981 + $0x8] sm:$0xf]
        %v6569 = vld [vmem:[%s981 + $0xc] sm:$0xf]
        %v6570 = vld [vmem:[%s984] sm:$0x1]
        %v6572 = vlaneseq
        %v6573 = vshrl.u32 %v6572, 7
        %v6574 = vsub.s32 0, %v6573
        %v6575 = vrot.slane %v6570, %v6574
        %v6581 = vunpack.c.l.b16 %v6566
        %v6582 = vunpack.c.l.b16 %v6567
        %v6583 = vunpack.c.l.b16 %v6568
        %v6584 = vunpack.c.l.b16 %v6569
        %v6585 = vpack.c.b16 %v6582, %v6581
        %v6586 = vpack.c.b16 %v6584, %v6583
        %v6590 = vsel %vm1025, %v6565, 0
        %6592 = vmatprep.subr.bf16.mxu0 0
        %6593 = vmatpush1.bf16.msra.mxu0 0
        %6594 = vmatprep.subr.bf16.mxu0 0
        %6595 = vmatpush1.bf16.msra.mxu0 0
        %6596 = vmatprep.subr.bf16.mxu0 0
        %6597 = vmatpush1.bf16.msra.mxu0 0
        %6598 = vmatprep.subr.bf16.mxu0 0
        %6599 = vmatpush1.bf16.msra.mxu0 0
        %6600 = vmatprep.subr.bf16.mxu0 0
        %6601 = vmatpush1.bf16.msra.mxu0 0
        %6602 = vmatprep.subr.bf16.mxu0 0
        %6603 = vmatpush1.bf16.msra.mxu0 0
        %6604 = vmatprep.subr.bf16.mxu0 0
        %6605 = vmatpush1.bf16.msra.mxu0 %v6586
        %6606 = vmatprep.subr.bf16.mxu0 0
        %6607 = vmatpush1.bf16.msra.mxu0 %v6585
        %6608 = vmatprep.subr.bf16.mxu0 0
        %6609 = vmatpush2.bf16.msra.mxu0 0
        %6610 = vmatprep.subr.bf16.mxu0 0
        %6611 = vmatpush2.bf16.msra.mxu0 0
        %6612 = vmatprep.subr.bf16.mxu0 0
        %6613 = vmatpush2.bf16.msra.mxu0 0
        %6614 = vmatprep.subr.bf16.mxu0 0
        %6615 = vmatpush2.bf16.msra.mxu0 0
        %6616 = vmatprep.subr.bf16.mxu0 0
        %6617 = vmatpush2.bf16.msra.mxu0 0
        %6618 = vmatprep.subr.bf16.mxu0 0
        %6619 = vmatpush2.bf16.msra.mxu0 0
        %6620 = vmatprep.subr.bf16.mxu0 0
        %6621 = vmatpush2.bf16.msra.mxu0 0
        %6622 = vmatprep.subr.bf16.mxu0 0
        %6623 = vmatpush2.bf16.msra.mxu0 0
        %6624 = vmatprep.mubr.bf16.mxu0 0
        %6625 = vmatmul.mubr.bf16.gmra.mxu0 %v6590
        %v6626 = vpop.f32.mrf.mxu0
        %v6627 = vadd.f32 %v6575, %v6626
        %v6628 = vpop.f32.mrf.mxu0
        %v6629 = vpop.f32.mrf.mxu0
        %v6630 = vadd.f32 %v6575, %v6629
        %v6631 = vpop.f32.mrf.mxu0
        %6632 = vdwg.mxu0
        %v6633 = vadd.f32 %v3278, %v6627
        %v6634 = vadd.f32 %v3279, %v6630
        %v6635 = vsel %vm1025, %v6633, 0.0
        %6636 = vadd.xlane.f32.xlu0 %v6635
        %v6637 = vpop.xlane.xlu0 %6636
        %v6638 = vsel %vm1025, %v6634, 0.0
        %6639 = vadd.xlane.f32.xlu0 %v6638
        %v6640 = vpop.xlane.xlu0 %6639
        %v6641 = vmul.f32 %v6637, %v1032
        %v6642 = vmul.f32 %v6640, %v1032
        %v6643 = vsub.f32 %v6633, %v6641
        %v6644 = vsub.f32 %v6634, %v6642
        %v6645 = vmul.f32 %v6643, %v6643
        %v6646 = vmul.f32 %v6644, %v6644
        %v6647 = vsel %vm1025, %v6645, 0.0
        %6648 = vadd.xlane.f32.xlu0 %v6647
        %v6649 = vpop.xlane.xlu0 %6648
        %v6650 = vsel %vm1025, %v6646, 0.0
        %6651 = vadd.xlane.f32.xlu0 %v6650
        %v6652 = vpop.xlane.xlu0 %6651
        %v6653 = vmul.f32 %v6649, %v1032
        %v6654 = vmul.f32 %v6652, %v1032
        %v6655 = vadd.f32 %v6653, 1e-05
        %v6656 = vadd.f32 %v6654, 1e-05
        %v6657 = vrsqrt.pop %v6655
        %v6658 = vrsqrt.pop %v6656
        %v6659 = vmul.f32 %v6643, %v6657
        %v6660 = vmul.f32 %v6644, %v6658
        %v6661 = vlaneseq
        %v6662 = vshrl.u32 %v6661, 7
        %v6663 = vsub.s32 2, %v6662
        %v6664 = vrot.slane %v1018, %v6663
        %v6665 = vmul.f32 %v6659, %v6664
        %v6666 = vmul.f32 %v6660, %v6664
        %v6667 = vlaneseq
        %v6668 = vshrl.u32 %v6667, 7
        %v6669 = vsub.s32 2, %v6668
        %v6670 = vrot.slane %v1019, %v6669
        %v6671 = vadd.f32 %v6665, %v6670
        %v6672 = vadd.f32 %v6666, %v6670
        %v6673 = vpack.c.bf16 %v6672, %v6671
        %v6674 = vld [vmem:[%s989] sm:$0xf]
        %v6675 = vld [vmem:[%s989 + $0x4] sm:$0xf]
        %v6676 = vld [vmem:[%s989 + $0x8] sm:$0xf]
        %v6677 = vld [vmem:[%s989 + $0xc] sm:$0xf]
        %v6678 = vld [vmem:[%s992] sm:$0x1]
        %v6680 = vlaneseq
        %v6681 = vshrl.u32 %v6680, 7
        %v6682 = vsub.s32 0, %v6681
        %v6683 = vrot.slane %v6678, %v6682
        %v6689 = vunpack.c.l.b16 %v6674
        %v6690 = vunpack.c.l.b16 %v6675
        %v6691 = vunpack.c.l.b16 %v6676
        %v6692 = vunpack.c.l.b16 %v6677
        %v6693 = vpack.c.b16 %v6690, %v6689
        %v6694 = vpack.c.b16 %v6692, %v6691
        %v6698 = vsel %vm1025, %v6673, 0
        %6700 = vmatprep.subr.bf16.mxu0 0
        %6701 = vmatpush1.bf16.msra.mxu0 0
        %6702 = vmatprep.subr.bf16.mxu0 0
        %6703 = vmatpush1.bf16.msra.mxu0 0
        %6704 = vmatprep.subr.bf16.mxu0 0
        %6705 = vmatpush1.bf16.msra.mxu0 0
        %6706 = vmatprep.subr.bf16.mxu0 0
        %6707 = vmatpush1.bf16.msra.mxu0 0
        %6708 = vmatprep.subr.bf16.mxu0 0
        %6709 = vmatpush1.bf16.msra.mxu0 0
        %6710 = vmatprep.subr.bf16.mxu0 0
        %6711 = vmatpush1.bf16.msra.mxu0 0
        %6712 = vmatprep.subr.bf16.mxu0 0
        %6713 = vmatpush1.bf16.msra.mxu0 %v6694
        %6714 = vmatprep.subr.bf16.mxu0 0
        %6715 = vmatpush1.bf16.msra.mxu0 %v6693
        %6716 = vmatprep.subr.bf16.mxu0 0
        %6717 = vmatpush2.bf16.msra.mxu0 0
        %6718 = vmatprep.subr.bf16.mxu0 0
        %6719 = vmatpush2.bf16.msra.mxu0 0
        %6720 = vmatprep.subr.bf16.mxu0 0
        %6721 = vmatpush2.bf16.msra.mxu0 0
        %6722 = vmatprep.subr.bf16.mxu0 0
        %6723 = vmatpush2.bf16.msra.mxu0 0
        %6724 = vmatprep.subr.bf16.mxu0 0
        %6725 = vmatpush2.bf16.msra.mxu0 0
        %6726 = vmatprep.subr.bf16.mxu0 0
        %6727 = vmatpush2.bf16.msra.mxu0 0
        %6728 = vmatprep.subr.bf16.mxu0 0
        %6729 = vmatpush2.bf16.msra.mxu0 0
        %6730 = vmatprep.subr.bf16.mxu0 0
        %6731 = vmatpush2.bf16.msra.mxu0 0
        %6732 = vmatprep.mubr.bf16.mxu0 0
        %6733 = vmatmul.mubr.bf16.gmra.mxu0 %v6698
        %v6734 = vpop.f32.mrf.mxu0
        %v6735 = vadd.f32 %v6683, %v6734
        %v6736 = vpop.f32.mrf.mxu0
        %v6737 = vpop.f32.mrf.mxu0
        %v6738 = vadd.f32 %v6683, %v6737
        %v6739 = vpop.f32.mrf.mxu0
        %6740 = vdwg.mxu0
        %v6741 = vmax.f32 %v6735, 0.0
        %v6742 = vmax.f32 %v6738, 0.0
        %v6743 = vpack.c.bf16 %v6742, %v6741
        %v6744 = vld [vmem:[%s997] sm:$0xf]
        %v6745 = vld [vmem:[%s997 + $0x4] sm:$0xf]
        %v6746 = vld [vmem:[%s997 + $0x8] sm:$0xf]
        %v6747 = vld [vmem:[%s997 + $0xc] sm:$0xf]
        %v6748 = vld [vmem:[%s997 + $0x10] sm:$0xf]
        %v6749 = vld [vmem:[%s997 + $0x14] sm:$0xf]
        %v6750 = vld [vmem:[%s997 + $0x18] sm:$0xf]
        %v6751 = vld [vmem:[%s997 + $0x1c] sm:$0xf]
        %v6752 = vld [vmem:[%s997 + $0x20] sm:$0xf]
        %v6753 = vld [vmem:[%s997 + $0x24] sm:$0xf]
        %v6754 = vld [vmem:[%s997 + $0x28] sm:$0xf]
        %v6755 = vld [vmem:[%s997 + $0x2c] sm:$0xf]
        %v6756 = vld [vmem:[%s997 + $0x30] sm:$0xf]
        %v6757 = vld [vmem:[%s997 + $0x34] sm:$0xf]
        %v6758 = vld [vmem:[%s997 + $0x38] sm:$0xf]
        %v6759 = vld [vmem:[%s997 + $0x3c] sm:$0xf]
        %v6760 = vld [vmem:[%s1000] sm:$0x1]
        %v6762 = vlaneseq
        %v6763 = vshrl.u32 %v6762, 7
        %v6764 = vsub.s32 0, %v6763
        %v6765 = vrot.slane %v6760, %v6764
        %v6783 = vunpack.c.l.b16 %v6744
        %v6784 = vunpack.c.l.b16 %v6745
        %v6785 = vunpack.c.l.b16 %v6746
        %v6786 = vunpack.c.l.b16 %v6747
        %v6787 = vunpack.c.l.b16 %v6748
        %v6788 = vunpack.c.l.b16 %v6749
        %v6789 = vunpack.c.l.b16 %v6750
        %v6790 = vunpack.c.l.b16 %v6751
        %v6791 = vunpack.c.l.b16 %v6752
        %v6792 = vunpack.c.l.b16 %v6753
        %v6793 = vunpack.c.l.b16 %v6754
        %v6794 = vunpack.c.l.b16 %v6755
        %v6795 = vunpack.c.l.b16 %v6756
        %v6796 = vunpack.c.l.b16 %v6757
        %v6797 = vunpack.c.l.b16 %v6758
        %v6798 = vunpack.c.l.b16 %v6759
        %v6799 = vpack.c.b16 %v6784, %v6783
        %v6800 = vpack.c.b16 %v6786, %v6785
        %v6801 = vpack.c.b16 %v6788, %v6787
        %v6802 = vpack.c.b16 %v6790, %v6789
        %v6803 = vpack.c.b16 %v6792, %v6791
        %v6804 = vpack.c.b16 %v6794, %v6793
        %v6805 = vpack.c.b16 %v6796, %v6795
        %v6806 = vpack.c.b16 %v6798, %v6797
        %6815 = vmatprep.subr.bf16.mxu0 0
        %6816 = vmatpush1.bf16.msra.mxu0 %v6806
        %6817 = vmatprep.subr.bf16.mxu0 0
        %6818 = vmatpush1.bf16.msra.mxu0 %v6805
        %6819 = vmatprep.subr.bf16.mxu0 0
        %6820 = vmatpush1.bf16.msra.mxu0 %v6804
        %6821 = vmatprep.subr.bf16.mxu0 0
        %6822 = vmatpush1.bf16.msra.mxu0 %v6803
        %6823 = vmatprep.subr.bf16.mxu0 0
        %6824 = vmatpush1.bf16.msra.mxu0 %v6802
        %6825 = vmatprep.subr.bf16.mxu0 0
        %6826 = vmatpush1.bf16.msra.mxu0 %v6801
        %6827 = vmatprep.subr.bf16.mxu0 0
        %6828 = vmatpush1.bf16.msra.mxu0 %v6800
        %6829 = vmatprep.subr.bf16.mxu0 0
        %6830 = vmatpush1.bf16.msra.mxu0 %v6799
        %6831 = vmatprep.subr.bf16.mxu0 0
        %6832 = vmatpush2.bf16.msra.mxu0 0
        %6833 = vmatprep.subr.bf16.mxu0 0
        %6834 = vmatpush2.bf16.msra.mxu0 0
        %6835 = vmatprep.subr.bf16.mxu0 0
        %6836 = vmatpush2.bf16.msra.mxu0 0
        %6837 = vmatprep.subr.bf16.mxu0 0
        %6838 = vmatpush2.bf16.msra.mxu0 0
        %6839 = vmatprep.subr.bf16.mxu0 0
        %6840 = vmatpush2.bf16.msra.mxu0 0
        %6841 = vmatprep.subr.bf16.mxu0 0
        %6842 = vmatpush2.bf16.msra.mxu0 0
        %6843 = vmatprep.subr.bf16.mxu0 0
        %6844 = vmatpush2.bf16.msra.mxu0 0
        %6845 = vmatprep.subr.bf16.mxu0 0
        %6846 = vmatpush2.bf16.msra.mxu0 0
        %6847 = vmatprep.mubr.bf16.mxu0 0
        %6848 = vmatmul.mubr.bf16.gmra.mxu0 %v6743
        %v6849 = vpop.f32.mrf.mxu0
        %v6850 = vadd.f32 %v6765, %v6849
        %v6851 = vpop.f32.mrf.mxu0
        %v6852 = vpop.f32.mrf.mxu0
        %v6853 = vadd.f32 %v6765, %v6852
        %v6854 = vpop.f32.mrf.mxu0
        %6855 = vdwg.mxu0
        %v6856 = vadd.f32 %v6633, %v6850
        %v6857 = vadd.f32 %v6634, %v6853
        %6858 = vst.msk [vmem:[#allocation10] sm:$0xff] %vm1025, %v6856
        %6859 = vst.msk [vmem:[#allocation10 + $0x8] sm:$0xff] %vm1025, %v6857
        // Predicated region
        $region121: #{tpu_custom_call.1} parent=99 // pred_check
          %p6860 = pneg %p587
        $region122: #{tpu_custom_call.1} parent=99 // pred_check_branch
          %6862 = sbr.rel (%p6860) target = $region124
        $region123: #{tpu_custom_call.1} parent=99 // pred_region
          %s6863 = smul.u32 2, %s41
          %s6865 = ssub.s32 256, 256
          %6866 = vsyncadd [#allocation4], %s6865
          %s6867 = smul.addr %s6863, 128
          %s6868 = scalar_lea.hbm %s20, %s6867
          %s6869 = sshll.u32 [#allocation10], 4
          %s6870 = int_to_ptr.vmem [resolvable:$true] %s6869
          %6875 = dma.vmem_to_hbm [thread:$0]  %s6870, 256, %s6868, [#allocation4], 128, 128, 8
        $region124: #{tpu_custom_call.1} parent=99 // pred_fallthru
          _
        // Predicated region
        $region125: #{tpu_custom_call.1} parent=99 // pred_check
          %p6876 = pneg %p587
        $region126: #{tpu_custom_call.1} parent=99 // pred_check_branch
          %6878 = sbr.rel (%p6876) target = $region128
        $region127: #{tpu_custom_call.1} parent=99 // pred_region
          %6879 = dma.done [#allocation4], 256
        $region128: #{tpu_custom_call.1} parent=99 // pred_fallthru
          _
      $region100: #{tpu_custom_call.1} parent=5 // pred_fallthru
        _
      %p6880 = scmp.le.s32.totalorder 2, %s32
      // Predicated region
      $region129: #{tpu_custom_call.1} parent=5 // pred_check
        %p6881 = pneg %p6880
      $region130: #{tpu_custom_call.1} parent=5 // pred_check_branch
        %6883 = sbr.rel (%p6881) target = $region132
      $region131: #{tpu_custom_call.1} parent=5 // pred_region
        %s6884 = ssub.s32 %s32, 2
      $region132: #{tpu_custom_call.1} parent=5 // pred_fallthru
        _
    $region6: #{tpu_custom_call.1} parent=1 // loop_footer
      %s36 = sadd.s32 1, %s32
    $region7: #{tpu_custom_call.1} parent=1 // loop_footer_branch
      %31 = sbr.rel target = $region3
    $region8: #{tpu_custom_call.1} parent=1 // loop_exit
      _
    %6885 = vsyncpa [#allocation3], 1
    %s6886 = scalar_lea.sflag [#allocation3], 1
    %6887 = vsyncpa %s6886, 1
    %6888 = vsyncpa [#allocation6], 1
    %6889 = vsyncpa [#allocation9], 1
    %s6890 = scalar_lea.sflag [#allocation9], 1
    %6891 = vsyncpa %s6890, 1
    %6892 = vsyncpa [#allocation4], 1
    %s6893 = scalar_lea.sflag [#allocation4], 1
    %6894 = vsyncpa %s6893, 1

</llo_original>
